<compile_context>
chip_gen: v7x
topology: tpu7x:2x2x1
jax: 0.10.0
libtpu: 0.0.40
codegen_flags: <defaults>
</compile_context>

<pallas_src>
import functools

import numpy as np
import jax
import jax.numpy as jnp
from jax import lax
from jax.experimental import pallas as pl
from jax.experimental.pallas import tpu as pltpu

EPS = 1e-5                              # nn.BatchNorm2d default eps
VMEM_LIMIT_BYTES = 48 * 1024 * 1024     # sized below v7x's 64 MiB physical VMEM


def _round_up(x, m):
    return ((x + m - 1) // m) * m


# ------------------------------ Pallas kernels ------------------------------ #

def _head_kernel(x_ref, w_ref, y_ref, sum_ref, sq_ref, *, mxu_dtype):
    """All branch-head 1x1 convs (+ optional shortcut conv) as one matmul.

    x_ref: (mt, Cin) f32 tile,  w_ref: (Cin, Call) mxu_dtype,
    y_ref: (mt, Call) raw conv output (f32),
    sum_ref/sq_ref: (1, Call) per-channel sum / sum-of-squares accumulators
    (revisited blocks across the row grid -> exact batch statistics).
    """
    i = pl.program_id(0)
    y = jnp.dot(x_ref[...].astype(mxu_dtype), w_ref[...],
                preferred_element_type=jnp.float32)
    y_ref[...] = y

    @pl.when(i == 0)
    def _init():
        sum_ref[...] = jnp.zeros_like(sum_ref)
        sq_ref[...] = jnp.zeros_like(sq_ref)

    sum_ref[...] += jnp.sum(y, axis=0, keepdims=True)
    sq_ref[...] += jnp.sum(y * y, axis=0, keepdims=True)


def _conv3_kernel(scale_ref, shift_ref, w_ref, yprev_hbm, mask_hbm,
                  y_ref, sum_ref, sq_ref, xwin_ref, mwin_ref, sems,
                  *, halo, wp, mxu_dtype):
    """Fused [BN+ReLU of previous stage] -> 3x3 conv -> [BN stats of this stage].

    The previous stage's *raw* conv output lives in HBM in the padded-flattened
    layout with `halo` extra zero rows on both ends (memory_space=ANY).  One
    manual DMA brings the halo'd window [r0, r0+mt+2*halo) into VMEM; the nine
    3x3 taps are the nine constant row offsets dh*wp+dw of that window,
    concatenated along channels and contracted with a single (9*Cp, Cout)
    matmul on the MXU.
    """
    i = pl.program_id(0)
    mt = y_ref.shape[0]
    rows = xwin_ref.shape[0]                       # mt + 2*halo
    r0 = pl.multiple_of(i * mt, 8)

    cp_x = pltpu.make_async_copy(yprev_hbm.at[pl.ds(r0, rows)], xwin_ref, sems.at[0])
    cp_m = pltpu.make_async_copy(mask_hbm.at[pl.ds(r0, rows)], mwin_ref, sems.at[1])
    cp_x.start()
    cp_m.start()
    cp_x.wait()
    cp_m.wait()

    m = mwin_ref[...]                                              # (rows, 1)
    # BN + ReLU of the previous stage, then zero the spatial-padding rows.
    a = jnp.maximum(xwin_ref[...] * scale_ref[...] + shift_ref[...], 0.0) * m
    taps = [a[halo + dh * wp + dw: halo + dh * wp + dw + mt, :]
            for dh in (-1, 0, 1) for dw in (-1, 0, 1)]
    col = jnp.concatenate(taps, axis=1).astype(mxu_dtype)          # (mt, 9*Cp)
    y = jnp.dot(col, w_ref[...], preferred_element_type=jnp.float32)
    y = y * m[halo:halo + mt, :]                                   # zero border rows
    y_ref[...] = y

    @pl.when(i == 0)
    def _init():
        sum_ref[...] = jnp.zeros_like(sum_ref)
        sq_ref[...] = jnp.zeros_like(sq_ref)

    sum_ref[...] += jnp.sum(y, axis=0, keepdims=True)
    sq_ref[...] += jnp.sum(y * y, axis=0, keepdims=True)


def _tail_kernel(*refs, b1, c_sc, identity, mxu_dtype):
    """BN+ReLU of the three branch outputs, conv_linear (+bias), shortcut,
    residual add and final ReLU -- all fused into one lane-dense output store."""
    if identity:
        (y0_ref, yb2_ref, yb3_ref, xsc_ref,
         s1_ref, h1_ref, s2_ref, h2_ref, s3_ref, h3_ref,
         wl_ref, bias_ref, o_ref) = refs
    else:
        (y0_ref, yb2_ref, yb3_ref,
         s1_ref, h1_ref, s2_ref, h2_ref, s3_ref, h3_ref, ssc_ref, hsc_ref,
         wl_ref, bias_ref, o_ref) = refs

    y0 = y0_ref[...]
    a1 = jnp.maximum(y0[:, :b1] * s1_ref[...] + h1_ref[...], 0.0)
    a2 = jnp.maximum(yb2_ref[...] * s2_ref[...] + h2_ref[...], 0.0)
    a3 = jnp.maximum(yb3_ref[...] * s3_ref[...] + h3_ref[...], 0.0)
    cat = jnp.concatenate([a1, a2, a3], axis=1).astype(mxu_dtype)
    lin = jnp.dot(cat, wl_ref[...], preferred_element_type=jnp.float32)
    lin = lin + bias_ref[...]
    if identity:
        sc = xsc_ref[...]
    else:
        sc = y0[:, c_sc:] * ssc_ref[...] + hsc_ref[...]            # BN, no ReLU
    o_ref[...] = jnp.maximum(lin + sc, 0.0)


# ----------------------------------- glue ----------------------------------- #

def _bn_scale_shift(s, sq, gamma, beta, count):
    """Fold training-mode BN into per-channel scale/shift from (sum, sumsq)."""
    mean = s / count
    var = jnp.maximum(sq / count - mean * mean, 0.0)
    scale = gamma.reshape(1, -1) * lax.rsqrt(var + EPS)
    shift = beta.reshape(1, -1) - mean * scale
    return scale, shift


def _w1x1(w):        # torch (O, I, 1, 1) -> (I, O)
    return jnp.transpose(w[:, :, 0, 0], (1, 0))


def _w3x3_col(w):    # torch (O, I, 3, 3) -> (9*I, O), tap-major (dh, dw)
    o, i = w.shape[0], w.shape[1]
    return jnp.transpose(w, (2, 3, 1, 0)).reshape(9 * i, o)


class InceptionAResPallas:
    """Pallas implementation of Inception_A_res (deterministic synthetic params).

    BatchNorm runs in training mode (batch statistics over N*H*W), matching the
    default behaviour of a fresh nn.BatchNorm2d in the PyTorch module.
    """

    def __init__(self, key, in_channels, b1, b2_n1, b2_n3, b3_n1, b3_n3_1,
                 b3_n3_2, n1_linear, *, block_rows=2048, mxu_dtype=jnp.bfloat16):
        ks = jax.random.split(key, 16)

        def conv_w(k, cout, cin, kh, kw):
            fan_in = cin * kh * kw
            return (jax.random.normal(k, (cout, cin, kh, kw), jnp.float32)
                    * np.sqrt(2.0 / fan_in))

        def bn_p(k, c):
            kg, kb = jax.random.split(k)
            return (1.0 + 0.1 * jax.random.normal(kg, (c,), jnp.float32),
                    0.1 * jax.random.normal(kb, (c,), jnp.float32))

        (self.in_channels, self.b1, self.b2_n1, self.b2_n3, self.b3_n1,
         self.b3_n3_1, self.b3_n3_2, self.n1_linear) = (
            in_channels, b1, b2_n1, b2_n3, b3_n1, b3_n3_1, b3_n3_2, n1_linear)
        self.block_rows = block_rows
        self.mxu_dtype = mxu_dtype

        # torch-layout parameters (also used by the pure-JAX reference)
        self.w_b1 = conv_w(ks[0], b1, in_channels, 1, 1)
        self.g_b1, self.be_b1 = bn_p(ks[1], b1)
        self.w_b2a = conv_w(ks[2], b2_n1, in_channels, 1, 1)
        self.g_b2a, self.be_b2a = bn_p(ks[3], b2_n1)
        self.w_b2b = conv_w(ks[4], b2_n3, b2_n1, 3, 3)
        self.g_b2b, self.be_b2b = bn_p(ks[5], b2_n3)
        self.w_b3a = conv_w(ks[6], b3_n1, in_channels, 1, 1)
        self.g_b3a, self.be_b3a = bn_p(ks[7], b3_n1)
        self.w_b3b = conv_w(ks[8], b3_n3_1, b3_n1, 3, 3)
        self.g_b3b, self.be_b3b = bn_p(ks[9], b3_n3_1)
        self.w_b3c = conv_w(ks[10], b3_n3_2, b3_n3_1, 3, 3)
        self.g_b3c, self.be_b3c = bn_p(ks[11], b3_n3_2)
        self.w_lin = conv_w(ks[12], n1_linear, b1 + b2_n3 + b3_n3_2, 1, 1)
        self.bias_lin = 0.1 * jax.random.normal(ks[13], (n1_linear,), jnp.float32)
        self.identity_shortcut = (in_channels == n1_linear)
        if not self.identity_shortcut:
            self.w_sc = conv_w(ks[14], n1_linear, in_channels, 1, 1)
            self.g_sc, self.b_sc = bn_p(ks[15], n1_linear)

        # kernel-side packed weights (MXU dtype)
        heads = [self.w_b1, self.w_b2a, self.w_b3a]
        if not self.identity_shortcut:
            heads.append(self.w_sc)
        self.w_head = jnp.concatenate([_w1x1(w) for w in heads],
                                      axis=1).astype(mxu_dtype)
        self.w_b2b_col = _w3x3_col(self.w_b2b).astype(mxu_dtype)
        self.w_b3b_col = _w3x3_col(self.w_b3b).astype(mxu_dtype)
        self.w_b3c_col = _w3x3_col(self.w_b3c).astype(mxu_dtype)
        self.w_lin2d = _w1x1(self.w_lin).astype(mxu_dtype)
        self.bias2d = self.bias_lin.reshape(1, -1)

    # ----------------------------- pallas_call wrappers ---------------------- #

    def _head(self, x2d, mt):
        mp_pad, cin = x2d.shape
        c_all = self.w_head.shape[1]
        return pl.pallas_call(
            functools.partial(_head_kernel, mxu_dtype=self.mxu_dtype),
            grid=(mp_pad // mt,),
            in_specs=(
                pl.BlockSpec((mt, cin), lambda i: (i, 0)),
                pl.BlockSpec(self.w_head.shape, lambda i: (0, 0)),
            ),
            out_specs=(
                pl.BlockSpec((mt, c_all), lambda i: (i, 0)),
                pl.BlockSpec((1, c_all), lambda i: (0, 0)),
                pl.BlockSpec((1, c_all), lambda i: (0, 0)),
            ),
            out_shape=(
                jax.ShapeDtypeStruct((mp_pad, c_all), jnp.float32),
                jax.ShapeDtypeStruct((1, c_all), jnp.float32),
                jax.ShapeDtypeStruct((1, c_all), jnp.float32),
            ),
            compiler_params=pltpu.CompilerParams(
                dimension_semantics=("arbitrary",),     # stats accumulators
                vmem_limit_bytes=VMEM_LIMIT_BYTES),
        )(x2d, self.w_head)

    def _conv3(self, yprev, s_prev, q_prev, gamma, beta, w_col,
               mt, halo, wp, count, mask_ext):
        mp_pad, cp = yprev.shape
        cout = w_col.shape[1]
        scale, shift = _bn_scale_shift(s_prev, q_prev, gamma, beta, count)
        yprev_ext = jnp.pad(yprev, ((halo, halo), (0, 0)))
        rows = mt + 2 * halo
        return pl.pallas_call(
            functools.partial(_conv3_kernel, halo=halo, wp=wp,
                              mxu_dtype=self.mxu_dtype),
            grid=(mp_pad // mt,),
            in_specs=(
                pl.BlockSpec((1, cp), lambda i: (0, 0)),
                pl.BlockSpec((1, cp), lambda i: (0, 0)),
                pl.BlockSpec(w_col.shape, lambda i: (0, 0)),
                pl.BlockSpec(memory_space=pl.ANY),       # halo'd raw activation
                pl.BlockSpec(memory_space=pl.ANY),       # halo'd interior mask
            ),
            out_specs=(
                pl.BlockSpec((mt, cout), lambda i: (i, 0)),
                pl.BlockSpec((1, cout), lambda i: (0, 0)),
                pl.BlockSpec((1, cout), lambda i: (0, 0)),
            ),
            out_shape=(
                jax.ShapeDtypeStruct((mp_pad, cout), jnp.float32),
                jax.ShapeDtypeStruct((1, cout), jnp.float32),
                jax.ShapeDtypeStruct((1, cout), jnp.float32),
            ),
            scratch_shapes=[
                pltpu.VMEM((rows, cp), jnp.float32),
                pltpu.VMEM((rows, 1), jnp.float32),
                pltpu.SemaphoreType.DMA((2,)),
            ],
            compiler_params=pltpu.CompilerParams(
                dimension_semantics=("arbitrary",),
                vmem_limit_bytes=VMEM_LIMIT_BYTES),
        )(scale, shift, w_col, yprev_ext, mask_ext)

    def _tail(self, y0, y_b2, y_b3, x2d, scale_shift, mt):
        mp_pad = y0.shape[0]
        n1 = self.n1_linear

        def tile_spec(a):
            return pl.BlockSpec((mt, a.shape[1]), lambda i: (i, 0))

        def full_spec(a):
            return pl.BlockSpec(a.shape, lambda i: (0, 0))

        args = [y0, y_b2, y_b3]
        specs = [tile_spec(y0), tile_spec(y_b2), tile_spec(y_b3)]
        if self.identity_shortcut:
            args.append(x2d)
            specs.append(tile_spec(x2d))
        args += list(scale_shift) + [self.w_lin2d, self.bias2d]
        specs += [full_spec(a) for a in scale_shift]
        specs += [full_spec(self.w_lin2d), full_spec(self.bias2d)]

        return pl.pallas_call(
            functools.partial(
                _tail_kernel, b1=self.b1,
                c_sc=self.b1 + self.b2_n1 + self.b3_n1,
                identity=self.identity_shortcut, mxu_dtype=self.mxu_dtype),
            grid=(mp_pad // mt,),
            in_specs=tuple(specs),
            out_specs=pl.BlockSpec((mt, n1), lambda i: (i, 0)),
            out_shape=jax.ShapeDtypeStruct((mp_pad, n1), jnp.float32),
            compiler_params=pltpu.CompilerParams(
                dimension_semantics=("parallel",),       # megacore-shardable
                vmem_limit_bytes=VMEM_LIMIT_BYTES),
        )(*args)

    # ---------------------------------- forward ------------------------------ #

    def __call__(self, x_nchw):
        N, C, H, W = x_nchw.shape
        hp, wp = H + 2, W + 2
        mp = N * hp * wp
        halo = wp + 1                       # max |dh*wp + dw| for a 3x3 tap
        mt = _round_up(min(self.block_rows, _round_up(mp, 8)), 8)
        mp_pad = _round_up(mp, mt)
        count = float(N * H * W)

        # NCHW -> zero-padded NHWC -> flattened (mp_pad, C)
        x = jnp.transpose(x_nchw, (0, 2, 3, 1)).astype(jnp.float32)
        x = jnp.pad(x, ((0, 0), (1, 1), (1, 1), (0, 0)))
        x2d = jnp.pad(x.reshape(mp, C), ((0, mp_pad - mp), (0, 0)))

        # interior-pixel mask in padded-flattened layout, with halo extension
        ih = ((jnp.arange(hp) >= 1) & (jnp.arange(hp) <= H)).astype(jnp.float32)
        iw = ((jnp.arange(wp) >= 1) & (jnp.arange(wp) <= W)).astype(jnp.float32)
        mask = jnp.tile((ih[:, None] * iw[None, :]).reshape(1, hp * wp), (N, 1))
        mask_ext = jnp.pad(mask.reshape(mp, 1),
                           ((halo, halo + mp_pad - mp), (0, 0)))

        b1, b2n1, b3n1 = self.b1, self.b2_n1, self.b3_n1
        c1 = slice(0, b1)
        c2 = slice(b1, b1 + b2n1)
        c3 = slice(b1 + b2n1, b1 + b2n1 + b3n1)
        c_sc = b1 + b2n1 + b3n1

        # 1) all branch-head 1x1 convs (+ shortcut conv) in one kernel
        y0, s0, q0 = self._head(x2d, mt)

        # 2) branch2: (BN+ReLU of its 1x1, fused) -> 3x3
        y_b2, s_b2, q_b2 = self._conv3(y0[:, c2], s0[:, c2], q0[:, c2],
                                       self.g_b2a, self.be_b2a,
                                       self.w_b2b_col, mt, halo, wp, count, mask_ext)

        # 3-4) branch3: (BN+ReLU of its 1x1) -> 3x3 -> (BN+ReLU) -> 3x3
        y_t, s_t, q_t = self._conv3(y0[:, c3], s0[:, c3], q0[:, c3],
                                    self.g_b3a, self.be_b3a,
                                    self.w_b3b_col, mt, halo, wp, count, mask_ext)
        y_b3, s_b3, q_b3 = self._conv3(y_t, s_t, q_t,
                                       self.g_b3b, self.be_b3b,
                                       self.w_b3c_col, mt, halo, wp, count, mask_ext)

        # 5) conv_linear(cat) + bias + shortcut + residual ReLU
        sc1, sh1 = _bn_scale_shift(s0[:, c1], q0[:, c1], self.g_b1, self.be_b1, count)
        sc2, sh2 = _bn_scale_shift(s_b2, q_b2, self.g_b2b, self.be_b2b, count)
        sc3, sh3 = _bn_scale_shift(s_b3, q_b3, self.g_b3c, self.be_b3c, count)
        scale_shift = [sc1, sh1, sc2, sh2, sc3, sh3]
        if not self.identity_shortcut:
            scs, shs = _bn_scale_shift(s0[:, c_sc:], q0[:, c_sc:],
                                       self.g_sc, self.b_sc, count)
            scale_shift += [scs, shs]
        out2d = self._tail(y0, y_b2, y_b3, x2d, scale_shift, mt)

        out = out2d[:mp].reshape(N, hp, wp, self.n1_linear)[:, 1:H + 1, 1:W + 1, :]
        return jnp.transpose(out, (0, 3, 1, 2))


# --------------------------- pure-JAX reference check ------------------------ #

def _conv2d_ref(x_nhwc, w_oihw, padding, dtype):
    w = jnp.transpose(w_oihw, (2, 3, 1, 0)).astype(dtype)      # HWIO
    return lax.conv_general_dilated(
        x_nhwc.astype(dtype), w, (1, 1), padding,
        dimension_numbers=("NHWC", "HWIO", "NHWC"),
        preferred_element_type=jnp.float32)


def _bn_train_ref(y, gamma, beta):
    mu = jnp.mean(y, axis=(0, 1, 2), keepdims=True)
    var = jnp.mean((y - mu) ** 2, axis=(0, 1, 2), keepdims=True)
    return (y - mu) * lax.rsqrt(var + EPS) * gamma + beta


def ref_forward(m, x_nchw):
    """Reference with the same mixed-precision policy as the kernels
    (conv inputs cast to m.mxu_dtype, fp32 accumulation + fp32 BN/ReLU)."""
    dt = m.mxu_dtype
    p0, p1 = [(0, 0), (0, 0)], [(1, 1), (1, 1)]
    relu = lambda v: jnp.maximum(v, 0.0)
    x = jnp.transpose(x_nchw, (0, 2, 3, 1)).astype(jnp.float32)

    o1 = relu(_bn_train_ref(_conv2d_ref(x, m.w_b1, p0, dt), m.g_b1, m.be_b1))
    h = relu(_bn_train_ref(_conv2d_ref(x, m.w_b2a, p0, dt), m.g_b2a, m.be_b2a))
    o2 = relu(_bn_train_ref(_conv2d_ref(h, m.w_b2b, p1, dt), m.g_b2b, m.be_b2b))
    h = relu(_bn_train_ref(_conv2d_ref(x, m.w_b3a, p0, dt), m.g_b3a, m.be_b3a))
    h = relu(_bn_train_ref(_conv2d_ref(h, m.w_b3b, p1, dt), m.g_b3b, m.be_b3b))
    o3 = relu(_bn_train_ref(_conv2d_ref(h, m.w_b3c, p1, dt), m.g_b3c, m.be_b3c))

    cat = jnp.concatenate([o1, o2, o3], axis=-1)
    out = _conv2d_ref(cat, m.w_lin, p0, dt) + m.bias_lin.reshape(1, 1, 1, -1)
    if m.identity_shortcut:
        sc = x
    else:
        sc = _bn_train_ref(_conv2d_ref(x, m.w_sc, p0, dt), m.g_sc, m.b_sc)
    return jnp.transpose(relu(out + sc), (0, 3, 1, 2))


# ------------------------------------- main ---------------------------------- #

if __name__ == "__main__":
    key = jax.random.PRNGKey(0)
    kparam, kx = jax.random.split(key)

    N, Cin, H, W = 2, 16, 16, 16
    b1, b2_n1, b2_n3 = 16, 16, 24
    b3_n1, b3_n3_1, b3_n3_2 = 16, 24, 24
    n1_linear = 32                                    # != Cin -> conv+BN shortcut

    model = InceptionAResPallas(kparam, Cin, b1, b2_n1, b2_n3, b3_n1,
                                b3_n3_1, b3_n3_2, n1_linear, block_rows=256)
    x = jax.random.normal(kx, (N, Cin, H, W), jnp.float32)

    fwd = jax.jit(model.__call__)
    out = jax.block_until_ready(fwd(x))
    assert out.shape == (N, n1_linear, H, W)

    ref = jax.block_until_ready(ref_forward(model, x))
    np.testing.assert_allclose(np.asarray(out), np.asarray(ref),
                               rtol=1e-2, atol=1e-2)

    print("KERNEL_OK")
</pallas_src>

<mosaic_0001>
module attributes {stable_mosaic.version = 11 : i64} {
  func.func @_head_kernel(%arg0: i32, %arg1: memref<256x16xf32, #tpu.memory_space<vmem>>, %arg2: memref<16x80xbf16, #tpu.memory_space<vmem>>, %arg3: memref<256x80xf32, #tpu.memory_space<vmem>>, %arg4: memref<1x80xf32, #tpu.memory_space<vmem>>, %arg5: memref<1x80xf32, #tpu.memory_space<vmem>>) attributes {dimension_semantics = [#tpu.dimension_semantics<arbitrary>], iteration_bounds = array<i64: 3>, scalar_prefetch = 0 : i64, scratch_operands = 0 : i64, tpu.core_type = #tpu.core_type<tc>, window_params = [{transform_indices = @transform_0, window_bounds = array<i64: 256, 16>}, {pipeline_mode = #tpu.pipeline_mode<synchronous>, transform_indices = @transform_1, window_bounds = array<i64: 16, 80>}, {transform_indices = @transform_2, window_bounds = array<i64: 256, 80>}, {pipeline_mode = #tpu.pipeline_mode<synchronous>, transform_indices = @transform_3, window_bounds = array<i64: 1, 80>}, {pipeline_mode = #tpu.pipeline_mode<synchronous>, transform_indices = @transform_4, window_bounds = array<i64: 1, 80>}]} {
    %c0 = arith.constant 0 : index
    %c0_0 = arith.constant 0 : index
    %0 = vector.load %arg1[%c0, %c0_0] : memref<256x16xf32, #tpu.memory_space<vmem>>, vector<256x16xf32>
    %1 = arith.truncf %0 : vector<256x16xf32> to vector<256x16xbf16>
    %c0_1 = arith.constant 0 : index
    %c0_2 = arith.constant 0 : index
    %2 = vector.load %arg2[%c0_1, %c0_2] : memref<16x80xbf16, #tpu.memory_space<vmem>>, vector<16x80xbf16>
    %cst = arith.constant dense<0.000000e+00> : vector<256x80xf32>
    %3 = tpu.matmul %1, %2, %cst {dimension_numbers = #tpu.dot_dimension_numbers<[1], [0], [0], [1], [0, 0, 1, 1], [], []>} : vector<256x16xbf16>, vector<16x80xbf16>, vector<256x80xf32> -> vector<256x80xf32>
    %c0_3 = arith.constant 0 : index
    %c0_4 = arith.constant 0 : index
    %4 = vector.load %arg3[%c0_3, %c0_4] : memref<256x80xf32, #tpu.memory_space<vmem>>, vector<256x80xf32>
    tpu.vector_store %arg3[%c0_3, %c0_4], %3 {strides = array<i32>} : memref<256x80xf32, #tpu.memory_space<vmem>>, vector<256x80xf32>,
    %c0_i32 = arith.constant 0 : i32
    %5 = arith.cmpi eq, %arg0, %c0_i32 : i32
    %6 = arith.extui %5 : i1 to i32
    %c0_i32_5 = arith.constant 0 : i32
    %7 = arith.cmpi ne, %6, %c0_i32_5 : i32
    scf.if %7 {
      %cst_16 = arith.constant 0.000000e+00 : f32
      %19 = vector.broadcast %cst_16 : f32 to vector<1x80xf32>
      %c0_17 = arith.constant 0 : index
      %c0_18 = arith.constant 0 : index
      %20 = vector.load %arg4[%c0_17, %c0_18] : memref<1x80xf32, #tpu.memory_space<vmem>>, vector<1x80xf32>
      tpu.vector_store %arg4[%c0_17, %c0_18], %19 {strides = array<i32>} : memref<1x80xf32, #tpu.memory_space<vmem>>, vector<1x80xf32>,
      %cst_19 = arith.constant 0.000000e+00 : f32
      %21 = vector.broadcast %cst_19 : f32 to vector<1x80xf32>
      %c0_20 = arith.constant 0 : index
      %c0_21 = arith.constant 0 : index
      %22 = vector.load %arg5[%c0_20, %c0_21] : memref<1x80xf32, #tpu.memory_space<vmem>>, vector<1x80xf32>
      tpu.vector_store %arg5[%c0_20, %c0_21], %21 {strides = array<i32>} : memref<1x80xf32, #tpu.memory_space<vmem>>, vector<1x80xf32>,
    } else {
    }
    %c0_6 = arith.constant 0 : index
    %c0_7 = arith.constant 0 : index
    %8 = vector.load %arg4[%c0_6, %c0_7] : memref<1x80xf32, #tpu.memory_space<vmem>>, vector<1x80xf32>
    %cst_8 = arith.constant dense<0.000000e+00> : vector<80xf32>
    %9 = vector.multi_reduction <add>, %3, %cst_8 [0] : vector<256x80xf32> to vector<80xf32>
    %10 = vector.shape_cast %9 : vector<80xf32> to vector<1x80xf32>
    %11 = arith.addf %8, %10 : vector<1x80xf32>
    %c0_9 = arith.constant 0 : index
    %c0_10 = arith.constant 0 : index
    %12 = vector.load %arg4[%c0_9, %c0_10] : memref<1x80xf32, #tpu.memory_space<vmem>>, vector<1x80xf32>
    tpu.vector_store %arg4[%c0_9, %c0_10], %11 {strides = array<i32>} : memref<1x80xf32, #tpu.memory_space<vmem>>, vector<1x80xf32>,
    %c0_11 = arith.constant 0 : index
    %c0_12 = arith.constant 0 : index
    %13 = vector.load %arg5[%c0_11, %c0_12] : memref<1x80xf32, #tpu.memory_space<vmem>>, vector<1x80xf32>
    %14 = arith.mulf %3, %3 : vector<256x80xf32>
    %cst_13 = arith.constant dense<0.000000e+00> : vector<80xf32>
    %15 = vector.multi_reduction <add>, %14, %cst_13 [0] : vector<256x80xf32> to vector<80xf32>
    %16 = vector.shape_cast %15 : vector<80xf32> to vector<1x80xf32>
    %17 = arith.addf %13, %16 : vector<1x80xf32>
    %c0_14 = arith.constant 0 : index
    %c0_15 = arith.constant 0 : index
    %18 = vector.load %arg5[%c0_14, %c0_15] : memref<1x80xf32, #tpu.memory_space<vmem>>, vector<1x80xf32>
    tpu.vector_store %arg5[%c0_14, %c0_15], %17 {strides = array<i32>} : memref<1x80xf32, #tpu.memory_space<vmem>>, vector<1x80xf32>,
    return
  }
  func.func @transform_0(%arg0: i32) -> (i32, i32) {
    %c0_i32 = arith.constant 0 : i32
    %c0_i32_0 = arith.constant 0 : i32
    return %arg0, %c0_i32 : i32, i32
  }
  func.func @transform_1(%arg0: i32) -> (i32, i32) {
    %c0_i32 = arith.constant 0 : i32
    %c0_i32_0 = arith.constant 0 : i32
    %c0_i32_1 = arith.constant 0 : i32
    return %c0_i32, %c0_i32_0 : i32, i32
  }
  func.func @transform_2(%arg0: i32) -> (i32, i32) {
    %c0_i32 = arith.constant 0 : i32
    %c0_i32_0 = arith.constant 0 : i32
    return %arg0, %c0_i32 : i32, i32
  }
  func.func @transform_3(%arg0: i32) -> (i32, i32) {
    %c0_i32 = arith.constant 0 : i32
    %c0_i32_0 = arith.constant 0 : i32
    %c0_i32_1 = arith.constant 0 : i32
    return %c0_i32, %c0_i32_0 : i32, i32
  }
  func.func @transform_4(%arg0: i32) -> (i32, i32) {
    %c0_i32 = arith.constant 0 : i32
    %c0_i32_0 = arith.constant 0 : i32
    %c0_i32_1 = arith.constant 0 : i32
    return %c0_i32, %c0_i32_0 : i32, i32
  }
}

module attributes {stable_mosaic.version = 11 : i64} {
  func.func @_conv3_kernel(%arg0: i32, %arg1: memref<1x16xf32, #tpu.memory_space<vmem>>, %arg2: memref<1x16xf32, #tpu.memory_space<vmem>>, %arg3: memref<144x24xbf16, #tpu.memory_space<vmem>>, %arg4: memref<806x16xf32, #tpu.memory_space<any>>, %arg5: memref<806x1xf32, #tpu.memory_space<any>>, %arg6: memref<256x24xf32, #tpu.memory_space<vmem>>, %arg7: memref<1x24xf32, #tpu.memory_space<vmem>>, %arg8: memref<1x24xf32, #tpu.memory_space<vmem>>, %arg9: memref<294x16xf32, #tpu.memory_space<vmem>>, %arg10: memref<294x1xf32, #tpu.memory_space<vmem>>, %arg11: memref<2x!tpu.dma_semaphore, #tpu.memory_space<semaphore_mem>>) attributes {dimension_semantics = [#tpu.dimension_semantics<arbitrary>], iteration_bounds = array<i64: 3>, scalar_prefetch = 0 : i64, scratch_operands = 3 : i64, tpu.core_type = #tpu.core_type<tc>, window_params = [{pipeline_mode = #tpu.pipeline_mode<synchronous>, transform_indices = @transform_0, window_bounds = array<i64: 1, 16>}, {pipeline_mode = #tpu.pipeline_mode<synchronous>, transform_indices = @transform_1, window_bounds = array<i64: 1, 16>}, {pipeline_mode = #tpu.pipeline_mode<synchronous>, transform_indices = @transform_2, window_bounds = array<i64: 144, 24>}, {}, {}, {transform_indices = @transform_5, window_bounds = array<i64: 256, 24>}, {pipeline_mode = #tpu.pipeline_mode<synchronous>, transform_indices = @transform_6, window_bounds = array<i64: 1, 24>}, {pipeline_mode = #tpu.pipeline_mode<synchronous>, transform_indices = @transform_7, window_bounds = array<i64: 1, 24>}]} {
    %c256_i32 = arith.constant 256 : i32
    %0 = arith.muli %arg0, %c256_i32 : i32
    %1 = tpu.assume_multiple %0, 8 : i32
    %c0_i32 = arith.constant 0 : i32
    %c0_i32_0 = arith.constant 0 : i32
    %2 = tpu.memref_slice %arg4[%1, %c0_i32_0] : memref<806x16xf32, #tpu.memory_space<any>> -> memref<294x16xf32, #tpu.memory_space<any>>
    %3 = tpu.memref_slice %arg11[%c0_i32] : memref<2x!tpu.dma_semaphore, #tpu.memory_space<semaphore_mem>> -> memref<1x!tpu.dma_semaphore, #tpu.memory_space<semaphore_mem>>
    %4 = tpu.memref_squeeze %3 : memref<1x!tpu.dma_semaphore, #tpu.memory_space<semaphore_mem>> -> memref<!tpu.dma_semaphore, #tpu.memory_space<semaphore_mem>>
    tpu.enqueue_dma source(%2 : memref<294x16xf32, #tpu.memory_space<any>>) target(%arg9 : memref<294x16xf32, #tpu.memory_space<vmem>>) target_semaphore(%4 : memref<!tpu.dma_semaphore, #tpu.memory_space<semaphore_mem>>)
    %c1_i32 = arith.constant 1 : i32
    %c0_i32_1 = arith.constant 0 : i32
    %5 = tpu.memref_slice %arg5[%1, %c0_i32_1] : memref<806x1xf32, #tpu.memory_space<any>> -> memref<294x1xf32, #tpu.memory_space<any>>
    %6 = tpu.memref_slice %arg11[%c1_i32] : memref<2x!tpu.dma_semaphore, #tpu.memory_space<semaphore_mem>> -> memref<1x!tpu.dma_semaphore, #tpu.memory_space<semaphore_mem>>
    %7 = tpu.memref_squeeze %6 : memref<1x!tpu.dma_semaphore, #tpu.memory_space<semaphore_mem>> -> memref<!tpu.dma_semaphore, #tpu.memory_space<semaphore_mem>>
    tpu.enqueue_dma source(%5 : memref<294x1xf32, #tpu.memory_space<any>>) target(%arg10 : memref<294x1xf32, #tpu.memory_space<vmem>>) target_semaphore(%7 : memref<!tpu.dma_semaphore, #tpu.memory_space<semaphore_mem>>)
    %c0_i32_2 = arith.constant 0 : i32
    %c0_i32_3 = arith.constant 0 : i32
    %8 = tpu.memref_slice %arg4[%1, %c0_i32_3] : memref<806x16xf32, #tpu.memory_space<any>> -> memref<294x16xf32, #tpu.memory_space<any>>
    %9 = tpu.memref_slice %arg11[%c0_i32_2] : memref<2x!tpu.dma_semaphore, #tpu.memory_space<semaphore_mem>> -> memref<1x!tpu.dma_semaphore, #tpu.memory_space<semaphore_mem>>
    %10 = tpu.memref_squeeze %9 : memref<1x!tpu.dma_semaphore, #tpu.memory_space<semaphore_mem>> -> memref<!tpu.dma_semaphore, #tpu.memory_space<semaphore_mem>>
    tpu.wait_dma2 semaphore(%10 : memref<!tpu.dma_semaphore, #tpu.memory_space<semaphore_mem>>) src(%8 : memref<294x16xf32, #tpu.memory_space<any>>) dst(%arg9 : memref<294x16xf32, #tpu.memory_space<vmem>>)
    %c1_i32_4 = arith.constant 1 : i32
    %c0_i32_5 = arith.constant 0 : i32
    %11 = tpu.memref_slice %arg5[%1, %c0_i32_5] : memref<806x1xf32, #tpu.memory_space<any>> -> memref<294x1xf32, #tpu.memory_space<any>>
    %12 = tpu.memref_slice %arg11[%c1_i32_4] : memref<2x!tpu.dma_semaphore, #tpu.memory_space<semaphore_mem>> -> memref<1x!tpu.dma_semaphore, #tpu.memory_space<semaphore_mem>>
    %13 = tpu.memref_squeeze %12 : memref<1x!tpu.dma_semaphore, #tpu.memory_space<semaphore_mem>> -> memref<!tpu.dma_semaphore, #tpu.memory_space<semaphore_mem>>
    tpu.wait_dma2 semaphore(%13 : memref<!tpu.dma_semaphore, #tpu.memory_space<semaphore_mem>>) src(%11 : memref<294x1xf32, #tpu.memory_space<any>>) dst(%arg10 : memref<294x1xf32, #tpu.memory_space<vmem>>)
    %c0 = arith.constant 0 : index
    %c0_6 = arith.constant 0 : index
    %14 = vector.load %arg10[%c0, %c0_6] : memref<294x1xf32, #tpu.memory_space<vmem>>, vector<294x1xf32>
    %c0_7 = arith.constant 0 : index
    %c0_8 = arith.constant 0 : index
    %15 = vector.load %arg9[%c0_7, %c0_8] : memref<294x16xf32, #tpu.memory_space<vmem>>, vector<294x16xf32>
    %c0_9 = arith.constant 0 : index
    %c0_10 = arith.constant 0 : index
    %16 = vector.load %arg1[%c0_9, %c0_10] : memref<1x16xf32, #tpu.memory_space<vmem>>, vector<1x16xf32>
    %17 = vector.broadcast %16 : vector<1x16xf32> to vector<294x16xf32>
    %18 = arith.mulf %15, %17 : vector<294x16xf32>
    %c0_11 = arith.constant 0 : index
    %c0_12 = arith.constant 0 : index
    %19 = vector.load %arg2[%c0_11, %c0_12] : memref<1x16xf32, #tpu.memory_space<vmem>>, vector<1x16xf32>
    %20 = vector.broadcast %19 : vector<1x16xf32> to vector<294x16xf32>
    %21 = arith.addf %18, %20 : vector<294x16xf32>
    %cst = arith.constant 0.000000e+00 : f32
    %22 = vector.broadcast %cst : f32 to vector<294x16xf32>
    %23 = arith.maximumf %21, %22 : vector<294x16xf32>
    %24 = vector.broadcast %14 : vector<294x1xf32> to vector<294x16xf32>
    %25 = arith.mulf %23, %24 : vector<294x16xf32>
    %26 = vector.extract_strided_slice %25 {offsets = [0, 0], sizes = [256, 16], strides = [1, 1]} : vector<294x16xf32> to vector<256x16xf32>
    %27 = vector.extract_strided_slice %25 {offsets = [1, 0], sizes = [256, 16], strides = [1, 1]} : vector<294x16xf32> to vector<256x16xf32>
    %28 = vector.extract_strided_slice %25 {offsets = [2, 0], sizes = [256, 16], strides = [1, 1]} : vector<294x16xf32> to vector<256x16xf32>
    %29 = vector.extract_strided_slice %25 {offsets = [18, 0], sizes = [256, 16], strides = [1, 1]} : vector<294x16xf32> to vector<256x16xf32>
    %30 = vector.extract_strided_slice %25 {offsets = [19, 0], sizes = [256, 16], strides = [1, 1]} : vector<294x16xf32> to vector<256x16xf32>
    %31 = vector.extract_strided_slice %25 {offsets = [20, 0], sizes = [256, 16], strides = [1, 1]} : vector<294x16xf32> to vector<256x16xf32>
    %32 = vector.extract_strided_slice %25 {offsets = [36, 0], sizes = [256, 16], strides = [1, 1]} : vector<294x16xf32> to vector<256x16xf32>
    %33 = vector.extract_strided_slice %25 {offsets = [37, 0], sizes = [256, 16], strides = [1, 1]} : vector<294x16xf32> to vector<256x16xf32>
    %34 = vector.extract_strided_slice %25 {offsets = [38, 0], sizes = [256, 16], strides = [1, 1]} : vector<294x16xf32> to vector<256x16xf32>
    %35 = tpu.concatenate %26, %27, %28, %29, %30, %31, %32, %33, %34 in 1 : vector<256x16xf32>, vector<256x16xf32>, vector<256x16xf32>, vector<256x16xf32>, vector<256x16xf32>, vector<256x16xf32>, vector<256x16xf32>, vector<256x16xf32>, vector<256x16xf32> -> vector<256x144xf32>
    %36 = arith.truncf %35 : vector<256x144xf32> to vector<256x144xbf16>
    %c0_13 = arith.constant 0 : index
    %c0_14 = arith.constant 0 : index
    %37 = vector.load %arg3[%c0_13, %c0_14] : memref<144x24xbf16, #tpu.memory_space<vmem>>, vector<144x24xbf16>
    %cst_15 = arith.constant dense<0.000000e+00> : vector<256x24xf32>
    %38 = tpu.matmul %36, %37, %cst_15 {dimension_numbers = #tpu.dot_dimension_numbers<[1], [0], [0], [1], [0, 0, 1, 1], [], []>} : vector<256x144xbf16>, vector<144x24xbf16>, vector<256x24xf32> -> vector<256x24xf32>
    %39 = vector.extract_strided_slice %14 {offsets = [19, 0], sizes = [256, 1], strides = [1, 1]} : vector<294x1xf32> to vector<256x1xf32>
    %40 = vector.broadcast %39 : vector<256x1xf32> to vector<256x24xf32>
    %41 = arith.mulf %38, %40 : vector<256x24xf32>
    %c0_16 = arith.constant 0 : index
    %c0_17 = arith.constant 0 : index
    %42 = vector.load %arg6[%c0_16, %c0_17] : memref<256x24xf32, #tpu.memory_space<vmem>>, vector<256x24xf32>
    tpu.vector_store %arg6[%c0_16, %c0_17], %41 {strides = array<i32>} : memref<256x24xf32, #tpu.memory_space<vmem>>, vector<256x24xf32>,
    %c0_i32_18 = arith.constant 0 : i32
    %43 = arith.cmpi eq, %arg0, %c0_i32_18 : i32
    %44 = arith.extui %43 : i1 to i32
    %c0_i32_19 = arith.constant 0 : i32
    %45 = arith.cmpi ne, %44, %c0_i32_19 : i32
    scf.if %45 {
      %cst_30 = arith.constant 0.000000e+00 : f32
      %57 = vector.broadcast %cst_30 : f32 to vector<1x24xf32>
      %c0_31 = arith.constant 0 : index
      %c0_32 = arith.constant 0 : index
      %58 = vector.load %arg7[%c0_31, %c0_32] : memref<1x24xf32, #tpu.memory_space<vmem>>, vector<1x24xf32>
      tpu.vector_store %arg7[%c0_31, %c0_32], %57 {strides = array<i32>} : memref<1x24xf32, #tpu.memory_space<vmem>>, vector<1x24xf32>,
      %cst_33 = arith.constant 0.000000e+00 : f32
      %59 = vector.broadcast %cst_33 : f32 to vector<1x24xf32>
      %c0_34 = arith.constant 0 : index
      %c0_35 = arith.constant 0 : index
      %60 = vector.load %arg8[%c0_34, %c0_35] : memref<1x24xf32, #tpu.memory_space<vmem>>, vector<1x24xf32>
      tpu.vector_store %arg8[%c0_34, %c0_35], %59 {strides = array<i32>} : memref<1x24xf32, #tpu.memory_space<vmem>>, vector<1x24xf32>,
    } else {
    }
    %c0_20 = arith.constant 0 : index
    %c0_21 = arith.constant 0 : index
    %46 = vector.load %arg7[%c0_20, %c0_21] : memref<1x24xf32, #tpu.memory_space<vmem>>, vector<1x24xf32>
    %cst_22 = arith.constant dense<0.000000e+00> : vector<24xf32>
    %47 = vector.multi_reduction <add>, %41, %cst_22 [0] : vector<256x24xf32> to vector<24xf32>
    %48 = vector.shape_cast %47 : vector<24xf32> to vector<1x24xf32>
    %49 = arith.addf %46, %48 : vector<1x24xf32>
    %c0_23 = arith.constant 0 : index
    %c0_24 = arith.constant 0 : index
    %50 = vector.load %arg7[%c0_23, %c0_24] : memref<1x24xf32, #tpu.memory_space<vmem>>, vector<1x24xf32>
    tpu.vector_store %arg7[%c0_23, %c0_24], %49 {strides = array<i32>} : memref<1x24xf32, #tpu.memory_space<vmem>>, vector<1x24xf32>,
    %c0_25 = arith.constant 0 : index
    %c0_26 = arith.constant 0 : index
    %51 = vector.load %arg8[%c0_25, %c0_26] : memref<1x24xf32, #tpu.memory_space<vmem>>, vector<1x24xf32>
    %52 = arith.mulf %41, %41 : vector<256x24xf32>
    %cst_27 = arith.constant dense<0.000000e+00> : vector<24xf32>
    %53 = vector.multi_reduction <add>, %52, %cst_27 [0] : vector<256x24xf32> to vector<24xf32>
    %54 = vector.shape_cast %53 : vector<24xf32> to vector<1x24xf32>
    %55 = arith.addf %51, %54 : vector<1x24xf32>
    %c0_28 = arith.constant 0 : index
    %c0_29 = arith.constant 0 : index
    %56 = vector.load %arg8[%c0_28, %c0_29] : memref<1x24xf32, #tpu.memory_space<vmem>>, vector<1x24xf32>
    tpu.vector_store %arg8[%c0_28, %c0_29], %55 {strides = array<i32>} : memref<1x24xf32, #tpu.memory_space<vmem>>, vector<1x24xf32>,
    return
  }
  func.func @transform_0(%arg0: i32) -> (i32, i32) {
    %c0_i32 = arith.constant 0 : i32
    %c0_i32_0 = arith.constant 0 : i32
    %c0_i32_1 = arith.constant 0 : i32
    return %c0_i32, %c0_i32_0 : i32, i32
  }
  func.func @transform_1(%arg0: i32) -> (i32, i32) {
    %c0_i32 = arith.constant 0 : i32
    %c0_i32_0 = arith.constant 0 : i32
    %c0_i32_1 = arith.constant 0 : i32
    return %c0_i32, %c0_i32_0 : i32, i32
  }
  func.func @transform_2(%arg0: i32) -> (i32, i32) {
    %c0_i32 = arith.constant 0 : i32
    %c0_i32_0 = arith.constant 0 : i32
    %c0_i32_1 = arith.constant 0 : i32
    return %c0_i32, %c0_i32_0 : i32, i32
  }
  func.func @transform_5(%arg0: i32) -> (i32, i32) {
    %c0_i32 = arith.constant 0 : i32
    %c0_i32_0 = arith.constant 0 : i32
    return %arg0, %c0_i32 : i32, i32
  }
  func.func @transform_6(%arg0: i32) -> (i32, i32) {
    %c0_i32 = arith.constant 0 : i32
    %c0_i32_0 = arith.constant 0 : i32
    %c0_i32_1 = arith.constant 0 : i32
    return %c0_i32, %c0_i32_0 : i32, i32
  }
  func.func @transform_7(%arg0: i32) -> (i32, i32) {
    %c0_i32 = arith.constant 0 : i32
    %c0_i32_0 = arith.constant 0 : i32
    %c0_i32_1 = arith.constant 0 : i32
    return %c0_i32, %c0_i32_0 : i32, i32
  }
}

module attributes {stable_mosaic.version = 11 : i64} {
  func.func @_conv3_kernel(%arg0: i32, %arg1: memref<1x24xf32, #tpu.memory_space<vmem>>, %arg2: memref<1x24xf32, #tpu.memory_space<vmem>>, %arg3: memref<216x24xbf16, #tpu.memory_space<vmem>>, %arg4: memref<806x24xf32, #tpu.memory_space<any>>, %arg5: memref<806x1xf32, #tpu.memory_space<any>>, %arg6: memref<256x24xf32, #tpu.memory_space<vmem>>, %arg7: memref<1x24xf32, #tpu.memory_space<vmem>>, %arg8: memref<1x24xf32, #tpu.memory_space<vmem>>, %arg9: memref<294x24xf32, #tpu.memory_space<vmem>>, %arg10: memref<294x1xf32, #tpu.memory_space<vmem>>, %arg11: memref<2x!tpu.dma_semaphore, #tpu.memory_space<semaphore_mem>>) attributes {dimension_semantics = [#tpu.dimension_semantics<arbitrary>], iteration_bounds = array<i64: 3>, scalar_prefetch = 0 : i64, scratch_operands = 3 : i64, tpu.core_type = #tpu.core_type<tc>, window_params = [{pipeline_mode = #tpu.pipeline_mode<synchronous>, transform_indices = @transform_0, window_bounds = array<i64: 1, 24>}, {pipeline_mode = #tpu.pipeline_mode<synchronous>, transform_indices = @transform_1, window_bounds = array<i64: 1, 24>}, {pipeline_mode = #tpu.pipeline_mode<synchronous>, transform_indices = @transform_2, window_bounds = array<i64: 216, 24>}, {}, {}, {transform_indices = @transform_5, window_bounds = array<i64: 256, 24>}, {pipeline_mode = #tpu.pipeline_mode<synchronous>, transform_indices = @transform_6, window_bounds = array<i64: 1, 24>}, {pipeline_mode = #tpu.pipeline_mode<synchronous>, transform_indices = @transform_7, window_bounds = array<i64: 1, 24>}]} {
    %c256_i32 = arith.constant 256 : i32
    %0 = arith.muli %arg0, %c256_i32 : i32
    %1 = tpu.assume_multiple %0, 8 : i32
    %c0_i32 = arith.constant 0 : i32
    %c0_i32_0 = arith.constant 0 : i32
    %2 = tpu.memref_slice %arg4[%1, %c0_i32_0] : memref<806x24xf32, #tpu.memory_space<any>> -> memref<294x24xf32, #tpu.memory_space<any>>
    %3 = tpu.memref_slice %arg11[%c0_i32] : memref<2x!tpu.dma_semaphore, #tpu.memory_space<semaphore_mem>> -> memref<1x!tpu.dma_semaphore, #tpu.memory_space<semaphore_mem>>
    %4 = tpu.memref_squeeze %3 : memref<1x!tpu.dma_semaphore, #tpu.memory_space<semaphore_mem>> -> memref<!tpu.dma_semaphore, #tpu.memory_space<semaphore_mem>>
    tpu.enqueue_dma source(%2 : memref<294x24xf32, #tpu.memory_space<any>>) target(%arg9 : memref<294x24xf32, #tpu.memory_space<vmem>>) target_semaphore(%4 : memref<!tpu.dma_semaphore, #tpu.memory_space<semaphore_mem>>)
    %c1_i32 = arith.constant 1 : i32
    %c0_i32_1 = arith.constant 0 : i32
    %5 = tpu.memref_slice %arg5[%1, %c0_i32_1] : memref<806x1xf32, #tpu.memory_space<any>> -> memref<294x1xf32, #tpu.memory_space<any>>
    %6 = tpu.memref_slice %arg11[%c1_i32] : memref<2x!tpu.dma_semaphore, #tpu.memory_space<semaphore_mem>> -> memref<1x!tpu.dma_semaphore, #tpu.memory_space<semaphore_mem>>
    %7 = tpu.memref_squeeze %6 : memref<1x!tpu.dma_semaphore, #tpu.memory_space<semaphore_mem>> -> memref<!tpu.dma_semaphore, #tpu.memory_space<semaphore_mem>>
    tpu.enqueue_dma source(%5 : memref<294x1xf32, #tpu.memory_space<any>>) target(%arg10 : memref<294x1xf32, #tpu.memory_space<vmem>>) target_semaphore(%7 : memref<!tpu.dma_semaphore, #tpu.memory_space<semaphore_mem>>)
    %c0_i32_2 = arith.constant 0 : i32
    %c0_i32_3 = arith.constant 0 : i32
    %8 = tpu.memref_slice %arg4[%1, %c0_i32_3] : memref<806x24xf32, #tpu.memory_space<any>> -> memref<294x24xf32, #tpu.memory_space<any>>
    %9 = tpu.memref_slice %arg11[%c0_i32_2] : memref<2x!tpu.dma_semaphore, #tpu.memory_space<semaphore_mem>> -> memref<1x!tpu.dma_semaphore, #tpu.memory_space<semaphore_mem>>
    %10 = tpu.memref_squeeze %9 : memref<1x!tpu.dma_semaphore, #tpu.memory_space<semaphore_mem>> -> memref<!tpu.dma_semaphore, #tpu.memory_space<semaphore_mem>>
    tpu.wait_dma2 semaphore(%10 : memref<!tpu.dma_semaphore, #tpu.memory_space<semaphore_mem>>) src(%8 : memref<294x24xf32, #tpu.memory_space<any>>) dst(%arg9 : memref<294x24xf32, #tpu.memory_space<vmem>>)
    %c1_i32_4 = arith.constant 1 : i32
    %c0_i32_5 = arith.constant 0 : i32
    %11 = tpu.memref_slice %arg5[%1, %c0_i32_5] : memref<806x1xf32, #tpu.memory_space<any>> -> memref<294x1xf32, #tpu.memory_space<any>>
    %12 = tpu.memref_slice %arg11[%c1_i32_4] : memref<2x!tpu.dma_semaphore, #tpu.memory_space<semaphore_mem>> -> memref<1x!tpu.dma_semaphore, #tpu.memory_space<semaphore_mem>>
    %13 = tpu.memref_squeeze %12 : memref<1x!tpu.dma_semaphore, #tpu.memory_space<semaphore_mem>> -> memref<!tpu.dma_semaphore, #tpu.memory_space<semaphore_mem>>
    tpu.wait_dma2 semaphore(%13 : memref<!tpu.dma_semaphore, #tpu.memory_space<semaphore_mem>>) src(%11 : memref<294x1xf32, #tpu.memory_space<any>>) dst(%arg10 : memref<294x1xf32, #tpu.memory_space<vmem>>)
    %c0 = arith.constant 0 : index
    %c0_6 = arith.constant 0 : index
    %14 = vector.load %arg10[%c0, %c0_6] : memref<294x1xf32, #tpu.memory_space<vmem>>, vector<294x1xf32>
    %c0_7 = arith.constant 0 : index
    %c0_8 = arith.constant 0 : index
    %15 = vector.load %arg9[%c0_7, %c0_8] : memref<294x24xf32, #tpu.memory_space<vmem>>, vector<294x24xf32>
    %c0_9 = arith.constant 0 : index
    %c0_10 = arith.constant 0 : index
    %16 = vector.load %arg1[%c0_9, %c0_10] : memref<1x24xf32, #tpu.memory_space<vmem>>, vector<1x24xf32>
    %17 = vector.broadcast %16 : vector<1x24xf32> to vector<294x24xf32>
    %18 = arith.mulf %15, %17 : vector<294x24xf32>
    %c0_11 = arith.constant 0 : index
    %c0_12 = arith.constant 0 : index
    %19 = vector.load %arg2[%c0_11, %c0_12] : memref<1x24xf32, #tpu.memory_space<vmem>>, vector<1x24xf32>
    %20 = vector.broadcast %19 : vector<1x24xf32> to vector<294x24xf32>
    %21 = arith.addf %18, %20 : vector<294x24xf32>
    %cst = arith.constant 0.000000e+00 : f32
    %22 = vector.broadcast %cst : f32 to vector<294x24xf32>
    %23 = arith.maximumf %21, %22 : vector<294x24xf32>
    %24 = vector.broadcast %14 : vector<294x1xf32> to vector<294x24xf32>
    %25 = arith.mulf %23, %24 : vector<294x24xf32>
    %26 = vector.extract_strided_slice %25 {offsets = [0, 0], sizes = [256, 24], strides = [1, 1]} : vector<294x24xf32> to vector<256x24xf32>
    %27 = vector.extract_strided_slice %25 {offsets = [1, 0], sizes = [256, 24], strides = [1, 1]} : vector<294x24xf32> to vector<256x24xf32>
    %28 = vector.extract_strided_slice %25 {offsets = [2, 0], sizes = [256, 24], strides = [1, 1]} : vector<294x24xf32> to vector<256x24xf32>
    %29 = vector.extract_strided_slice %25 {offsets = [18, 0], sizes = [256, 24], strides = [1, 1]} : vector<294x24xf32> to vector<256x24xf32>
    %30 = vector.extract_strided_slice %25 {offsets = [19, 0], sizes = [256, 24], strides = [1, 1]} : vector<294x24xf32> to vector<256x24xf32>
    %31 = vector.extract_strided_slice %25 {offsets = [20, 0], sizes = [256, 24], strides = [1, 1]} : vector<294x24xf32> to vector<256x24xf32>
    %32 = vector.extract_strided_slice %25 {offsets = [36, 0], sizes = [256, 24], strides = [1, 1]} : vector<294x24xf32> to vector<256x24xf32>
    %33 = vector.extract_strided_slice %25 {offsets = [37, 0], sizes = [256, 24], strides = [1, 1]} : vector<294x24xf32> to vector<256x24xf32>
    %34 = vector.extract_strided_slice %25 {offsets = [38, 0], sizes = [256, 24], strides = [1, 1]} : vector<294x24xf32> to vector<256x24xf32>
    %35 = tpu.concatenate %26, %27, %28, %29, %30, %31, %32, %33, %34 in 1 : vector<256x24xf32>, vector<256x24xf32>, vector<256x24xf32>, vector<256x24xf32>, vector<256x24xf32>, vector<256x24xf32>, vector<256x24xf32>, vector<256x24xf32>, vector<256x24xf32> -> vector<256x216xf32>
    %36 = arith.truncf %35 : vector<256x216xf32> to vector<256x216xbf16>
    %c0_13 = arith.constant 0 : index
    %c0_14 = arith.constant 0 : index
    %37 = vector.load %arg3[%c0_13, %c0_14] : memref<216x24xbf16, #tpu.memory_space<vmem>>, vector<216x24xbf16>
    %cst_15 = arith.constant dense<0.000000e+00> : vector<256x24xf32>
    %38 = tpu.matmul %36, %37, %cst_15 {dimension_numbers = #tpu.dot_dimension_numbers<[1], [0], [0], [1], [0, 0, 1, 1], [], []>} : vector<256x216xbf16>, vector<216x24xbf16>, vector<256x24xf32> -> vector<256x24xf32>
    %39 = vector.extract_strided_slice %14 {offsets = [19, 0], sizes = [256, 1], strides = [1, 1]} : vector<294x1xf32> to vector<256x1xf32>
    %40 = vector.broadcast %39 : vector<256x1xf32> to vector<256x24xf32>
    %41 = arith.mulf %38, %40 : vector<256x24xf32>
    %c0_16 = arith.constant 0 : index
    %c0_17 = arith.constant 0 : index
    %42 = vector.load %arg6[%c0_16, %c0_17] : memref<256x24xf32, #tpu.memory_space<vmem>>, vector<256x24xf32>
    tpu.vector_store %arg6[%c0_16, %c0_17], %41 {strides = array<i32>} : memref<256x24xf32, #tpu.memory_space<vmem>>, vector<256x24xf32>,
    %c0_i32_18 = arith.constant 0 : i32
    %43 = arith.cmpi eq, %arg0, %c0_i32_18 : i32
    %44 = arith.extui %43 : i1 to i32
    %c0_i32_19 = arith.constant 0 : i32
    %45 = arith.cmpi ne, %44, %c0_i32_19 : i32
    scf.if %45 {
      %cst_30 = arith.constant 0.000000e+00 : f32
      %57 = vector.broadcast %cst_30 : f32 to vector<1x24xf32>
      %c0_31 = arith.constant 0 : index
      %c0_32 = arith.constant 0 : index
      %58 = vector.load %arg7[%c0_31, %c0_32] : memref<1x24xf32, #tpu.memory_space<vmem>>, vector<1x24xf32>
      tpu.vector_store %arg7[%c0_31, %c0_32], %57 {strides = array<i32>} : memref<1x24xf32, #tpu.memory_space<vmem>>, vector<1x24xf32>,
      %cst_33 = arith.constant 0.000000e+00 : f32
      %59 = vector.broadcast %cst_33 : f32 to vector<1x24xf32>
      %c0_34 = arith.constant 0 : index
      %c0_35 = arith.constant 0 : index
      %60 = vector.load %arg8[%c0_34, %c0_35] : memref<1x24xf32, #tpu.memory_space<vmem>>, vector<1x24xf32>
      tpu.vector_store %arg8[%c0_34, %c0_35], %59 {strides = array<i32>} : memref<1x24xf32, #tpu.memory_space<vmem>>, vector<1x24xf32>,
    } else {
    }
    %c0_20 = arith.constant 0 : index
    %c0_21 = arith.constant 0 : index
    %46 = vector.load %arg7[%c0_20, %c0_21] : memref<1x24xf32, #tpu.memory_space<vmem>>, vector<1x24xf32>
    %cst_22 = arith.constant dense<0.000000e+00> : vector<24xf32>
    %47 = vector.multi_reduction <add>, %41, %cst_22 [0] : vector<256x24xf32> to vector<24xf32>
    %48 = vector.shape_cast %47 : vector<24xf32> to vector<1x24xf32>
    %49 = arith.addf %46, %48 : vector<1x24xf32>
    %c0_23 = arith.constant 0 : index
    %c0_24 = arith.constant 0 : index
    %50 = vector.load %arg7[%c0_23, %c0_24] : memref<1x24xf32, #tpu.memory_space<vmem>>, vector<1x24xf32>
    tpu.vector_store %arg7[%c0_23, %c0_24], %49 {strides = array<i32>} : memref<1x24xf32, #tpu.memory_space<vmem>>, vector<1x24xf32>,
    %c0_25 = arith.constant 0 : index
    %c0_26 = arith.constant 0 : index
    %51 = vector.load %arg8[%c0_25, %c0_26] : memref<1x24xf32, #tpu.memory_space<vmem>>, vector<1x24xf32>
    %52 = arith.mulf %41, %41 : vector<256x24xf32>
    %cst_27 = arith.constant dense<0.000000e+00> : vector<24xf32>
    %53 = vector.multi_reduction <add>, %52, %cst_27 [0] : vector<256x24xf32> to vector<24xf32>
    %54 = vector.shape_cast %53 : vector<24xf32> to vector<1x24xf32>
    %55 = arith.addf %51, %54 : vector<1x24xf32>
    %c0_28 = arith.constant 0 : index
    %c0_29 = arith.constant 0 : index
    %56 = vector.load %arg8[%c0_28, %c0_29] : memref<1x24xf32, #tpu.memory_space<vmem>>, vector<1x24xf32>
    tpu.vector_store %arg8[%c0_28, %c0_29], %55 {strides = array<i32>} : memref<1x24xf32, #tpu.memory_space<vmem>>, vector<1x24xf32>,
    return
  }
  func.func @transform_0(%arg0: i32) -> (i32, i32) {
    %c0_i32 = arith.constant 0 : i32
    %c0_i32_0 = arith.constant 0 : i32
    %c0_i32_1 = arith.constant 0 : i32
    return %c0_i32, %c0_i32_0 : i32, i32
  }
  func.func @transform_1(%arg0: i32) -> (i32, i32) {
    %c0_i32 = arith.constant 0 : i32
    %c0_i32_0 = arith.constant 0 : i32
    %c0_i32_1 = arith.constant 0 : i32
    return %c0_i32, %c0_i32_0 : i32, i32
  }
  func.func @transform_2(%arg0: i32) -> (i32, i32) {
    %c0_i32 = arith.constant 0 : i32
    %c0_i32_0 = arith.constant 0 : i32
    %c0_i32_1 = arith.constant 0 : i32
    return %c0_i32, %c0_i32_0 : i32, i32
  }
  func.func @transform_5(%arg0: i32) -> (i32, i32) {
    %c0_i32 = arith.constant 0 : i32
    %c0_i32_0 = arith.constant 0 : i32
    return %arg0, %c0_i32 : i32, i32
  }
  func.func @transform_6(%arg0: i32) -> (i32, i32) {
    %c0_i32 = arith.constant 0 : i32
    %c0_i32_0 = arith.constant 0 : i32
    %c0_i32_1 = arith.constant 0 : i32
    return %c0_i32, %c0_i32_0 : i32, i32
  }
  func.func @transform_7(%arg0: i32) -> (i32, i32) {
    %c0_i32 = arith.constant 0 : i32
    %c0_i32_0 = arith.constant 0 : i32
    %c0_i32_1 = arith.constant 0 : i32
    return %c0_i32, %c0_i32_0 : i32, i32
  }
}

module attributes {stable_mosaic.version = 11 : i64} {
  func.func @_tail_kernel(%arg0: i32, %arg1: memref<256x80xf32, #tpu.memory_space<vmem>>, %arg2: memref<256x24xf32, #tpu.memory_space<vmem>>, %arg3: memref<256x24xf32, #tpu.memory_space<vmem>>, %arg4: memref<1x16xf32, #tpu.memory_space<vmem>>, %arg5: memref<1x16xf32, #tpu.memory_space<vmem>>, %arg6: memref<1x24xf32, #tpu.memory_space<vmem>>, %arg7: memref<1x24xf32, #tpu.memory_space<vmem>>, %arg8: memref<1x24xf32, #tpu.memory_space<vmem>>, %arg9: memref<1x24xf32, #tpu.memory_space<vmem>>, %arg10: memref<1x32xf32, #tpu.memory_space<vmem>>, %arg11: memref<1x32xf32, #tpu.memory_space<vmem>>, %arg12: memref<64x32xbf16, #tpu.memory_space<vmem>>, %arg13: memref<1x32xf32, #tpu.memory_space<vmem>>, %arg14: memref<256x32xf32, #tpu.memory_space<vmem>>) attributes {dimension_semantics = [#tpu.dimension_semantics<parallel>], iteration_bounds = array<i64: 3>, scalar_prefetch = 0 : i64, scratch_operands = 0 : i64, tpu.core_type = #tpu.core_type<tc>, window_params = [{transform_indices = @transform_0, window_bounds = array<i64: 256, 80>}, {transform_indices = @transform_1, window_bounds = array<i64: 256, 24>}, {transform_indices = @transform_2, window_bounds = array<i64: 256, 24>}, {pipeline_mode = #tpu.pipeline_mode<synchronous>, transform_indices = @transform_3, window_bounds = array<i64: 1, 16>}, {pipeline_mode = #tpu.pipeline_mode<synchronous>, transform_indices = @transform_4, window_bounds = array<i64: 1, 16>}, {pipeline_mode = #tpu.pipeline_mode<synchronous>, transform_indices = @transform_5, window_bounds = array<i64: 1, 24>}, {pipeline_mode = #tpu.pipeline_mode<synchronous>, transform_indices = @transform_6, window_bounds = array<i64: 1, 24>}, {pipeline_mode = #tpu.pipeline_mode<synchronous>, transform_indices = @transform_7, window_bounds = array<i64: 1, 24>}, {pipeline_mode = #tpu.pipeline_mode<synchronous>, transform_indices = @transform_8, window_bounds = array<i64: 1, 24>}, {pipeline_mode = #tpu.pipeline_mode<synchronous>, transform_indices = @transform_9, window_bounds = array<i64: 1, 32>}, {pipeline_mode = #tpu.pipeline_mode<synchronous>, transform_indices = @transform_10, window_bounds = array<i64: 1, 32>}, {pipeline_mode = #tpu.pipeline_mode<synchronous>, transform_indices = @transform_11, window_bounds = array<i64: 64, 32>}, {pipeline_mode = #tpu.pipeline_mode<synchronous>, transform_indices = @transform_12, window_bounds = array<i64: 1, 32>}, {transform_indices = @transform_13, window_bounds = array<i64: 256, 32>}]} {
    %c0 = arith.constant 0 : index
    %c0_0 = arith.constant 0 : index
    %0 = vector.load %arg1[%c0, %c0_0] : memref<256x80xf32, #tpu.memory_space<vmem>>, vector<256x80xf32>
    %1 = vector.extract_strided_slice %0 {offsets = [0, 0], sizes = [256, 16], strides = [1, 1]} : vector<256x80xf32> to vector<256x16xf32>
    %c0_1 = arith.constant 0 : index
    %c0_2 = arith.constant 0 : index
    %2 = vector.load %arg4[%c0_1, %c0_2] : memref<1x16xf32, #tpu.memory_space<vmem>>, vector<1x16xf32>
    %3 = vector.broadcast %2 : vector<1x16xf32> to vector<256x16xf32>
    %4 = arith.mulf %1, %3 : vector<256x16xf32>
    %c0_3 = arith.constant 0 : index
    %c0_4 = arith.constant 0 : index
    %5 = vector.load %arg5[%c0_3, %c0_4] : memref<1x16xf32, #tpu.memory_space<vmem>>, vector<1x16xf32>
    %6 = vector.broadcast %5 : vector<1x16xf32> to vector<256x16xf32>
    %7 = arith.addf %4, %6 : vector<256x16xf32>
    %cst = arith.constant 0.000000e+00 : f32
    %8 = vector.broadcast %cst : f32 to vector<256x16xf32>
    %9 = arith.maximumf %7, %8 : vector<256x16xf32>
    %c0_5 = arith.constant 0 : index
    %c0_6 = arith.constant 0 : index
    %10 = vector.load %arg2[%c0_5, %c0_6] : memref<256x24xf32, #tpu.memory_space<vmem>>, vector<256x24xf32>
    %c0_7 = arith.constant 0 : index
    %c0_8 = arith.constant 0 : index
    %11 = vector.load %arg6[%c0_7, %c0_8] : memref<1x24xf32, #tpu.memory_space<vmem>>, vector<1x24xf32>
    %12 = vector.broadcast %11 : vector<1x24xf32> to vector<256x24xf32>
    %13 = arith.mulf %10, %12 : vector<256x24xf32>
    %c0_9 = arith.constant 0 : index
    %c0_10 = arith.constant 0 : index
    %14 = vector.load %arg7[%c0_9, %c0_10] : memref<1x24xf32, #tpu.memory_space<vmem>>, vector<1x24xf32>
    %15 = vector.broadcast %14 : vector<1x24xf32> to vector<256x24xf32>
    %16 = arith.addf %13, %15 : vector<256x24xf32>
    %cst_11 = arith.constant 0.000000e+00 : f32
    %17 = vector.broadcast %cst_11 : f32 to vector<256x24xf32>
    %18 = arith.maximumf %16, %17 : vector<256x24xf32>
    %c0_12 = arith.constant 0 : index
    %c0_13 = arith.constant 0 : index
    %19 = vector.load %arg3[%c0_12, %c0_13] : memref<256x24xf32, #tpu.memory_space<vmem>>, vector<256x24xf32>
    %c0_14 = arith.constant 0 : index
    %c0_15 = arith.constant 0 : index
    %20 = vector.load %arg8[%c0_14, %c0_15] : memref<1x24xf32, #tpu.memory_space<vmem>>, vector<1x24xf32>
    %21 = vector.broadcast %20 : vector<1x24xf32> to vector<256x24xf32>
    %22 = arith.mulf %19, %21 : vector<256x24xf32>
    %c0_16 = arith.constant 0 : index
    %c0_17 = arith.constant 0 : index
    %23 = vector.load %arg9[%c0_16, %c0_17] : memref<1x24xf32, #tpu.memory_space<vmem>>, vector<1x24xf32>
    %24 = vector.broadcast %23 : vector<1x24xf32> to vector<256x24xf32>
    %25 = arith.addf %22, %24 : vector<256x24xf32>
    %cst_18 = arith.constant 0.000000e+00 : f32
    %26 = vector.broadcast %cst_18 : f32 to vector<256x24xf32>
    %27 = arith.maximumf %25, %26 : vector<256x24xf32>
    %28 = tpu.concatenate %9, %18, %27 in 1 : vector<256x16xf32>, vector<256x24xf32>, vector<256x24xf32> -> vector<256x64xf32>
    %29 = arith.truncf %28 : vector<256x64xf32> to vector<256x64xbf16>
    %c0_19 = arith.constant 0 : index
    %c0_20 = arith.constant 0 : index
    %30 = vector.load %arg12[%c0_19, %c0_20] : memref<64x32xbf16, #tpu.memory_space<vmem>>, vector<64x32xbf16>
    %cst_21 = arith.constant dense<0.000000e+00> : vector<256x32xf32>
    %31 = tpu.matmul %29, %30, %cst_21 {dimension_numbers = #tpu.dot_dimension_numbers<[1], [0], [0], [1], [0, 0, 1, 1], [], []>} : vector<256x64xbf16>, vector<64x32xbf16>, vector<256x32xf32> -> vector<256x32xf32>
    %c0_22 = arith.constant 0 : index
    %c0_23 = arith.constant 0 : index
    %32 = vector.load %arg13[%c0_22, %c0_23] : memref<1x32xf32, #tpu.memory_space<vmem>>, vector<1x32xf32>
    %33 = vector.broadcast %32 : vector<1x32xf32> to vector<256x32xf32>
    %34 = arith.addf %31, %33 : vector<256x32xf32>
    %35 = vector.extract_strided_slice %0 {offsets = [0, 48], sizes = [256, 32], strides = [1, 1]} : vector<256x80xf32> to vector<256x32xf32>
    %c0_24 = arith.constant 0 : index
    %c0_25 = arith.constant 0 : index
    %36 = vector.load %arg10[%c0_24, %c0_25] : memref<1x32xf32, #tpu.memory_space<vmem>>, vector<1x32xf32>
    %37 = vector.broadcast %36 : vector<1x32xf32> to vector<256x32xf32>
    %38 = arith.mulf %35, %37 : vector<256x32xf32>
    %c0_26 = arith.constant 0 : index
    %c0_27 = arith.constant 0 : index
    %39 = vector.load %arg11[%c0_26, %c0_27] : memref<1x32xf32, #tpu.memory_space<vmem>>, vector<1x32xf32>
    %40 = vector.broadcast %39 : vector<1x32xf32> to vector<256x32xf32>
    %41 = arith.addf %38, %40 : vector<256x32xf32>
    %42 = arith.addf %34, %41 : vector<256x32xf32>
    %cst_28 = arith.constant 0.000000e+00 : f32
    %43 = vector.broadcast %cst_28 : f32 to vector<256x32xf32>
    %44 = arith.maximumf %42, %43 : vector<256x32xf32>
    %c0_29 = arith.constant 0 : index
    %c0_30 = arith.constant 0 : index
    %45 = vector.load %arg14[%c0_29, %c0_30] : memref<256x32xf32, #tpu.memory_space<vmem>>, vector<256x32xf32>
    tpu.vector_store %arg14[%c0_29, %c0_30], %44 {strides = array<i32>} : memref<256x32xf32, #tpu.memory_space<vmem>>, vector<256x32xf32>,
    return
  }
  func.func @transform_0(%arg0: i32) -> (i32, i32) {
    %c0_i32 = arith.constant 0 : i32
    %c0_i32_0 = arith.constant 0 : i32
    return %arg0, %c0_i32 : i32, i32
  }
  func.func @transform_1(%arg0: i32) -> (i32, i32) {
    %c0_i32 = arith.constant 0 : i32
    %c0_i32_0 = arith.constant 0 : i32
    return %arg0, %c0_i32 : i32, i32
  }
  func.func @transform_2(%arg0: i32) -> (i32, i32) {
    %c0_i32 = arith.constant 0 : i32
    %c0_i32_0 = arith.constant 0 : i32
    return %arg0, %c0_i32 : i32, i32
  }
  func.func @transform_3(%arg0: i32) -> (i32, i32) {
    %c0_i32 = arith.constant 0 : i32
    %c0_i32_0 = arith.constant 0 : i32
    %c0_i32_1 = arith.constant 0 : i32
    return %c0_i32, %c0_i32_0 : i32, i32
  }
  func.func @transform_4(%arg0: i32) -> (i32, i32) {
    %c0_i32 = arith.constant 0 : i32
    %c0_i32_0 = arith.constant 0 : i32
    %c0_i32_1 = arith.constant 0 : i32
    return %c0_i32, %c0_i32_0 : i32, i32
  }
  func.func @transform_5(%arg0: i32) -> (i32, i32) {
    %c0_i32 = arith.constant 0 : i32
    %c0_i32_0 = arith.constant 0 : i32
    %c0_i32_1 = arith.constant 0 : i32
    return %c0_i32, %c0_i32_0 : i32, i32
  }
  func.func @transform_6(%arg0: i32) -> (i32, i32) {
    %c0_i32 = arith.constant 0 : i32
    %c0_i32_0 = arith.constant 0 : i32
    %c0_i32_1 = arith.constant 0 : i32
    return %c0_i32, %c0_i32_0 : i32, i32
  }
  func.func @transform_7(%arg0: i32) -> (i32, i32) {
    %c0_i32 = arith.constant 0 : i32
    %c0_i32_0 = arith.constant 0 : i32
    %c0_i32_1 = arith.constant 0 : i32
    return %c0_i32, %c0_i32_0 : i32, i32
  }
  func.func @transform_8(%arg0: i32) -> (i32, i32) {
    %c0_i32 = arith.constant 0 : i32
    %c0_i32_0 = arith.constant 0 : i32
    %c0_i32_1 = arith.constant 0 : i32
    return %c0_i32, %c0_i32_0 : i32, i32
  }
  func.func @transform_9(%arg0: i32) -> (i32, i32) {
    %c0_i32 = arith.constant 0 : i32
    %c0_i32_0 = arith.constant 0 : i32
    %c0_i32_1 = arith.constant 0 : i32
    return %c0_i32, %c0_i32_0 : i32, i32
  }
  func.func @transform_10(%arg0: i32) -> (i32, i32) {
    %c0_i32 = arith.constant 0 : i32
    %c0_i32_0 = arith.constant 0 : i32
    %c0_i32_1 = arith.constant 0 : i32
    return %c0_i32, %c0_i32_0 : i32, i32
  }
  func.func @transform_11(%arg0: i32) -> (i32, i32) {
    %c0_i32 = arith.constant 0 : i32
    %c0_i32_0 = arith.constant 0 : i32
    %c0_i32_1 = arith.constant 0 : i32
    return %c0_i32, %c0_i32_0 : i32, i32
  }
  func.func @transform_12(%arg0: i32) -> (i32, i32) {
    %c0_i32 = arith.constant 0 : i32
    %c0_i32_0 = arith.constant 0 : i32
    %c0_i32_1 = arith.constant 0 : i32
    return %c0_i32, %c0_i32_0 : i32, i32
  }
  func.func @transform_13(%arg0: i32) -> (i32, i32) {
    %c0_i32 = arith.constant 0 : i32
    %c0_i32_0 = arith.constant 0 : i32
    return %arg0, %c0_i32 : i32, i32
  }
}

</mosaic_0001>

<llo_original>
// kernel: tile.6
$region0: #{tile.6}
  #allocation0 [shape = 's32[1]{0}', space=sflag, size = 0x4, scoped, tag = 'scoped memory for tile.6']
  %s0 = inlined_call_operand.vmem [shape: f32[324], index: 0, kind: input, shape index: {}]
  %s1 = inlined_call_operand.vmem [shape: f32[2,1,1,324], index: 1, kind: output, shape index: {}]
  // Predicated region
  $region2: #{tile.6} parent=0 // pred_check
    _
  $region3: #{tile.6} parent=0 // pred_check_branch
    %3 = sbr.rel (0) target = $region5
  $region4: #{tile.6} parent=0 // pred_region
    _
  $region5: #{tile.6} parent=0 // pred_fallthru
    _
  %v4 = vld [vmem:[%s0] ss:$0 sm:$0xff]
  %5 = vst [vmem:[%s1] sm:$0x3] %v4
  %s6 = scalar_lea.vmem %s0, 1
  %v7 = vld [vmem:[%s6] ss:$0 sm:$0xff]
  %s8 = scalar_lea.vmem %s1, 2
  %9 = vst [vmem:[%s8] sm:$0x3] %v7
  %s10 = scalar_lea.vmem %s0, 2
  %v11 = vld [vmem:[%s10] ss:$0 sm:$0xff]
  %s12 = scalar_lea.vmem %s1, 4
  %13 = vst [vmem:[%s12] sm:$0x3] %v11

// kernel: tile.0
$region0: #{tile.0}
  %s0 = inlined_call_operand.vmem [shape: f32[2,1,1,324], index: 0, kind: input, shape index: {}]
  %s1 = inlined_call_operand.vmem [shape: f32[648,1], index: 1, kind: output, shape index: {}]
  $region1: #{tile.0} parent=0
    #allocation0 [shape = 'u8[12288]{0}', space=vmem, size = 0x3000, scoped, tag = 'scoped mem for input reshape']
    %s3 = sshllo.u32 0, 2
    %s4 = smul.addr 2, 2
    %s5 = scalar_lea.vmem %s0, %s4
    %v6 = vld [vmem:[%s5] sm:%s3]
    %s7 = scalar_lea.vmem [#allocation0], 16
    %8 = vst [vmem:[%s7] sm:%s3] %v6
    %s9 = scalar_lea.vmem %s0, 2
    %v10 = vld [vmem:[%s9] sm:%s3]
    %s11 = scalar_lea.vmem [#allocation0], 8
    %12 = vst [vmem:[%s11] sm:%s3] %v10
    %v13 = vld [vmem:[%s0] sm:%s3]
    %14 = vst [vmem:[#allocation0] sm:%s3] %v13
    %v15 = vld [vmem:[#allocation0] sm:$0x3]
    %vm16 = vcmask 7168
    %17 = vst.msk [vmem:[%s1] ss:$324 sm:$0x3] %vm16, %v15
    %s18 = scalar_lea.vmem [#allocation0], 8
    %v19 = vld [vmem:[%s18] sm:$0x3]
    %vm20 = vcmask 7168
    %s21 = scalar_lea.vmem %s1, 128
    %22 = vst.msk [vmem:[%s21] ss:$324 sm:$0x3] %vm20, %v19
    %s23 = scalar_lea.vmem [#allocation0], 16
    %v24 = vld [vmem:[%s23] sm:$0x3]
    %vm25 = vcmask 7168
    %s26 = scalar_lea.vmem %s1, 256
    %27 = vst.msk [vmem:[%s26] ss:$324 sm:$0x3] %vm25, %v24
    %v28 = vld.sshfl [vmem:[#allocation0] sm:$0xff pattern:$0x99999810]
    %s29 = scalar_lea.vmem [#allocation0], 12
    %v30 = vld [vmem:[%s29] sm:$0x30]
    %vm31 = vcmask 1045508
    %v32 = vsel %vm31, %v30, %v28
    %33 = vrot.lane.b32.xlu0 %v32, 127
    %v34 = vpop.permute.xlu0 %33
    %vm35 = vcmask 7168
    %s36 = scalar_lea.vmem %s1, 1
    %37 = vst.msk [vmem:[%s36] ss:$324 sm:$0x3] %vm35, %v34
    %s38 = scalar_lea.vmem %s1, 4294966777
    %39 = vst.msk [vmem:[%s38] ss:$324 sm:$0xc] %vm35, %v34
    %s40 = scalar_lea.vmem %s1, 4294966257
    %41 = vst.msk [vmem:[%s40] ss:$324 sm:$0x30] %vm35, %v34
    %v42 = vld.sshfl [vmem:[#allocation0] sm:$0xff pattern:$0x99999810]
    %s43 = scalar_lea.vmem [#allocation0], 12
    %v44 = vld [vmem:[%s43] sm:$0x30]
    %vm45 = vcmask 1045508
    %v46 = vsel %vm45, %v44, %v42
    %47 = vrot.lane.b32.xlu0 %v46, 126
    %v48 = vpop.permute.xlu0 %47
    %vm49 = vcmask 7168
    %s50 = scalar_lea.vmem %s1, 2
    %51 = vst.msk [vmem:[%s50] ss:$324 sm:$0x3] %vm49, %v48
    %s52 = scalar_lea.vmem %s1, 4294966778
    %53 = vst.msk [vmem:[%s52] ss:$324 sm:$0xc] %vm49, %v48
    %s54 = scalar_lea.vmem %s1, 4294966258
    %55 = vst.msk [vmem:[%s54] ss:$324 sm:$0x30] %vm49, %v48
    %v56 = vld.sshfl [vmem:[#allocation0] sm:$0xff pattern:$0x99999810]
    %s57 = scalar_lea.vmem [#allocation0], 12
    %v58 = vld [vmem:[%s57] sm:$0x30]
    %vm59 = vcmask 1045508
    %v60 = vsel %vm59, %v58, %v56
    %61 = vrot.lane.b32.xlu0 %v60, 125
    %v62 = vpop.permute.xlu0 %61
    %vm63 = vcmask 7168
    %s64 = scalar_lea.vmem %s1, 3
    %65 = vst.msk [vmem:[%s64] ss:$324 sm:$0x3] %vm63, %v62
    %s66 = scalar_lea.vmem %s1, 4294966779
    %67 = vst.msk [vmem:[%s66] ss:$324 sm:$0xc] %vm63, %v62
    %s68 = scalar_lea.vmem %s1, 4294966259
    %69 = vst.msk [vmem:[%s68] ss:$324 sm:$0x30] %vm63, %v62
    %v70 = vld.sshfl [vmem:[#allocation0] sm:$0xff pattern:$0x99999810]
    %s71 = scalar_lea.vmem [#allocation0], 12
    %v72 = vld [vmem:[%s71] sm:$0x30]
    %vm73 = vcmask 1045508
    %v74 = vsel %vm73, %v72, %v70
    %75 = vrot.lane.b32.xlu0 %v74, 124
    %v76 = vpop.permute.xlu0 %75
    %vm77 = vcmask 7168
    %s78 = scalar_lea.vmem %s1, 4
    %79 = vst.msk [vmem:[%s78] ss:$324 sm:$0x3] %vm77, %v76
    %s80 = scalar_lea.vmem %s1, 4294966780
    %81 = vst.msk [vmem:[%s80] ss:$324 sm:$0xc] %vm77, %v76
    %s82 = scalar_lea.vmem %s1, 4294966260
    %83 = vst.msk [vmem:[%s82] ss:$324 sm:$0x30] %vm77, %v76
    %v84 = vld.sshfl [vmem:[#allocation0] sm:$0xff pattern:$0x99999810]
    %s85 = scalar_lea.vmem [#allocation0], 12
    %v86 = vld [vmem:[%s85] sm:$0x30]
    %vm87 = vcmask 1045508
    %v88 = vsel %vm87, %v86, %v84
    %89 = vrot.lane.b32.xlu0 %v88, 123
    %v90 = vpop.permute.xlu0 %89
    %vm91 = vcmask 7168
    %s92 = scalar_lea.vmem %s1, 5
    %93 = vst.msk [vmem:[%s92] ss:$324 sm:$0x3] %vm91, %v90
    %s94 = scalar_lea.vmem %s1, 4294966781
    %95 = vst.msk [vmem:[%s94] ss:$324 sm:$0xc] %vm91, %v90
    %s96 = scalar_lea.vmem %s1, 4294966261
    %97 = vst.msk [vmem:[%s96] ss:$324 sm:$0x30] %vm91, %v90
    %v98 = vld.sshfl [vmem:[#allocation0] sm:$0xff pattern:$0x99999810]
    %s99 = scalar_lea.vmem [#allocation0], 12
    %v100 = vld [vmem:[%s99] sm:$0x30]
    %vm101 = vcmask 1045508
    %v102 = vsel %vm101, %v100, %v98
    %103 = vrot.lane.b32.xlu0 %v102, 122
    %v104 = vpop.permute.xlu0 %103
    %vm105 = vcmask 7168
    %s106 = scalar_lea.vmem %s1, 6
    %107 = vst.msk [vmem:[%s106] ss:$324 sm:$0x3] %vm105, %v104
    %s108 = scalar_lea.vmem %s1, 4294966782
    %109 = vst.msk [vmem:[%s108] ss:$324 sm:$0xc] %vm105, %v104
    %s110 = scalar_lea.vmem %s1, 4294966262
    %111 = vst.msk [vmem:[%s110] ss:$324 sm:$0x30] %vm105, %v104
    %v112 = vld.sshfl [vmem:[#allocation0] sm:$0xff pattern:$0x99999810]
    %s113 = scalar_lea.vmem [#allocation0], 12
    %v114 = vld [vmem:[%s113] sm:$0x30]
    %vm115 = vcmask 1045508
    %v116 = vsel %vm115, %v114, %v112
    %117 = vrot.lane.b32.xlu0 %v116, 121
    %v118 = vpop.permute.xlu0 %117
    %vm119 = vcmask 7168
    %s120 = scalar_lea.vmem %s1, 7
    %121 = vst.msk [vmem:[%s120] ss:$324 sm:$0x3] %vm119, %v118
    %s122 = scalar_lea.vmem %s1, 4294966783
    %123 = vst.msk [vmem:[%s122] ss:$324 sm:$0xc] %vm119, %v118
    %s124 = scalar_lea.vmem %s1, 4294966263
    %125 = vst.msk [vmem:[%s124] ss:$324 sm:$0x30] %vm119, %v118
    %v126 = vld.sshfl [vmem:[#allocation0] sm:$0xff pattern:$0x99999810]
    %s127 = scalar_lea.vmem [#allocation0], 12
    %v128 = vld [vmem:[%s127] sm:$0x30]
    %vm129 = vcmask 1045508
    %v130 = vsel %vm129, %v128, %v126
    %131 = vrot.lane.b32.xlu0 %v130, 120
    %v132 = vpop.permute.xlu0 %131
    %vm133 = vcmask 7168
    %s134 = scalar_lea.vmem %s1, 8
    %135 = vst.msk [vmem:[%s134] ss:$324 sm:$0x3] %vm133, %v132
    %s136 = scalar_lea.vmem %s1, 4294966784
    %137 = vst.msk [vmem:[%s136] ss:$324 sm:$0xc] %vm133, %v132
    %s138 = scalar_lea.vmem %s1, 4294966264
    %139 = vst.msk [vmem:[%s138] ss:$324 sm:$0x30] %vm133, %v132
    %v140 = vld.sshfl [vmem:[#allocation0] sm:$0xff pattern:$0x99999810]
    %s141 = scalar_lea.vmem [#allocation0], 12
    %v142 = vld [vmem:[%s141] sm:$0x30]
    %vm143 = vcmask 1045508
    %v144 = vsel %vm143, %v142, %v140
    %145 = vrot.lane.b32.xlu0 %v144, 119
    %v146 = vpop.permute.xlu0 %145
    %vm147 = vcmask 7168
    %s148 = scalar_lea.vmem %s1, 9
    %149 = vst.msk [vmem:[%s148] ss:$324 sm:$0x3] %vm147, %v146
    %s150 = scalar_lea.vmem %s1, 4294966785
    %151 = vst.msk [vmem:[%s150] ss:$324 sm:$0xc] %vm147, %v146
    %s152 = scalar_lea.vmem %s1, 4294966265
    %153 = vst.msk [vmem:[%s152] ss:$324 sm:$0x30] %vm147, %v146
    %v154 = vld.sshfl [vmem:[#allocation0] sm:$0xff pattern:$0x99999810]
    %s155 = scalar_lea.vmem [#allocation0], 12
    %v156 = vld [vmem:[%s155] sm:$0x30]
    %vm157 = vcmask 1045508
    %v158 = vsel %vm157, %v156, %v154
    %159 = vrot.lane.b32.xlu0 %v158, 118
    %v160 = vpop.permute.xlu0 %159
    %vm161 = vcmask 7168
    %s162 = scalar_lea.vmem %s1, 10
    %163 = vst.msk [vmem:[%s162] ss:$324 sm:$0x3] %vm161, %v160
    %s164 = scalar_lea.vmem %s1, 4294966786
    %165 = vst.msk [vmem:[%s164] ss:$324 sm:$0xc] %vm161, %v160
    %s166 = scalar_lea.vmem %s1, 4294966266
    %167 = vst.msk [vmem:[%s166] ss:$324 sm:$0x30] %vm161, %v160
    %v168 = vld.sshfl [vmem:[#allocation0] sm:$0xff pattern:$0x99999810]
    %s169 = scalar_lea.vmem [#allocation0], 12
    %v170 = vld [vmem:[%s169] sm:$0x30]
    %vm171 = vcmask 1045508
    %v172 = vsel %vm171, %v170, %v168
    %173 = vrot.lane.b32.xlu0 %v172, 117
    %v174 = vpop.permute.xlu0 %173
    %vm175 = vcmask 7168
    %s176 = scalar_lea.vmem %s1, 11
    %177 = vst.msk [vmem:[%s176] ss:$324 sm:$0x3] %vm175, %v174
    %s178 = scalar_lea.vmem %s1, 4294966787
    %179 = vst.msk [vmem:[%s178] ss:$324 sm:$0xc] %vm175, %v174
    %s180 = scalar_lea.vmem %s1, 4294966267
    %181 = vst.msk [vmem:[%s180] ss:$324 sm:$0x30] %vm175, %v174
    %v182 = vld.sshfl [vmem:[#allocation0] sm:$0xff pattern:$0x99999810]
    %s183 = scalar_lea.vmem [#allocation0], 12
    %v184 = vld [vmem:[%s183] sm:$0x30]
    %vm185 = vcmask 1045508
    %v186 = vsel %vm185, %v184, %v182
    %187 = vrot.lane.b32.xlu0 %v186, 116
    %v188 = vpop.permute.xlu0 %187
    %vm189 = vcmask 7168
    %s190 = scalar_lea.vmem %s1, 12
    %191 = vst.msk [vmem:[%s190] ss:$324 sm:$0x3] %vm189, %v188
    %s192 = scalar_lea.vmem %s1, 4294966788
    %193 = vst.msk [vmem:[%s192] ss:$324 sm:$0xc] %vm189, %v188
    %s194 = scalar_lea.vmem %s1, 4294966268
    %195 = vst.msk [vmem:[%s194] ss:$324 sm:$0x30] %vm189, %v188
    %v196 = vld.sshfl [vmem:[#allocation0] sm:$0xff pattern:$0x99999810]
    %s197 = scalar_lea.vmem [#allocation0], 12
    %v198 = vld [vmem:[%s197] sm:$0x30]
    %vm199 = vcmask 1045508
    %v200 = vsel %vm199, %v198, %v196
    %201 = vrot.lane.b32.xlu0 %v200, 115
    %v202 = vpop.permute.xlu0 %201
    %vm203 = vcmask 7168
    %s204 = scalar_lea.vmem %s1, 13
    %205 = vst.msk [vmem:[%s204] ss:$324 sm:$0x3] %vm203, %v202
    %s206 = scalar_lea.vmem %s1, 4294966789
    %207 = vst.msk [vmem:[%s206] ss:$324 sm:$0xc] %vm203, %v202
    %s208 = scalar_lea.vmem %s1, 4294966269
    %209 = vst.msk [vmem:[%s208] ss:$324 sm:$0x30] %vm203, %v202
    %v210 = vld.sshfl [vmem:[#allocation0] sm:$0xff pattern:$0x99999810]
    %s211 = scalar_lea.vmem [#allocation0], 12
    %v212 = vld [vmem:[%s211] sm:$0x30]
    %vm213 = vcmask 1045508
    %v214 = vsel %vm213, %v212, %v210
    %215 = vrot.lane.b32.xlu0 %v214, 114
    %v216 = vpop.permute.xlu0 %215
    %vm217 = vcmask 7168
    %s218 = scalar_lea.vmem %s1, 14
    %219 = vst.msk [vmem:[%s218] ss:$324 sm:$0x3] %vm217, %v216
    %s220 = scalar_lea.vmem %s1, 4294966790
    %221 = vst.msk [vmem:[%s220] ss:$324 sm:$0xc] %vm217, %v216
    %s222 = scalar_lea.vmem %s1, 4294966270
    %223 = vst.msk [vmem:[%s222] ss:$324 sm:$0x30] %vm217, %v216
    %v224 = vld.sshfl [vmem:[#allocation0] sm:$0xff pattern:$0x99999810]
    %s225 = scalar_lea.vmem [#allocation0], 12
    %v226 = vld [vmem:[%s225] sm:$0x30]
    %vm227 = vcmask 1045508
    %v228 = vsel %vm227, %v226, %v224
    %229 = vrot.lane.b32.xlu0 %v228, 113
    %v230 = vpop.permute.xlu0 %229
    %vm231 = vcmask 7168
    %s232 = scalar_lea.vmem %s1, 15
    %233 = vst.msk [vmem:[%s232] ss:$324 sm:$0x3] %vm231, %v230
    %s234 = scalar_lea.vmem %s1, 4294966791
    %235 = vst.msk [vmem:[%s234] ss:$324 sm:$0xc] %vm231, %v230
    %s236 = scalar_lea.vmem %s1, 4294966271
    %237 = vst.msk [vmem:[%s236] ss:$324 sm:$0x30] %vm231, %v230
    %v238 = vld.sshfl [vmem:[#allocation0] sm:$0xff pattern:$0x99999810]
    %s239 = scalar_lea.vmem [#allocation0], 12
    %v240 = vld [vmem:[%s239] sm:$0x30]
    %vm241 = vcmask 1045508
    %v242 = vsel %vm241, %v240, %v238
    %243 = vrot.lane.b32.xlu0 %v242, 112
    %v244 = vpop.permute.xlu0 %243
    %vm245 = vcmask 7168
    %s246 = scalar_lea.vmem %s1, 16
    %247 = vst.msk [vmem:[%s246] ss:$324 sm:$0x3] %vm245, %v244
    %s248 = scalar_lea.vmem %s1, 4294966792
    %249 = vst.msk [vmem:[%s248] ss:$324 sm:$0xc] %vm245, %v244
    %s250 = scalar_lea.vmem %s1, 4294966272
    %251 = vst.msk [vmem:[%s250] ss:$324 sm:$0x30] %vm245, %v244
    %v252 = vld.sshfl [vmem:[#allocation0] sm:$0xff pattern:$0x99999810]
    %s253 = scalar_lea.vmem [#allocation0], 12
    %v254 = vld [vmem:[%s253] sm:$0x30]
    %vm255 = vcmask 1045508
    %v256 = vsel %vm255, %v254, %v252
    %257 = vrot.lane.b32.xlu0 %v256, 111
    %v258 = vpop.permute.xlu0 %257
    %vm259 = vcmask 7168
    %s260 = scalar_lea.vmem %s1, 17
    %261 = vst.msk [vmem:[%s260] ss:$324 sm:$0x3] %vm259, %v258
    %s262 = scalar_lea.vmem %s1, 4294966793
    %263 = vst.msk [vmem:[%s262] ss:$324 sm:$0xc] %vm259, %v258
    %s264 = scalar_lea.vmem %s1, 4294966273
    %265 = vst.msk [vmem:[%s264] ss:$324 sm:$0x30] %vm259, %v258
    %v266 = vld.sshfl [vmem:[#allocation0] sm:$0xff pattern:$0x99999810]
    %s267 = scalar_lea.vmem [#allocation0], 12
    %v268 = vld [vmem:[%s267] sm:$0x30]
    %vm269 = vcmask 1045508
    %v270 = vsel %vm269, %v268, %v266
    %271 = vrot.lane.b32.xlu0 %v270, 110
    %v272 = vpop.permute.xlu0 %271
    %vm273 = vcmask 7168
    %s274 = scalar_lea.vmem %s1, 18
    %275 = vst.msk [vmem:[%s274] ss:$324 sm:$0x3] %vm273, %v272
    %s276 = scalar_lea.vmem %s1, 4294966794
    %277 = vst.msk [vmem:[%s276] ss:$324 sm:$0xc] %vm273, %v272
    %s278 = scalar_lea.vmem %s1, 4294966274
    %279 = vst.msk [vmem:[%s278] ss:$324 sm:$0x30] %vm273, %v272
    %v280 = vld.sshfl [vmem:[#allocation0] sm:$0xff pattern:$0x99999810]
    %s281 = scalar_lea.vmem [#allocation0], 12
    %v282 = vld [vmem:[%s281] sm:$0x30]
    %vm283 = vcmask 1045508
    %v284 = vsel %vm283, %v282, %v280
    %285 = vrot.lane.b32.xlu0 %v284, 109
    %v286 = vpop.permute.xlu0 %285
    %vm287 = vcmask 7168
    %s288 = scalar_lea.vmem %s1, 19
    %289 = vst.msk [vmem:[%s288] ss:$324 sm:$0x3] %vm287, %v286
    %s290 = scalar_lea.vmem %s1, 4294966795
    %291 = vst.msk [vmem:[%s290] ss:$324 sm:$0xc] %vm287, %v286
    %s292 = scalar_lea.vmem %s1, 4294966275
    %293 = vst.msk [vmem:[%s292] ss:$324 sm:$0x30] %vm287, %v286
    %v294 = vld.sshfl [vmem:[#allocation0] sm:$0xff pattern:$0x99999810]
    %s295 = scalar_lea.vmem [#allocation0], 12
    %v296 = vld [vmem:[%s295] sm:$0x30]
    %vm297 = vcmask 1045508
    %v298 = vsel %vm297, %v296, %v294
    %299 = vrot.lane.b32.xlu0 %v298, 108
    %v300 = vpop.permute.xlu0 %299
    %vm301 = vcmask 7168
    %s302 = scalar_lea.vmem %s1, 20
    %303 = vst.msk [vmem:[%s302] ss:$324 sm:$0x3] %vm301, %v300
    %s304 = scalar_lea.vmem %s1, 4294966796
    %305 = vst.msk [vmem:[%s304] ss:$324 sm:$0xc] %vm301, %v300
    %s306 = scalar_lea.vmem %s1, 4294966276
    %307 = vst.msk [vmem:[%s306] ss:$324 sm:$0x30] %vm301, %v300
    %v308 = vld.sshfl [vmem:[#allocation0] sm:$0xff pattern:$0x99999810]
    %s309 = scalar_lea.vmem [#allocation0], 12
    %v310 = vld [vmem:[%s309] sm:$0x30]
    %vm311 = vcmask 1045508
    %v312 = vsel %vm311, %v310, %v308
    %313 = vrot.lane.b32.xlu0 %v312, 107
    %v314 = vpop.permute.xlu0 %313
    %vm315 = vcmask 7168
    %s316 = scalar_lea.vmem %s1, 21
    %317 = vst.msk [vmem:[%s316] ss:$324 sm:$0x3] %vm315, %v314
    %s318 = scalar_lea.vmem %s1, 4294966797
    %319 = vst.msk [vmem:[%s318] ss:$324 sm:$0xc] %vm315, %v314
    %s320 = scalar_lea.vmem %s1, 4294966277
    %321 = vst.msk [vmem:[%s320] ss:$324 sm:$0x30] %vm315, %v314
    %v322 = vld.sshfl [vmem:[#allocation0] sm:$0xff pattern:$0x99999810]
    %s323 = scalar_lea.vmem [#allocation0], 12
    %v324 = vld [vmem:[%s323] sm:$0x30]
    %vm325 = vcmask 1045508
    %v326 = vsel %vm325, %v324, %v322
    %327 = vrot.lane.b32.xlu0 %v326, 106
    %v328 = vpop.permute.xlu0 %327
    %vm329 = vcmask 7168
    %s330 = scalar_lea.vmem %s1, 22
    %331 = vst.msk [vmem:[%s330] ss:$324 sm:$0x3] %vm329, %v328
    %s332 = scalar_lea.vmem %s1, 4294966798
    %333 = vst.msk [vmem:[%s332] ss:$324 sm:$0xc] %vm329, %v328
    %s334 = scalar_lea.vmem %s1, 4294966278
    %335 = vst.msk [vmem:[%s334] ss:$324 sm:$0x30] %vm329, %v328
    %v336 = vld.sshfl [vmem:[#allocation0] sm:$0xff pattern:$0x99999810]
    %s337 = scalar_lea.vmem [#allocation0], 12
    %v338 = vld [vmem:[%s337] sm:$0x30]
    %vm339 = vcmask 1045508
    %v340 = vsel %vm339, %v338, %v336
    %341 = vrot.lane.b32.xlu0 %v340, 105
    %v342 = vpop.permute.xlu0 %341
    %vm343 = vcmask 7168
    %s344 = scalar_lea.vmem %s1, 23
    %345 = vst.msk [vmem:[%s344] ss:$324 sm:$0x3] %vm343, %v342
    %s346 = scalar_lea.vmem %s1, 4294966799
    %347 = vst.msk [vmem:[%s346] ss:$324 sm:$0xc] %vm343, %v342
    %s348 = scalar_lea.vmem %s1, 4294966279
    %349 = vst.msk [vmem:[%s348] ss:$324 sm:$0x30] %vm343, %v342
    %v350 = vld.sshfl [vmem:[#allocation0] sm:$0xff pattern:$0x99999810]
    %s351 = scalar_lea.vmem [#allocation0], 12
    %v352 = vld [vmem:[%s351] sm:$0x30]
    %vm353 = vcmask 1045508
    %v354 = vsel %vm353, %v352, %v350
    %355 = vrot.lane.b32.xlu0 %v354, 104
    %v356 = vpop.permute.xlu0 %355
    %vm357 = vcmask 7168
    %s358 = scalar_lea.vmem %s1, 24
    %359 = vst.msk [vmem:[%s358] ss:$324 sm:$0x3] %vm357, %v356
    %s360 = scalar_lea.vmem %s1, 4294966800
    %361 = vst.msk [vmem:[%s360] ss:$324 sm:$0xc] %vm357, %v356
    %s362 = scalar_lea.vmem %s1, 4294966280
    %363 = vst.msk [vmem:[%s362] ss:$324 sm:$0x30] %vm357, %v356
    %v364 = vld.sshfl [vmem:[#allocation0] sm:$0xff pattern:$0x99999810]
    %s365 = scalar_lea.vmem [#allocation0], 12
    %v366 = vld [vmem:[%s365] sm:$0x30]
    %vm367 = vcmask 1045508
    %v368 = vsel %vm367, %v366, %v364
    %369 = vrot.lane.b32.xlu0 %v368, 103
    %v370 = vpop.permute.xlu0 %369
    %vm371 = vcmask 7168
    %s372 = scalar_lea.vmem %s1, 25
    %373 = vst.msk [vmem:[%s372] ss:$324 sm:$0x3] %vm371, %v370
    %s374 = scalar_lea.vmem %s1, 4294966801
    %375 = vst.msk [vmem:[%s374] ss:$324 sm:$0xc] %vm371, %v370
    %s376 = scalar_lea.vmem %s1, 4294966281
    %377 = vst.msk [vmem:[%s376] ss:$324 sm:$0x30] %vm371, %v370
    %v378 = vld.sshfl [vmem:[#allocation0] sm:$0xff pattern:$0x99999810]
    %s379 = scalar_lea.vmem [#allocation0], 12
    %v380 = vld [vmem:[%s379] sm:$0x30]
    %vm381 = vcmask 1045508
    %v382 = vsel %vm381, %v380, %v378
    %383 = vrot.lane.b32.xlu0 %v382, 102
    %v384 = vpop.permute.xlu0 %383
    %vm385 = vcmask 7168
    %s386 = scalar_lea.vmem %s1, 26
    %387 = vst.msk [vmem:[%s386] ss:$324 sm:$0x3] %vm385, %v384
    %s388 = scalar_lea.vmem %s1, 4294966802
    %389 = vst.msk [vmem:[%s388] ss:$324 sm:$0xc] %vm385, %v384
    %s390 = scalar_lea.vmem %s1, 4294966282
    %391 = vst.msk [vmem:[%s390] ss:$324 sm:$0x30] %vm385, %v384
    %v392 = vld.sshfl [vmem:[#allocation0] sm:$0xff pattern:$0x99999810]
    %s393 = scalar_lea.vmem [#allocation0], 12
    %v394 = vld [vmem:[%s393] sm:$0x30]
    %vm395 = vcmask 1045508
    %v396 = vsel %vm395, %v394, %v392
    %397 = vrot.lane.b32.xlu0 %v396, 101
    %v398 = vpop.permute.xlu0 %397
    %vm399 = vcmask 7168
    %s400 = scalar_lea.vmem %s1, 27
    %401 = vst.msk [vmem:[%s400] ss:$324 sm:$0x3] %vm399, %v398
    %s402 = scalar_lea.vmem %s1, 4294966803
    %403 = vst.msk [vmem:[%s402] ss:$324 sm:$0xc] %vm399, %v398
    %s404 = scalar_lea.vmem %s1, 4294966283
    %405 = vst.msk [vmem:[%s404] ss:$324 sm:$0x30] %vm399, %v398
    %v406 = vld.sshfl [vmem:[#allocation0] sm:$0xff pattern:$0x88888901]
    %s407 = scalar_lea.vmem [#allocation0], 21
    %s408 = smov 48
    %v409 = vld [vmem:[%s407] ss:$-1 sm:%s408]
    %vm410 = vcmask 1045508
    %v411 = vsel %vm410, %v409, %v406
    %412 = vrot.lane.b32.xlu0 %v411, 100
    %v413 = vpop.permute.xlu0 %412
    %vm414 = vcmask 7168
    %s415 = scalar_lea.vmem %s1, 352
    %416 = vst.msk [vmem:[%s415] ss:$-324 sm:$0x3] %vm414, %v413
    %s417 = scalar_lea.vmem %s1, 1128
    %418 = vst.msk [vmem:[%s417] ss:$-324 sm:$0xc] %vm414, %v413
    %s419 = scalar_lea.vmem %s1, 1904
    %420 = vst.msk [vmem:[%s419] ss:$-324 sm:$0x30] %vm414, %v413
    %v421 = vld.sshfl [vmem:[#allocation0] sm:$0xff pattern:$0x88888901]
    %s422 = scalar_lea.vmem [#allocation0], 21
    %s423 = smov 48
    %v424 = vld [vmem:[%s422] ss:$-1 sm:%s423]
    %vm425 = vcmask 1045508
    %v426 = vsel %vm425, %v424, %v421
    %427 = vrot.lane.b32.xlu0 %v426, 99
    %v428 = vpop.permute.xlu0 %427
    %vm429 = vcmask 7168
    %s430 = scalar_lea.vmem %s1, 353
    %431 = vst.msk [vmem:[%s430] ss:$-324 sm:$0x3] %vm429, %v428
    %s432 = scalar_lea.vmem %s1, 1129
    %433 = vst.msk [vmem:[%s432] ss:$-324 sm:$0xc] %vm429, %v428
    %s434 = scalar_lea.vmem %s1, 1905
    %435 = vst.msk [vmem:[%s434] ss:$-324 sm:$0x30] %vm429, %v428
    %v436 = vld.sshfl [vmem:[#allocation0] sm:$0xff pattern:$0x88888901]
    %s437 = scalar_lea.vmem [#allocation0], 21
    %s438 = smov 48
    %v439 = vld [vmem:[%s437] ss:$-1 sm:%s438]
    %vm440 = vcmask 1045508
    %v441 = vsel %vm440, %v439, %v436
    %442 = vrot.lane.b32.xlu0 %v441, 98
    %v443 = vpop.permute.xlu0 %442
    %vm444 = vcmask 7168
    %s445 = scalar_lea.vmem %s1, 354
    %446 = vst.msk [vmem:[%s445] ss:$-324 sm:$0x3] %vm444, %v443
    %s447 = scalar_lea.vmem %s1, 1130
    %448 = vst.msk [vmem:[%s447] ss:$-324 sm:$0xc] %vm444, %v443
    %s449 = scalar_lea.vmem %s1, 1906
    %450 = vst.msk [vmem:[%s449] ss:$-324 sm:$0x30] %vm444, %v443
    %v451 = vld.sshfl [vmem:[#allocation0] sm:$0xff pattern:$0x88888901]
    %s452 = scalar_lea.vmem [#allocation0], 21
    %s453 = smov 48
    %v454 = vld [vmem:[%s452] ss:$-1 sm:%s453]
    %vm455 = vcmask 1045508
    %v456 = vsel %vm455, %v454, %v451
    %457 = vrot.lane.b32.xlu0 %v456, 97
    %v458 = vpop.permute.xlu0 %457
    %vm459 = vcmask 7168
    %s460 = scalar_lea.vmem %s1, 355
    %461 = vst.msk [vmem:[%s460] ss:$-324 sm:$0x3] %vm459, %v458
    %s462 = scalar_lea.vmem %s1, 1131
    %463 = vst.msk [vmem:[%s462] ss:$-324 sm:$0xc] %vm459, %v458
    %s464 = scalar_lea.vmem %s1, 1907
    %465 = vst.msk [vmem:[%s464] ss:$-324 sm:$0x30] %vm459, %v458
    %v466 = vld.sshfl [vmem:[#allocation0] sm:$0xff pattern:$0x99999810]
    %s467 = scalar_lea.vmem [#allocation0], 12
    %v468 = vld [vmem:[%s467] sm:$0x30]
    %vm469 = vcmask 1045508
    %v470 = vsel %vm469, %v468, %v466
    %471 = vrot.lane.b32.xlu0 %v470, 96
    %v472 = vpop.permute.xlu0 %471
    %vm473 = vcmask 7168
    %s474 = scalar_lea.vmem %s1, 32
    %475 = vst.msk [vmem:[%s474] ss:$324 sm:$0x3] %vm473, %v472
    %s476 = scalar_lea.vmem %s1, 4294966808
    %477 = vst.msk [vmem:[%s476] ss:$324 sm:$0xc] %vm473, %v472
    %s478 = scalar_lea.vmem %s1, 4294966288
    %479 = vst.msk [vmem:[%s478] ss:$324 sm:$0x30] %vm473, %v472
    %v480 = vld.sshfl [vmem:[#allocation0] sm:$0xff pattern:$0x99999810]
    %s481 = scalar_lea.vmem [#allocation0], 12
    %v482 = vld [vmem:[%s481] sm:$0x30]
    %vm483 = vcmask 1045508
    %v484 = vsel %vm483, %v482, %v480
    %485 = vrot.lane.b32.xlu0 %v484, 95
    %v486 = vpop.permute.xlu0 %485
    %vm487 = vcmask 7168
    %s488 = scalar_lea.vmem %s1, 33
    %489 = vst.msk [vmem:[%s488] ss:$324 sm:$0x3] %vm487, %v486
    %s490 = scalar_lea.vmem %s1, 4294966809
    %491 = vst.msk [vmem:[%s490] ss:$324 sm:$0xc] %vm487, %v486
    %s492 = scalar_lea.vmem %s1, 4294966289
    %493 = vst.msk [vmem:[%s492] ss:$324 sm:$0x30] %vm487, %v486
    %v494 = vld.sshfl [vmem:[#allocation0] sm:$0xff pattern:$0x99999810]
    %s495 = scalar_lea.vmem [#allocation0], 12
    %v496 = vld [vmem:[%s495] sm:$0x30]
    %vm497 = vcmask 1045508
    %v498 = vsel %vm497, %v496, %v494
    %499 = vrot.lane.b32.xlu0 %v498, 94
    %v500 = vpop.permute.xlu0 %499
    %vm501 = vcmask 7168
    %s502 = scalar_lea.vmem %s1, 34
    %503 = vst.msk [vmem:[%s502] ss:$324 sm:$0x3] %vm501, %v500
    %s504 = scalar_lea.vmem %s1, 4294966810
    %505 = vst.msk [vmem:[%s504] ss:$324 sm:$0xc] %vm501, %v500
    %s506 = scalar_lea.vmem %s1, 4294966290
    %507 = vst.msk [vmem:[%s506] ss:$324 sm:$0x30] %vm501, %v500
    %v508 = vld.sshfl [vmem:[#allocation0] sm:$0xff pattern:$0x99999810]
    %s509 = scalar_lea.vmem [#allocation0], 12
    %v510 = vld [vmem:[%s509] sm:$0x30]
    %vm511 = vcmask 1045508
    %v512 = vsel %vm511, %v510, %v508
    %513 = vrot.lane.b32.xlu0 %v512, 93
    %v514 = vpop.permute.xlu0 %513
    %vm515 = vcmask 7168
    %s516 = scalar_lea.vmem %s1, 35
    %517 = vst.msk [vmem:[%s516] ss:$324 sm:$0x3] %vm515, %v514
    %s518 = scalar_lea.vmem %s1, 4294966811
    %519 = vst.msk [vmem:[%s518] ss:$324 sm:$0xc] %vm515, %v514
    %s520 = scalar_lea.vmem %s1, 4294966291
    %521 = vst.msk [vmem:[%s520] ss:$324 sm:$0x30] %vm515, %v514
    %v522 = vld.sshfl [vmem:[#allocation0] sm:$0xff pattern:$0x99999810]
    %s523 = scalar_lea.vmem [#allocation0], 12
    %v524 = vld [vmem:[%s523] sm:$0x30]
    %vm525 = vcmask 1045508
    %v526 = vsel %vm525, %v524, %v522
    %527 = vrot.lane.b32.xlu0 %v526, 92
    %v528 = vpop.permute.xlu0 %527
    %vm529 = vcmask 7168
    %s530 = scalar_lea.vmem %s1, 36
    %531 = vst.msk [vmem:[%s530] ss:$324 sm:$0x3] %vm529, %v528
    %s532 = scalar_lea.vmem %s1, 4294966812
    %533 = vst.msk [vmem:[%s532] ss:$324 sm:$0xc] %vm529, %v528
    %s534 = scalar_lea.vmem %s1, 4294966292
    %535 = vst.msk [vmem:[%s534] ss:$324 sm:$0x30] %vm529, %v528
    %v536 = vld.sshfl [vmem:[#allocation0] sm:$0xff pattern:$0x99999810]
    %s537 = scalar_lea.vmem [#allocation0], 12
    %v538 = vld [vmem:[%s537] sm:$0x30]
    %vm539 = vcmask 1045508
    %v540 = vsel %vm539, %v538, %v536
    %541 = vrot.lane.b32.xlu0 %v540, 91
    %v542 = vpop.permute.xlu0 %541
    %vm543 = vcmask 7168
    %s544 = scalar_lea.vmem %s1, 37
    %545 = vst.msk [vmem:[%s544] ss:$324 sm:$0x3] %vm543, %v542
    %s546 = scalar_lea.vmem %s1, 4294966813
    %547 = vst.msk [vmem:[%s546] ss:$324 sm:$0xc] %vm543, %v542
    %s548 = scalar_lea.vmem %s1, 4294966293
    %549 = vst.msk [vmem:[%s548] ss:$324 sm:$0x30] %vm543, %v542
    %v550 = vld.sshfl [vmem:[#allocation0] sm:$0xff pattern:$0x99999810]
    %s551 = scalar_lea.vmem [#allocation0], 12
    %v552 = vld [vmem:[%s551] sm:$0x30]
    %vm553 = vcmask 1045508
    %v554 = vsel %vm553, %v552, %v550
    %555 = vrot.lane.b32.xlu0 %v554, 90
    %v556 = vpop.permute.xlu0 %555
    %vm557 = vcmask 7168
    %s558 = scalar_lea.vmem %s1, 38
    %559 = vst.msk [vmem:[%s558] ss:$324 sm:$0x3] %vm557, %v556
    %s560 = scalar_lea.vmem %s1, 4294966814
    %561 = vst.msk [vmem:[%s560] ss:$324 sm:$0xc] %vm557, %v556
    %s562 = scalar_lea.vmem %s1, 4294966294
    %563 = vst.msk [vmem:[%s562] ss:$324 sm:$0x30] %vm557, %v556
    %v564 = vld.sshfl [vmem:[#allocation0] sm:$0xff pattern:$0x99999810]
    %s565 = scalar_lea.vmem [#allocation0], 12
    %v566 = vld [vmem:[%s565] sm:$0x30]
    %vm567 = vcmask 1045508
    %v568 = vsel %vm567, %v566, %v564
    %569 = vrot.lane.b32.xlu0 %v568, 89
    %v570 = vpop.permute.xlu0 %569
    %vm571 = vcmask 7168
    %s572 = scalar_lea.vmem %s1, 39
    %573 = vst.msk [vmem:[%s572] ss:$324 sm:$0x3] %vm571, %v570
    %s574 = scalar_lea.vmem %s1, 4294966815
    %575 = vst.msk [vmem:[%s574] ss:$324 sm:$0xc] %vm571, %v570
    %s576 = scalar_lea.vmem %s1, 4294966295
    %577 = vst.msk [vmem:[%s576] ss:$324 sm:$0x30] %vm571, %v570
    %v578 = vld.sshfl [vmem:[#allocation0] sm:$0xff pattern:$0x99999810]
    %s579 = scalar_lea.vmem [#allocation0], 12
    %v580 = vld [vmem:[%s579] sm:$0x30]
    %vm581 = vcmask 1045508
    %v582 = vsel %vm581, %v580, %v578
    %583 = vrot.lane.b32.xlu0 %v582, 88
    %v584 = vpop.permute.xlu0 %583
    %vm585 = vcmask 7168
    %s586 = scalar_lea.vmem %s1, 40
    %587 = vst.msk [vmem:[%s586] ss:$324 sm:$0x3] %vm585, %v584
    %s588 = scalar_lea.vmem %s1, 4294966816
    %589 = vst.msk [vmem:[%s588] ss:$324 sm:$0xc] %vm585, %v584
    %s590 = scalar_lea.vmem %s1, 4294966296
    %591 = vst.msk [vmem:[%s590] ss:$324 sm:$0x30] %vm585, %v584
    %v592 = vld.sshfl [vmem:[#allocation0] sm:$0xff pattern:$0x99999810]
    %s593 = scalar_lea.vmem [#allocation0], 12
    %v594 = vld [vmem:[%s593] sm:$0x30]
    %vm595 = vcmask 1045508
    %v596 = vsel %vm595, %v594, %v592
    %597 = vrot.lane.b32.xlu0 %v596, 87
    %v598 = vpop.permute.xlu0 %597
    %vm599 = vcmask 7168
    %s600 = scalar_lea.vmem %s1, 41
    %601 = vst.msk [vmem:[%s600] ss:$324 sm:$0x3] %vm599, %v598
    %s602 = scalar_lea.vmem %s1, 4294966817
    %603 = vst.msk [vmem:[%s602] ss:$324 sm:$0xc] %vm599, %v598
    %s604 = scalar_lea.vmem %s1, 4294966297
    %605 = vst.msk [vmem:[%s604] ss:$324 sm:$0x30] %vm599, %v598
    %v606 = vld.sshfl [vmem:[#allocation0] sm:$0xff pattern:$0x99999810]
    %s607 = scalar_lea.vmem [#allocation0], 12
    %v608 = vld [vmem:[%s607] sm:$0x30]
    %vm609 = vcmask 1045508
    %v610 = vsel %vm609, %v608, %v606
    %611 = vrot.lane.b32.xlu0 %v610, 86
    %v612 = vpop.permute.xlu0 %611
    %vm613 = vcmask 7168
    %s614 = scalar_lea.vmem %s1, 42
    %615 = vst.msk [vmem:[%s614] ss:$324 sm:$0x3] %vm613, %v612
    %s616 = scalar_lea.vmem %s1, 4294966818
    %617 = vst.msk [vmem:[%s616] ss:$324 sm:$0xc] %vm613, %v612
    %s618 = scalar_lea.vmem %s1, 4294966298
    %619 = vst.msk [vmem:[%s618] ss:$324 sm:$0x30] %vm613, %v612
    %v620 = vld.sshfl [vmem:[#allocation0] sm:$0xff pattern:$0x99999810]
    %s621 = scalar_lea.vmem [#allocation0], 12
    %v622 = vld [vmem:[%s621] sm:$0x30]
    %vm623 = vcmask 1045508
    %v624 = vsel %vm623, %v622, %v620
    %625 = vrot.lane.b32.xlu0 %v624, 85
    %v626 = vpop.permute.xlu0 %625
    %vm627 = vcmask 7168
    %s628 = scalar_lea.vmem %s1, 43
    %629 = vst.msk [vmem:[%s628] ss:$324 sm:$0x3] %vm627, %v626
    %s630 = scalar_lea.vmem %s1, 4294966819
    %631 = vst.msk [vmem:[%s630] ss:$324 sm:$0xc] %vm627, %v626
    %s632 = scalar_lea.vmem %s1, 4294966299
    %633 = vst.msk [vmem:[%s632] ss:$324 sm:$0x30] %vm627, %v626
    %v634 = vld.sshfl [vmem:[#allocation0] sm:$0xff pattern:$0x99999810]
    %s635 = scalar_lea.vmem [#allocation0], 12
    %v636 = vld [vmem:[%s635] sm:$0x30]
    %vm637 = vcmask 1045508
    %v638 = vsel %vm637, %v636, %v634
    %639 = vrot.lane.b32.xlu0 %v638, 84
    %v640 = vpop.permute.xlu0 %639
    %vm641 = vcmask 7168
    %s642 = scalar_lea.vmem %s1, 44
    %643 = vst.msk [vmem:[%s642] ss:$324 sm:$0x3] %vm641, %v640
    %s644 = scalar_lea.vmem %s1, 4294966820
    %645 = vst.msk [vmem:[%s644] ss:$324 sm:$0xc] %vm641, %v640
    %s646 = scalar_lea.vmem %s1, 4294966300
    %647 = vst.msk [vmem:[%s646] ss:$324 sm:$0x30] %vm641, %v640
    %v648 = vld.sshfl [vmem:[#allocation0] sm:$0xff pattern:$0x99999810]
    %s649 = scalar_lea.vmem [#allocation0], 12
    %v650 = vld [vmem:[%s649] sm:$0x30]
    %vm651 = vcmask 1045508
    %v652 = vsel %vm651, %v650, %v648
    %653 = vrot.lane.b32.xlu0 %v652, 83
    %v654 = vpop.permute.xlu0 %653
    %vm655 = vcmask 7168
    %s656 = scalar_lea.vmem %s1, 45
    %657 = vst.msk [vmem:[%s656] ss:$324 sm:$0x3] %vm655, %v654
    %s658 = scalar_lea.vmem %s1, 4294966821
    %659 = vst.msk [vmem:[%s658] ss:$324 sm:$0xc] %vm655, %v654
    %s660 = scalar_lea.vmem %s1, 4294966301
    %661 = vst.msk [vmem:[%s660] ss:$324 sm:$0x30] %vm655, %v654
    %v662 = vld.sshfl [vmem:[#allocation0] sm:$0xff pattern:$0x99999810]
    %s663 = scalar_lea.vmem [#allocation0], 12
    %v664 = vld [vmem:[%s663] sm:$0x30]
    %vm665 = vcmask 1045508
    %v666 = vsel %vm665, %v664, %v662
    %667 = vrot.lane.b32.xlu0 %v666, 82
    %v668 = vpop.permute.xlu0 %667
    %vm669 = vcmask 7168
    %s670 = scalar_lea.vmem %s1, 46
    %671 = vst.msk [vmem:[%s670] ss:$324 sm:$0x3] %vm669, %v668
    %s672 = scalar_lea.vmem %s1, 4294966822
    %673 = vst.msk [vmem:[%s672] ss:$324 sm:$0xc] %vm669, %v668
    %s674 = scalar_lea.vmem %s1, 4294966302
    %675 = vst.msk [vmem:[%s674] ss:$324 sm:$0x30] %vm669, %v668
    %v676 = vld.sshfl [vmem:[#allocation0] sm:$0xff pattern:$0x99999810]
    %s677 = scalar_lea.vmem [#allocation0], 12
    %v678 = vld [vmem:[%s677] sm:$0x30]
    %vm679 = vcmask 1045508
    %v680 = vsel %vm679, %v678, %v676
    %681 = vrot.lane.b32.xlu0 %v680, 81
    %v682 = vpop.permute.xlu0 %681
    %vm683 = vcmask 7168
    %s684 = scalar_lea.vmem %s1, 47
    %685 = vst.msk [vmem:[%s684] ss:$324 sm:$0x3] %vm683, %v682
    %s686 = scalar_lea.vmem %s1, 4294966823
    %687 = vst.msk [vmem:[%s686] ss:$324 sm:$0xc] %vm683, %v682
    %s688 = scalar_lea.vmem %s1, 4294966303
    %689 = vst.msk [vmem:[%s688] ss:$324 sm:$0x30] %vm683, %v682
    %v690 = vld.sshfl [vmem:[#allocation0] sm:$0xff pattern:$0x99999810]
    %s691 = scalar_lea.vmem [#allocation0], 12
    %v692 = vld [vmem:[%s691] sm:$0x30]
    %vm693 = vcmask 1045508
    %v694 = vsel %vm693, %v692, %v690
    %695 = vrot.lane.b32.xlu0 %v694, 80
    %v696 = vpop.permute.xlu0 %695
    %vm697 = vcmask 7168
    %s698 = scalar_lea.vmem %s1, 48
    %699 = vst.msk [vmem:[%s698] ss:$324 sm:$0x3] %vm697, %v696
    %s700 = scalar_lea.vmem %s1, 4294966824
    %701 = vst.msk [vmem:[%s700] ss:$324 sm:$0xc] %vm697, %v696
    %s702 = scalar_lea.vmem %s1, 4294966304
    %703 = vst.msk [vmem:[%s702] ss:$324 sm:$0x30] %vm697, %v696
    %v704 = vld.sshfl [vmem:[#allocation0] sm:$0xff pattern:$0x99999810]
    %s705 = scalar_lea.vmem [#allocation0], 12
    %v706 = vld [vmem:[%s705] sm:$0x30]
    %vm707 = vcmask 1045508
    %v708 = vsel %vm707, %v706, %v704
    %709 = vrot.lane.b32.xlu0 %v708, 79
    %v710 = vpop.permute.xlu0 %709
    %vm711 = vcmask 7168
    %s712 = scalar_lea.vmem %s1, 49
    %713 = vst.msk [vmem:[%s712] ss:$324 sm:$0x3] %vm711, %v710
    %s714 = scalar_lea.vmem %s1, 4294966825
    %715 = vst.msk [vmem:[%s714] ss:$324 sm:$0xc] %vm711, %v710
    %s716 = scalar_lea.vmem %s1, 4294966305
    %717 = vst.msk [vmem:[%s716] ss:$324 sm:$0x30] %vm711, %v710
    %v718 = vld.sshfl [vmem:[#allocation0] sm:$0xff pattern:$0x99999810]
    %s719 = scalar_lea.vmem [#allocation0], 12
    %v720 = vld [vmem:[%s719] sm:$0x30]
    %vm721 = vcmask 1045508
    %v722 = vsel %vm721, %v720, %v718
    %723 = vrot.lane.b32.xlu0 %v722, 78
    %v724 = vpop.permute.xlu0 %723
    %vm725 = vcmask 7168
    %s726 = scalar_lea.vmem %s1, 50
    %727 = vst.msk [vmem:[%s726] ss:$324 sm:$0x3] %vm725, %v724
    %s728 = scalar_lea.vmem %s1, 4294966826
    %729 = vst.msk [vmem:[%s728] ss:$324 sm:$0xc] %vm725, %v724
    %s730 = scalar_lea.vmem %s1, 4294966306
    %731 = vst.msk [vmem:[%s730] ss:$324 sm:$0x30] %vm725, %v724
    %v732 = vld.sshfl [vmem:[#allocation0] sm:$0xff pattern:$0x99999810]
    %s733 = scalar_lea.vmem [#allocation0], 12
    %v734 = vld [vmem:[%s733] sm:$0x30]
    %vm735 = vcmask 1045508
    %v736 = vsel %vm735, %v734, %v732
    %737 = vrot.lane.b32.xlu0 %v736, 77
    %v738 = vpop.permute.xlu0 %737
    %vm739 = vcmask 7168
    %s740 = scalar_lea.vmem %s1, 51
    %741 = vst.msk [vmem:[%s740] ss:$324 sm:$0x3] %vm739, %v738
    %s742 = scalar_lea.vmem %s1, 4294966827
    %743 = vst.msk [vmem:[%s742] ss:$324 sm:$0xc] %vm739, %v738
    %s744 = scalar_lea.vmem %s1, 4294966307
    %745 = vst.msk [vmem:[%s744] ss:$324 sm:$0x30] %vm739, %v738
    %v746 = vld.sshfl [vmem:[#allocation0] sm:$0xff pattern:$0x99999810]
    %s747 = scalar_lea.vmem [#allocation0], 12
    %v748 = vld [vmem:[%s747] sm:$0x30]
    %vm749 = vcmask 1045508
    %v750 = vsel %vm749, %v748, %v746
    %751 = vrot.lane.b32.xlu0 %v750, 76
    %v752 = vpop.permute.xlu0 %751
    %vm753 = vcmask 7168
    %s754 = scalar_lea.vmem %s1, 52
    %755 = vst.msk [vmem:[%s754] ss:$324 sm:$0x3] %vm753, %v752
    %s756 = scalar_lea.vmem %s1, 4294966828
    %757 = vst.msk [vmem:[%s756] ss:$324 sm:$0xc] %vm753, %v752
    %s758 = scalar_lea.vmem %s1, 4294966308
    %759 = vst.msk [vmem:[%s758] ss:$324 sm:$0x30] %vm753, %v752
    %v760 = vld.sshfl [vmem:[#allocation0] sm:$0xff pattern:$0x99999810]
    %s761 = scalar_lea.vmem [#allocation0], 12
    %v762 = vld [vmem:[%s761] sm:$0x30]
    %vm763 = vcmask 1045508
    %v764 = vsel %vm763, %v762, %v760
    %765 = vrot.lane.b32.xlu0 %v764, 75
    %v766 = vpop.permute.xlu0 %765
    %vm767 = vcmask 7168
    %s768 = scalar_lea.vmem %s1, 53
    %769 = vst.msk [vmem:[%s768] ss:$324 sm:$0x3] %vm767, %v766
    %s770 = scalar_lea.vmem %s1, 4294966829
    %771 = vst.msk [vmem:[%s770] ss:$324 sm:$0xc] %vm767, %v766
    %s772 = scalar_lea.vmem %s1, 4294966309
    %773 = vst.msk [vmem:[%s772] ss:$324 sm:$0x30] %vm767, %v766
    %v774 = vld.sshfl [vmem:[#allocation0] sm:$0xff pattern:$0x99999810]
    %s775 = scalar_lea.vmem [#allocation0], 12
    %v776 = vld [vmem:[%s775] sm:$0x30]
    %vm777 = vcmask 1045508
    %v778 = vsel %vm777, %v776, %v774
    %779 = vrot.lane.b32.xlu0 %v778, 74
    %v780 = vpop.permute.xlu0 %779
    %vm781 = vcmask 7168
    %s782 = scalar_lea.vmem %s1, 54
    %783 = vst.msk [vmem:[%s782] ss:$324 sm:$0x3] %vm781, %v780
    %s784 = scalar_lea.vmem %s1, 4294966830
    %785 = vst.msk [vmem:[%s784] ss:$324 sm:$0xc] %vm781, %v780
    %s786 = scalar_lea.vmem %s1, 4294966310
    %787 = vst.msk [vmem:[%s786] ss:$324 sm:$0x30] %vm781, %v780
    %v788 = vld.sshfl [vmem:[#allocation0] sm:$0xff pattern:$0x99999810]
    %s789 = scalar_lea.vmem [#allocation0], 12
    %v790 = vld [vmem:[%s789] sm:$0x30]
    %vm791 = vcmask 1045508
    %v792 = vsel %vm791, %v790, %v788
    %793 = vrot.lane.b32.xlu0 %v792, 73
    %v794 = vpop.permute.xlu0 %793
    %vm795 = vcmask 7168
    %s796 = scalar_lea.vmem %s1, 55
    %797 = vst.msk [vmem:[%s796] ss:$324 sm:$0x3] %vm795, %v794
    %s798 = scalar_lea.vmem %s1, 4294966831
    %799 = vst.msk [vmem:[%s798] ss:$324 sm:$0xc] %vm795, %v794
    %s800 = scalar_lea.vmem %s1, 4294966311
    %801 = vst.msk [vmem:[%s800] ss:$324 sm:$0x30] %vm795, %v794
    %v802 = vld.sshfl [vmem:[#allocation0] sm:$0xff pattern:$0x99999810]
    %s803 = scalar_lea.vmem [#allocation0], 12
    %v804 = vld [vmem:[%s803] sm:$0x30]
    %vm805 = vcmask 1045508
    %v806 = vsel %vm805, %v804, %v802
    %807 = vrot.lane.b32.xlu0 %v806, 72
    %v808 = vpop.permute.xlu0 %807
    %vm809 = vcmask 7168
    %s810 = scalar_lea.vmem %s1, 56
    %811 = vst.msk [vmem:[%s810] ss:$324 sm:$0x3] %vm809, %v808
    %s812 = scalar_lea.vmem %s1, 4294966832
    %813 = vst.msk [vmem:[%s812] ss:$324 sm:$0xc] %vm809, %v808
    %s814 = scalar_lea.vmem %s1, 4294966312
    %815 = vst.msk [vmem:[%s814] ss:$324 sm:$0x30] %vm809, %v808
    %v816 = vld.sshfl [vmem:[#allocation0] sm:$0xff pattern:$0x99999810]
    %s817 = scalar_lea.vmem [#allocation0], 12
    %v818 = vld [vmem:[%s817] sm:$0x30]
    %vm819 = vcmask 1045508
    %v820 = vsel %vm819, %v818, %v816
    %821 = vrot.lane.b32.xlu0 %v820, 71
    %v822 = vpop.permute.xlu0 %821
    %vm823 = vcmask 7168
    %s824 = scalar_lea.vmem %s1, 57
    %825 = vst.msk [vmem:[%s824] ss:$324 sm:$0x3] %vm823, %v822
    %s826 = scalar_lea.vmem %s1, 4294966833
    %827 = vst.msk [vmem:[%s826] ss:$324 sm:$0xc] %vm823, %v822
    %s828 = scalar_lea.vmem %s1, 4294966313
    %829 = vst.msk [vmem:[%s828] ss:$324 sm:$0x30] %vm823, %v822
    %v830 = vld.sshfl [vmem:[#allocation0] sm:$0xff pattern:$0x99999810]
    %s831 = scalar_lea.vmem [#allocation0], 12
    %v832 = vld [vmem:[%s831] sm:$0x30]
    %vm833 = vcmask 1045508
    %v834 = vsel %vm833, %v832, %v830
    %835 = vrot.lane.b32.xlu0 %v834, 70
    %v836 = vpop.permute.xlu0 %835
    %vm837 = vcmask 7168
    %s838 = scalar_lea.vmem %s1, 58
    %839 = vst.msk [vmem:[%s838] ss:$324 sm:$0x3] %vm837, %v836
    %s840 = scalar_lea.vmem %s1, 4294966834
    %841 = vst.msk [vmem:[%s840] ss:$324 sm:$0xc] %vm837, %v836
    %s842 = scalar_lea.vmem %s1, 4294966314
    %843 = vst.msk [vmem:[%s842] ss:$324 sm:$0x30] %vm837, %v836
    %v844 = vld.sshfl [vmem:[#allocation0] sm:$0xff pattern:$0x99999810]
    %s845 = scalar_lea.vmem [#allocation0], 12
    %v846 = vld [vmem:[%s845] sm:$0x30]
    %vm847 = vcmask 1045508
    %v848 = vsel %vm847, %v846, %v844
    %849 = vrot.lane.b32.xlu0 %v848, 69
    %v850 = vpop.permute.xlu0 %849
    %vm851 = vcmask 7168
    %s852 = scalar_lea.vmem %s1, 59
    %853 = vst.msk [vmem:[%s852] ss:$324 sm:$0x3] %vm851, %v850
    %s854 = scalar_lea.vmem %s1, 4294966835
    %855 = vst.msk [vmem:[%s854] ss:$324 sm:$0xc] %vm851, %v850
    %s856 = scalar_lea.vmem %s1, 4294966315
    %857 = vst.msk [vmem:[%s856] ss:$324 sm:$0x30] %vm851, %v850
    %v858 = vld.sshfl [vmem:[#allocation0] sm:$0xff pattern:$0x88888901]
    %s859 = scalar_lea.vmem [#allocation0], 21
    %s860 = smov 48
    %v861 = vld [vmem:[%s859] ss:$-1 sm:%s860]
    %vm862 = vcmask 1045508
    %v863 = vsel %vm862, %v861, %v858
    %864 = vrot.lane.b32.xlu0 %v863, 68
    %v865 = vpop.permute.xlu0 %864
    %vm866 = vcmask 7168
    %s867 = scalar_lea.vmem %s1, 384
    %868 = vst.msk [vmem:[%s867] ss:$-324 sm:$0x3] %vm866, %v865
    %s869 = scalar_lea.vmem %s1, 1160
    %870 = vst.msk [vmem:[%s869] ss:$-324 sm:$0xc] %vm866, %v865
    %s871 = scalar_lea.vmem %s1, 1936
    %872 = vst.msk [vmem:[%s871] ss:$-324 sm:$0x30] %vm866, %v865
    %v873 = vld.sshfl [vmem:[#allocation0] sm:$0xff pattern:$0x88888901]
    %s874 = scalar_lea.vmem [#allocation0], 21
    %s875 = smov 48
    %v876 = vld [vmem:[%s874] ss:$-1 sm:%s875]
    %vm877 = vcmask 1045508
    %v878 = vsel %vm877, %v876, %v873
    %879 = vrot.lane.b32.xlu0 %v878, 67
    %v880 = vpop.permute.xlu0 %879
    %vm881 = vcmask 7168
    %s882 = scalar_lea.vmem %s1, 385
    %883 = vst.msk [vmem:[%s882] ss:$-324 sm:$0x3] %vm881, %v880
    %s884 = scalar_lea.vmem %s1, 1161
    %885 = vst.msk [vmem:[%s884] ss:$-324 sm:$0xc] %vm881, %v880
    %s886 = scalar_lea.vmem %s1, 1937
    %887 = vst.msk [vmem:[%s886] ss:$-324 sm:$0x30] %vm881, %v880
    %v888 = vld.sshfl [vmem:[#allocation0] sm:$0xff pattern:$0x88888901]
    %s889 = scalar_lea.vmem [#allocation0], 21
    %s890 = smov 48
    %v891 = vld [vmem:[%s889] ss:$-1 sm:%s890]
    %vm892 = vcmask 1045508
    %v893 = vsel %vm892, %v891, %v888
    %894 = vrot.lane.b32.xlu0 %v893, 66
    %v895 = vpop.permute.xlu0 %894
    %vm896 = vcmask 7168
    %s897 = scalar_lea.vmem %s1, 386
    %898 = vst.msk [vmem:[%s897] ss:$-324 sm:$0x3] %vm896, %v895
    %s899 = scalar_lea.vmem %s1, 1162
    %900 = vst.msk [vmem:[%s899] ss:$-324 sm:$0xc] %vm896, %v895
    %s901 = scalar_lea.vmem %s1, 1938
    %902 = vst.msk [vmem:[%s901] ss:$-324 sm:$0x30] %vm896, %v895
    %v903 = vld.sshfl [vmem:[#allocation0] sm:$0xff pattern:$0x88888901]
    %s904 = scalar_lea.vmem [#allocation0], 21
    %s905 = smov 48
    %v906 = vld [vmem:[%s904] ss:$-1 sm:%s905]
    %vm907 = vcmask 1045508
    %v908 = vsel %vm907, %v906, %v903
    %909 = vrot.lane.b32.xlu0 %v908, 65
    %v910 = vpop.permute.xlu0 %909
    %vm911 = vcmask 7168
    %s912 = scalar_lea.vmem %s1, 387
    %913 = vst.msk [vmem:[%s912] ss:$-324 sm:$0x3] %vm911, %v910
    %s914 = scalar_lea.vmem %s1, 1163
    %915 = vst.msk [vmem:[%s914] ss:$-324 sm:$0xc] %vm911, %v910
    %s916 = scalar_lea.vmem %s1, 1939
    %917 = vst.msk [vmem:[%s916] ss:$-324 sm:$0x30] %vm911, %v910
    %v918 = vld.sshfl [vmem:[#allocation0] sm:$0xff pattern:$0x99999810]
    %s919 = scalar_lea.vmem [#allocation0], 12
    %v920 = vld [vmem:[%s919] sm:$0x30]
    %vm921 = vcmask 1045508
    %v922 = vsel %vm921, %v920, %v918
    %923 = vrot.lane.b32.xlu0 %v922, 64
    %v924 = vpop.permute.xlu0 %923
    %vm925 = vcmask 7168
    %s926 = scalar_lea.vmem %s1, 64
    %927 = vst.msk [vmem:[%s926] ss:$324 sm:$0x3] %vm925, %v924
    %s928 = scalar_lea.vmem %s1, 4294966840
    %929 = vst.msk [vmem:[%s928] ss:$324 sm:$0xc] %vm925, %v924
    %s930 = scalar_lea.vmem %s1, 4294966320
    %931 = vst.msk [vmem:[%s930] ss:$324 sm:$0x30] %vm925, %v924
    %v932 = vld.sshfl [vmem:[#allocation0] sm:$0xff pattern:$0x99999810]
    %s933 = scalar_lea.vmem [#allocation0], 12
    %v934 = vld [vmem:[%s933] sm:$0x30]
    %vm935 = vcmask 1045508
    %v936 = vsel %vm935, %v934, %v932
    %937 = vrot.lane.b32.xlu0 %v936, 63
    %v938 = vpop.permute.xlu0 %937
    %vm939 = vcmask 7168
    %s940 = scalar_lea.vmem %s1, 65
    %941 = vst.msk [vmem:[%s940] ss:$324 sm:$0x3] %vm939, %v938
    %s942 = scalar_lea.vmem %s1, 4294966841
    %943 = vst.msk [vmem:[%s942] ss:$324 sm:$0xc] %vm939, %v938
    %s944 = scalar_lea.vmem %s1, 4294966321
    %945 = vst.msk [vmem:[%s944] ss:$324 sm:$0x30] %vm939, %v938
    %v946 = vld.sshfl [vmem:[#allocation0] sm:$0xff pattern:$0x99999810]
    %s947 = scalar_lea.vmem [#allocation0], 12
    %v948 = vld [vmem:[%s947] sm:$0x30]
    %vm949 = vcmask 1045508
    %v950 = vsel %vm949, %v948, %v946
    %951 = vrot.lane.b32.xlu0 %v950, 62
    %v952 = vpop.permute.xlu0 %951
    %vm953 = vcmask 7168
    %s954 = scalar_lea.vmem %s1, 66
    %955 = vst.msk [vmem:[%s954] ss:$324 sm:$0x3] %vm953, %v952
    %s956 = scalar_lea.vmem %s1, 4294966842
    %957 = vst.msk [vmem:[%s956] ss:$324 sm:$0xc] %vm953, %v952
    %s958 = scalar_lea.vmem %s1, 4294966322
    %959 = vst.msk [vmem:[%s958] ss:$324 sm:$0x30] %vm953, %v952
    %v960 = vld.sshfl [vmem:[#allocation0] sm:$0xff pattern:$0x99999810]
    %s961 = scalar_lea.vmem [#allocation0], 12
    %v962 = vld [vmem:[%s961] sm:$0x30]
    %vm963 = vcmask 1045508
    %v964 = vsel %vm963, %v962, %v960
    %965 = vrot.lane.b32.xlu0 %v964, 61
    %v966 = vpop.permute.xlu0 %965
    %vm967 = vcmask 7168
    %s968 = scalar_lea.vmem %s1, 67
    %969 = vst.msk [vmem:[%s968] ss:$324 sm:$0x3] %vm967, %v966
    %s970 = scalar_lea.vmem %s1, 4294966843
    %971 = vst.msk [vmem:[%s970] ss:$324 sm:$0xc] %vm967, %v966
    %s972 = scalar_lea.vmem %s1, 4294966323
    %973 = vst.msk [vmem:[%s972] ss:$324 sm:$0x30] %vm967, %v966
    %v974 = vld.sshfl [vmem:[#allocation0] sm:$0xff pattern:$0x99999810]
    %975 = vrot.lane.b32.xlu0 %v974, 60
    %v976 = vpop.permute.xlu0 %975
    %vm977 = vcmask 7168
    %s978 = scalar_lea.vmem %s1, 68
    %979 = vst.msk [vmem:[%s978] ss:$324 sm:$0x3] %vm977, %v976
    %s980 = scalar_lea.vmem %s1, 4294966844
    %981 = vst.msk [vmem:[%s980] ss:$324 sm:$0xc] %vm977, %v976
    %v982 = vld.sshfl [vmem:[#allocation0] sm:$0xff pattern:$0x99999810]
    %983 = vrot.lane.b32.xlu0 %v982, 59
    %v984 = vpop.permute.xlu0 %983
    %vm985 = vcmask 7168
    %s986 = scalar_lea.vmem %s1, 69
    %987 = vst.msk [vmem:[%s986] ss:$324 sm:$0x3] %vm985, %v984
    %s988 = scalar_lea.vmem %s1, 4294966845
    %989 = vst.msk [vmem:[%s988] ss:$324 sm:$0xc] %vm985, %v984
    %v990 = vld.sshfl [vmem:[#allocation0] sm:$0xff pattern:$0x99999810]
    %991 = vrot.lane.b32.xlu0 %v990, 58
    %v992 = vpop.permute.xlu0 %991
    %vm993 = vcmask 7168
    %s994 = scalar_lea.vmem %s1, 70
    %995 = vst.msk [vmem:[%s994] ss:$324 sm:$0x3] %vm993, %v992
    %s996 = scalar_lea.vmem %s1, 4294966846
    %997 = vst.msk [vmem:[%s996] ss:$324 sm:$0xc] %vm993, %v992
    %v998 = vld.sshfl [vmem:[#allocation0] sm:$0xff pattern:$0x99999810]
    %999 = vrot.lane.b32.xlu0 %v998, 57
    %v1000 = vpop.permute.xlu0 %999
    %vm1001 = vcmask 7168
    %s1002 = scalar_lea.vmem %s1, 71
    %1003 = vst.msk [vmem:[%s1002] ss:$324 sm:$0x3] %vm1001, %v1000
    %s1004 = scalar_lea.vmem %s1, 4294966847
    %1005 = vst.msk [vmem:[%s1004] ss:$324 sm:$0xc] %vm1001, %v1000
    %v1006 = vld.sshfl [vmem:[#allocation0] sm:$0xff pattern:$0x99999810]
    %1007 = vrot.lane.b32.xlu0 %v1006, 56
    %v1008 = vpop.permute.xlu0 %1007
    %vm1009 = vcmask 7168
    %s1010 = scalar_lea.vmem %s1, 72
    %1011 = vst.msk [vmem:[%s1010] ss:$324 sm:$0x3] %vm1009, %v1008
    %s1012 = scalar_lea.vmem %s1, 4294966848
    %1013 = vst.msk [vmem:[%s1012] ss:$324 sm:$0xc] %vm1009, %v1008
    %v1014 = vld.sshfl [vmem:[#allocation0] sm:$0xff pattern:$0x99999810]
    %1015 = vrot.lane.b32.xlu0 %v1014, 55
    %v1016 = vpop.permute.xlu0 %1015
    %vm1017 = vcmask 7168
    %s1018 = scalar_lea.vmem %s1, 73
    %1019 = vst.msk [vmem:[%s1018] ss:$324 sm:$0x3] %vm1017, %v1016
    %s1020 = scalar_lea.vmem %s1, 4294966849
    %1021 = vst.msk [vmem:[%s1020] ss:$324 sm:$0xc] %vm1017, %v1016
    %v1022 = vld.sshfl [vmem:[#allocation0] sm:$0xff pattern:$0x99999810]
    %1023 = vrot.lane.b32.xlu0 %v1022, 54
    %v1024 = vpop.permute.xlu0 %1023
    %vm1025 = vcmask 7168
    %s1026 = scalar_lea.vmem %s1, 74
    %1027 = vst.msk [vmem:[%s1026] ss:$324 sm:$0x3] %vm1025, %v1024
    %s1028 = scalar_lea.vmem %s1, 4294966850
    %1029 = vst.msk [vmem:[%s1028] ss:$324 sm:$0xc] %vm1025, %v1024
    %v1030 = vld.sshfl [vmem:[#allocation0] sm:$0xff pattern:$0x99999810]
    %1031 = vrot.lane.b32.xlu0 %v1030, 53
    %v1032 = vpop.permute.xlu0 %1031
    %vm1033 = vcmask 7168
    %s1034 = scalar_lea.vmem %s1, 75
    %1035 = vst.msk [vmem:[%s1034] ss:$324 sm:$0x3] %vm1033, %v1032
    %s1036 = scalar_lea.vmem %s1, 4294966851
    %1037 = vst.msk [vmem:[%s1036] ss:$324 sm:$0xc] %vm1033, %v1032
    %v1038 = vld.sshfl [vmem:[#allocation0] sm:$0xff pattern:$0x99999810]
    %1039 = vrot.lane.b32.xlu0 %v1038, 52
    %v1040 = vpop.permute.xlu0 %1039
    %vm1041 = vcmask 7168
    %s1042 = scalar_lea.vmem %s1, 76
    %1043 = vst.msk [vmem:[%s1042] ss:$324 sm:$0x3] %vm1041, %v1040
    %s1044 = scalar_lea.vmem %s1, 4294966852
    %1045 = vst.msk [vmem:[%s1044] ss:$324 sm:$0xc] %vm1041, %v1040
    %v1046 = vld.sshfl [vmem:[#allocation0] sm:$0xff pattern:$0x99999810]
    %1047 = vrot.lane.b32.xlu0 %v1046, 51
    %v1048 = vpop.permute.xlu0 %1047
    %vm1049 = vcmask 7168
    %s1050 = scalar_lea.vmem %s1, 77
    %1051 = vst.msk [vmem:[%s1050] ss:$324 sm:$0x3] %vm1049, %v1048
    %s1052 = scalar_lea.vmem %s1, 4294966853
    %1053 = vst.msk [vmem:[%s1052] ss:$324 sm:$0xc] %vm1049, %v1048
    %v1054 = vld.sshfl [vmem:[#allocation0] sm:$0xff pattern:$0x99999810]
    %1055 = vrot.lane.b32.xlu0 %v1054, 50
    %v1056 = vpop.permute.xlu0 %1055
    %vm1057 = vcmask 7168
    %s1058 = scalar_lea.vmem %s1, 78
    %1059 = vst.msk [vmem:[%s1058] ss:$324 sm:$0x3] %vm1057, %v1056
    %s1060 = scalar_lea.vmem %s1, 4294966854
    %1061 = vst.msk [vmem:[%s1060] ss:$324 sm:$0xc] %vm1057, %v1056
    %v1062 = vld.sshfl [vmem:[#allocation0] sm:$0xff pattern:$0x99999810]
    %1063 = vrot.lane.b32.xlu0 %v1062, 49
    %v1064 = vpop.permute.xlu0 %1063
    %vm1065 = vcmask 7168
    %s1066 = scalar_lea.vmem %s1, 79
    %1067 = vst.msk [vmem:[%s1066] ss:$324 sm:$0x3] %vm1065, %v1064
    %s1068 = scalar_lea.vmem %s1, 4294966855
    %1069 = vst.msk [vmem:[%s1068] ss:$324 sm:$0xc] %vm1065, %v1064
    %v1070 = vld.sshfl [vmem:[#allocation0] sm:$0xff pattern:$0x99999810]
    %1071 = vrot.lane.b32.xlu0 %v1070, 48
    %v1072 = vpop.permute.xlu0 %1071
    %vm1073 = vcmask 7168
    %s1074 = scalar_lea.vmem %s1, 80
    %1075 = vst.msk [vmem:[%s1074] ss:$324 sm:$0x3] %vm1073, %v1072
    %s1076 = scalar_lea.vmem %s1, 4294966856
    %1077 = vst.msk [vmem:[%s1076] ss:$324 sm:$0xc] %vm1073, %v1072
    %v1078 = vld.sshfl [vmem:[#allocation0] sm:$0xff pattern:$0x99999810]
    %1079 = vrot.lane.b32.xlu0 %v1078, 47
    %v1080 = vpop.permute.xlu0 %1079
    %vm1081 = vcmask 7168
    %s1082 = scalar_lea.vmem %s1, 81
    %1083 = vst.msk [vmem:[%s1082] ss:$324 sm:$0x3] %vm1081, %v1080
    %s1084 = scalar_lea.vmem %s1, 4294966857
    %1085 = vst.msk [vmem:[%s1084] ss:$324 sm:$0xc] %vm1081, %v1080
    %v1086 = vld.sshfl [vmem:[#allocation0] sm:$0xff pattern:$0x99999810]
    %1087 = vrot.lane.b32.xlu0 %v1086, 46
    %v1088 = vpop.permute.xlu0 %1087
    %vm1089 = vcmask 7168
    %s1090 = scalar_lea.vmem %s1, 82
    %1091 = vst.msk [vmem:[%s1090] ss:$324 sm:$0x3] %vm1089, %v1088
    %s1092 = scalar_lea.vmem %s1, 4294966858
    %1093 = vst.msk [vmem:[%s1092] ss:$324 sm:$0xc] %vm1089, %v1088
    %v1094 = vld.sshfl [vmem:[#allocation0] sm:$0xff pattern:$0x99999810]
    %1095 = vrot.lane.b32.xlu0 %v1094, 45
    %v1096 = vpop.permute.xlu0 %1095
    %vm1097 = vcmask 7168
    %s1098 = scalar_lea.vmem %s1, 83
    %1099 = vst.msk [vmem:[%s1098] ss:$324 sm:$0x3] %vm1097, %v1096
    %s1100 = scalar_lea.vmem %s1, 4294966859
    %1101 = vst.msk [vmem:[%s1100] ss:$324 sm:$0xc] %vm1097, %v1096
    %v1102 = vld.sshfl [vmem:[#allocation0] sm:$0xff pattern:$0x99999810]
    %1103 = vrot.lane.b32.xlu0 %v1102, 44
    %v1104 = vpop.permute.xlu0 %1103
    %vm1105 = vcmask 7168
    %s1106 = scalar_lea.vmem %s1, 84
    %1107 = vst.msk [vmem:[%s1106] ss:$324 sm:$0x3] %vm1105, %v1104
    %s1108 = scalar_lea.vmem %s1, 4294966860
    %1109 = vst.msk [vmem:[%s1108] ss:$324 sm:$0xc] %vm1105, %v1104
    %v1110 = vld.sshfl [vmem:[#allocation0] sm:$0xff pattern:$0x99999810]
    %1111 = vrot.lane.b32.xlu0 %v1110, 43
    %v1112 = vpop.permute.xlu0 %1111
    %vm1113 = vcmask 7168
    %s1114 = scalar_lea.vmem %s1, 85
    %1115 = vst.msk [vmem:[%s1114] ss:$324 sm:$0x3] %vm1113, %v1112
    %s1116 = scalar_lea.vmem %s1, 4294966861
    %1117 = vst.msk [vmem:[%s1116] ss:$324 sm:$0xc] %vm1113, %v1112
    %v1118 = vld.sshfl [vmem:[#allocation0] sm:$0xff pattern:$0x99999810]
    %1119 = vrot.lane.b32.xlu0 %v1118, 42
    %v1120 = vpop.permute.xlu0 %1119
    %vm1121 = vcmask 7168
    %s1122 = scalar_lea.vmem %s1, 86
    %1123 = vst.msk [vmem:[%s1122] ss:$324 sm:$0x3] %vm1121, %v1120
    %s1124 = scalar_lea.vmem %s1, 4294966862
    %1125 = vst.msk [vmem:[%s1124] ss:$324 sm:$0xc] %vm1121, %v1120
    %v1126 = vld.sshfl [vmem:[#allocation0] sm:$0xff pattern:$0x99999810]
    %1127 = vrot.lane.b32.xlu0 %v1126, 41
    %v1128 = vpop.permute.xlu0 %1127
    %vm1129 = vcmask 7168
    %s1130 = scalar_lea.vmem %s1, 87
    %1131 = vst.msk [vmem:[%s1130] ss:$324 sm:$0x3] %vm1129, %v1128
    %s1132 = scalar_lea.vmem %s1, 4294966863
    %1133 = vst.msk [vmem:[%s1132] ss:$324 sm:$0xc] %vm1129, %v1128
    %v1134 = vld.sshfl [vmem:[#allocation0] sm:$0xff pattern:$0x99999810]
    %1135 = vrot.lane.b32.xlu0 %v1134, 40
    %v1136 = vpop.permute.xlu0 %1135
    %vm1137 = vcmask 7168
    %s1138 = scalar_lea.vmem %s1, 88
    %1139 = vst.msk [vmem:[%s1138] ss:$324 sm:$0x3] %vm1137, %v1136
    %s1140 = scalar_lea.vmem %s1, 4294966864
    %1141 = vst.msk [vmem:[%s1140] ss:$324 sm:$0xc] %vm1137, %v1136
    %v1142 = vld.sshfl [vmem:[#allocation0] sm:$0xff pattern:$0x99999810]
    %1143 = vrot.lane.b32.xlu0 %v1142, 39
    %v1144 = vpop.permute.xlu0 %1143
    %vm1145 = vcmask 7168
    %s1146 = scalar_lea.vmem %s1, 89
    %1147 = vst.msk [vmem:[%s1146] ss:$324 sm:$0x3] %vm1145, %v1144
    %s1148 = scalar_lea.vmem %s1, 4294966865
    %1149 = vst.msk [vmem:[%s1148] ss:$324 sm:$0xc] %vm1145, %v1144
    %v1150 = vld.sshfl [vmem:[#allocation0] sm:$0xff pattern:$0x99999810]
    %1151 = vrot.lane.b32.xlu0 %v1150, 38
    %v1152 = vpop.permute.xlu0 %1151
    %vm1153 = vcmask 7168
    %s1154 = scalar_lea.vmem %s1, 90
    %1155 = vst.msk [vmem:[%s1154] ss:$324 sm:$0x3] %vm1153, %v1152
    %s1156 = scalar_lea.vmem %s1, 4294966866
    %1157 = vst.msk [vmem:[%s1156] ss:$324 sm:$0xc] %vm1153, %v1152
    %v1158 = vld.sshfl [vmem:[#allocation0] sm:$0xff pattern:$0x99999810]
    %1159 = vrot.lane.b32.xlu0 %v1158, 37
    %v1160 = vpop.permute.xlu0 %1159
    %vm1161 = vcmask 7168
    %s1162 = scalar_lea.vmem %s1, 91
    %1163 = vst.msk [vmem:[%s1162] ss:$324 sm:$0x3] %vm1161, %v1160
    %s1164 = scalar_lea.vmem %s1, 4294966867
    %1165 = vst.msk [vmem:[%s1164] ss:$324 sm:$0xc] %vm1161, %v1160
    %v1166 = vld.sshfl [vmem:[#allocation0] sm:$0xff pattern:$0x88888901]
    %1167 = vrot.lane.b32.xlu0 %v1166, 36
    %v1168 = vpop.permute.xlu0 %1167
    %vm1169 = vcmask 7168
    %s1170 = scalar_lea.vmem %s1, 416
    %1171 = vst.msk [vmem:[%s1170] ss:$-324 sm:$0x3] %vm1169, %v1168
    %s1172 = scalar_lea.vmem %s1, 1192
    %1173 = vst.msk [vmem:[%s1172] ss:$-324 sm:$0xc] %vm1169, %v1168
    %v1174 = vld.sshfl [vmem:[#allocation0] sm:$0xff pattern:$0x88888901]
    %1175 = vrot.lane.b32.xlu0 %v1174, 35
    %v1176 = vpop.permute.xlu0 %1175
    %vm1177 = vcmask 7168
    %s1178 = scalar_lea.vmem %s1, 417
    %1179 = vst.msk [vmem:[%s1178] ss:$-324 sm:$0x3] %vm1177, %v1176
    %s1180 = scalar_lea.vmem %s1, 1193
    %1181 = vst.msk [vmem:[%s1180] ss:$-324 sm:$0xc] %vm1177, %v1176
    %v1182 = vld.sshfl [vmem:[#allocation0] sm:$0xff pattern:$0x88888901]
    %1183 = vrot.lane.b32.xlu0 %v1182, 34
    %v1184 = vpop.permute.xlu0 %1183
    %vm1185 = vcmask 7168
    %s1186 = scalar_lea.vmem %s1, 418
    %1187 = vst.msk [vmem:[%s1186] ss:$-324 sm:$0x3] %vm1185, %v1184
    %s1188 = scalar_lea.vmem %s1, 1194
    %1189 = vst.msk [vmem:[%s1188] ss:$-324 sm:$0xc] %vm1185, %v1184
    %v1190 = vld.sshfl [vmem:[#allocation0] sm:$0xff pattern:$0x88888901]
    %1191 = vrot.lane.b32.xlu0 %v1190, 33
    %v1192 = vpop.permute.xlu0 %1191
    %vm1193 = vcmask 7168
    %s1194 = scalar_lea.vmem %s1, 419
    %1195 = vst.msk [vmem:[%s1194] ss:$-324 sm:$0x3] %vm1193, %v1192
    %s1196 = scalar_lea.vmem %s1, 1195
    %1197 = vst.msk [vmem:[%s1196] ss:$-324 sm:$0xc] %vm1193, %v1192
    %v1198 = vld.sshfl [vmem:[#allocation0] sm:$0xff pattern:$0x99999810]
    %1199 = vrot.lane.b32.xlu0 %v1198, 32
    %v1200 = vpop.permute.xlu0 %1199
    %vm1201 = vcmask 7168
    %s1202 = scalar_lea.vmem %s1, 96
    %1203 = vst.msk [vmem:[%s1202] ss:$324 sm:$0x3] %vm1201, %v1200
    %s1204 = scalar_lea.vmem %s1, 4294966872
    %1205 = vst.msk [vmem:[%s1204] ss:$324 sm:$0xc] %vm1201, %v1200
    %v1206 = vld.sshfl [vmem:[#allocation0] sm:$0xff pattern:$0x99999810]
    %1207 = vrot.lane.b32.xlu0 %v1206, 31
    %v1208 = vpop.permute.xlu0 %1207
    %vm1209 = vcmask 7168
    %s1210 = scalar_lea.vmem %s1, 97
    %1211 = vst.msk [vmem:[%s1210] ss:$324 sm:$0x3] %vm1209, %v1208
    %s1212 = scalar_lea.vmem %s1, 4294966873
    %1213 = vst.msk [vmem:[%s1212] ss:$324 sm:$0xc] %vm1209, %v1208
    %v1214 = vld.sshfl [vmem:[#allocation0] sm:$0xff pattern:$0x99999810]
    %1215 = vrot.lane.b32.xlu0 %v1214, 30
    %v1216 = vpop.permute.xlu0 %1215
    %vm1217 = vcmask 7168
    %s1218 = scalar_lea.vmem %s1, 98
    %1219 = vst.msk [vmem:[%s1218] ss:$324 sm:$0x3] %vm1217, %v1216
    %s1220 = scalar_lea.vmem %s1, 4294966874
    %1221 = vst.msk [vmem:[%s1220] ss:$324 sm:$0xc] %vm1217, %v1216
    %v1222 = vld.sshfl [vmem:[#allocation0] sm:$0xff pattern:$0x99999810]
    %1223 = vrot.lane.b32.xlu0 %v1222, 29
    %v1224 = vpop.permute.xlu0 %1223
    %vm1225 = vcmask 7168
    %s1226 = scalar_lea.vmem %s1, 99
    %1227 = vst.msk [vmem:[%s1226] ss:$324 sm:$0x3] %vm1225, %v1224
    %s1228 = scalar_lea.vmem %s1, 4294966875
    %1229 = vst.msk [vmem:[%s1228] ss:$324 sm:$0xc] %vm1225, %v1224
    %v1230 = vld.sshfl [vmem:[#allocation0] sm:$0xff pattern:$0x99999810]
    %1231 = vrot.lane.b32.xlu0 %v1230, 28
    %v1232 = vpop.permute.xlu0 %1231
    %vm1233 = vcmask 7168
    %s1234 = scalar_lea.vmem %s1, 100
    %1235 = vst.msk [vmem:[%s1234] ss:$324 sm:$0x3] %vm1233, %v1232
    %s1236 = scalar_lea.vmem %s1, 4294966876
    %1237 = vst.msk [vmem:[%s1236] ss:$324 sm:$0xc] %vm1233, %v1232
    %v1238 = vld.sshfl [vmem:[#allocation0] sm:$0xff pattern:$0x99999810]
    %1239 = vrot.lane.b32.xlu0 %v1238, 27
    %v1240 = vpop.permute.xlu0 %1239
    %vm1241 = vcmask 7168
    %s1242 = scalar_lea.vmem %s1, 101
    %1243 = vst.msk [vmem:[%s1242] ss:$324 sm:$0x3] %vm1241, %v1240
    %s1244 = scalar_lea.vmem %s1, 4294966877
    %1245 = vst.msk [vmem:[%s1244] ss:$324 sm:$0xc] %vm1241, %v1240
    %v1246 = vld.sshfl [vmem:[#allocation0] sm:$0xff pattern:$0x99999810]
    %1247 = vrot.lane.b32.xlu0 %v1246, 26
    %v1248 = vpop.permute.xlu0 %1247
    %vm1249 = vcmask 7168
    %s1250 = scalar_lea.vmem %s1, 102
    %1251 = vst.msk [vmem:[%s1250] ss:$324 sm:$0x3] %vm1249, %v1248
    %s1252 = scalar_lea.vmem %s1, 4294966878
    %1253 = vst.msk [vmem:[%s1252] ss:$324 sm:$0xc] %vm1249, %v1248
    %v1254 = vld.sshfl [vmem:[#allocation0] sm:$0xff pattern:$0x99999810]
    %1255 = vrot.lane.b32.xlu0 %v1254, 25
    %v1256 = vpop.permute.xlu0 %1255
    %vm1257 = vcmask 7168
    %s1258 = scalar_lea.vmem %s1, 103
    %1259 = vst.msk [vmem:[%s1258] ss:$324 sm:$0x3] %vm1257, %v1256
    %s1260 = scalar_lea.vmem %s1, 4294966879
    %1261 = vst.msk [vmem:[%s1260] ss:$324 sm:$0xc] %vm1257, %v1256
    %v1262 = vld.sshfl [vmem:[#allocation0] sm:$0xff pattern:$0x99999810]
    %1263 = vrot.lane.b32.xlu0 %v1262, 24
    %v1264 = vpop.permute.xlu0 %1263
    %vm1265 = vcmask 7168
    %s1266 = scalar_lea.vmem %s1, 104
    %1267 = vst.msk [vmem:[%s1266] ss:$324 sm:$0x3] %vm1265, %v1264
    %s1268 = scalar_lea.vmem %s1, 4294966880
    %1269 = vst.msk [vmem:[%s1268] ss:$324 sm:$0xc] %vm1265, %v1264
    %v1270 = vld.sshfl [vmem:[#allocation0] sm:$0xff pattern:$0x99999810]
    %1271 = vrot.lane.b32.xlu0 %v1270, 23
    %v1272 = vpop.permute.xlu0 %1271
    %vm1273 = vcmask 7168
    %s1274 = scalar_lea.vmem %s1, 105
    %1275 = vst.msk [vmem:[%s1274] ss:$324 sm:$0x3] %vm1273, %v1272
    %s1276 = scalar_lea.vmem %s1, 4294966881
    %1277 = vst.msk [vmem:[%s1276] ss:$324 sm:$0xc] %vm1273, %v1272
    %v1278 = vld.sshfl [vmem:[#allocation0] sm:$0xff pattern:$0x99999810]
    %1279 = vrot.lane.b32.xlu0 %v1278, 22
    %v1280 = vpop.permute.xlu0 %1279
    %vm1281 = vcmask 7168
    %s1282 = scalar_lea.vmem %s1, 106
    %1283 = vst.msk [vmem:[%s1282] ss:$324 sm:$0x3] %vm1281, %v1280
    %s1284 = scalar_lea.vmem %s1, 4294966882
    %1285 = vst.msk [vmem:[%s1284] ss:$324 sm:$0xc] %vm1281, %v1280
    %v1286 = vld.sshfl [vmem:[#allocation0] sm:$0xff pattern:$0x99999810]
    %1287 = vrot.lane.b32.xlu0 %v1286, 21
    %v1288 = vpop.permute.xlu0 %1287
    %vm1289 = vcmask 7168
    %s1290 = scalar_lea.vmem %s1, 107
    %1291 = vst.msk [vmem:[%s1290] ss:$324 sm:$0x3] %vm1289, %v1288
    %s1292 = scalar_lea.vmem %s1, 4294966883
    %1293 = vst.msk [vmem:[%s1292] ss:$324 sm:$0xc] %vm1289, %v1288
    %v1294 = vld.sshfl [vmem:[#allocation0] sm:$0xff pattern:$0x99999810]
    %1295 = vrot.lane.b32.xlu0 %v1294, 20
    %v1296 = vpop.permute.xlu0 %1295
    %vm1297 = vcmask 7168
    %s1298 = scalar_lea.vmem %s1, 108
    %1299 = vst.msk [vmem:[%s1298] ss:$324 sm:$0x3] %vm1297, %v1296
    %s1300 = scalar_lea.vmem %s1, 4294966884
    %1301 = vst.msk [vmem:[%s1300] ss:$324 sm:$0xc] %vm1297, %v1296
    %v1302 = vld.sshfl [vmem:[#allocation0] sm:$0xff pattern:$0x99999810]
    %1303 = vrot.lane.b32.xlu0 %v1302, 19
    %v1304 = vpop.permute.xlu0 %1303
    %vm1305 = vcmask 7168
    %s1306 = scalar_lea.vmem %s1, 109
    %1307 = vst.msk [vmem:[%s1306] ss:$324 sm:$0x3] %vm1305, %v1304
    %s1308 = scalar_lea.vmem %s1, 4294966885
    %1309 = vst.msk [vmem:[%s1308] ss:$324 sm:$0xc] %vm1305, %v1304
    %v1310 = vld.sshfl [vmem:[#allocation0] sm:$0xff pattern:$0x99999810]
    %1311 = vrot.lane.b32.xlu0 %v1310, 18
    %v1312 = vpop.permute.xlu0 %1311
    %vm1313 = vcmask 7168
    %s1314 = scalar_lea.vmem %s1, 110
    %1315 = vst.msk [vmem:[%s1314] ss:$324 sm:$0x3] %vm1313, %v1312
    %s1316 = scalar_lea.vmem %s1, 4294966886
    %1317 = vst.msk [vmem:[%s1316] ss:$324 sm:$0xc] %vm1313, %v1312
    %v1318 = vld.sshfl [vmem:[#allocation0] sm:$0xff pattern:$0x99999810]
    %1319 = vrot.lane.b32.xlu0 %v1318, 17
    %v1320 = vpop.permute.xlu0 %1319
    %vm1321 = vcmask 7168
    %s1322 = scalar_lea.vmem %s1, 111
    %1323 = vst.msk [vmem:[%s1322] ss:$324 sm:$0x3] %vm1321, %v1320
    %s1324 = scalar_lea.vmem %s1, 4294966887
    %1325 = vst.msk [vmem:[%s1324] ss:$324 sm:$0xc] %vm1321, %v1320
    %v1326 = vld.sshfl [vmem:[#allocation0] sm:$0xff pattern:$0x99999810]
    %1327 = vrot.lane.b32.xlu0 %v1326, 16
    %v1328 = vpop.permute.xlu0 %1327
    %vm1329 = vcmask 7168
    %s1330 = scalar_lea.vmem %s1, 112
    %1331 = vst.msk [vmem:[%s1330] ss:$324 sm:$0x3] %vm1329, %v1328
    %s1332 = scalar_lea.vmem %s1, 4294966888
    %1333 = vst.msk [vmem:[%s1332] ss:$324 sm:$0xc] %vm1329, %v1328
    %v1334 = vld.sshfl [vmem:[#allocation0] sm:$0xff pattern:$0x99999810]
    %1335 = vrot.lane.b32.xlu0 %v1334, 15
    %v1336 = vpop.permute.xlu0 %1335
    %vm1337 = vcmask 7168
    %s1338 = scalar_lea.vmem %s1, 113
    %1339 = vst.msk [vmem:[%s1338] ss:$324 sm:$0x3] %vm1337, %v1336
    %s1340 = scalar_lea.vmem %s1, 4294966889
    %1341 = vst.msk [vmem:[%s1340] ss:$324 sm:$0xc] %vm1337, %v1336
    %v1342 = vld.sshfl [vmem:[#allocation0] sm:$0xff pattern:$0x99999810]
    %1343 = vrot.lane.b32.xlu0 %v1342, 14
    %v1344 = vpop.permute.xlu0 %1343
    %vm1345 = vcmask 7168
    %s1346 = scalar_lea.vmem %s1, 114
    %1347 = vst.msk [vmem:[%s1346] ss:$324 sm:$0x3] %vm1345, %v1344
    %s1348 = scalar_lea.vmem %s1, 4294966890
    %1349 = vst.msk [vmem:[%s1348] ss:$324 sm:$0xc] %vm1345, %v1344
    %v1350 = vld.sshfl [vmem:[#allocation0] sm:$0xff pattern:$0x99999810]
    %1351 = vrot.lane.b32.xlu0 %v1350, 13
    %v1352 = vpop.permute.xlu0 %1351
    %vm1353 = vcmask 7168
    %s1354 = scalar_lea.vmem %s1, 115
    %1355 = vst.msk [vmem:[%s1354] ss:$324 sm:$0x3] %vm1353, %v1352
    %s1356 = scalar_lea.vmem %s1, 4294966891
    %1357 = vst.msk [vmem:[%s1356] ss:$324 sm:$0xc] %vm1353, %v1352
    %v1358 = vld.sshfl [vmem:[#allocation0] sm:$0xff pattern:$0x99999810]
    %1359 = vrot.lane.b32.xlu0 %v1358, 12
    %v1360 = vpop.permute.xlu0 %1359
    %vm1361 = vcmask 7168
    %s1362 = scalar_lea.vmem %s1, 116
    %1363 = vst.msk [vmem:[%s1362] ss:$324 sm:$0x3] %vm1361, %v1360
    %s1364 = scalar_lea.vmem %s1, 4294966892
    %1365 = vst.msk [vmem:[%s1364] ss:$324 sm:$0xc] %vm1361, %v1360
    %v1366 = vld.sshfl [vmem:[#allocation0] sm:$0xff pattern:$0x99999810]
    %1367 = vrot.lane.b32.xlu0 %v1366, 11
    %v1368 = vpop.permute.xlu0 %1367
    %vm1369 = vcmask 7168
    %s1370 = scalar_lea.vmem %s1, 117
    %1371 = vst.msk [vmem:[%s1370] ss:$324 sm:$0x3] %vm1369, %v1368
    %s1372 = scalar_lea.vmem %s1, 4294966893
    %1373 = vst.msk [vmem:[%s1372] ss:$324 sm:$0xc] %vm1369, %v1368
    %v1374 = vld.sshfl [vmem:[#allocation0] sm:$0xff pattern:$0x99999810]
    %1375 = vrot.lane.b32.xlu0 %v1374, 10
    %v1376 = vpop.permute.xlu0 %1375
    %vm1377 = vcmask 7168
    %s1378 = scalar_lea.vmem %s1, 118
    %1379 = vst.msk [vmem:[%s1378] ss:$324 sm:$0x3] %vm1377, %v1376
    %s1380 = scalar_lea.vmem %s1, 4294966894
    %1381 = vst.msk [vmem:[%s1380] ss:$324 sm:$0xc] %vm1377, %v1376
    %v1382 = vld.sshfl [vmem:[#allocation0] sm:$0xff pattern:$0x99999810]
    %1383 = vrot.lane.b32.xlu0 %v1382, 9
    %v1384 = vpop.permute.xlu0 %1383
    %vm1385 = vcmask 7168
    %s1386 = scalar_lea.vmem %s1, 119
    %1387 = vst.msk [vmem:[%s1386] ss:$324 sm:$0x3] %vm1385, %v1384
    %s1388 = scalar_lea.vmem %s1, 4294966895
    %1389 = vst.msk [vmem:[%s1388] ss:$324 sm:$0xc] %vm1385, %v1384
    %v1390 = vld.sshfl [vmem:[#allocation0] sm:$0xff pattern:$0x99999810]
    %1391 = vrot.lane.b32.xlu0 %v1390, 8
    %v1392 = vpop.permute.xlu0 %1391
    %vm1393 = vcmask 7168
    %s1394 = scalar_lea.vmem %s1, 120
    %1395 = vst.msk [vmem:[%s1394] ss:$324 sm:$0x3] %vm1393, %v1392
    %s1396 = scalar_lea.vmem %s1, 4294966896
    %1397 = vst.msk [vmem:[%s1396] ss:$324 sm:$0xc] %vm1393, %v1392
    %v1398 = vld.sshfl [vmem:[#allocation0] sm:$0xff pattern:$0x99999810]
    %1399 = vrot.lane.b32.xlu0 %v1398, 7
    %v1400 = vpop.permute.xlu0 %1399
    %vm1401 = vcmask 7168
    %s1402 = scalar_lea.vmem %s1, 121
    %1403 = vst.msk [vmem:[%s1402] ss:$324 sm:$0x3] %vm1401, %v1400
    %s1404 = scalar_lea.vmem %s1, 4294966897
    %1405 = vst.msk [vmem:[%s1404] ss:$324 sm:$0xc] %vm1401, %v1400
    %v1406 = vld.sshfl [vmem:[#allocation0] sm:$0xff pattern:$0x99999810]
    %1407 = vrot.lane.b32.xlu0 %v1406, 6
    %v1408 = vpop.permute.xlu0 %1407
    %vm1409 = vcmask 7168
    %s1410 = scalar_lea.vmem %s1, 122
    %1411 = vst.msk [vmem:[%s1410] ss:$324 sm:$0x3] %vm1409, %v1408
    %s1412 = scalar_lea.vmem %s1, 4294966898
    %1413 = vst.msk [vmem:[%s1412] ss:$324 sm:$0xc] %vm1409, %v1408
    %v1414 = vld.sshfl [vmem:[#allocation0] sm:$0xff pattern:$0x99999810]
    %1415 = vrot.lane.b32.xlu0 %v1414, 5
    %v1416 = vpop.permute.xlu0 %1415
    %vm1417 = vcmask 7168
    %s1418 = scalar_lea.vmem %s1, 123
    %1419 = vst.msk [vmem:[%s1418] ss:$324 sm:$0x3] %vm1417, %v1416
    %s1420 = scalar_lea.vmem %s1, 4294966899
    %1421 = vst.msk [vmem:[%s1420] ss:$324 sm:$0xc] %vm1417, %v1416
    %v1422 = vld.sshfl [vmem:[#allocation0] sm:$0xff pattern:$0x88888901]
    %1423 = vrot.lane.b32.xlu0 %v1422, 4
    %v1424 = vpop.permute.xlu0 %1423
    %vm1425 = vcmask 7168
    %s1426 = scalar_lea.vmem %s1, 448
    %1427 = vst.msk [vmem:[%s1426] ss:$-324 sm:$0x3] %vm1425, %v1424
    %s1428 = scalar_lea.vmem %s1, 1224
    %1429 = vst.msk [vmem:[%s1428] ss:$-324 sm:$0xc] %vm1425, %v1424
    %v1430 = vld.sshfl [vmem:[#allocation0] sm:$0xff pattern:$0x88888901]
    %1431 = vrot.lane.b32.xlu0 %v1430, 3
    %v1432 = vpop.permute.xlu0 %1431
    %vm1433 = vcmask 7168
    %s1434 = scalar_lea.vmem %s1, 449
    %1435 = vst.msk [vmem:[%s1434] ss:$-324 sm:$0x3] %vm1433, %v1432
    %s1436 = scalar_lea.vmem %s1, 1225
    %1437 = vst.msk [vmem:[%s1436] ss:$-324 sm:$0xc] %vm1433, %v1432
    %v1438 = vld.sshfl [vmem:[#allocation0] sm:$0xff pattern:$0x88888901]
    %1439 = vrot.lane.b32.xlu0 %v1438, 2
    %v1440 = vpop.permute.xlu0 %1439
    %vm1441 = vcmask 7168
    %s1442 = scalar_lea.vmem %s1, 450
    %1443 = vst.msk [vmem:[%s1442] ss:$-324 sm:$0x3] %vm1441, %v1440
    %s1444 = scalar_lea.vmem %s1, 1226
    %1445 = vst.msk [vmem:[%s1444] ss:$-324 sm:$0xc] %vm1441, %v1440
    %v1446 = vld.sshfl [vmem:[#allocation0] sm:$0xff pattern:$0x88888901]
    %1447 = vrot.lane.b32.xlu0 %v1446, 1
    %v1448 = vpop.permute.xlu0 %1447
    %vm1449 = vcmask 7168
    %s1450 = scalar_lea.vmem %s1, 451
    %1451 = vst.msk [vmem:[%s1450] ss:$-324 sm:$0x3] %vm1449, %v1448
    %s1452 = scalar_lea.vmem %s1, 1227
    %1453 = vst.msk [vmem:[%s1452] ss:$-324 sm:$0xc] %vm1449, %v1448

// kernel: a_call__.5
$region0: #{a_call__.5}
  #allocation0 [shape = 'u32[]', space=smem, size = 0x4, offset = 0x4, fixed_abs, tag = 'smem constant byte address 0x4 - core index']
  #allocation1 [shape = 'u32[144,128]{1,0:T(1,128)}', space=vmem, size = 0x12000, scoped, tag = 'internal scratch']
  %s0 = inlined_call_operand.vmem [shape: f32[768,16], index: 0, kind: input, shape index: {}]
  %s1 = inlined_call_operand.vmem [shape: bf16[16,80], index: 1, kind: input, shape index: {}]
  %s2 = inlined_call_operand.vmem [shape: f32[768,80], index: 2, kind: output, shape index: {0}]
  %s3 = inlined_call_operand.vmem [shape: f32[1,80], index: 3, kind: output, shape index: {1}]
  %s4 = inlined_call_operand.vmem [shape: f32[1,80], index: 4, kind: output, shape index: {2}]
  %5 = xla_tuple %s2, %s3, %s4
  %s6 = sld [smem:[#allocation0]]
  $region61: #{a_call__.5} parent=0
    _
  %s8 = ssub.s32 1, %s6
  %s9 = scalar_select 0, %s8, %s6
  loop: start=0, step=1, limit=5
  $region2: #{a_call__.5} parent=0 // loop_pre_header
    _
  $region3: #{a_call__.5} parent=0 // loop_header
    %s11 = sphi 0, %s15
    %p12 = scmp.ge.s32.totalorder %s11, 5
    %s21 = sphi 0, %s23
    %s24 = sphi 0, %s21
    %s25 = sphi 0, %s24
    %s41 = sphi 0, %s25
    %s45 = sphi 0, %s45
    %s47 = sphi 0, %s45
    %s48 = sphi 0, %s47
    %s62 = sphi 0, %s48
    %s68 = sphi 0, %s70
    %s71 = sphi 0, %s68
    %s72 = sphi 0, %s71
    %s88 = sphi 0, %s72
    %s92 = sphi 0, %s92
    %s94 = sphi 0, %s92
    %s95 = sphi 0, %s94
    %s109 = sphi 0, %s95
    %s113 = sphi 0, %s113
    %s115 = sphi 0, %s113
    %s116 = sphi 0, %s115
    %s130 = sphi 0, %s116
  $region4: #{a_call__.5} parent=0 // loop_header_branch
    %14 = sbr.rel (%p12) target = $region8
  $region5: #{a_call__.5} parent=0 // loop_body
    %s16 = ssub.s32 %s11, 1
    %s17 = ssub.s32 %s11, 2
    %s18 = sadd.s32 %s11, 1
    %s19 = ssub.s32 %s11, %s18
    %p20 = scmp.eq.s32.totalorder %s19, 0
    %s22 = sadd.s32 %s21, 1
    %s23 = scalar_select %p20, %s21, %s22
    %p26 = pneg %p20
    %p27 = scmp.eq.s32.totalorder %s11, 2
    %p28 = por %p26, %p27
    %p29 = scmp.ne.s32.totalorder %s21, %s24
    %p30 = scmp.eq.s32.totalorder %s11, 0
    %p31 = por %p29, %p30
    %p32 = scmp.ne.s32.totalorder %s21, %s24
    %p33 = scmp.eq.s32.totalorder %s16, 2
    %p34 = por %p32, %p33
    %p35 = scmp.ne.s32.totalorder %s24, %s25
    %p36 = scmp.eq.s32.totalorder %s16, 0
    %p37 = por %p35, %p36
    %p38 = scmp.ne.s32.totalorder %s24, %s25
    %p39 = scmp.eq.s32.totalorder %s17, 2
    %p40 = por %p38, %p39
    %p42 = scmp.ne.s32.totalorder %s25, %s41
    %p43 = scmp.eq.s32.totalorder %s17, 0
    %p44 = por %p42, %p43
    %s46 = sadd.s32 %s45, 1
    %p49 = scmp.eq.s32.totalorder %s11, 2
    %p50 = scmp.ne.s32.totalorder %s45, %s47
    %p51 = scmp.eq.s32.totalorder %s11, 0
    %p52 = por %p50, %p51
    %p53 = scmp.ne.s32.totalorder %s45, %s47
    %p54 = scmp.eq.s32.totalorder %s16, 2
    %p55 = por %p53, %p54
    %p56 = scmp.ne.s32.totalorder %s47, %s48
    %p57 = scmp.eq.s32.totalorder %s16, 0
    %p58 = por %p56, %p57
    %p59 = scmp.ne.s32.totalorder %s47, %s48
    %p60 = scmp.eq.s32.totalorder %s17, 2
    %p61 = por %p59, %p60
    %p63 = scmp.ne.s32.totalorder %s48, %s62
    %p64 = scmp.eq.s32.totalorder %s17, 0
    %p65 = por %p63, %p64
    %s66 = ssub.s32 %s11, %s18
    %p67 = scmp.eq.s32.totalorder %s66, 0
    %s69 = sadd.s32 %s68, 1
    %s70 = scalar_select %p67, %s68, %s69
    %p73 = pneg %p67
    %p74 = scmp.eq.s32.totalorder %s11, 2
    %p75 = por %p73, %p74
    %p76 = scmp.ne.s32.totalorder %s68, %s71
    %p77 = scmp.eq.s32.totalorder %s11, 0
    %p78 = por %p76, %p77
    %p79 = scmp.ne.s32.totalorder %s68, %s71
    %p80 = scmp.eq.s32.totalorder %s16, 2
    %p81 = por %p79, %p80
    %p82 = scmp.ne.s32.totalorder %s71, %s72
    %p83 = scmp.eq.s32.totalorder %s16, 0
    %p84 = por %p82, %p83
    %p85 = scmp.ne.s32.totalorder %s71, %s72
    %p86 = scmp.eq.s32.totalorder %s17, 2
    %p87 = por %p85, %p86
    %p89 = scmp.ne.s32.totalorder %s72, %s88
    %p90 = scmp.eq.s32.totalorder %s17, 0
    %p91 = por %p89, %p90
    %s93 = sadd.s32 %s92, 1
    %p96 = scmp.eq.s32.totalorder %s11, 2
    %p97 = scmp.ne.s32.totalorder %s92, %s94
    %p98 = scmp.eq.s32.totalorder %s11, 0
    %p99 = por %p97, %p98
    %p100 = scmp.ne.s32.totalorder %s92, %s94
    %p101 = scmp.eq.s32.totalorder %s16, 2
    %p102 = por %p100, %p101
    %p103 = scmp.ne.s32.totalorder %s94, %s95
    %p104 = scmp.eq.s32.totalorder %s16, 0
    %p105 = por %p103, %p104
    %p106 = scmp.ne.s32.totalorder %s94, %s95
    %p107 = scmp.eq.s32.totalorder %s17, 2
    %p108 = por %p106, %p107
    %p110 = scmp.ne.s32.totalorder %s95, %s109
    %p111 = scmp.eq.s32.totalorder %s17, 0
    %p112 = por %p110, %p111
    %s114 = sadd.s32 %s113, 1
    %p117 = scmp.eq.s32.totalorder %s11, 2
    %p118 = scmp.ne.s32.totalorder %s113, %s115
    %p119 = scmp.eq.s32.totalorder %s11, 0
    %p120 = por %p118, %p119
    %p121 = scmp.ne.s32.totalorder %s113, %s115
    %p122 = scmp.eq.s32.totalorder %s16, 2
    %p123 = por %p121, %p122
    %p124 = scmp.ne.s32.totalorder %s115, %s116
    %p125 = scmp.eq.s32.totalorder %s16, 0
    %p126 = por %p124, %p125
    %p127 = scmp.ne.s32.totalorder %s115, %s116
    %p128 = scmp.eq.s32.totalorder %s17, 2
    %p129 = por %p127, %p128
    %p131 = scmp.ne.s32.totalorder %s116, %s130
    %p132 = scmp.eq.s32.totalorder %s17, 0
    %p133 = por %p131, %p132
    %p134 = scmp.le.s32.totalorder 1, %s11
    %p135 = scmp.lt.s32.totalorder %s11, 4
    %p136 = pnand %p134, %p135
    %p137 = pneg %p136
    // Predicated region
    $region9: #{a_call__.5} parent=5 // pred_check
      _
    $region10: #{a_call__.5} parent=5 // pred_check_branch
      %139 = sbr.rel (%p136) target = $region12
    $region11: #{a_call__.5} parent=5 // pred_region
      %s140 = ssub.s32 %s11, 1
      // Predicated region
      $region13: #{a_call__.5} parent=11 // pred_check
        %p141 = pneg %p58
      $region14: #{a_call__.5} parent=11 // pred_check_branch
        %143 = sbr.rel (%p141) target = $region16
      $region15: #{a_call__.5} parent=11 // pred_region
        _
      $region16: #{a_call__.5} parent=11 // pred_fallthru
        _
    $region12: #{a_call__.5} parent=5 // pred_fallthru
      _
    %p144 = scmp.lt.s32.totalorder %s11, 3
    // Predicated region
    $region17: #{a_call__.5} parent=5 // pred_check
      %p145 = pneg %p144
    $region18: #{a_call__.5} parent=5 // pred_check_branch
      %147 = sbr.rel (%p145) target = $region20
    $region19: #{a_call__.5} parent=5 // pred_region
      // Predicated region
      $region21: #{a_call__.5} parent=19 // pred_check
        %p148 = pneg %p31
      $region22: #{a_call__.5} parent=19 // pred_check_branch
        %150 = sbr.rel (%p148) target = $region24
      $region23: #{a_call__.5} parent=19 // pred_region
        %s151 = smul.u32 32, %s11
        %p152 = scmp.lt.s32.totalorder %s151, 95
        %s153 = scalar_select %p152, %s151, 95
        %s154 = smul.addr %s153, 8
        %s155 = scalar_lea.vmem %s0, %s154
        %s156 = smul.u32 32, %s11
      $region24: #{a_call__.5} parent=19 // pred_fallthru
        _
    $region20: #{a_call__.5} parent=5 // pred_fallthru
      _
    %p157 = scmp.le.s32.totalorder 1, %s11
    %p158 = scmp.lt.s32.totalorder %s11, 4
    %p159 = pnand %p157, %p158
    %p160 = pneg %p159
    // Predicated region
    $region25: #{a_call__.5} parent=5 // pred_check
      _
    $region26: #{a_call__.5} parent=5 // pred_check_branch
      %162 = sbr.rel (%p159) target = $region28
    $region27: #{a_call__.5} parent=5 // pred_region
      %s163 = ssub.s32 %s11, 1
      %s164 = smul.u32 32, %s16
      %p165 = scmp.lt.s32.totalorder %s164, 95
      %s166 = scalar_select %p165, %s164, 95
      %s167 = smul.addr %s166, 8
      %s168 = scalar_lea.vmem %s0, %s167
      %p169 = pneg %p37
      %p170 = pneg %p34
      %p171 = pneg %p58
      %p172 = pneg %p55
      %p173 = pneg %p84
      %p174 = pneg %p81
      %s175 = smul.u32 32, %s16
      %p176 = scmp.lt.s32.totalorder %s175, 95
      %s177 = scalar_select %p176, %s175, 95
      %s178 = smul.addr %s177, 8
      %s179 = scalar_lea.vmem %s2, %s178
      %p180 = pneg %p105
      %p181 = pneg %p102
      %p182 = pneg %p126
      %p183 = pneg %p123
      %s184 = smul.u32 32, %s16
      %p185 = scmp.lt.s32.totalorder %s184, 95
      %s186 = scalar_select %p185, %s184, 95
      %s187 = smul.addr %s186, 8
      %s188 = scalar_lea.vmem %s0, %s187
      %s189 = smul.u32 32, %s16
      %s190 = smul.u32 32, %s16
      %p191 = scmp.lt.s32.totalorder %s190, 95
      %s192 = scalar_select %p191, %s190, 95
      %s193 = smul.addr %s192, 8
      %s194 = scalar_lea.vmem %s2, %s193
      %s195 = smul.u32 32, %s16
      %v197 = vld [vmem:[%s188] sm:$0xff]
      %v198 = vld [vmem:[%s188 + $0x8] sm:$0xff]
      %v199 = vld [vmem:[%s188 + $0x10] sm:$0xff]
      %v200 = vld [vmem:[%s188 + $0x18] sm:$0xff]
      %v201 = vld [vmem:[%s188 + $0x20] sm:$0xff]
      %v202 = vld [vmem:[%s188 + $0x28] sm:$0xff]
      %v203 = vld [vmem:[%s188 + $0x30] sm:$0xff]
      %v204 = vld [vmem:[%s188 + $0x38] sm:$0xff]
      %v205 = vld [vmem:[%s188 + $0x40] sm:$0xff]
      %v206 = vld [vmem:[%s188 + $0x48] sm:$0xff]
      %v207 = vld [vmem:[%s188 + $0x50] sm:$0xff]
      %v208 = vld [vmem:[%s188 + $0x58] sm:$0xff]
      %v209 = vld [vmem:[%s188 + $0x60] sm:$0xff]
      %v210 = vld [vmem:[%s188 + $0x68] sm:$0xff]
      %v211 = vld [vmem:[%s188 + $0x70] sm:$0xff]
      %v212 = vld [vmem:[%s188 + $0x78] sm:$0xff]
      %v213 = vld [vmem:[%s188 + $0x80] sm:$0xff]
      %v214 = vld [vmem:[%s188 + $0x88] sm:$0xff]
      %v215 = vld [vmem:[%s188 + $0x90] sm:$0xff]
      %v216 = vld [vmem:[%s188 + $0x98] sm:$0xff]
      %v217 = vld [vmem:[%s188 + $0xa0] sm:$0xff]
      %v218 = vld [vmem:[%s188 + $0xa8] sm:$0xff]
      %v219 = vld [vmem:[%s188 + $0xb0] sm:$0xff]
      %v220 = vld [vmem:[%s188 + $0xb8] sm:$0xff]
      %v221 = vld [vmem:[%s188 + $0xc0] sm:$0xff]
      %v222 = vld [vmem:[%s188 + $0xc8] sm:$0xff]
      %v223 = vld [vmem:[%s188 + $0xd0] sm:$0xff]
      %v224 = vld [vmem:[%s188 + $0xd8] sm:$0xff]
      %v225 = vld [vmem:[%s188 + $0xe0] sm:$0xff]
      %v226 = vld [vmem:[%s188 + $0xe8] sm:$0xff]
      %v227 = vld [vmem:[%s188 + $0xf0] sm:$0xff]
      %v228 = vld [vmem:[%s188 + $0xf8] sm:$0xff]
      %v229 = vpack.c.bf16 %v198, %v197
      %v230 = vpack.c.bf16 %v200, %v199
      %v231 = vpack.c.bf16 %v202, %v201
      %v232 = vpack.c.bf16 %v204, %v203
      %v233 = vpack.c.bf16 %v206, %v205
      %v234 = vpack.c.bf16 %v208, %v207
      %v235 = vpack.c.bf16 %v210, %v209
      %v236 = vpack.c.bf16 %v212, %v211
      %v237 = vpack.c.bf16 %v214, %v213
      %v238 = vpack.c.bf16 %v216, %v215
      %v239 = vpack.c.bf16 %v218, %v217
      %v240 = vpack.c.bf16 %v220, %v219
      %v241 = vpack.c.bf16 %v222, %v221
      %v242 = vpack.c.bf16 %v224, %v223
      %v243 = vpack.c.bf16 %v226, %v225
      %v244 = vpack.c.bf16 %v228, %v227
      %v245 = vld [vmem:[%s1] sm:$0xf]
      %v246 = vld [vmem:[%s1 + $0x4] sm:$0xf]
      %v249 = vunpack.c.l.b16 %v245
      %v250 = vunpack.c.l.b16 %v246
      %v251 = vpack.c.b16 %v250, %v249
      %vm253 = vcmask 130048
      %v255 = vsel %vm253, %v229, 0
      %v258 = vsel %vm253, %v230, 0
      %v261 = vsel %vm253, %v231, 0
      %v264 = vsel %vm253, %v232, 0
      %v267 = vsel %vm253, %v233, 0
      %v270 = vsel %vm253, %v234, 0
      %v273 = vsel %vm253, %v235, 0
      %v276 = vsel %vm253, %v236, 0
      %v279 = vsel %vm253, %v237, 0
      %v282 = vsel %vm253, %v238, 0
      %v285 = vsel %vm253, %v239, 0
      %v288 = vsel %vm253, %v240, 0
      %v291 = vsel %vm253, %v241, 0
      %v294 = vsel %vm253, %v242, 0
      %v297 = vsel %vm253, %v243, 0
      %v300 = vsel %vm253, %v244, 0
      %302 = vmatprep.subr.bf16.mxu0 0
      %303 = vmatpush1.bf16.msra.mxu0 %v251
      %304 = vmatprep.subr.bf16.mxu0 0
      %305 = vmatpush1.bf16.msra.mxu0 0
      %306 = vmatprep.subr.bf16.mxu0 0
      %307 = vmatpush1.bf16.msra.mxu0 0
      %308 = vmatprep.subr.bf16.mxu0 0
      %309 = vmatpush1.bf16.msra.mxu0 0
      %310 = vmatprep.subr.bf16.mxu0 0
      %311 = vmatpush1.bf16.msra.mxu0 0
      %312 = vmatprep.subr.bf16.mxu0 0
      %313 = vmatpush1.bf16.msra.mxu0 0
      %314 = vmatprep.subr.bf16.mxu0 0
      %315 = vmatpush1.bf16.msra.mxu0 0
      %316 = vmatprep.subr.bf16.mxu0 0
      %317 = vmatpush1.bf16.msra.mxu0 0
      %318 = vmatprep.subr.bf16.mxu0 0
      %319 = vmatpush1.bf16.msra.mxu0 0
      %320 = vmatprep.subr.bf16.mxu0 0
      %321 = vmatpush1.bf16.msra.mxu0 0
      %322 = vmatprep.subr.bf16.mxu0 0
      %323 = vmatpush1.bf16.msra.mxu0 0
      %324 = vmatprep.subr.bf16.mxu0 0
      %325 = vmatpush1.bf16.msra.mxu0 0
      %326 = vmatprep.subr.bf16.mxu0 0
      %327 = vmatpush1.bf16.msra.mxu0 0
      %328 = vmatprep.subr.bf16.mxu0 0
      %329 = vmatpush1.bf16.msra.mxu0 0
      %330 = vmatprep.subr.bf16.mxu0 0
      %331 = vmatpush1.bf16.msra.mxu0 0
      %332 = vmatprep.subr.bf16.mxu0 0
      %333 = vmatpush1.bf16.msra.mxu0 0
      %334 = vmatprep.mubr.bf16.mxu0 0
      %335 = vmatmul.mubr.bf16.gmra.mrb[0].mxu0 %v255
      %v336 = vpop.f32.mrb[0].mxu0
      %v337 = vadd.f32 0.0, %v336
      %v338 = vpop.f32.mrb[0].mxu0
      %v339 = vpop.f32.mrb[0].mxu0
      %v340 = vadd.f32 0.0, %v339
      %v341 = vpop.f32.mrb[0].mxu0
      %342 = vmatprep.mubr.bf16.mxu0 0
      %343 = vmatmul.mubr.bf16.gmra.mrb[0].mxu0 %v258
      %v344 = vpop.f32.mrb[0].mxu0
      %v345 = vadd.f32 0.0, %v344
      %v346 = vpop.f32.mrb[0].mxu0
      %v347 = vpop.f32.mrb[0].mxu0
      %v348 = vadd.f32 0.0, %v347
      %v349 = vpop.f32.mrb[0].mxu0
      %350 = vmatprep.mubr.bf16.mxu0 0
      %351 = vmatmul.mubr.bf16.gmra.mrb[0].mxu0 %v261
      %v352 = vpop.f32.mrb[0].mxu0
      %v353 = vadd.f32 0.0, %v352
      %v354 = vpop.f32.mrb[0].mxu0
      %v355 = vpop.f32.mrb[0].mxu0
      %v356 = vadd.f32 0.0, %v355
      %v357 = vpop.f32.mrb[0].mxu0
      %358 = vmatprep.mubr.bf16.mxu0 0
      %359 = vmatmul.mubr.bf16.gmra.mrb[0].mxu0 %v264
      %v360 = vpop.f32.mrb[0].mxu0
      %v361 = vadd.f32 0.0, %v360
      %v362 = vpop.f32.mrb[0].mxu0
      %v363 = vpop.f32.mrb[0].mxu0
      %v364 = vadd.f32 0.0, %v363
      %v365 = vpop.f32.mrb[0].mxu0
      %366 = vmatprep.mubr.bf16.mxu0 0
      %367 = vmatmul.mubr.bf16.gmra.mrb[0].mxu0 %v267
      %v368 = vpop.f32.mrb[0].mxu0
      %v369 = vadd.f32 0.0, %v368
      %v370 = vpop.f32.mrb[0].mxu0
      %v371 = vpop.f32.mrb[0].mxu0
      %v372 = vadd.f32 0.0, %v371
      %v373 = vpop.f32.mrb[0].mxu0
      %374 = vmatprep.mubr.bf16.mxu0 0
      %375 = vmatmul.mubr.bf16.gmra.mrb[0].mxu0 %v270
      %v376 = vpop.f32.mrb[0].mxu0
      %v377 = vadd.f32 0.0, %v376
      %v378 = vpop.f32.mrb[0].mxu0
      %v379 = vpop.f32.mrb[0].mxu0
      %v380 = vadd.f32 0.0, %v379
      %v381 = vpop.f32.mrb[0].mxu0
      %382 = vmatprep.mubr.bf16.mxu0 0
      %383 = vmatmul.mubr.bf16.gmra.mrb[0].mxu0 %v273
      %v384 = vpop.f32.mrb[0].mxu0
      %v385 = vadd.f32 0.0, %v384
      %v386 = vpop.f32.mrb[0].mxu0
      %v387 = vpop.f32.mrb[0].mxu0
      %v388 = vadd.f32 0.0, %v387
      %v389 = vpop.f32.mrb[0].mxu0
      %390 = vmatprep.mubr.bf16.mxu0 0
      %391 = vmatmul.mubr.bf16.gmra.mrb[0].mxu0 %v276
      %v392 = vpop.f32.mrb[0].mxu0
      %v393 = vadd.f32 0.0, %v392
      %v394 = vpop.f32.mrb[0].mxu0
      %v395 = vpop.f32.mrb[0].mxu0
      %v396 = vadd.f32 0.0, %v395
      %v397 = vpop.f32.mrb[0].mxu0
      %398 = vmatprep.mubr.bf16.mxu0 0
      %399 = vmatmul.mubr.bf16.gmra.mrb[0].mxu0 %v279
      %v400 = vpop.f32.mrb[0].mxu0
      %v401 = vadd.f32 0.0, %v400
      %v402 = vpop.f32.mrb[0].mxu0
      %v403 = vpop.f32.mrb[0].mxu0
      %v404 = vadd.f32 0.0, %v403
      %v405 = vpop.f32.mrb[0].mxu0
      %406 = vmatprep.mubr.bf16.mxu0 0
      %407 = vmatmul.mubr.bf16.gmra.mrb[0].mxu0 %v282
      %v408 = vpop.f32.mrb[0].mxu0
      %v409 = vadd.f32 0.0, %v408
      %v410 = vpop.f32.mrb[0].mxu0
      %v411 = vpop.f32.mrb[0].mxu0
      %v412 = vadd.f32 0.0, %v411
      %v413 = vpop.f32.mrb[0].mxu0
      %414 = vmatprep.mubr.bf16.mxu0 0
      %415 = vmatmul.mubr.bf16.gmra.mrb[0].mxu0 %v285
      %v416 = vpop.f32.mrb[0].mxu0
      %v417 = vadd.f32 0.0, %v416
      %v418 = vpop.f32.mrb[0].mxu0
      %v419 = vpop.f32.mrb[0].mxu0
      %v420 = vadd.f32 0.0, %v419
      %v421 = vpop.f32.mrb[0].mxu0
      %422 = vmatprep.mubr.bf16.mxu0 0
      %423 = vmatmul.mubr.bf16.gmra.mrb[0].mxu0 %v288
      %v424 = vpop.f32.mrb[0].mxu0
      %v425 = vadd.f32 0.0, %v424
      %v426 = vpop.f32.mrb[0].mxu0
      %v427 = vpop.f32.mrb[0].mxu0
      %v428 = vadd.f32 0.0, %v427
      %v429 = vpop.f32.mrb[0].mxu0
      %430 = vmatprep.mubr.bf16.mxu0 0
      %431 = vmatmul.mubr.bf16.gmra.mrb[0].mxu0 %v291
      %v432 = vpop.f32.mrb[0].mxu0
      %v433 = vadd.f32 0.0, %v432
      %v434 = vpop.f32.mrb[0].mxu0
      %v435 = vpop.f32.mrb[0].mxu0
      %v436 = vadd.f32 0.0, %v435
      %v437 = vpop.f32.mrb[0].mxu0
      %438 = vmatprep.mubr.bf16.mxu0 0
      %439 = vmatmul.mubr.bf16.gmra.mrb[0].mxu0 %v294
      %v440 = vpop.f32.mrb[0].mxu0
      %v441 = vadd.f32 0.0, %v440
      %v442 = vpop.f32.mrb[0].mxu0
      %v443 = vpop.f32.mrb[0].mxu0
      %v444 = vadd.f32 0.0, %v443
      %v445 = vpop.f32.mrb[0].mxu0
      %446 = vmatprep.mubr.bf16.mxu0 0
      %447 = vmatmul.mubr.bf16.gmra.mrb[0].mxu0 %v297
      %v448 = vpop.f32.mrb[0].mxu0
      %v449 = vadd.f32 0.0, %v448
      %v450 = vpop.f32.mrb[0].mxu0
      %v451 = vpop.f32.mrb[0].mxu0
      %v452 = vadd.f32 0.0, %v451
      %v453 = vpop.f32.mrb[0].mxu0
      %454 = vmatprep.mubr.bf16.mxu0 0
      %455 = vmatmul.mubr.bf16.gmra.mrb[0].mxu0 %v300
      %v456 = vpop.f32.mrb[0].mxu0
      %v457 = vadd.f32 0.0, %v456
      %v458 = vpop.f32.mrb[0].mxu0
      %v459 = vpop.f32.mrb[0].mxu0
      %v460 = vadd.f32 0.0, %v459
      %v461 = vpop.f32.mrb[0].mxu0
      %462 = vdwg.mxu0
      %vm463 = vcmask 654336
      %464 = vst.msk [vmem:[%s194] sm:$0xff] %vm463, %v337
      %465 = vst.msk [vmem:[%s194 + $0x8] sm:$0xff] %vm463, %v340
      %466 = vst.msk [vmem:[%s194 + $0x10] sm:$0xff] %vm463, %v345
      %467 = vst.msk [vmem:[%s194 + $0x18] sm:$0xff] %vm463, %v348
      %468 = vst.msk [vmem:[%s194 + $0x20] sm:$0xff] %vm463, %v353
      %469 = vst.msk [vmem:[%s194 + $0x28] sm:$0xff] %vm463, %v356
      %470 = vst.msk [vmem:[%s194 + $0x30] sm:$0xff] %vm463, %v361
      %471 = vst.msk [vmem:[%s194 + $0x38] sm:$0xff] %vm463, %v364
      %472 = vst.msk [vmem:[%s194 + $0x40] sm:$0xff] %vm463, %v369
      %473 = vst.msk [vmem:[%s194 + $0x48] sm:$0xff] %vm463, %v372
      %474 = vst.msk [vmem:[%s194 + $0x50] sm:$0xff] %vm463, %v377
      %475 = vst.msk [vmem:[%s194 + $0x58] sm:$0xff] %vm463, %v380
      %476 = vst.msk [vmem:[%s194 + $0x60] sm:$0xff] %vm463, %v385
      %477 = vst.msk [vmem:[%s194 + $0x68] sm:$0xff] %vm463, %v388
      %478 = vst.msk [vmem:[%s194 + $0x70] sm:$0xff] %vm463, %v393
      %479 = vst.msk [vmem:[%s194 + $0x78] sm:$0xff] %vm463, %v396
      %480 = vst.msk [vmem:[%s194 + $0x80] sm:$0xff] %vm463, %v401
      %481 = vst.msk [vmem:[%s194 + $0x88] sm:$0xff] %vm463, %v404
      %482 = vst.msk [vmem:[%s194 + $0x90] sm:$0xff] %vm463, %v409
      %483 = vst.msk [vmem:[%s194 + $0x98] sm:$0xff] %vm463, %v412
      %484 = vst.msk [vmem:[%s194 + $0xa0] sm:$0xff] %vm463, %v417
      %485 = vst.msk [vmem:[%s194 + $0xa8] sm:$0xff] %vm463, %v420
      %486 = vst.msk [vmem:[%s194 + $0xb0] sm:$0xff] %vm463, %v425
      %487 = vst.msk [vmem:[%s194 + $0xb8] sm:$0xff] %vm463, %v428
      %488 = vst.msk [vmem:[%s194 + $0xc0] sm:$0xff] %vm463, %v433
      %489 = vst.msk [vmem:[%s194 + $0xc8] sm:$0xff] %vm463, %v436
      %490 = vst.msk [vmem:[%s194 + $0xd0] sm:$0xff] %vm463, %v441
      %491 = vst.msk [vmem:[%s194 + $0xd8] sm:$0xff] %vm463, %v444
      %492 = vst.msk [vmem:[%s194 + $0xe0] sm:$0xff] %vm463, %v449
      %493 = vst.msk [vmem:[%s194 + $0xe8] sm:$0xff] %vm463, %v452
      %494 = vst.msk [vmem:[%s194 + $0xf0] sm:$0xff] %vm463, %v457
      %495 = vst.msk [vmem:[%s194 + $0xf8] sm:$0xff] %vm463, %v460
      %p496 = scmp.eq.s32.totalorder %s16, 0
      // Predicated region
      $region29: #{a_call__.5} parent=27 // pred_check
        %p497 = pneg %p496
      $region30: #{a_call__.5} parent=27 // pred_check_branch
        %499 = sbr.rel (%p497) target = $region32
      $region31: #{a_call__.5} parent=27 // pred_region
        %vm500 = vcmask 647168
        %501 = vst.msk [vmem:[%s3] sm:$0x1] %vm500, 0.0
        %502 = vst.msk [vmem:[%s4] sm:$0x1] %vm500, 0.0
      $region32: #{a_call__.5} parent=27 // pred_fallthru
        _
      %v503 = vld [vmem:[%s3] sm:$0x1]
      %v504 = vsel %vm463, %v337, 0.0
      %v505 = vsel %vm463, %v340, 0.0
      %v506 = vadd.f32 %v504, %v505
      %v507 = vsel %vm463, %v345, 0.0
      %v508 = vadd.f32 %v506, %v507
      %v509 = vsel %vm463, %v348, 0.0
      %v510 = vadd.f32 %v508, %v509
      %v511 = vsel %vm463, %v353, 0.0
      %v512 = vadd.f32 %v510, %v511
      %v513 = vsel %vm463, %v356, 0.0
      %v514 = vadd.f32 %v512, %v513
      %v515 = vsel %vm463, %v361, 0.0
      %v516 = vadd.f32 %v514, %v515
      %v517 = vsel %vm463, %v364, 0.0
      %v518 = vadd.f32 %v516, %v517
      %v519 = vsel %vm463, %v369, 0.0
      %v520 = vadd.f32 %v518, %v519
      %v521 = vsel %vm463, %v372, 0.0
      %v522 = vadd.f32 %v520, %v521
      %v523 = vsel %vm463, %v377, 0.0
      %v524 = vadd.f32 %v522, %v523
      %v525 = vsel %vm463, %v380, 0.0
      %v526 = vadd.f32 %v524, %v525
      %v527 = vsel %vm463, %v385, 0.0
      %v528 = vadd.f32 %v526, %v527
      %v529 = vsel %vm463, %v388, 0.0
      %v530 = vadd.f32 %v528, %v529
      %v531 = vsel %vm463, %v393, 0.0
      %v532 = vadd.f32 %v530, %v531
      %v533 = vsel %vm463, %v396, 0.0
      %v534 = vadd.f32 %v532, %v533
      %v535 = vsel %vm463, %v401, 0.0
      %v536 = vadd.f32 %v534, %v535
      %v537 = vsel %vm463, %v404, 0.0
      %v538 = vadd.f32 %v536, %v537
      %v539 = vsel %vm463, %v409, 0.0
      %v540 = vadd.f32 %v538, %v539
      %v541 = vsel %vm463, %v412, 0.0
      %v542 = vadd.f32 %v540, %v541
      %v543 = vsel %vm463, %v417, 0.0
      %v544 = vadd.f32 %v542, %v543
      %v545 = vsel %vm463, %v420, 0.0
      %v546 = vadd.f32 %v544, %v545
      %v547 = vsel %vm463, %v425, 0.0
      %v548 = vadd.f32 %v546, %v547
      %v549 = vsel %vm463, %v428, 0.0
      %v550 = vadd.f32 %v548, %v549
      %v551 = vsel %vm463, %v433, 0.0
      %v552 = vadd.f32 %v550, %v551
      %v553 = vsel %vm463, %v436, 0.0
      %v554 = vadd.f32 %v552, %v553
      %v555 = vsel %vm463, %v441, 0.0
      %v556 = vadd.f32 %v554, %v555
      %v557 = vsel %vm463, %v444, 0.0
      %v558 = vadd.f32 %v556, %v557
      %v559 = vsel %vm463, %v449, 0.0
      %v560 = vadd.f32 %v558, %v559
      %v561 = vsel %vm463, %v452, 0.0
      %v562 = vadd.f32 %v560, %v561
      %v563 = vsel %vm463, %v457, 0.0
      %v564 = vadd.f32 %v562, %v563
      %v565 = vsel %vm463, %v460, 0.0
      %v566 = vadd.f32 %v564, %v565
      %v567 = vrot.slane %v566, 4
      %v568 = vadd.f32 %v566, %v567
      %v569 = vrot.slane %v568, 2
      %v570 = vadd.f32 %v568, %v569
      %v571 = vrot.slane %v570, 1
      %v572 = vadd.f32 %v570, %v571
      %v573 = vadd.f32 %v503, %v572
      %vm574 = vcmask 647168
      %575 = vst.msk [vmem:[%s3] sm:$0x1] %vm574, %v573
      %v576 = vld [vmem:[%s4] sm:$0x1]
      %v577 = vmul.f32 %v337, %v337
      %v578 = vmul.f32 %v340, %v340
      %v579 = vmul.f32 %v345, %v345
      %v580 = vmul.f32 %v348, %v348
      %v581 = vmul.f32 %v353, %v353
      %v582 = vmul.f32 %v356, %v356
      %v583 = vmul.f32 %v361, %v361
      %v584 = vmul.f32 %v364, %v364
      %v585 = vmul.f32 %v369, %v369
      %v586 = vmul.f32 %v372, %v372
      %v587 = vmul.f32 %v377, %v377
      %v588 = vmul.f32 %v380, %v380
      %v589 = vmul.f32 %v385, %v385
      %v590 = vmul.f32 %v388, %v388
      %v591 = vmul.f32 %v393, %v393
      %v592 = vmul.f32 %v396, %v396
      %v593 = vmul.f32 %v401, %v401
      %v594 = vmul.f32 %v404, %v404
      %v595 = vmul.f32 %v409, %v409
      %v596 = vmul.f32 %v412, %v412
      %v597 = vmul.f32 %v417, %v417
      %v598 = vmul.f32 %v420, %v420
      %v599 = vmul.f32 %v425, %v425
      %v600 = vmul.f32 %v428, %v428
      %v601 = vmul.f32 %v433, %v433
      %v602 = vmul.f32 %v436, %v436
      %v603 = vmul.f32 %v441, %v441
      %v604 = vmul.f32 %v444, %v444
      %v605 = vmul.f32 %v449, %v449
      %v606 = vmul.f32 %v452, %v452
      %v607 = vmul.f32 %v457, %v457
      %v608 = vmul.f32 %v460, %v460
      %v609 = vsel %vm463, %v577, 0.0
      %v610 = vsel %vm463, %v578, 0.0
      %v611 = vadd.f32 %v609, %v610
      %v612 = vsel %vm463, %v579, 0.0
      %v613 = vadd.f32 %v611, %v612
      %v614 = vsel %vm463, %v580, 0.0
      %v615 = vadd.f32 %v613, %v614
      %v616 = vsel %vm463, %v581, 0.0
      %v617 = vadd.f32 %v615, %v616
      %v618 = vsel %vm463, %v582, 0.0
      %v619 = vadd.f32 %v617, %v618
      %v620 = vsel %vm463, %v583, 0.0
      %v621 = vadd.f32 %v619, %v620
      %v622 = vsel %vm463, %v584, 0.0
      %v623 = vadd.f32 %v621, %v622
      %v624 = vsel %vm463, %v585, 0.0
      %v625 = vadd.f32 %v623, %v624
      %v626 = vsel %vm463, %v586, 0.0
      %v627 = vadd.f32 %v625, %v626
      %v628 = vsel %vm463, %v587, 0.0
      %v629 = vadd.f32 %v627, %v628
      %v630 = vsel %vm463, %v588, 0.0
      %v631 = vadd.f32 %v629, %v630
      %v632 = vsel %vm463, %v589, 0.0
      %v633 = vadd.f32 %v631, %v632
      %v634 = vsel %vm463, %v590, 0.0
      %v635 = vadd.f32 %v633, %v634
      %v636 = vsel %vm463, %v591, 0.0
      %v637 = vadd.f32 %v635, %v636
      %v638 = vsel %vm463, %v592, 0.0
      %v639 = vadd.f32 %v637, %v638
      %v640 = vsel %vm463, %v593, 0.0
      %v641 = vadd.f32 %v639, %v640
      %v642 = vsel %vm463, %v594, 0.0
      %v643 = vadd.f32 %v641, %v642
      %v644 = vsel %vm463, %v595, 0.0
      %v645 = vadd.f32 %v643, %v644
      %v646 = vsel %vm463, %v596, 0.0
      %v647 = vadd.f32 %v645, %v646
      %v648 = vsel %vm463, %v597, 0.0
      %v649 = vadd.f32 %v647, %v648
      %v650 = vsel %vm463, %v598, 0.0
      %v651 = vadd.f32 %v649, %v650
      %v652 = vsel %vm463, %v599, 0.0
      %v653 = vadd.f32 %v651, %v652
      %v654 = vsel %vm463, %v600, 0.0
      %v655 = vadd.f32 %v653, %v654
      %v656 = vsel %vm463, %v601, 0.0
      %v657 = vadd.f32 %v655, %v656
      %v658 = vsel %vm463, %v602, 0.0
      %v659 = vadd.f32 %v657, %v658
      %v660 = vsel %vm463, %v603, 0.0
      %v661 = vadd.f32 %v659, %v660
      %v662 = vsel %vm463, %v604, 0.0
      %v663 = vadd.f32 %v661, %v662
      %v664 = vsel %vm463, %v605, 0.0
      %v665 = vadd.f32 %v663, %v664
      %v666 = vsel %vm463, %v606, 0.0
      %v667 = vadd.f32 %v665, %v666
      %v668 = vsel %vm463, %v607, 0.0
      %v669 = vadd.f32 %v667, %v668
      %v670 = vsel %vm463, %v608, 0.0
      %v671 = vadd.f32 %v669, %v670
      %v672 = vrot.slane %v671, 4
      %v673 = vadd.f32 %v671, %v672
      %v674 = vrot.slane %v673, 2
      %v675 = vadd.f32 %v673, %v674
      %v676 = vrot.slane %v675, 1
      %v677 = vadd.f32 %v675, %v676
      %v678 = vadd.f32 %v576, %v677
      %679 = vst.msk [vmem:[%s4] sm:$0x1] %vm574, %v678
      %s680 = smul.u32 32, %s16
      %p681 = scmp.lt.s32.totalorder %s680, 95
      %s682 = scalar_select %p681, %s680, 95
      %s683 = smul.addr %s682, 8
      %s684 = scalar_lea.vmem %s2, %s683
      // Predicated region
      $region33: #{a_call__.5} parent=27 // pred_check
        %p685 = pneg %p81
      $region34: #{a_call__.5} parent=27 // pred_check_branch
        %687 = sbr.rel (%p685) target = $region36
      $region35: #{a_call__.5} parent=27 // pred_region
        %s688 = smul.u32 32, %s16
      $region36: #{a_call__.5} parent=27 // pred_fallthru
        _
      // Predicated region
      $region37: #{a_call__.5} parent=27 // pred_check
        %p689 = pneg %p102
      $region38: #{a_call__.5} parent=27 // pred_check_branch
        %691 = sbr.rel (%p689) target = $region40
      $region39: #{a_call__.5} parent=27 // pred_region
        _
      $region40: #{a_call__.5} parent=27 // pred_fallthru
        _
      // Predicated region
      $region41: #{a_call__.5} parent=27 // pred_check
        %p692 = pneg %p123
      $region42: #{a_call__.5} parent=27 // pred_check_branch
        %694 = sbr.rel (%p692) target = $region44
      $region43: #{a_call__.5} parent=27 // pred_region
        _
      $region44: #{a_call__.5} parent=27 // pred_fallthru
        _
      // Predicated region
      $region45: #{a_call__.5} parent=27 // pred_check
        %p695 = pneg %p102
      $region46: #{a_call__.5} parent=27 // pred_check_branch
        %697 = sbr.rel (%p695) target = $region48
      $region47: #{a_call__.5} parent=27 // pred_region
        _
      $region48: #{a_call__.5} parent=27 // pred_fallthru
        _
      // Predicated region
      $region49: #{a_call__.5} parent=27 // pred_check
        %p698 = pneg %p123
      $region50: #{a_call__.5} parent=27 // pred_check_branch
        %700 = sbr.rel (%p698) target = $region52
      $region51: #{a_call__.5} parent=27 // pred_region
        _
      $region52: #{a_call__.5} parent=27 // pred_fallthru
        _
    $region28: #{a_call__.5} parent=5 // pred_fallthru
      _
    %p701 = scmp.le.s32.totalorder 2, %s11
    // Predicated region
    $region53: #{a_call__.5} parent=5 // pred_check
      %p702 = pneg %p701
    $region54: #{a_call__.5} parent=5 // pred_check_branch
      %704 = sbr.rel (%p702) target = $region56
    $region55: #{a_call__.5} parent=5 // pred_region
      %s705 = ssub.s32 %s11, 2
      // Predicated region
      $region57: #{a_call__.5} parent=55 // pred_check
        %p706 = pneg %p87
      $region58: #{a_call__.5} parent=55 // pred_check_branch
        %708 = sbr.rel (%p706) target = $region60
      $region59: #{a_call__.5} parent=55 // pred_region
        %s709 = smul.u32 32, %s17
        %p710 = scmp.lt.s32.totalorder %s709, 95
        %s711 = scalar_select %p710, %s709, 95
        %s712 = smul.addr %s711, 8
        %s713 = scalar_lea.vmem %s2, %s712
      $region60: #{a_call__.5} parent=55 // pred_fallthru
        _
    $region56: #{a_call__.5} parent=5 // pred_fallthru
      _
  $region6: #{a_call__.5} parent=0 // loop_footer
    %s15 = sadd.s32 1, %s11
  $region7: #{a_call__.5} parent=0 // loop_footer_branch
    %10 = sbr.rel target = $region3
  $region8: #{a_call__.5} parent=0 // loop_exit
    _

// kernel: a_call__.7
$region0: #{a_call__.7}
  #allocation0 [shape = 'u32[]', space=smem, size = 0x4, offset = 0x4, fixed_abs, tag = 'smem constant byte address 0x4 - core index']
  #allocation1 [shape = 'u32[144,128]{1,0:T(1,128)}', space=vmem, size = 0x12000, scoped, tag = 'internal scratch']
  #allocation2 [shape = 'f32[294,16]{1,0:T(8,128)}', space=vmem, size = 0x25000, scoped, tag = 'scratch operand']
  #allocation3 [shape = 'f32[294,1]{1,0:T(8,128)}', space=vmem, size = 0x25000, scoped, tag = 'scratch operand']
  #allocation4 [shape = 's32[2]{0}', space=sflag, size = 0x8, scoped, tag = 'scratch operand']
  #allocation5 [shape = 's32[]', space=sflag, size = 0x4, offset = 0, fixed_abs, tag = 'sflag constant byte address 0x0 - dummy sync flag']
  #allocation6 [shape = 's32[]', space=sflag, size = 0x4, offset = 0, fixed_abs, tag = 'sflag constant byte address 0x0 - dummy sync flag']
  %s0 = inlined_call_operand.vmem [shape: f32[1,16], index: 0, kind: input, shape index: {}]
  %s1 = inlined_call_operand.vmem [shape: f32[1,16], index: 1, kind: input, shape index: {}]
  %s2 = inlined_call_operand.vmem [shape: bf16[144,24], index: 2, kind: input, shape index: {}]
  %s3 = inlined_call_operand.vmem [shape: f32[806,16], index: 3, kind: input, shape index: {}]
  %s4 = inlined_call_operand.vmem [shape: f32[806,1], index: 4, kind: input, shape index: {}]
  %s5 = inlined_call_operand.vmem [shape: f32[768,24], index: 5, kind: output, shape index: {0}]
  %s6 = inlined_call_operand.vmem [shape: f32[1,24], index: 6, kind: output, shape index: {1}]
  %s7 = inlined_call_operand.vmem [shape: f32[1,24], index: 7, kind: output, shape index: {2}]
  %8 = xla_tuple %s5, %s6, %s7
  %s9 = sld [smem:[#allocation0]]
  $region139: #{a_call__.7} parent=0
    _
  %s11 = ssub.s32 1, %s9
  %s12 = scalar_select 0, %s11, %s9
  loop: start=0, step=1, limit=5
  $region2: #{a_call__.7} parent=0 // loop_pre_header
    _
  $region3: #{a_call__.7} parent=0 // loop_header
    %s14 = sphi 0, %s18
    %p15 = scmp.ge.s32.totalorder %s14, 5
    %s22 = sphi 0, %s22
    %s24 = sphi 0, %s22
    %s25 = sphi 0, %s24
    %s39 = sphi 0, %s25
    %s43 = sphi 0, %s43
    %s45 = sphi 0, %s43
    %s46 = sphi 0, %s45
    %s60 = sphi 0, %s46
    %s64 = sphi 0, %s64
    %s66 = sphi 0, %s64
    %s67 = sphi 0, %s66
    %s81 = sphi 0, %s67
    %s87 = sphi 0, %s89
    %s90 = sphi 0, %s87
    %s91 = sphi 0, %s90
    %s107 = sphi 0, %s91
    %s111 = sphi 0, %s111
    %s113 = sphi 0, %s111
    %s114 = sphi 0, %s113
    %s128 = sphi 0, %s114
    %s132 = sphi 0, %s132
    %s134 = sphi 0, %s132
    %s135 = sphi 0, %s134
    %s149 = sphi 0, %s135
  $region4: #{a_call__.7} parent=0 // loop_header_branch
    %17 = sbr.rel (%p15) target = $region8
  $region5: #{a_call__.7} parent=0 // loop_body
    %s19 = ssub.s32 %s14, 1
    %s20 = ssub.s32 %s14, 2
    %s21 = sadd.s32 %s14, 1
    %s23 = sadd.s32 %s22, 1
    %p26 = scmp.eq.s32.totalorder %s14, 2
    %p27 = scmp.ne.s32.totalorder %s22, %s24
    %p28 = scmp.eq.s32.totalorder %s14, 0
    %p29 = por %p27, %p28
    %p30 = scmp.ne.s32.totalorder %s22, %s24
    %p31 = scmp.eq.s32.totalorder %s19, 2
    %p32 = por %p30, %p31
    %p33 = scmp.ne.s32.totalorder %s24, %s25
    %p34 = scmp.eq.s32.totalorder %s19, 0
    %p35 = por %p33, %p34
    %p36 = scmp.ne.s32.totalorder %s24, %s25
    %p37 = scmp.eq.s32.totalorder %s20, 2
    %p38 = por %p36, %p37
    %p40 = scmp.ne.s32.totalorder %s25, %s39
    %p41 = scmp.eq.s32.totalorder %s20, 0
    %p42 = por %p40, %p41
    %s44 = sadd.s32 %s43, 1
    %p47 = scmp.eq.s32.totalorder %s14, 2
    %p48 = scmp.ne.s32.totalorder %s43, %s45
    %p49 = scmp.eq.s32.totalorder %s14, 0
    %p50 = por %p48, %p49
    %p51 = scmp.ne.s32.totalorder %s43, %s45
    %p52 = scmp.eq.s32.totalorder %s19, 2
    %p53 = por %p51, %p52
    %p54 = scmp.ne.s32.totalorder %s45, %s46
    %p55 = scmp.eq.s32.totalorder %s19, 0
    %p56 = por %p54, %p55
    %p57 = scmp.ne.s32.totalorder %s45, %s46
    %p58 = scmp.eq.s32.totalorder %s20, 2
    %p59 = por %p57, %p58
    %p61 = scmp.ne.s32.totalorder %s46, %s60
    %p62 = scmp.eq.s32.totalorder %s20, 0
    %p63 = por %p61, %p62
    %s65 = sadd.s32 %s64, 1
    %p68 = scmp.eq.s32.totalorder %s14, 2
    %p69 = scmp.ne.s32.totalorder %s64, %s66
    %p70 = scmp.eq.s32.totalorder %s14, 0
    %p71 = por %p69, %p70
    %p72 = scmp.ne.s32.totalorder %s64, %s66
    %p73 = scmp.eq.s32.totalorder %s19, 2
    %p74 = por %p72, %p73
    %p75 = scmp.ne.s32.totalorder %s66, %s67
    %p76 = scmp.eq.s32.totalorder %s19, 0
    %p77 = por %p75, %p76
    %p78 = scmp.ne.s32.totalorder %s66, %s67
    %p79 = scmp.eq.s32.totalorder %s20, 2
    %p80 = por %p78, %p79
    %p82 = scmp.ne.s32.totalorder %s67, %s81
    %p83 = scmp.eq.s32.totalorder %s20, 0
    %p84 = por %p82, %p83
    %s85 = ssub.s32 %s14, %s21
    %p86 = scmp.eq.s32.totalorder %s85, 0
    %s88 = sadd.s32 %s87, 1
    %s89 = scalar_select %p86, %s87, %s88
    %p92 = pneg %p86
    %p93 = scmp.eq.s32.totalorder %s14, 2
    %p94 = por %p92, %p93
    %p95 = scmp.ne.s32.totalorder %s87, %s90
    %p96 = scmp.eq.s32.totalorder %s14, 0
    %p97 = por %p95, %p96
    %p98 = scmp.ne.s32.totalorder %s87, %s90
    %p99 = scmp.eq.s32.totalorder %s19, 2
    %p100 = por %p98, %p99
    %p101 = scmp.ne.s32.totalorder %s90, %s91
    %p102 = scmp.eq.s32.totalorder %s19, 0
    %p103 = por %p101, %p102
    %p104 = scmp.ne.s32.totalorder %s90, %s91
    %p105 = scmp.eq.s32.totalorder %s20, 2
    %p106 = por %p104, %p105
    %p108 = scmp.ne.s32.totalorder %s91, %s107
    %p109 = scmp.eq.s32.totalorder %s20, 0
    %p110 = por %p108, %p109
    %s112 = sadd.s32 %s111, 1
    %p115 = scmp.eq.s32.totalorder %s14, 2
    %p116 = scmp.ne.s32.totalorder %s111, %s113
    %p117 = scmp.eq.s32.totalorder %s14, 0
    %p118 = por %p116, %p117
    %p119 = scmp.ne.s32.totalorder %s111, %s113
    %p120 = scmp.eq.s32.totalorder %s19, 2
    %p121 = por %p119, %p120
    %p122 = scmp.ne.s32.totalorder %s113, %s114
    %p123 = scmp.eq.s32.totalorder %s19, 0
    %p124 = por %p122, %p123
    %p125 = scmp.ne.s32.totalorder %s113, %s114
    %p126 = scmp.eq.s32.totalorder %s20, 2
    %p127 = por %p125, %p126
    %p129 = scmp.ne.s32.totalorder %s114, %s128
    %p130 = scmp.eq.s32.totalorder %s20, 0
    %p131 = por %p129, %p130
    %s133 = sadd.s32 %s132, 1
    %p136 = scmp.eq.s32.totalorder %s14, 2
    %p137 = scmp.ne.s32.totalorder %s132, %s134
    %p138 = scmp.eq.s32.totalorder %s14, 0
    %p139 = por %p137, %p138
    %p140 = scmp.ne.s32.totalorder %s132, %s134
    %p141 = scmp.eq.s32.totalorder %s19, 2
    %p142 = por %p140, %p141
    %p143 = scmp.ne.s32.totalorder %s134, %s135
    %p144 = scmp.eq.s32.totalorder %s19, 0
    %p145 = por %p143, %p144
    %p146 = scmp.ne.s32.totalorder %s134, %s135
    %p147 = scmp.eq.s32.totalorder %s20, 2
    %p148 = por %p146, %p147
    %p150 = scmp.ne.s32.totalorder %s135, %s149
    %p151 = scmp.eq.s32.totalorder %s20, 0
    %p152 = por %p150, %p151
    %p153 = scmp.le.s32.totalorder 1, %s14
    %p154 = scmp.lt.s32.totalorder %s14, 4
    %p155 = pnand %p153, %p154
    %p156 = pneg %p155
    // Predicated region
    $region9: #{a_call__.7} parent=5 // pred_check
      _
    $region10: #{a_call__.7} parent=5 // pred_check_branch
      %158 = sbr.rel (%p155) target = $region12
    $region11: #{a_call__.7} parent=5 // pred_region
      %s159 = ssub.s32 %s14, 1
      // Predicated region
      $region13: #{a_call__.7} parent=11 // pred_check
        %p160 = pneg %p35
      $region14: #{a_call__.7} parent=11 // pred_check_branch
        %162 = sbr.rel (%p160) target = $region16
      $region15: #{a_call__.7} parent=11 // pred_region
        _
      $region16: #{a_call__.7} parent=11 // pred_fallthru
        _
      // Predicated region
      $region17: #{a_call__.7} parent=11 // pred_check
        %p163 = pneg %p56
      $region18: #{a_call__.7} parent=11 // pred_check_branch
        %165 = sbr.rel (%p163) target = $region20
      $region19: #{a_call__.7} parent=11 // pred_region
        _
      $region20: #{a_call__.7} parent=11 // pred_fallthru
        _
      // Predicated region
      $region21: #{a_call__.7} parent=11 // pred_check
        %p166 = pneg %p77
      $region22: #{a_call__.7} parent=11 // pred_check_branch
        %168 = sbr.rel (%p166) target = $region24
      $region23: #{a_call__.7} parent=11 // pred_region
        _
      $region24: #{a_call__.7} parent=11 // pred_fallthru
        _
    $region12: #{a_call__.7} parent=5 // pred_fallthru
      _
    %p169 = scmp.lt.s32.totalorder %s14, 3
    // Predicated region
    $region25: #{a_call__.7} parent=5 // pred_check
      %p170 = pneg %p169
    $region26: #{a_call__.7} parent=5 // pred_check_branch
      %172 = sbr.rel (%p170) target = $region28
    $region27: #{a_call__.7} parent=5 // pred_region
      _
    $region28: #{a_call__.7} parent=5 // pred_fallthru
      _
    %p173 = scmp.le.s32.totalorder 1, %s14
    %p174 = scmp.lt.s32.totalorder %s14, 4
    %p175 = pnand %p173, %p174
    %p176 = pneg %p175
    // Predicated region
    $region29: #{a_call__.7} parent=5 // pred_check
      _
    $region30: #{a_call__.7} parent=5 // pred_check_branch
      %178 = sbr.rel (%p175) target = $region32
    $region31: #{a_call__.7} parent=5 // pred_region
      %s179 = ssub.s32 %s14, 1
      %p180 = pneg %p35
      %p181 = pneg %p32
      %p182 = pneg %p56
      %p183 = pneg %p53
      %p184 = pneg %p77
      %p185 = pneg %p74
      %p186 = pneg %p103
      %p187 = pneg %p100
      %s188 = smul.u32 32, %s19
      %p189 = scmp.lt.s32.totalorder %s188, 95
      %s190 = scalar_select %p189, %s188, 95
      %s191 = smul.addr %s190, 8
      %s192 = scalar_lea.vmem %s5, %s191
      %p193 = pneg %p124
      %p194 = pneg %p121
      %p195 = pneg %p145
      %p196 = pneg %p142
      %s197 = smul.u32 32, %s19
      %p198 = scmp.lt.s32.totalorder %s197, 95
      %s199 = scalar_select %p198, %s197, 95
      %s200 = smul.addr %s199, 8
      %s201 = scalar_lea.vmem %s5, %s200
      %s202 = smul.u32 32, %s19
      %s204 = smul.u32 %s19, 256
      %s205 = scalar_lea.vmem %s3, %s204
      %p207 = scmp.lt.u32.totalorder 294, 8
      %p208 = pneg %p207
      // Predicated region
      $region33: #{a_call__.7} parent=31 // pred_check
        _
      $region34: #{a_call__.7} parent=31 // pred_check_branch
        %210 = sbr.rel (%p207) target = $region36
      $region35: #{a_call__.7} parent=31 // pred_region
        %s225 = sand.u32 294, 7
        %p226 = scmp.eq.s32.totalorder %s225, 0
        %p227 = pneg %p226
        // Predicated region
        $region48: #{a_call__.7} parent=35 // pred_check
          _
        $region49: #{a_call__.7} parent=35 // pred_check_branch
          %229 = sbr.rel (%p226) target = $region51
        $region50: #{a_call__.7} parent=35 // pred_region
          %s230 = sand.u32 294, 7
          %s231 = ssub.s32 294, %s230
          %s232 = scalar_lea.vmem %s205, %s231
          %s233 = ssub.s32 294, %s230
          %s234 = scalar_lea.vmem [#allocation2], %s233
          loop: start=0, step=1, limit=1
          $region52: #{a_call__.7} parent=50 // loop_pre_header
            _
          $region53: #{a_call__.7} parent=50 // loop_header
            %s236 = sphi 0, %s240
            %p237 = scmp.ge.s32.totalorder %s236, 1
            %s241 = sphi %s205, %s205
            %s242 = sphi [#allocation2], [#allocation2]
          $region54: #{a_call__.7} parent=50 // loop_header_branch
            %239 = sbr.rel (%p237) target = $region58
          $region55: #{a_call__.7} parent=50 // loop_body
            %v243 = vld [vmem:[%s241] sm:$0xff]
            %244 = vst [vmem:[%s242] sm:$0xff] %v243
            %v245 = vld [vmem:[%s241 + $0x8] sm:$0xff]
            %246 = vst [vmem:[%s242 + $0x8] sm:$0xff] %v245
            %v247 = vld [vmem:[%s241 + $0x10] sm:$0xff]
            %248 = vst [vmem:[%s242 + $0x10] sm:$0xff] %v247
            %v249 = vld [vmem:[%s241 + $0x18] sm:$0xff]
            %250 = vst [vmem:[%s242 + $0x18] sm:$0xff] %v249
            %v251 = vld [vmem:[%s241 + $0x20] sm:$0xff]
            %252 = vst [vmem:[%s242 + $0x20] sm:$0xff] %v251
            %v253 = vld [vmem:[%s241 + $0x28] sm:$0xff]
            %254 = vst [vmem:[%s242 + $0x28] sm:$0xff] %v253
            %v255 = vld [vmem:[%s241 + $0x30] sm:$0xff]
            %256 = vst [vmem:[%s242 + $0x30] sm:$0xff] %v255
            %v257 = vld [vmem:[%s241 + $0x38] sm:$0xff]
            %258 = vst [vmem:[%s242 + $0x38] sm:$0xff] %v257
            %v259 = vld [vmem:[%s241 + $0x40] sm:$0xff]
            %260 = vst [vmem:[%s242 + $0x40] sm:$0xff] %v259
            %v261 = vld [vmem:[%s241 + $0x48] sm:$0xff]
            %262 = vst [vmem:[%s242 + $0x48] sm:$0xff] %v261
            %v263 = vld [vmem:[%s241 + $0x50] sm:$0xff]
            %264 = vst [vmem:[%s242 + $0x50] sm:$0xff] %v263
            %v265 = vld [vmem:[%s241 + $0x58] sm:$0xff]
            %266 = vst [vmem:[%s242 + $0x58] sm:$0xff] %v265
            %v267 = vld [vmem:[%s241 + $0x60] sm:$0xff]
            %268 = vst [vmem:[%s242 + $0x60] sm:$0xff] %v267
            %v269 = vld [vmem:[%s241 + $0x68] sm:$0xff]
            %270 = vst [vmem:[%s242 + $0x68] sm:$0xff] %v269
            %v271 = vld [vmem:[%s241 + $0x70] sm:$0xff]
            %272 = vst [vmem:[%s242 + $0x70] sm:$0xff] %v271
            %v273 = vld [vmem:[%s241 + $0x78] sm:$0xff]
            %274 = vst [vmem:[%s242 + $0x78] sm:$0xff] %v273
            %v275 = vld [vmem:[%s241 + $0x80] sm:$0xff]
            %276 = vst [vmem:[%s242 + $0x80] sm:$0xff] %v275
            %v277 = vld [vmem:[%s241 + $0x88] sm:$0xff]
            %278 = vst [vmem:[%s242 + $0x88] sm:$0xff] %v277
            %v279 = vld [vmem:[%s241 + $0x90] sm:$0xff]
            %280 = vst [vmem:[%s242 + $0x90] sm:$0xff] %v279
            %v281 = vld [vmem:[%s241 + $0x98] sm:$0xff]
            %282 = vst [vmem:[%s242 + $0x98] sm:$0xff] %v281
            %v283 = vld [vmem:[%s241 + $0xa0] sm:$0xff]
            %284 = vst [vmem:[%s242 + $0xa0] sm:$0xff] %v283
            %v285 = vld [vmem:[%s241 + $0xa8] sm:$0xff]
            %286 = vst [vmem:[%s242 + $0xa8] sm:$0xff] %v285
            %v287 = vld [vmem:[%s241 + $0xb0] sm:$0xff]
            %288 = vst [vmem:[%s242 + $0xb0] sm:$0xff] %v287
            %v289 = vld [vmem:[%s241 + $0xb8] sm:$0xff]
            %290 = vst [vmem:[%s242 + $0xb8] sm:$0xff] %v289
            %v291 = vld [vmem:[%s241 + $0xc0] sm:$0xff]
            %292 = vst [vmem:[%s242 + $0xc0] sm:$0xff] %v291
            %v293 = vld [vmem:[%s241 + $0xc8] sm:$0xff]
            %294 = vst [vmem:[%s242 + $0xc8] sm:$0xff] %v293
            %v295 = vld [vmem:[%s241 + $0xd0] sm:$0xff]
            %296 = vst [vmem:[%s242 + $0xd0] sm:$0xff] %v295
            %v297 = vld [vmem:[%s241 + $0xd8] sm:$0xff]
            %298 = vst [vmem:[%s242 + $0xd8] sm:$0xff] %v297
            %v299 = vld [vmem:[%s241 + $0xe0] sm:$0xff]
            %300 = vst [vmem:[%s242 + $0xe0] sm:$0xff] %v299
            %v301 = vld [vmem:[%s241 + $0xe8] sm:$0xff]
            %302 = vst [vmem:[%s242 + $0xe8] sm:$0xff] %v301
            %v303 = vld [vmem:[%s241 + $0xf0] sm:$0xff]
            %304 = vst [vmem:[%s242 + $0xf0] sm:$0xff] %v303
            %v305 = vld [vmem:[%s241 + $0xf8] sm:$0xff]
            %306 = vst [vmem:[%s242 + $0xf8] sm:$0xff] %v305
            %v307 = vld [vmem:[%s241 + $0x100] sm:$0xff]
            %308 = vst [vmem:[%s242 + $0x100] sm:$0xff] %v307
            %v309 = vld [vmem:[%s241 + $0x108] sm:$0xff]
            %310 = vst [vmem:[%s242 + $0x108] sm:$0xff] %v309
            %v311 = vld [vmem:[%s241 + $0x110] sm:$0xff]
            %312 = vst [vmem:[%s242 + $0x110] sm:$0xff] %v311
            %v313 = vld [vmem:[%s241 + $0x118] sm:$0xff]
            %314 = vst [vmem:[%s242 + $0x118] sm:$0xff] %v313
          $region56: #{a_call__.7} parent=50 // loop_footer
            %s240 = sadd.s32 1, %s236
          $region57: #{a_call__.7} parent=50 // loop_footer_branch
            %235 = sbr.rel target = $region53
          $region58: #{a_call__.7} parent=50 // loop_exit
            _
          %s315 = sshllo.u32 0, %s230
          loop: start=0, step=1, limit=1
          $region59: #{a_call__.7} parent=50 // loop_pre_header
            _
          $region60: #{a_call__.7} parent=50 // loop_header
            %s317 = sphi 0, %s321
            %p318 = scmp.ge.s32.totalorder %s317, 1
            %s322 = sphi %s232, %s232
            %s323 = sphi %s234, %s234
          $region61: #{a_call__.7} parent=50 // loop_header_branch
            %320 = sbr.rel (%p318) target = $region65
          $region62: #{a_call__.7} parent=50 // loop_body
            %v324 = vld [vmem:[%s322] sm:%s315]
            %325 = vst [vmem:[%s323] sm:%s315] %v324
          $region63: #{a_call__.7} parent=50 // loop_footer
            %s321 = sadd.s32 1, %s317
          $region64: #{a_call__.7} parent=50 // loop_footer_branch
            %316 = sbr.rel target = $region60
          $region65: #{a_call__.7} parent=50 // loop_exit
            _
        $region51: #{a_call__.7} parent=35 // pred_fallthru
          _
      $region36: #{a_call__.7} parent=31 // pred_fallthru
        _
      // Predicated region
      $region37: #{a_call__.7} parent=31 // pred_check
        %p211 = pneg %p207
      $region38: #{a_call__.7} parent=31 // pred_check_branch
        %213 = sbr.rel (%p211) target = $region40
      $region39: #{a_call__.7} parent=31 // pred_region
        %s214 = sshllo.u32 0, 294
        loop: start=0, step=1, limit=1
        $region41: #{a_call__.7} parent=39 // loop_pre_header
          _
        $region42: #{a_call__.7} parent=39 // loop_header
          %s216 = sphi 0, %s220
          %p217 = scmp.ge.s32.totalorder %s216, 1
          %s221 = sphi %s205, %s205
          %s222 = sphi [#allocation2], [#allocation2]
        $region43: #{a_call__.7} parent=39 // loop_header_branch
          %219 = sbr.rel (%p217) target = $region47
        $region44: #{a_call__.7} parent=39 // loop_body
          %v223 = vld [vmem:[%s221] sm:%s214]
          %224 = vst [vmem:[%s222] sm:%s214] %v223
        $region45: #{a_call__.7} parent=39 // loop_footer
          %s220 = sadd.s32 1, %s216
        $region46: #{a_call__.7} parent=39 // loop_footer_branch
          %215 = sbr.rel target = $region42
        $region47: #{a_call__.7} parent=39 // loop_exit
          _
      $region40: #{a_call__.7} parent=31 // pred_fallthru
        _
      // Predicated region
      $region66: #{a_call__.7} parent=31 // pred_check
        _
      $region67: #{a_call__.7} parent=31 // pred_check_branch
        %328 = sbr.rel (0) target = $region69
      $region68: #{a_call__.7} parent=31 // pred_region
        %329 = vsyncadd [#allocation4], 4704
      $region69: #{a_call__.7} parent=31 // pred_fallthru
        _
      %s330 = scalar_lea.vmem %s4, %s204
      %s331 = scalar_lea.sflag [#allocation4], 1
      %p333 = scmp.lt.u32.totalorder 294, 8
      %p334 = pneg %p333
      // Predicated region
      $region70: #{a_call__.7} parent=31 // pred_check
        _
      $region71: #{a_call__.7} parent=31 // pred_check_branch
        %336 = sbr.rel (%p333) target = $region73
      $region72: #{a_call__.7} parent=31 // pred_region
        %s351 = sand.u32 294, 7
        %p352 = scmp.eq.s32.totalorder %s351, 0
        %p353 = pneg %p352
        // Predicated region
        $region85: #{a_call__.7} parent=72 // pred_check
          _
        $region86: #{a_call__.7} parent=72 // pred_check_branch
          %355 = sbr.rel (%p352) target = $region88
        $region87: #{a_call__.7} parent=72 // pred_region
          %s356 = sand.u32 294, 7
          %s357 = ssub.s32 294, %s356
          %s358 = scalar_lea.vmem %s330, %s357
          %s359 = ssub.s32 294, %s356
          %s360 = scalar_lea.vmem [#allocation3], %s359
          loop: start=0, step=1, limit=1
          $region89: #{a_call__.7} parent=87 // loop_pre_header
            _
          $region90: #{a_call__.7} parent=87 // loop_header
            %s362 = sphi 0, %s366
            %p363 = scmp.ge.s32.totalorder %s362, 1
            %s367 = sphi %s330, %s330
            %s368 = sphi [#allocation3], [#allocation3]
          $region91: #{a_call__.7} parent=87 // loop_header_branch
            %365 = sbr.rel (%p363) target = $region95
          $region92: #{a_call__.7} parent=87 // loop_body
            %v369 = vld [vmem:[%s367] sm:$0xff]
            %370 = vst [vmem:[%s368] sm:$0xff] %v369
            %v371 = vld [vmem:[%s367 + $0x8] sm:$0xff]
            %372 = vst [vmem:[%s368 + $0x8] sm:$0xff] %v371
            %v373 = vld [vmem:[%s367 + $0x10] sm:$0xff]
            %374 = vst [vmem:[%s368 + $0x10] sm:$0xff] %v373
            %v375 = vld [vmem:[%s367 + $0x18] sm:$0xff]
            %376 = vst [vmem:[%s368 + $0x18] sm:$0xff] %v375
            %v377 = vld [vmem:[%s367 + $0x20] sm:$0xff]
            %378 = vst [vmem:[%s368 + $0x20] sm:$0xff] %v377
            %v379 = vld [vmem:[%s367 + $0x28] sm:$0xff]
            %380 = vst [vmem:[%s368 + $0x28] sm:$0xff] %v379
            %v381 = vld [vmem:[%s367 + $0x30] sm:$0xff]
            %382 = vst [vmem:[%s368 + $0x30] sm:$0xff] %v381
            %v383 = vld [vmem:[%s367 + $0x38] sm:$0xff]
            %384 = vst [vmem:[%s368 + $0x38] sm:$0xff] %v383
            %v385 = vld [vmem:[%s367 + $0x40] sm:$0xff]
            %386 = vst [vmem:[%s368 + $0x40] sm:$0xff] %v385
            %v387 = vld [vmem:[%s367 + $0x48] sm:$0xff]
            %388 = vst [vmem:[%s368 + $0x48] sm:$0xff] %v387
            %v389 = vld [vmem:[%s367 + $0x50] sm:$0xff]
            %390 = vst [vmem:[%s368 + $0x50] sm:$0xff] %v389
            %v391 = vld [vmem:[%s367 + $0x58] sm:$0xff]
            %392 = vst [vmem:[%s368 + $0x58] sm:$0xff] %v391
            %v393 = vld [vmem:[%s367 + $0x60] sm:$0xff]
            %394 = vst [vmem:[%s368 + $0x60] sm:$0xff] %v393
            %v395 = vld [vmem:[%s367 + $0x68] sm:$0xff]
            %396 = vst [vmem:[%s368 + $0x68] sm:$0xff] %v395
            %v397 = vld [vmem:[%s367 + $0x70] sm:$0xff]
            %398 = vst [vmem:[%s368 + $0x70] sm:$0xff] %v397
            %v399 = vld [vmem:[%s367 + $0x78] sm:$0xff]
            %400 = vst [vmem:[%s368 + $0x78] sm:$0xff] %v399
            %v401 = vld [vmem:[%s367 + $0x80] sm:$0xff]
            %402 = vst [vmem:[%s368 + $0x80] sm:$0xff] %v401
            %v403 = vld [vmem:[%s367 + $0x88] sm:$0xff]
            %404 = vst [vmem:[%s368 + $0x88] sm:$0xff] %v403
            %v405 = vld [vmem:[%s367 + $0x90] sm:$0xff]
            %406 = vst [vmem:[%s368 + $0x90] sm:$0xff] %v405
            %v407 = vld [vmem:[%s367 + $0x98] sm:$0xff]
            %408 = vst [vmem:[%s368 + $0x98] sm:$0xff] %v407
            %v409 = vld [vmem:[%s367 + $0xa0] sm:$0xff]
            %410 = vst [vmem:[%s368 + $0xa0] sm:$0xff] %v409
            %v411 = vld [vmem:[%s367 + $0xa8] sm:$0xff]
            %412 = vst [vmem:[%s368 + $0xa8] sm:$0xff] %v411
            %v413 = vld [vmem:[%s367 + $0xb0] sm:$0xff]
            %414 = vst [vmem:[%s368 + $0xb0] sm:$0xff] %v413
            %v415 = vld [vmem:[%s367 + $0xb8] sm:$0xff]
            %416 = vst [vmem:[%s368 + $0xb8] sm:$0xff] %v415
            %v417 = vld [vmem:[%s367 + $0xc0] sm:$0xff]
            %418 = vst [vmem:[%s368 + $0xc0] sm:$0xff] %v417
            %v419 = vld [vmem:[%s367 + $0xc8] sm:$0xff]
            %420 = vst [vmem:[%s368 + $0xc8] sm:$0xff] %v419
            %v421 = vld [vmem:[%s367 + $0xd0] sm:$0xff]
            %422 = vst [vmem:[%s368 + $0xd0] sm:$0xff] %v421
            %v423 = vld [vmem:[%s367 + $0xd8] sm:$0xff]
            %424 = vst [vmem:[%s368 + $0xd8] sm:$0xff] %v423
            %v425 = vld [vmem:[%s367 + $0xe0] sm:$0xff]
            %426 = vst [vmem:[%s368 + $0xe0] sm:$0xff] %v425
            %v427 = vld [vmem:[%s367 + $0xe8] sm:$0xff]
            %428 = vst [vmem:[%s368 + $0xe8] sm:$0xff] %v427
            %v429 = vld [vmem:[%s367 + $0xf0] sm:$0xff]
            %430 = vst [vmem:[%s368 + $0xf0] sm:$0xff] %v429
            %v431 = vld [vmem:[%s367 + $0xf8] sm:$0xff]
            %432 = vst [vmem:[%s368 + $0xf8] sm:$0xff] %v431
            %v433 = vld [vmem:[%s367 + $0x100] sm:$0xff]
            %434 = vst [vmem:[%s368 + $0x100] sm:$0xff] %v433
            %v435 = vld [vmem:[%s367 + $0x108] sm:$0xff]
            %436 = vst [vmem:[%s368 + $0x108] sm:$0xff] %v435
            %v437 = vld [vmem:[%s367 + $0x110] sm:$0xff]
            %438 = vst [vmem:[%s368 + $0x110] sm:$0xff] %v437
            %v439 = vld [vmem:[%s367 + $0x118] sm:$0xff]
            %440 = vst [vmem:[%s368 + $0x118] sm:$0xff] %v439
          $region93: #{a_call__.7} parent=87 // loop_footer
            %s366 = sadd.s32 1, %s362
          $region94: #{a_call__.7} parent=87 // loop_footer_branch
            %361 = sbr.rel target = $region90
          $region95: #{a_call__.7} parent=87 // loop_exit
            _
          %s441 = sshllo.u32 0, %s356
          loop: start=0, step=1, limit=1
          $region96: #{a_call__.7} parent=87 // loop_pre_header
            _
          $region97: #{a_call__.7} parent=87 // loop_header
            %s443 = sphi 0, %s447
            %p444 = scmp.ge.s32.totalorder %s443, 1
            %s448 = sphi %s358, %s358
            %s449 = sphi %s360, %s360
          $region98: #{a_call__.7} parent=87 // loop_header_branch
            %446 = sbr.rel (%p444) target = $region102
          $region99: #{a_call__.7} parent=87 // loop_body
            %v450 = vld [vmem:[%s448] sm:%s441]
            %451 = vst [vmem:[%s449] sm:%s441] %v450
          $region100: #{a_call__.7} parent=87 // loop_footer
            %s447 = sadd.s32 1, %s443
          $region101: #{a_call__.7} parent=87 // loop_footer_branch
            %442 = sbr.rel target = $region97
          $region102: #{a_call__.7} parent=87 // loop_exit
            _
        $region88: #{a_call__.7} parent=72 // pred_fallthru
          _
      $region73: #{a_call__.7} parent=31 // pred_fallthru
        _
      // Predicated region
      $region74: #{a_call__.7} parent=31 // pred_check
        %p337 = pneg %p333
      $region75: #{a_call__.7} parent=31 // pred_check_branch
        %339 = sbr.rel (%p337) target = $region77
      $region76: #{a_call__.7} parent=31 // pred_region
        %s340 = sshllo.u32 0, 294
        loop: start=0, step=1, limit=1
        $region78: #{a_call__.7} parent=76 // loop_pre_header
          _
        $region79: #{a_call__.7} parent=76 // loop_header
          %s342 = sphi 0, %s346
          %p343 = scmp.ge.s32.totalorder %s342, 1
          %s347 = sphi %s330, %s330
          %s348 = sphi [#allocation3], [#allocation3]
        $region80: #{a_call__.7} parent=76 // loop_header_branch
          %345 = sbr.rel (%p343) target = $region84
        $region81: #{a_call__.7} parent=76 // loop_body
          %v349 = vld [vmem:[%s347] sm:%s340]
          %350 = vst [vmem:[%s348] sm:%s340] %v349
        $region82: #{a_call__.7} parent=76 // loop_footer
          %s346 = sadd.s32 1, %s342
        $region83: #{a_call__.7} parent=76 // loop_footer_branch
          %341 = sbr.rel target = $region79
        $region84: #{a_call__.7} parent=76 // loop_exit
          _
      $region77: #{a_call__.7} parent=31 // pred_fallthru
        _
      // Predicated region
      $region103: #{a_call__.7} parent=31 // pred_check
        _
      $region104: #{a_call__.7} parent=31 // pred_check_branch
        %454 = sbr.rel (0) target = $region106
      $region105: #{a_call__.7} parent=31 // pred_region
        %455 = vsyncadd %s331, 4704
      $region106: #{a_call__.7} parent=31 // pred_fallthru
        _
      %s456 = smul.u32 294, 1
      %s457 = sshll.u32 %s456, 4
      %458 = dma.done [#allocation4], %s457
      %s459 = sshll.u32 %s456, 4
      %460 = dma.done %s331, %s459
      %v461 = vld [vmem:[#allocation3] sm:$0xff]
      %v462 = vld [vmem:[#allocation3 + $0x8] sm:$0xff]
      %v463 = vld [vmem:[#allocation3 + $0x10] sm:$0xff]
      %v464 = vld [vmem:[#allocation3 + $0x18] sm:$0xff]
      %v465 = vld [vmem:[#allocation3 + $0x20] sm:$0xff]
      %v466 = vld [vmem:[#allocation3 + $0x28] sm:$0xff]
      %v467 = vld [vmem:[#allocation3 + $0x30] sm:$0xff]
      %v468 = vld [vmem:[#allocation3 + $0x38] sm:$0xff]
      %v469 = vld [vmem:[#allocation3 + $0x40] sm:$0xff]
      %v470 = vld [vmem:[#allocation3 + $0x48] sm:$0xff]
      %v471 = vld [vmem:[#allocation3 + $0x50] sm:$0xff]
      %v472 = vld [vmem:[#allocation3 + $0x58] sm:$0xff]
      %v473 = vld [vmem:[#allocation3 + $0x60] sm:$0xff]
      %v474 = vld [vmem:[#allocation3 + $0x68] sm:$0xff]
      %v475 = vld [vmem:[#allocation3 + $0x70] sm:$0xff]
      %v476 = vld [vmem:[#allocation3 + $0x78] sm:$0xff]
      %v477 = vld [vmem:[#allocation3 + $0x80] sm:$0xff]
      %v478 = vld [vmem:[#allocation3 + $0x88] sm:$0xff]
      %v479 = vld [vmem:[#allocation3 + $0x90] sm:$0xff]
      %v480 = vld [vmem:[#allocation3 + $0x98] sm:$0xff]
      %v481 = vld [vmem:[#allocation3 + $0xa0] sm:$0xff]
      %v482 = vld [vmem:[#allocation3 + $0xa8] sm:$0xff]
      %v483 = vld [vmem:[#allocation3 + $0xb0] sm:$0xff]
      %v484 = vld [vmem:[#allocation3 + $0xb8] sm:$0xff]
      %v485 = vld [vmem:[#allocation3 + $0xc0] sm:$0xff]
      %v486 = vld [vmem:[#allocation3 + $0xc8] sm:$0xff]
      %v487 = vld [vmem:[#allocation3 + $0xd0] sm:$0xff]
      %v488 = vld [vmem:[#allocation3 + $0xd8] sm:$0xff]
      %v489 = vld [vmem:[#allocation3 + $0xe0] sm:$0xff]
      %v490 = vld [vmem:[#allocation3 + $0xe8] sm:$0xff]
      %v491 = vld [vmem:[#allocation3 + $0xf0] sm:$0xff]
      %v492 = vld [vmem:[#allocation3 + $0xf8] sm:$0xff]
      %v493 = vld [vmem:[#allocation3 + $0x100] sm:$0xff]
      %v494 = vld [vmem:[#allocation3 + $0x108] sm:$0xff]
      %v495 = vld [vmem:[#allocation3 + $0x110] sm:$0xff]
      %v496 = vld [vmem:[#allocation3 + $0x118] sm:$0xff]
      %v497 = vld [vmem:[#allocation3 + $0x120] sm:$0x3f]
      %v498 = vld [vmem:[#allocation2] sm:$0xff]
      %v499 = vld [vmem:[#allocation2 + $0x8] sm:$0xff]
      %v500 = vld [vmem:[#allocation2 + $0x10] sm:$0xff]
      %v501 = vld [vmem:[#allocation2 + $0x18] sm:$0xff]
      %v502 = vld [vmem:[#allocation2 + $0x20] sm:$0xff]
      %v503 = vld [vmem:[#allocation2 + $0x28] sm:$0xff]
      %v504 = vld [vmem:[#allocation2 + $0x30] sm:$0xff]
      %v505 = vld [vmem:[#allocation2 + $0x38] sm:$0xff]
      %v506 = vld [vmem:[#allocation2 + $0x40] sm:$0xff]
      %v507 = vld [vmem:[#allocation2 + $0x48] sm:$0xff]
      %v508 = vld [vmem:[#allocation2 + $0x50] sm:$0xff]
      %v509 = vld [vmem:[#allocation2 + $0x58] sm:$0xff]
      %v510 = vld [vmem:[#allocation2 + $0x60] sm:$0xff]
      %v511 = vld [vmem:[#allocation2 + $0x68] sm:$0xff]
      %v512 = vld [vmem:[#allocation2 + $0x70] sm:$0xff]
      %v513 = vld [vmem:[#allocation2 + $0x78] sm:$0xff]
      %v514 = vld [vmem:[#allocation2 + $0x80] sm:$0xff]
      %v515 = vld [vmem:[#allocation2 + $0x88] sm:$0xff]
      %v516 = vld [vmem:[#allocation2 + $0x90] sm:$0xff]
      %v517 = vld [vmem:[#allocation2 + $0x98] sm:$0xff]
      %v518 = vld [vmem:[#allocation2 + $0xa0] sm:$0xff]
      %v519 = vld [vmem:[#allocation2 + $0xa8] sm:$0xff]
      %v520 = vld [vmem:[#allocation2 + $0xb0] sm:$0xff]
      %v521 = vld [vmem:[#allocation2 + $0xb8] sm:$0xff]
      %v522 = vld [vmem:[#allocation2 + $0xc0] sm:$0xff]
      %v523 = vld [vmem:[#allocation2 + $0xc8] sm:$0xff]
      %v524 = vld [vmem:[#allocation2 + $0xd0] sm:$0xff]
      %v525 = vld [vmem:[#allocation2 + $0xd8] sm:$0xff]
      %v526 = vld [vmem:[#allocation2 + $0xe0] sm:$0xff]
      %v527 = vld [vmem:[#allocation2 + $0xe8] sm:$0xff]
      %v528 = vld [vmem:[#allocation2 + $0xf0] sm:$0xff]
      %v529 = vld [vmem:[#allocation2 + $0xf8] sm:$0xff]
      %v530 = vld [vmem:[#allocation2 + $0x100] sm:$0xff]
      %v531 = vld [vmem:[#allocation2 + $0x108] sm:$0xff]
      %v532 = vld [vmem:[#allocation2 + $0x110] sm:$0xff]
      %v533 = vld [vmem:[#allocation2 + $0x118] sm:$0xff]
      %v534 = vld [vmem:[#allocation2 + $0x120] sm:$0x3f]
      %v535 = vld [vmem:[%s0] sm:$0x1]
      %v537 = vlaneseq
      %v538 = vshrl.u32 %v537, 7
      %v539 = vsub.s32 0, %v538
      %v540 = vrot.slane %v535, %v539
      %v542 = vmul.f32 %v498, %v540
      %v543 = vmul.f32 %v499, %v540
      %v544 = vmul.f32 %v500, %v540
      %v545 = vmul.f32 %v501, %v540
      %v546 = vmul.f32 %v502, %v540
      %v547 = vmul.f32 %v503, %v540
      %v548 = vmul.f32 %v504, %v540
      %v549 = vmul.f32 %v505, %v540
      %v550 = vmul.f32 %v506, %v540
      %v551 = vmul.f32 %v507, %v540
      %v552 = vmul.f32 %v508, %v540
      %v553 = vmul.f32 %v509, %v540
      %v554 = vmul.f32 %v510, %v540
      %v555 = vmul.f32 %v511, %v540
      %v556 = vmul.f32 %v512, %v540
      %v557 = vmul.f32 %v513, %v540
      %v558 = vmul.f32 %v514, %v540
      %v559 = vmul.f32 %v515, %v540
      %v560 = vmul.f32 %v516, %v540
      %v561 = vmul.f32 %v517, %v540
      %v562 = vmul.f32 %v518, %v540
      %v563 = vmul.f32 %v519, %v540
      %v564 = vmul.f32 %v520, %v540
      %v565 = vmul.f32 %v521, %v540
      %v566 = vmul.f32 %v522, %v540
      %v567 = vmul.f32 %v523, %v540
      %v568 = vmul.f32 %v524, %v540
      %v569 = vmul.f32 %v525, %v540
      %v570 = vmul.f32 %v526, %v540
      %v571 = vmul.f32 %v527, %v540
      %v572 = vmul.f32 %v528, %v540
      %v573 = vmul.f32 %v529, %v540
      %v574 = vmul.f32 %v530, %v540
      %v575 = vmul.f32 %v531, %v540
      %v576 = vmul.f32 %v532, %v540
      %v577 = vmul.f32 %v533, %v540
      %v578 = vmul.f32 %v534, %v540
      %v579 = vld [vmem:[%s1] sm:$0x1]
      %v581 = vlaneseq
      %v582 = vshrl.u32 %v581, 7
      %v583 = vsub.s32 0, %v582
      %v584 = vrot.slane %v579, %v583
      %v586 = vadd.f32 %v542, %v584
      %v587 = vadd.f32 %v543, %v584
      %v588 = vadd.f32 %v544, %v584
      %v589 = vadd.f32 %v545, %v584
      %v590 = vadd.f32 %v546, %v584
      %v591 = vadd.f32 %v547, %v584
      %v592 = vadd.f32 %v548, %v584
      %v593 = vadd.f32 %v549, %v584
      %v594 = vadd.f32 %v550, %v584
      %v595 = vadd.f32 %v551, %v584
      %v596 = vadd.f32 %v552, %v584
      %v597 = vadd.f32 %v553, %v584
      %v598 = vadd.f32 %v554, %v584
      %v599 = vadd.f32 %v555, %v584
      %v600 = vadd.f32 %v556, %v584
      %v601 = vadd.f32 %v557, %v584
      %v602 = vadd.f32 %v558, %v584
      %v603 = vadd.f32 %v559, %v584
      %v604 = vadd.f32 %v560, %v584
      %v605 = vadd.f32 %v561, %v584
      %v606 = vadd.f32 %v562, %v584
      %v607 = vadd.f32 %v563, %v584
      %v608 = vadd.f32 %v564, %v584
      %v609 = vadd.f32 %v565, %v584
      %v610 = vadd.f32 %v566, %v584
      %v611 = vadd.f32 %v567, %v584
      %v612 = vadd.f32 %v568, %v584
      %v613 = vadd.f32 %v569, %v584
      %v614 = vadd.f32 %v570, %v584
      %v615 = vadd.f32 %v571, %v584
      %v616 = vadd.f32 %v572, %v584
      %v617 = vadd.f32 %v573, %v584
      %v618 = vadd.f32 %v574, %v584
      %v619 = vadd.f32 %v575, %v584
      %v620 = vadd.f32 %v576, %v584
      %v621 = vadd.f32 %v577, %v584
      %v622 = vadd.f32 %v578, %v584
      %v623 = vmax.f32 %v586, 0.0
      %v624 = vmax.f32 %v587, 0.0
      %v625 = vmax.f32 %v588, 0.0
      %v626 = vmax.f32 %v589, 0.0
      %v627 = vmax.f32 %v590, 0.0
      %v628 = vmax.f32 %v591, 0.0
      %v629 = vmax.f32 %v592, 0.0
      %v630 = vmax.f32 %v593, 0.0
      %v631 = vmax.f32 %v594, 0.0
      %v632 = vmax.f32 %v595, 0.0
      %v633 = vmax.f32 %v596, 0.0
      %v634 = vmax.f32 %v597, 0.0
      %v635 = vmax.f32 %v598, 0.0
      %v636 = vmax.f32 %v599, 0.0
      %v637 = vmax.f32 %v600, 0.0
      %v638 = vmax.f32 %v601, 0.0
      %v639 = vmax.f32 %v602, 0.0
      %v640 = vmax.f32 %v603, 0.0
      %v641 = vmax.f32 %v604, 0.0
      %v642 = vmax.f32 %v605, 0.0
      %v643 = vmax.f32 %v606, 0.0
      %v644 = vmax.f32 %v607, 0.0
      %v645 = vmax.f32 %v608, 0.0
      %v646 = vmax.f32 %v609, 0.0
      %v647 = vmax.f32 %v610, 0.0
      %v648 = vmax.f32 %v611, 0.0
      %v649 = vmax.f32 %v612, 0.0
      %v650 = vmax.f32 %v613, 0.0
      %v651 = vmax.f32 %v614, 0.0
      %v652 = vmax.f32 %v615, 0.0
      %v653 = vmax.f32 %v616, 0.0
      %v654 = vmax.f32 %v617, 0.0
      %v655 = vmax.f32 %v618, 0.0
      %v656 = vmax.f32 %v619, 0.0
      %v657 = vmax.f32 %v620, 0.0
      %v658 = vmax.f32 %v621, 0.0
      %v659 = vmax.f32 %v622, 0.0
      %661 = vset.pattern.permute.xlu0 0
      %662 = vperm.xlu0 %661, %v461
      %v663 = vpop.permute.xlu0 %662
      %666 = vset.pattern.permute.xlu0 0
      %667 = vperm.xlu0 %666, %v462
      %v668 = vpop.permute.xlu0 %667
      %671 = vset.pattern.permute.xlu0 0
      %672 = vperm.xlu0 %671, %v463
      %v673 = vpop.permute.xlu0 %672
      %676 = vset.pattern.permute.xlu0 0
      %677 = vperm.xlu0 %676, %v464
      %v678 = vpop.permute.xlu0 %677
      %681 = vset.pattern.permute.xlu0 0
      %682 = vperm.xlu0 %681, %v465
      %v683 = vpop.permute.xlu0 %682
      %686 = vset.pattern.permute.xlu0 0
      %687 = vperm.xlu0 %686, %v466
      %v688 = vpop.permute.xlu0 %687
      %691 = vset.pattern.permute.xlu0 0
      %692 = vperm.xlu0 %691, %v467
      %v693 = vpop.permute.xlu0 %692
      %696 = vset.pattern.permute.xlu0 0
      %697 = vperm.xlu0 %696, %v468
      %v698 = vpop.permute.xlu0 %697
      %701 = vset.pattern.permute.xlu0 0
      %702 = vperm.xlu0 %701, %v469
      %v703 = vpop.permute.xlu0 %702
      %706 = vset.pattern.permute.xlu0 0
      %707 = vperm.xlu0 %706, %v470
      %v708 = vpop.permute.xlu0 %707
      %711 = vset.pattern.permute.xlu0 0
      %712 = vperm.xlu0 %711, %v471
      %v713 = vpop.permute.xlu0 %712
      %716 = vset.pattern.permute.xlu0 0
      %717 = vperm.xlu0 %716, %v472
      %v718 = vpop.permute.xlu0 %717
      %721 = vset.pattern.permute.xlu0 0
      %722 = vperm.xlu0 %721, %v473
      %v723 = vpop.permute.xlu0 %722
      %726 = vset.pattern.permute.xlu0 0
      %727 = vperm.xlu0 %726, %v474
      %v728 = vpop.permute.xlu0 %727
      %731 = vset.pattern.permute.xlu0 0
      %732 = vperm.xlu0 %731, %v475
      %v733 = vpop.permute.xlu0 %732
      %736 = vset.pattern.permute.xlu0 0
      %737 = vperm.xlu0 %736, %v476
      %v738 = vpop.permute.xlu0 %737
      %741 = vset.pattern.permute.xlu0 0
      %742 = vperm.xlu0 %741, %v477
      %v743 = vpop.permute.xlu0 %742
      %746 = vset.pattern.permute.xlu0 0
      %747 = vperm.xlu0 %746, %v478
      %v748 = vpop.permute.xlu0 %747
      %751 = vset.pattern.permute.xlu0 0
      %752 = vperm.xlu0 %751, %v479
      %v753 = vpop.permute.xlu0 %752
      %756 = vset.pattern.permute.xlu0 0
      %757 = vperm.xlu0 %756, %v480
      %v758 = vpop.permute.xlu0 %757
      %761 = vset.pattern.permute.xlu0 0
      %762 = vperm.xlu0 %761, %v481
      %v763 = vpop.permute.xlu0 %762
      %766 = vset.pattern.permute.xlu0 0
      %767 = vperm.xlu0 %766, %v482
      %v768 = vpop.permute.xlu0 %767
      %771 = vset.pattern.permute.xlu0 0
      %772 = vperm.xlu0 %771, %v483
      %v773 = vpop.permute.xlu0 %772
      %776 = vset.pattern.permute.xlu0 0
      %777 = vperm.xlu0 %776, %v484
      %v778 = vpop.permute.xlu0 %777
      %781 = vset.pattern.permute.xlu0 0
      %782 = vperm.xlu0 %781, %v485
      %v783 = vpop.permute.xlu0 %782
      %786 = vset.pattern.permute.xlu0 0
      %787 = vperm.xlu0 %786, %v486
      %v788 = vpop.permute.xlu0 %787
      %791 = vset.pattern.permute.xlu0 0
      %792 = vperm.xlu0 %791, %v487
      %v793 = vpop.permute.xlu0 %792
      %796 = vset.pattern.permute.xlu0 0
      %797 = vperm.xlu0 %796, %v488
      %v798 = vpop.permute.xlu0 %797
      %801 = vset.pattern.permute.xlu0 0
      %802 = vperm.xlu0 %801, %v489
      %v803 = vpop.permute.xlu0 %802
      %806 = vset.pattern.permute.xlu0 0
      %807 = vperm.xlu0 %806, %v490
      %v808 = vpop.permute.xlu0 %807
      %811 = vset.pattern.permute.xlu0 0
      %812 = vperm.xlu0 %811, %v491
      %v813 = vpop.permute.xlu0 %812
      %816 = vset.pattern.permute.xlu0 0
      %817 = vperm.xlu0 %816, %v492
      %v818 = vpop.permute.xlu0 %817
      %821 = vset.pattern.permute.xlu0 0
      %822 = vperm.xlu0 %821, %v493
      %v823 = vpop.permute.xlu0 %822
      %826 = vset.pattern.permute.xlu0 0
      %827 = vperm.xlu0 %826, %v494
      %v828 = vpop.permute.xlu0 %827
      %831 = vset.pattern.permute.xlu0 0
      %832 = vperm.xlu0 %831, %v495
      %v833 = vpop.permute.xlu0 %832
      %836 = vset.pattern.permute.xlu0 0
      %837 = vperm.xlu0 %836, %v496
      %v838 = vpop.permute.xlu0 %837
      %841 = vset.pattern.permute.xlu0 0
      %842 = vperm.xlu0 %841, %v497
      %v843 = vpop.permute.xlu0 %842
      %v845 = vmul.f32 %v623, %v663
      %v846 = vmul.f32 %v624, %v668
      %v847 = vmul.f32 %v625, %v673
      %v848 = vmul.f32 %v626, %v678
      %v849 = vmul.f32 %v627, %v683
      %v850 = vmul.f32 %v628, %v688
      %v851 = vmul.f32 %v629, %v693
      %v852 = vmul.f32 %v630, %v698
      %v853 = vmul.f32 %v631, %v703
      %v854 = vmul.f32 %v632, %v708
      %v855 = vmul.f32 %v633, %v713
      %v856 = vmul.f32 %v634, %v718
      %v857 = vmul.f32 %v635, %v723
      %v858 = vmul.f32 %v636, %v728
      %v859 = vmul.f32 %v637, %v733
      %v860 = vmul.f32 %v638, %v738
      %v861 = vmul.f32 %v639, %v743
      %v862 = vmul.f32 %v640, %v748
      %v863 = vmul.f32 %v641, %v753
      %v864 = vmul.f32 %v642, %v758
      %v865 = vmul.f32 %v643, %v763
      %v866 = vmul.f32 %v644, %v768
      %v867 = vmul.f32 %v645, %v773
      %v868 = vmul.f32 %v646, %v778
      %v869 = vmul.f32 %v647, %v783
      %v870 = vmul.f32 %v648, %v788
      %v871 = vmul.f32 %v649, %v793
      %v872 = vmul.f32 %v650, %v798
      %v873 = vmul.f32 %v651, %v803
      %v874 = vmul.f32 %v652, %v808
      %v875 = vmul.f32 %v653, %v813
      %v876 = vmul.f32 %v654, %v818
      %v877 = vmul.f32 %v655, %v823
      %v878 = vmul.f32 %v656, %v828
      %v879 = vmul.f32 %v657, %v833
      %v880 = vmul.f32 %v658, %v838
      %v881 = vmul.f32 %v659, %v843
      %vm915 = vcmask 1046528
      %v916 = vrot.slane %v845, 1
      %v917 = vrot.slane %v846, 1
      %v918 = vsel %vm915, %v916, %v917
      %v919 = vrot.slane %v847, 1
      %v920 = vsel %vm915, %v917, %v919
      %v921 = vrot.slane %v848, 1
      %v922 = vsel %vm915, %v919, %v921
      %v923 = vrot.slane %v849, 1
      %v924 = vsel %vm915, %v921, %v923
      %v925 = vrot.slane %v850, 1
      %v926 = vsel %vm915, %v923, %v925
      %v927 = vrot.slane %v851, 1
      %v928 = vsel %vm915, %v925, %v927
      %v929 = vrot.slane %v852, 1
      %v930 = vsel %vm915, %v927, %v929
      %v931 = vrot.slane %v853, 1
      %v932 = vsel %vm915, %v929, %v931
      %v933 = vrot.slane %v854, 1
      %v934 = vsel %vm915, %v931, %v933
      %v935 = vrot.slane %v855, 1
      %v936 = vsel %vm915, %v933, %v935
      %v937 = vrot.slane %v856, 1
      %v938 = vsel %vm915, %v935, %v937
      %v939 = vrot.slane %v857, 1
      %v940 = vsel %vm915, %v937, %v939
      %v941 = vrot.slane %v858, 1
      %v942 = vsel %vm915, %v939, %v941
      %v943 = vrot.slane %v859, 1
      %v944 = vsel %vm915, %v941, %v943
      %v945 = vrot.slane %v860, 1
      %v946 = vsel %vm915, %v943, %v945
      %v947 = vrot.slane %v861, 1
      %v948 = vsel %vm915, %v945, %v947
      %v949 = vrot.slane %v862, 1
      %v950 = vsel %vm915, %v947, %v949
      %v951 = vrot.slane %v863, 1
      %v952 = vsel %vm915, %v949, %v951
      %v953 = vrot.slane %v864, 1
      %v954 = vsel %vm915, %v951, %v953
      %v955 = vrot.slane %v865, 1
      %v956 = vsel %vm915, %v953, %v955
      %v957 = vrot.slane %v866, 1
      %v958 = vsel %vm915, %v955, %v957
      %v959 = vrot.slane %v867, 1
      %v960 = vsel %vm915, %v957, %v959
      %v961 = vrot.slane %v868, 1
      %v962 = vsel %vm915, %v959, %v961
      %v963 = vrot.slane %v869, 1
      %v964 = vsel %vm915, %v961, %v963
      %v965 = vrot.slane %v870, 1
      %v966 = vsel %vm915, %v963, %v965
      %v967 = vrot.slane %v871, 1
      %v968 = vsel %vm915, %v965, %v967
      %v969 = vrot.slane %v872, 1
      %v970 = vsel %vm915, %v967, %v969
      %v971 = vrot.slane %v873, 1
      %v972 = vsel %vm915, %v969, %v971
      %v973 = vrot.slane %v874, 1
      %v974 = vsel %vm915, %v971, %v973
      %v975 = vrot.slane %v875, 1
      %v976 = vsel %vm915, %v973, %v975
      %v977 = vrot.slane %v876, 1
      %v978 = vsel %vm915, %v975, %v977
      %v979 = vrot.slane %v877, 1
      %v980 = vsel %vm915, %v977, %v979
      %981 = vrot.lane.b32.xlu0 %v918, 16
      %v982 = vpop.permute.xlu0 %981
      %983 = vrot.lane.b32.xlu0 %v920, 16
      %v984 = vpop.permute.xlu0 %983
      %985 = vrot.lane.b32.xlu0 %v922, 16
      %v986 = vpop.permute.xlu0 %985
      %987 = vrot.lane.b32.xlu0 %v924, 16
      %v988 = vpop.permute.xlu0 %987
      %989 = vrot.lane.b32.xlu0 %v926, 16
      %v990 = vpop.permute.xlu0 %989
      %991 = vrot.lane.b32.xlu0 %v928, 16
      %v992 = vpop.permute.xlu0 %991
      %993 = vrot.lane.b32.xlu0 %v930, 16
      %v994 = vpop.permute.xlu0 %993
      %995 = vrot.lane.b32.xlu0 %v932, 16
      %v996 = vpop.permute.xlu0 %995
      %997 = vrot.lane.b32.xlu0 %v934, 16
      %v998 = vpop.permute.xlu0 %997
      %999 = vrot.lane.b32.xlu0 %v936, 16
      %v1000 = vpop.permute.xlu0 %999
      %1001 = vrot.lane.b32.xlu0 %v938, 16
      %v1002 = vpop.permute.xlu0 %1001
      %1003 = vrot.lane.b32.xlu0 %v940, 16
      %v1004 = vpop.permute.xlu0 %1003
      %1005 = vrot.lane.b32.xlu0 %v942, 16
      %v1006 = vpop.permute.xlu0 %1005
      %1007 = vrot.lane.b32.xlu0 %v944, 16
      %v1008 = vpop.permute.xlu0 %1007
      %1009 = vrot.lane.b32.xlu0 %v946, 16
      %v1010 = vpop.permute.xlu0 %1009
      %1011 = vrot.lane.b32.xlu0 %v948, 16
      %v1012 = vpop.permute.xlu0 %1011
      %1013 = vrot.lane.b32.xlu0 %v950, 16
      %v1014 = vpop.permute.xlu0 %1013
      %1015 = vrot.lane.b32.xlu0 %v952, 16
      %v1016 = vpop.permute.xlu0 %1015
      %1017 = vrot.lane.b32.xlu0 %v954, 16
      %v1018 = vpop.permute.xlu0 %1017
      %1019 = vrot.lane.b32.xlu0 %v956, 16
      %v1020 = vpop.permute.xlu0 %1019
      %1021 = vrot.lane.b32.xlu0 %v958, 16
      %v1022 = vpop.permute.xlu0 %1021
      %1023 = vrot.lane.b32.xlu0 %v960, 16
      %v1024 = vpop.permute.xlu0 %1023
      %1025 = vrot.lane.b32.xlu0 %v962, 16
      %v1026 = vpop.permute.xlu0 %1025
      %1027 = vrot.lane.b32.xlu0 %v964, 16
      %v1028 = vpop.permute.xlu0 %1027
      %1029 = vrot.lane.b32.xlu0 %v966, 16
      %v1030 = vpop.permute.xlu0 %1029
      %1031 = vrot.lane.b32.xlu0 %v968, 16
      %v1032 = vpop.permute.xlu0 %1031
      %1033 = vrot.lane.b32.xlu0 %v970, 16
      %v1034 = vpop.permute.xlu0 %1033
      %1035 = vrot.lane.b32.xlu0 %v972, 16
      %v1036 = vpop.permute.xlu0 %1035
      %1037 = vrot.lane.b32.xlu0 %v974, 16
      %v1038 = vpop.permute.xlu0 %1037
      %1039 = vrot.lane.b32.xlu0 %v976, 16
      %v1040 = vpop.permute.xlu0 %1039
      %1041 = vrot.lane.b32.xlu0 %v978, 16
      %v1042 = vpop.permute.xlu0 %1041
      %1043 = vrot.lane.b32.xlu0 %v980, 16
      %v1044 = vpop.permute.xlu0 %1043
      %vm1077 = vcmask 1045504
      %v1078 = vrot.slane %v845, 2
      %v1079 = vrot.slane %v846, 2
      %v1080 = vsel %vm1077, %v1078, %v1079
      %v1081 = vrot.slane %v847, 2
      %v1082 = vsel %vm1077, %v1079, %v1081
      %v1083 = vrot.slane %v848, 2
      %v1084 = vsel %vm1077, %v1081, %v1083
      %v1085 = vrot.slane %v849, 2
      %v1086 = vsel %vm1077, %v1083, %v1085
      %v1087 = vrot.slane %v850, 2
      %v1088 = vsel %vm1077, %v1085, %v1087
      %v1089 = vrot.slane %v851, 2
      %v1090 = vsel %vm1077, %v1087, %v1089
      %v1091 = vrot.slane %v852, 2
      %v1092 = vsel %vm1077, %v1089, %v1091
      %v1093 = vrot.slane %v853, 2
      %v1094 = vsel %vm1077, %v1091, %v1093
      %v1095 = vrot.slane %v854, 2
      %v1096 = vsel %vm1077, %v1093, %v1095
      %v1097 = vrot.slane %v855, 2
      %v1098 = vsel %vm1077, %v1095, %v1097
      %v1099 = vrot.slane %v856, 2
      %v1100 = vsel %vm1077, %v1097, %v1099
      %v1101 = vrot.slane %v857, 2
      %v1102 = vsel %vm1077, %v1099, %v1101
      %v1103 = vrot.slane %v858, 2
      %v1104 = vsel %vm1077, %v1101, %v1103
      %v1105 = vrot.slane %v859, 2
      %v1106 = vsel %vm1077, %v1103, %v1105
      %v1107 = vrot.slane %v860, 2
      %v1108 = vsel %vm1077, %v1105, %v1107
      %v1109 = vrot.slane %v861, 2
      %v1110 = vsel %vm1077, %v1107, %v1109
      %v1111 = vrot.slane %v862, 2
      %v1112 = vsel %vm1077, %v1109, %v1111
      %v1113 = vrot.slane %v863, 2
      %v1114 = vsel %vm1077, %v1111, %v1113
      %v1115 = vrot.slane %v864, 2
      %v1116 = vsel %vm1077, %v1113, %v1115
      %v1117 = vrot.slane %v865, 2
      %v1118 = vsel %vm1077, %v1115, %v1117
      %v1119 = vrot.slane %v866, 2
      %v1120 = vsel %vm1077, %v1117, %v1119
      %v1121 = vrot.slane %v867, 2
      %v1122 = vsel %vm1077, %v1119, %v1121
      %v1123 = vrot.slane %v868, 2
      %v1124 = vsel %vm1077, %v1121, %v1123
      %v1125 = vrot.slane %v869, 2
      %v1126 = vsel %vm1077, %v1123, %v1125
      %v1127 = vrot.slane %v870, 2
      %v1128 = vsel %vm1077, %v1125, %v1127
      %v1129 = vrot.slane %v871, 2
      %v1130 = vsel %vm1077, %v1127, %v1129
      %v1131 = vrot.slane %v872, 2
      %v1132 = vsel %vm1077, %v1129, %v1131
      %v1133 = vrot.slane %v873, 2
      %v1134 = vsel %vm1077, %v1131, %v1133
      %v1135 = vrot.slane %v874, 2
      %v1136 = vsel %vm1077, %v1133, %v1135
      %v1137 = vrot.slane %v875, 2
      %v1138 = vsel %vm1077, %v1135, %v1137
      %v1139 = vrot.slane %v876, 2
      %v1140 = vsel %vm1077, %v1137, %v1139
      %v1141 = vrot.slane %v877, 2
      %v1142 = vsel %vm1077, %v1139, %v1141
      %1143 = vrot.lane.b32.xlu0 %v1080, 32
      %v1144 = vpop.permute.xlu0 %1143
      %1145 = vrot.lane.b32.xlu0 %v1082, 32
      %v1146 = vpop.permute.xlu0 %1145
      %1147 = vrot.lane.b32.xlu0 %v1084, 32
      %v1148 = vpop.permute.xlu0 %1147
      %1149 = vrot.lane.b32.xlu0 %v1086, 32
      %v1150 = vpop.permute.xlu0 %1149
      %1151 = vrot.lane.b32.xlu0 %v1088, 32
      %v1152 = vpop.permute.xlu0 %1151
      %1153 = vrot.lane.b32.xlu0 %v1090, 32
      %v1154 = vpop.permute.xlu0 %1153
      %1155 = vrot.lane.b32.xlu0 %v1092, 32
      %v1156 = vpop.permute.xlu0 %1155
      %1157 = vrot.lane.b32.xlu0 %v1094, 32
      %v1158 = vpop.permute.xlu0 %1157
      %1159 = vrot.lane.b32.xlu0 %v1096, 32
      %v1160 = vpop.permute.xlu0 %1159
      %1161 = vrot.lane.b32.xlu0 %v1098, 32
      %v1162 = vpop.permute.xlu0 %1161
      %1163 = vrot.lane.b32.xlu0 %v1100, 32
      %v1164 = vpop.permute.xlu0 %1163
      %1165 = vrot.lane.b32.xlu0 %v1102, 32
      %v1166 = vpop.permute.xlu0 %1165
      %1167 = vrot.lane.b32.xlu0 %v1104, 32
      %v1168 = vpop.permute.xlu0 %1167
      %1169 = vrot.lane.b32.xlu0 %v1106, 32
      %v1170 = vpop.permute.xlu0 %1169
      %1171 = vrot.lane.b32.xlu0 %v1108, 32
      %v1172 = vpop.permute.xlu0 %1171
      %1173 = vrot.lane.b32.xlu0 %v1110, 32
      %v1174 = vpop.permute.xlu0 %1173
      %1175 = vrot.lane.b32.xlu0 %v1112, 32
      %v1176 = vpop.permute.xlu0 %1175
      %1177 = vrot.lane.b32.xlu0 %v1114, 32
      %v1178 = vpop.permute.xlu0 %1177
      %1179 = vrot.lane.b32.xlu0 %v1116, 32
      %v1180 = vpop.permute.xlu0 %1179
      %1181 = vrot.lane.b32.xlu0 %v1118, 32
      %v1182 = vpop.permute.xlu0 %1181
      %1183 = vrot.lane.b32.xlu0 %v1120, 32
      %v1184 = vpop.permute.xlu0 %1183
      %1185 = vrot.lane.b32.xlu0 %v1122, 32
      %v1186 = vpop.permute.xlu0 %1185
      %1187 = vrot.lane.b32.xlu0 %v1124, 32
      %v1188 = vpop.permute.xlu0 %1187
      %1189 = vrot.lane.b32.xlu0 %v1126, 32
      %v1190 = vpop.permute.xlu0 %1189
      %1191 = vrot.lane.b32.xlu0 %v1128, 32
      %v1192 = vpop.permute.xlu0 %1191
      %1193 = vrot.lane.b32.xlu0 %v1130, 32
      %v1194 = vpop.permute.xlu0 %1193
      %1195 = vrot.lane.b32.xlu0 %v1132, 32
      %v1196 = vpop.permute.xlu0 %1195
      %1197 = vrot.lane.b32.xlu0 %v1134, 32
      %v1198 = vpop.permute.xlu0 %1197
      %1199 = vrot.lane.b32.xlu0 %v1136, 32
      %v1200 = vpop.permute.xlu0 %1199
      %1201 = vrot.lane.b32.xlu0 %v1138, 32
      %v1202 = vpop.permute.xlu0 %1201
      %1203 = vrot.lane.b32.xlu0 %v1140, 32
      %v1204 = vpop.permute.xlu0 %1203
      %1205 = vrot.lane.b32.xlu0 %v1142, 32
      %v1206 = vpop.permute.xlu0 %1205
      %v1241 = vrot.slane %v878, 2
      %v1242 = vsel %vm1077, %v1141, %v1241
      %v1243 = vrot.slane %v879, 2
      %v1244 = vsel %vm1077, %v1241, %v1243
      %1245 = vrot.lane.b32.xlu0 %v1084, 48
      %v1246 = vpop.permute.xlu0 %1245
      %1247 = vrot.lane.b32.xlu0 %v1086, 48
      %v1248 = vpop.permute.xlu0 %1247
      %1249 = vrot.lane.b32.xlu0 %v1088, 48
      %v1250 = vpop.permute.xlu0 %1249
      %1251 = vrot.lane.b32.xlu0 %v1090, 48
      %v1252 = vpop.permute.xlu0 %1251
      %1253 = vrot.lane.b32.xlu0 %v1092, 48
      %v1254 = vpop.permute.xlu0 %1253
      %1255 = vrot.lane.b32.xlu0 %v1094, 48
      %v1256 = vpop.permute.xlu0 %1255
      %1257 = vrot.lane.b32.xlu0 %v1096, 48
      %v1258 = vpop.permute.xlu0 %1257
      %1259 = vrot.lane.b32.xlu0 %v1098, 48
      %v1260 = vpop.permute.xlu0 %1259
      %1261 = vrot.lane.b32.xlu0 %v1100, 48
      %v1262 = vpop.permute.xlu0 %1261
      %1263 = vrot.lane.b32.xlu0 %v1102, 48
      %v1264 = vpop.permute.xlu0 %1263
      %1265 = vrot.lane.b32.xlu0 %v1104, 48
      %v1266 = vpop.permute.xlu0 %1265
      %1267 = vrot.lane.b32.xlu0 %v1106, 48
      %v1268 = vpop.permute.xlu0 %1267
      %1269 = vrot.lane.b32.xlu0 %v1108, 48
      %v1270 = vpop.permute.xlu0 %1269
      %1271 = vrot.lane.b32.xlu0 %v1110, 48
      %v1272 = vpop.permute.xlu0 %1271
      %1273 = vrot.lane.b32.xlu0 %v1112, 48
      %v1274 = vpop.permute.xlu0 %1273
      %1275 = vrot.lane.b32.xlu0 %v1114, 48
      %v1276 = vpop.permute.xlu0 %1275
      %1277 = vrot.lane.b32.xlu0 %v1116, 48
      %v1278 = vpop.permute.xlu0 %1277
      %1279 = vrot.lane.b32.xlu0 %v1118, 48
      %v1280 = vpop.permute.xlu0 %1279
      %1281 = vrot.lane.b32.xlu0 %v1120, 48
      %v1282 = vpop.permute.xlu0 %1281
      %1283 = vrot.lane.b32.xlu0 %v1122, 48
      %v1284 = vpop.permute.xlu0 %1283
      %1285 = vrot.lane.b32.xlu0 %v1124, 48
      %v1286 = vpop.permute.xlu0 %1285
      %1287 = vrot.lane.b32.xlu0 %v1126, 48
      %v1288 = vpop.permute.xlu0 %1287
      %1289 = vrot.lane.b32.xlu0 %v1128, 48
      %v1290 = vpop.permute.xlu0 %1289
      %1291 = vrot.lane.b32.xlu0 %v1130, 48
      %v1292 = vpop.permute.xlu0 %1291
      %1293 = vrot.lane.b32.xlu0 %v1132, 48
      %v1294 = vpop.permute.xlu0 %1293
      %1295 = vrot.lane.b32.xlu0 %v1134, 48
      %v1296 = vpop.permute.xlu0 %1295
      %1297 = vrot.lane.b32.xlu0 %v1136, 48
      %v1298 = vpop.permute.xlu0 %1297
      %1299 = vrot.lane.b32.xlu0 %v1138, 48
      %v1300 = vpop.permute.xlu0 %1299
      %1301 = vrot.lane.b32.xlu0 %v1140, 48
      %v1302 = vpop.permute.xlu0 %1301
      %1303 = vrot.lane.b32.xlu0 %v1142, 48
      %v1304 = vpop.permute.xlu0 %1303
      %1305 = vrot.lane.b32.xlu0 %v1242, 48
      %v1306 = vpop.permute.xlu0 %1305
      %1307 = vrot.lane.b32.xlu0 %v1244, 48
      %v1308 = vpop.permute.xlu0 %1307
      %vm1341 = vcmask 1044480
      %v1342 = vrot.slane %v847, 3
      %v1343 = vrot.slane %v848, 3
      %v1344 = vsel %vm1341, %v1342, %v1343
      %v1345 = vrot.slane %v849, 3
      %v1346 = vsel %vm1341, %v1343, %v1345
      %v1347 = vrot.slane %v850, 3
      %v1348 = vsel %vm1341, %v1345, %v1347
      %v1349 = vrot.slane %v851, 3
      %v1350 = vsel %vm1341, %v1347, %v1349
      %v1351 = vrot.slane %v852, 3
      %v1352 = vsel %vm1341, %v1349, %v1351
      %v1353 = vrot.slane %v853, 3
      %v1354 = vsel %vm1341, %v1351, %v1353
      %v1355 = vrot.slane %v854, 3
      %v1356 = vsel %vm1341, %v1353, %v1355
      %v1357 = vrot.slane %v855, 3
      %v1358 = vsel %vm1341, %v1355, %v1357
      %v1359 = vrot.slane %v856, 3
      %v1360 = vsel %vm1341, %v1357, %v1359
      %v1361 = vrot.slane %v857, 3
      %v1362 = vsel %vm1341, %v1359, %v1361
      %v1363 = vrot.slane %v858, 3
      %v1364 = vsel %vm1341, %v1361, %v1363
      %v1365 = vrot.slane %v859, 3
      %v1366 = vsel %vm1341, %v1363, %v1365
      %v1367 = vrot.slane %v860, 3
      %v1368 = vsel %vm1341, %v1365, %v1367
      %v1369 = vrot.slane %v861, 3
      %v1370 = vsel %vm1341, %v1367, %v1369
      %v1371 = vrot.slane %v862, 3
      %v1372 = vsel %vm1341, %v1369, %v1371
      %v1373 = vrot.slane %v863, 3
      %v1374 = vsel %vm1341, %v1371, %v1373
      %v1375 = vrot.slane %v864, 3
      %v1376 = vsel %vm1341, %v1373, %v1375
      %v1377 = vrot.slane %v865, 3
      %v1378 = vsel %vm1341, %v1375, %v1377
      %v1379 = vrot.slane %v866, 3
      %v1380 = vsel %vm1341, %v1377, %v1379
      %v1381 = vrot.slane %v867, 3
      %v1382 = vsel %vm1341, %v1379, %v1381
      %v1383 = vrot.slane %v868, 3
      %v1384 = vsel %vm1341, %v1381, %v1383
      %v1385 = vrot.slane %v869, 3
      %v1386 = vsel %vm1341, %v1383, %v1385
      %v1387 = vrot.slane %v870, 3
      %v1388 = vsel %vm1341, %v1385, %v1387
      %v1389 = vrot.slane %v871, 3
      %v1390 = vsel %vm1341, %v1387, %v1389
      %v1391 = vrot.slane %v872, 3
      %v1392 = vsel %vm1341, %v1389, %v1391
      %v1393 = vrot.slane %v873, 3
      %v1394 = vsel %vm1341, %v1391, %v1393
      %v1395 = vrot.slane %v874, 3
      %v1396 = vsel %vm1341, %v1393, %v1395
      %v1397 = vrot.slane %v875, 3
      %v1398 = vsel %vm1341, %v1395, %v1397
      %v1399 = vrot.slane %v876, 3
      %v1400 = vsel %vm1341, %v1397, %v1399
      %v1401 = vrot.slane %v877, 3
      %v1402 = vsel %vm1341, %v1399, %v1401
      %v1403 = vrot.slane %v878, 3
      %v1404 = vsel %vm1341, %v1401, %v1403
      %v1405 = vrot.slane %v879, 3
      %v1406 = vsel %vm1341, %v1403, %v1405
      %1407 = vrot.lane.b32.xlu0 %v1344, 64
      %v1408 = vpop.permute.xlu0 %1407
      %1409 = vrot.lane.b32.xlu0 %v1346, 64
      %v1410 = vpop.permute.xlu0 %1409
      %1411 = vrot.lane.b32.xlu0 %v1348, 64
      %v1412 = vpop.permute.xlu0 %1411
      %1413 = vrot.lane.b32.xlu0 %v1350, 64
      %v1414 = vpop.permute.xlu0 %1413
      %1415 = vrot.lane.b32.xlu0 %v1352, 64
      %v1416 = vpop.permute.xlu0 %1415
      %1417 = vrot.lane.b32.xlu0 %v1354, 64
      %v1418 = vpop.permute.xlu0 %1417
      %1419 = vrot.lane.b32.xlu0 %v1356, 64
      %v1420 = vpop.permute.xlu0 %1419
      %1421 = vrot.lane.b32.xlu0 %v1358, 64
      %v1422 = vpop.permute.xlu0 %1421
      %1423 = vrot.lane.b32.xlu0 %v1360, 64
      %v1424 = vpop.permute.xlu0 %1423
      %1425 = vrot.lane.b32.xlu0 %v1362, 64
      %v1426 = vpop.permute.xlu0 %1425
      %1427 = vrot.lane.b32.xlu0 %v1364, 64
      %v1428 = vpop.permute.xlu0 %1427
      %1429 = vrot.lane.b32.xlu0 %v1366, 64
      %v1430 = vpop.permute.xlu0 %1429
      %1431 = vrot.lane.b32.xlu0 %v1368, 64
      %v1432 = vpop.permute.xlu0 %1431
      %1433 = vrot.lane.b32.xlu0 %v1370, 64
      %v1434 = vpop.permute.xlu0 %1433
      %1435 = vrot.lane.b32.xlu0 %v1372, 64
      %v1436 = vpop.permute.xlu0 %1435
      %1437 = vrot.lane.b32.xlu0 %v1374, 64
      %v1438 = vpop.permute.xlu0 %1437
      %1439 = vrot.lane.b32.xlu0 %v1376, 64
      %v1440 = vpop.permute.xlu0 %1439
      %1441 = vrot.lane.b32.xlu0 %v1378, 64
      %v1442 = vpop.permute.xlu0 %1441
      %1443 = vrot.lane.b32.xlu0 %v1380, 64
      %v1444 = vpop.permute.xlu0 %1443
      %1445 = vrot.lane.b32.xlu0 %v1382, 64
      %v1446 = vpop.permute.xlu0 %1445
      %1447 = vrot.lane.b32.xlu0 %v1384, 64
      %v1448 = vpop.permute.xlu0 %1447
      %1449 = vrot.lane.b32.xlu0 %v1386, 64
      %v1450 = vpop.permute.xlu0 %1449
      %1451 = vrot.lane.b32.xlu0 %v1388, 64
      %v1452 = vpop.permute.xlu0 %1451
      %1453 = vrot.lane.b32.xlu0 %v1390, 64
      %v1454 = vpop.permute.xlu0 %1453
      %1455 = vrot.lane.b32.xlu0 %v1392, 64
      %v1456 = vpop.permute.xlu0 %1455
      %1457 = vrot.lane.b32.xlu0 %v1394, 64
      %v1458 = vpop.permute.xlu0 %1457
      %1459 = vrot.lane.b32.xlu0 %v1396, 64
      %v1460 = vpop.permute.xlu0 %1459
      %1461 = vrot.lane.b32.xlu0 %v1398, 64
      %v1462 = vpop.permute.xlu0 %1461
      %1463 = vrot.lane.b32.xlu0 %v1400, 64
      %v1464 = vpop.permute.xlu0 %1463
      %1465 = vrot.lane.b32.xlu0 %v1402, 64
      %v1466 = vpop.permute.xlu0 %1465
      %1467 = vrot.lane.b32.xlu0 %v1404, 64
      %v1468 = vpop.permute.xlu0 %1467
      %1469 = vrot.lane.b32.xlu0 %v1406, 64
      %v1470 = vpop.permute.xlu0 %1469
      %vm1503 = vcmask 1043456
      %v1504 = vrot.slane %v847, 4
      %v1505 = vrot.slane %v848, 4
      %v1506 = vsel %vm1503, %v1504, %v1505
      %v1507 = vrot.slane %v849, 4
      %v1508 = vsel %vm1503, %v1505, %v1507
      %v1509 = vrot.slane %v850, 4
      %v1510 = vsel %vm1503, %v1507, %v1509
      %v1511 = vrot.slane %v851, 4
      %v1512 = vsel %vm1503, %v1509, %v1511
      %v1513 = vrot.slane %v852, 4
      %v1514 = vsel %vm1503, %v1511, %v1513
      %v1515 = vrot.slane %v853, 4
      %v1516 = vsel %vm1503, %v1513, %v1515
      %v1517 = vrot.slane %v854, 4
      %v1518 = vsel %vm1503, %v1515, %v1517
      %v1519 = vrot.slane %v855, 4
      %v1520 = vsel %vm1503, %v1517, %v1519
      %v1521 = vrot.slane %v856, 4
      %v1522 = vsel %vm1503, %v1519, %v1521
      %v1523 = vrot.slane %v857, 4
      %v1524 = vsel %vm1503, %v1521, %v1523
      %v1525 = vrot.slane %v858, 4
      %v1526 = vsel %vm1503, %v1523, %v1525
      %v1527 = vrot.slane %v859, 4
      %v1528 = vsel %vm1503, %v1525, %v1527
      %v1529 = vrot.slane %v860, 4
      %v1530 = vsel %vm1503, %v1527, %v1529
      %v1531 = vrot.slane %v861, 4
      %v1532 = vsel %vm1503, %v1529, %v1531
      %v1533 = vrot.slane %v862, 4
      %v1534 = vsel %vm1503, %v1531, %v1533
      %v1535 = vrot.slane %v863, 4
      %v1536 = vsel %vm1503, %v1533, %v1535
      %v1537 = vrot.slane %v864, 4
      %v1538 = vsel %vm1503, %v1535, %v1537
      %v1539 = vrot.slane %v865, 4
      %v1540 = vsel %vm1503, %v1537, %v1539
      %v1541 = vrot.slane %v866, 4
      %v1542 = vsel %vm1503, %v1539, %v1541
      %v1543 = vrot.slane %v867, 4
      %v1544 = vsel %vm1503, %v1541, %v1543
      %v1545 = vrot.slane %v868, 4
      %v1546 = vsel %vm1503, %v1543, %v1545
      %v1547 = vrot.slane %v869, 4
      %v1548 = vsel %vm1503, %v1545, %v1547
      %v1549 = vrot.slane %v870, 4
      %v1550 = vsel %vm1503, %v1547, %v1549
      %v1551 = vrot.slane %v871, 4
      %v1552 = vsel %vm1503, %v1549, %v1551
      %v1553 = vrot.slane %v872, 4
      %v1554 = vsel %vm1503, %v1551, %v1553
      %v1555 = vrot.slane %v873, 4
      %v1556 = vsel %vm1503, %v1553, %v1555
      %v1557 = vrot.slane %v874, 4
      %v1558 = vsel %vm1503, %v1555, %v1557
      %v1559 = vrot.slane %v875, 4
      %v1560 = vsel %vm1503, %v1557, %v1559
      %v1561 = vrot.slane %v876, 4
      %v1562 = vsel %vm1503, %v1559, %v1561
      %v1563 = vrot.slane %v877, 4
      %v1564 = vsel %vm1503, %v1561, %v1563
      %v1565 = vrot.slane %v878, 4
      %v1566 = vsel %vm1503, %v1563, %v1565
      %v1567 = vrot.slane %v879, 4
      %v1568 = vsel %vm1503, %v1565, %v1567
      %1569 = vrot.lane.b32.xlu0 %v1506, 80
      %v1570 = vpop.permute.xlu0 %1569
      %1571 = vrot.lane.b32.xlu0 %v1508, 80
      %v1572 = vpop.permute.xlu0 %1571
      %1573 = vrot.lane.b32.xlu0 %v1510, 80
      %v1574 = vpop.permute.xlu0 %1573
      %1575 = vrot.lane.b32.xlu0 %v1512, 80
      %v1576 = vpop.permute.xlu0 %1575
      %1577 = vrot.lane.b32.xlu0 %v1514, 80
      %v1578 = vpop.permute.xlu0 %1577
      %1579 = vrot.lane.b32.xlu0 %v1516, 80
      %v1580 = vpop.permute.xlu0 %1579
      %1581 = vrot.lane.b32.xlu0 %v1518, 80
      %v1582 = vpop.permute.xlu0 %1581
      %1583 = vrot.lane.b32.xlu0 %v1520, 80
      %v1584 = vpop.permute.xlu0 %1583
      %1585 = vrot.lane.b32.xlu0 %v1522, 80
      %v1586 = vpop.permute.xlu0 %1585
      %1587 = vrot.lane.b32.xlu0 %v1524, 80
      %v1588 = vpop.permute.xlu0 %1587
      %1589 = vrot.lane.b32.xlu0 %v1526, 80
      %v1590 = vpop.permute.xlu0 %1589
      %1591 = vrot.lane.b32.xlu0 %v1528, 80
      %v1592 = vpop.permute.xlu0 %1591
      %1593 = vrot.lane.b32.xlu0 %v1530, 80
      %v1594 = vpop.permute.xlu0 %1593
      %1595 = vrot.lane.b32.xlu0 %v1532, 80
      %v1596 = vpop.permute.xlu0 %1595
      %1597 = vrot.lane.b32.xlu0 %v1534, 80
      %v1598 = vpop.permute.xlu0 %1597
      %1599 = vrot.lane.b32.xlu0 %v1536, 80
      %v1600 = vpop.permute.xlu0 %1599
      %1601 = vrot.lane.b32.xlu0 %v1538, 80
      %v1602 = vpop.permute.xlu0 %1601
      %1603 = vrot.lane.b32.xlu0 %v1540, 80
      %v1604 = vpop.permute.xlu0 %1603
      %1605 = vrot.lane.b32.xlu0 %v1542, 80
      %v1606 = vpop.permute.xlu0 %1605
      %1607 = vrot.lane.b32.xlu0 %v1544, 80
      %v1608 = vpop.permute.xlu0 %1607
      %1609 = vrot.lane.b32.xlu0 %v1546, 80
      %v1610 = vpop.permute.xlu0 %1609
      %1611 = vrot.lane.b32.xlu0 %v1548, 80
      %v1612 = vpop.permute.xlu0 %1611
      %1613 = vrot.lane.b32.xlu0 %v1550, 80
      %v1614 = vpop.permute.xlu0 %1613
      %1615 = vrot.lane.b32.xlu0 %v1552, 80
      %v1616 = vpop.permute.xlu0 %1615
      %1617 = vrot.lane.b32.xlu0 %v1554, 80
      %v1618 = vpop.permute.xlu0 %1617
      %1619 = vrot.lane.b32.xlu0 %v1556, 80
      %v1620 = vpop.permute.xlu0 %1619
      %1621 = vrot.lane.b32.xlu0 %v1558, 80
      %v1622 = vpop.permute.xlu0 %1621
      %1623 = vrot.lane.b32.xlu0 %v1560, 80
      %v1624 = vpop.permute.xlu0 %1623
      %1625 = vrot.lane.b32.xlu0 %v1562, 80
      %v1626 = vpop.permute.xlu0 %1625
      %1627 = vrot.lane.b32.xlu0 %v1564, 80
      %v1628 = vpop.permute.xlu0 %1627
      %1629 = vrot.lane.b32.xlu0 %v1566, 80
      %v1630 = vpop.permute.xlu0 %1629
      %1631 = vrot.lane.b32.xlu0 %v1568, 80
      %v1632 = vpop.permute.xlu0 %1631
      %v1667 = vrot.slane %v880, 4
      %v1668 = vsel %vm1503, %v1567, %v1667
      %v1669 = vrot.slane %v881, 4
      %v1670 = vsel %vm1503, %v1667, %v1669
      %1671 = vrot.lane.b32.xlu0 %v1510, 96
      %v1672 = vpop.permute.xlu0 %1671
      %1673 = vrot.lane.b32.xlu0 %v1512, 96
      %v1674 = vpop.permute.xlu0 %1673
      %1675 = vrot.lane.b32.xlu0 %v1514, 96
      %v1676 = vpop.permute.xlu0 %1675
      %1677 = vrot.lane.b32.xlu0 %v1516, 96
      %v1678 = vpop.permute.xlu0 %1677
      %1679 = vrot.lane.b32.xlu0 %v1518, 96
      %v1680 = vpop.permute.xlu0 %1679
      %1681 = vrot.lane.b32.xlu0 %v1520, 96
      %v1682 = vpop.permute.xlu0 %1681
      %1683 = vrot.lane.b32.xlu0 %v1522, 96
      %v1684 = vpop.permute.xlu0 %1683
      %1685 = vrot.lane.b32.xlu0 %v1524, 96
      %v1686 = vpop.permute.xlu0 %1685
      %1687 = vrot.lane.b32.xlu0 %v1526, 96
      %v1688 = vpop.permute.xlu0 %1687
      %1689 = vrot.lane.b32.xlu0 %v1528, 96
      %v1690 = vpop.permute.xlu0 %1689
      %1691 = vrot.lane.b32.xlu0 %v1530, 96
      %v1692 = vpop.permute.xlu0 %1691
      %1693 = vrot.lane.b32.xlu0 %v1532, 96
      %v1694 = vpop.permute.xlu0 %1693
      %1695 = vrot.lane.b32.xlu0 %v1534, 96
      %v1696 = vpop.permute.xlu0 %1695
      %1697 = vrot.lane.b32.xlu0 %v1536, 96
      %v1698 = vpop.permute.xlu0 %1697
      %1699 = vrot.lane.b32.xlu0 %v1538, 96
      %v1700 = vpop.permute.xlu0 %1699
      %1701 = vrot.lane.b32.xlu0 %v1540, 96
      %v1702 = vpop.permute.xlu0 %1701
      %1703 = vrot.lane.b32.xlu0 %v1542, 96
      %v1704 = vpop.permute.xlu0 %1703
      %1705 = vrot.lane.b32.xlu0 %v1544, 96
      %v1706 = vpop.permute.xlu0 %1705
      %1707 = vrot.lane.b32.xlu0 %v1546, 96
      %v1708 = vpop.permute.xlu0 %1707
      %1709 = vrot.lane.b32.xlu0 %v1548, 96
      %v1710 = vpop.permute.xlu0 %1709
      %1711 = vrot.lane.b32.xlu0 %v1550, 96
      %v1712 = vpop.permute.xlu0 %1711
      %1713 = vrot.lane.b32.xlu0 %v1552, 96
      %v1714 = vpop.permute.xlu0 %1713
      %1715 = vrot.lane.b32.xlu0 %v1554, 96
      %v1716 = vpop.permute.xlu0 %1715
      %1717 = vrot.lane.b32.xlu0 %v1556, 96
      %v1718 = vpop.permute.xlu0 %1717
      %1719 = vrot.lane.b32.xlu0 %v1558, 96
      %v1720 = vpop.permute.xlu0 %1719
      %1721 = vrot.lane.b32.xlu0 %v1560, 96
      %v1722 = vpop.permute.xlu0 %1721
      %1723 = vrot.lane.b32.xlu0 %v1562, 96
      %v1724 = vpop.permute.xlu0 %1723
      %1725 = vrot.lane.b32.xlu0 %v1564, 96
      %v1726 = vpop.permute.xlu0 %1725
      %1727 = vrot.lane.b32.xlu0 %v1566, 96
      %v1728 = vpop.permute.xlu0 %1727
      %1729 = vrot.lane.b32.xlu0 %v1568, 96
      %v1730 = vpop.permute.xlu0 %1729
      %1731 = vrot.lane.b32.xlu0 %v1668, 96
      %v1732 = vpop.permute.xlu0 %1731
      %1733 = vrot.lane.b32.xlu0 %v1670, 96
      %v1734 = vpop.permute.xlu0 %1733
      %vm1767 = vcmask 1042432
      %v1768 = vrot.slane %v849, 5
      %v1769 = vrot.slane %v850, 5
      %v1770 = vsel %vm1767, %v1768, %v1769
      %v1771 = vrot.slane %v851, 5
      %v1772 = vsel %vm1767, %v1769, %v1771
      %v1773 = vrot.slane %v852, 5
      %v1774 = vsel %vm1767, %v1771, %v1773
      %v1775 = vrot.slane %v853, 5
      %v1776 = vsel %vm1767, %v1773, %v1775
      %v1777 = vrot.slane %v854, 5
      %v1778 = vsel %vm1767, %v1775, %v1777
      %v1779 = vrot.slane %v855, 5
      %v1780 = vsel %vm1767, %v1777, %v1779
      %v1781 = vrot.slane %v856, 5
      %v1782 = vsel %vm1767, %v1779, %v1781
      %v1783 = vrot.slane %v857, 5
      %v1784 = vsel %vm1767, %v1781, %v1783
      %v1785 = vrot.slane %v858, 5
      %v1786 = vsel %vm1767, %v1783, %v1785
      %v1787 = vrot.slane %v859, 5
      %v1788 = vsel %vm1767, %v1785, %v1787
      %v1789 = vrot.slane %v860, 5
      %v1790 = vsel %vm1767, %v1787, %v1789
      %v1791 = vrot.slane %v861, 5
      %v1792 = vsel %vm1767, %v1789, %v1791
      %v1793 = vrot.slane %v862, 5
      %v1794 = vsel %vm1767, %v1791, %v1793
      %v1795 = vrot.slane %v863, 5
      %v1796 = vsel %vm1767, %v1793, %v1795
      %v1797 = vrot.slane %v864, 5
      %v1798 = vsel %vm1767, %v1795, %v1797
      %v1799 = vrot.slane %v865, 5
      %v1800 = vsel %vm1767, %v1797, %v1799
      %v1801 = vrot.slane %v866, 5
      %v1802 = vsel %vm1767, %v1799, %v1801
      %v1803 = vrot.slane %v867, 5
      %v1804 = vsel %vm1767, %v1801, %v1803
      %v1805 = vrot.slane %v868, 5
      %v1806 = vsel %vm1767, %v1803, %v1805
      %v1807 = vrot.slane %v869, 5
      %v1808 = vsel %vm1767, %v1805, %v1807
      %v1809 = vrot.slane %v870, 5
      %v1810 = vsel %vm1767, %v1807, %v1809
      %v1811 = vrot.slane %v871, 5
      %v1812 = vsel %vm1767, %v1809, %v1811
      %v1813 = vrot.slane %v872, 5
      %v1814 = vsel %vm1767, %v1811, %v1813
      %v1815 = vrot.slane %v873, 5
      %v1816 = vsel %vm1767, %v1813, %v1815
      %v1817 = vrot.slane %v874, 5
      %v1818 = vsel %vm1767, %v1815, %v1817
      %v1819 = vrot.slane %v875, 5
      %v1820 = vsel %vm1767, %v1817, %v1819
      %v1821 = vrot.slane %v876, 5
      %v1822 = vsel %vm1767, %v1819, %v1821
      %v1823 = vrot.slane %v877, 5
      %v1824 = vsel %vm1767, %v1821, %v1823
      %v1825 = vrot.slane %v878, 5
      %v1826 = vsel %vm1767, %v1823, %v1825
      %v1827 = vrot.slane %v879, 5
      %v1828 = vsel %vm1767, %v1825, %v1827
      %v1829 = vrot.slane %v880, 5
      %v1830 = vsel %vm1767, %v1827, %v1829
      %v1831 = vrot.slane %v881, 5
      %v1832 = vsel %vm1767, %v1829, %v1831
      %1833 = vrot.lane.b32.xlu0 %v1770, 112
      %v1834 = vpop.permute.xlu0 %1833
      %1835 = vrot.lane.b32.xlu0 %v1772, 112
      %v1836 = vpop.permute.xlu0 %1835
      %1837 = vrot.lane.b32.xlu0 %v1774, 112
      %v1838 = vpop.permute.xlu0 %1837
      %1839 = vrot.lane.b32.xlu0 %v1776, 112
      %v1840 = vpop.permute.xlu0 %1839
      %1841 = vrot.lane.b32.xlu0 %v1778, 112
      %v1842 = vpop.permute.xlu0 %1841
      %1843 = vrot.lane.b32.xlu0 %v1780, 112
      %v1844 = vpop.permute.xlu0 %1843
      %1845 = vrot.lane.b32.xlu0 %v1782, 112
      %v1846 = vpop.permute.xlu0 %1845
      %1847 = vrot.lane.b32.xlu0 %v1784, 112
      %v1848 = vpop.permute.xlu0 %1847
      %1849 = vrot.lane.b32.xlu0 %v1786, 112
      %v1850 = vpop.permute.xlu0 %1849
      %1851 = vrot.lane.b32.xlu0 %v1788, 112
      %v1852 = vpop.permute.xlu0 %1851
      %1853 = vrot.lane.b32.xlu0 %v1790, 112
      %v1854 = vpop.permute.xlu0 %1853
      %1855 = vrot.lane.b32.xlu0 %v1792, 112
      %v1856 = vpop.permute.xlu0 %1855
      %1857 = vrot.lane.b32.xlu0 %v1794, 112
      %v1858 = vpop.permute.xlu0 %1857
      %1859 = vrot.lane.b32.xlu0 %v1796, 112
      %v1860 = vpop.permute.xlu0 %1859
      %1861 = vrot.lane.b32.xlu0 %v1798, 112
      %v1862 = vpop.permute.xlu0 %1861
      %1863 = vrot.lane.b32.xlu0 %v1800, 112
      %v1864 = vpop.permute.xlu0 %1863
      %1865 = vrot.lane.b32.xlu0 %v1802, 112
      %v1866 = vpop.permute.xlu0 %1865
      %1867 = vrot.lane.b32.xlu0 %v1804, 112
      %v1868 = vpop.permute.xlu0 %1867
      %1869 = vrot.lane.b32.xlu0 %v1806, 112
      %v1870 = vpop.permute.xlu0 %1869
      %1871 = vrot.lane.b32.xlu0 %v1808, 112
      %v1872 = vpop.permute.xlu0 %1871
      %1873 = vrot.lane.b32.xlu0 %v1810, 112
      %v1874 = vpop.permute.xlu0 %1873
      %1875 = vrot.lane.b32.xlu0 %v1812, 112
      %v1876 = vpop.permute.xlu0 %1875
      %1877 = vrot.lane.b32.xlu0 %v1814, 112
      %v1878 = vpop.permute.xlu0 %1877
      %1879 = vrot.lane.b32.xlu0 %v1816, 112
      %v1880 = vpop.permute.xlu0 %1879
      %1881 = vrot.lane.b32.xlu0 %v1818, 112
      %v1882 = vpop.permute.xlu0 %1881
      %1883 = vrot.lane.b32.xlu0 %v1820, 112
      %v1884 = vpop.permute.xlu0 %1883
      %1885 = vrot.lane.b32.xlu0 %v1822, 112
      %v1886 = vpop.permute.xlu0 %1885
      %1887 = vrot.lane.b32.xlu0 %v1824, 112
      %v1888 = vpop.permute.xlu0 %1887
      %1889 = vrot.lane.b32.xlu0 %v1826, 112
      %v1890 = vpop.permute.xlu0 %1889
      %1891 = vrot.lane.b32.xlu0 %v1828, 112
      %v1892 = vpop.permute.xlu0 %1891
      %1893 = vrot.lane.b32.xlu0 %v1830, 112
      %v1894 = vpop.permute.xlu0 %1893
      %1895 = vrot.lane.b32.xlu0 %v1832, 112
      %v1896 = vpop.permute.xlu0 %1895
      %vm1929 = vcmask 1041408
      %v1930 = vrot.slane %v849, 6
      %v1931 = vrot.slane %v850, 6
      %v1932 = vsel %vm1929, %v1930, %v1931
      %v1933 = vrot.slane %v851, 6
      %v1934 = vsel %vm1929, %v1931, %v1933
      %v1935 = vrot.slane %v852, 6
      %v1936 = vsel %vm1929, %v1933, %v1935
      %v1937 = vrot.slane %v853, 6
      %v1938 = vsel %vm1929, %v1935, %v1937
      %v1939 = vrot.slane %v854, 6
      %v1940 = vsel %vm1929, %v1937, %v1939
      %v1941 = vrot.slane %v855, 6
      %v1942 = vsel %vm1929, %v1939, %v1941
      %v1943 = vrot.slane %v856, 6
      %v1944 = vsel %vm1929, %v1941, %v1943
      %v1945 = vrot.slane %v857, 6
      %v1946 = vsel %vm1929, %v1943, %v1945
      %v1947 = vrot.slane %v858, 6
      %v1948 = vsel %vm1929, %v1945, %v1947
      %v1949 = vrot.slane %v859, 6
      %v1950 = vsel %vm1929, %v1947, %v1949
      %v1951 = vrot.slane %v860, 6
      %v1952 = vsel %vm1929, %v1949, %v1951
      %v1953 = vrot.slane %v861, 6
      %v1954 = vsel %vm1929, %v1951, %v1953
      %v1955 = vrot.slane %v862, 6
      %v1956 = vsel %vm1929, %v1953, %v1955
      %v1957 = vrot.slane %v863, 6
      %v1958 = vsel %vm1929, %v1955, %v1957
      %v1959 = vrot.slane %v864, 6
      %v1960 = vsel %vm1929, %v1957, %v1959
      %v1961 = vrot.slane %v865, 6
      %v1962 = vsel %vm1929, %v1959, %v1961
      %v1963 = vrot.slane %v866, 6
      %v1964 = vsel %vm1929, %v1961, %v1963
      %v1965 = vrot.slane %v867, 6
      %v1966 = vsel %vm1929, %v1963, %v1965
      %v1967 = vrot.slane %v868, 6
      %v1968 = vsel %vm1929, %v1965, %v1967
      %v1969 = vrot.slane %v869, 6
      %v1970 = vsel %vm1929, %v1967, %v1969
      %v1971 = vrot.slane %v870, 6
      %v1972 = vsel %vm1929, %v1969, %v1971
      %v1973 = vrot.slane %v871, 6
      %v1974 = vsel %vm1929, %v1971, %v1973
      %v1975 = vrot.slane %v872, 6
      %v1976 = vsel %vm1929, %v1973, %v1975
      %v1977 = vrot.slane %v873, 6
      %v1978 = vsel %vm1929, %v1975, %v1977
      %v1979 = vrot.slane %v874, 6
      %v1980 = vsel %vm1929, %v1977, %v1979
      %v1981 = vrot.slane %v875, 6
      %v1982 = vsel %vm1929, %v1979, %v1981
      %v1983 = vrot.slane %v876, 6
      %v1984 = vsel %vm1929, %v1981, %v1983
      %v1985 = vrot.slane %v877, 6
      %v1986 = vsel %vm1929, %v1983, %v1985
      %v1987 = vrot.slane %v878, 6
      %v1988 = vsel %vm1929, %v1985, %v1987
      %v1989 = vrot.slane %v879, 6
      %v1990 = vsel %vm1929, %v1987, %v1989
      %v1991 = vrot.slane %v880, 6
      %v1992 = vsel %vm1929, %v1989, %v1991
      %v1993 = vrot.slane %v881, 6
      %v1994 = vsel %vm1929, %v1991, %v1993
      %vm2027 = vcmask 130048
      %v2028 = vsel %vm2027, %v845, %v982
      %v2029 = vsel %vm2027, %v846, %v984
      %v2030 = vsel %vm2027, %v847, %v986
      %v2031 = vsel %vm2027, %v848, %v988
      %v2032 = vsel %vm2027, %v849, %v990
      %v2033 = vsel %vm2027, %v850, %v992
      %v2034 = vsel %vm2027, %v851, %v994
      %v2035 = vsel %vm2027, %v852, %v996
      %v2036 = vsel %vm2027, %v853, %v998
      %v2037 = vsel %vm2027, %v854, %v1000
      %v2038 = vsel %vm2027, %v855, %v1002
      %v2039 = vsel %vm2027, %v856, %v1004
      %v2040 = vsel %vm2027, %v857, %v1006
      %v2041 = vsel %vm2027, %v858, %v1008
      %v2042 = vsel %vm2027, %v859, %v1010
      %v2043 = vsel %vm2027, %v860, %v1012
      %v2044 = vsel %vm2027, %v861, %v1014
      %v2045 = vsel %vm2027, %v862, %v1016
      %v2046 = vsel %vm2027, %v863, %v1018
      %v2047 = vsel %vm2027, %v864, %v1020
      %v2048 = vsel %vm2027, %v865, %v1022
      %v2049 = vsel %vm2027, %v866, %v1024
      %v2050 = vsel %vm2027, %v867, %v1026
      %v2051 = vsel %vm2027, %v868, %v1028
      %v2052 = vsel %vm2027, %v869, %v1030
      %v2053 = vsel %vm2027, %v870, %v1032
      %v2054 = vsel %vm2027, %v871, %v1034
      %v2055 = vsel %vm2027, %v872, %v1036
      %v2056 = vsel %vm2027, %v873, %v1038
      %v2057 = vsel %vm2027, %v874, %v1040
      %v2058 = vsel %vm2027, %v875, %v1042
      %v2059 = vsel %vm2027, %v876, %v1044
      %vm2060 = vcmask 261120
      %v2061 = vsel %vm2060, %v2028, %v1144
      %v2062 = vsel %vm2060, %v2029, %v1146
      %v2063 = vsel %vm2060, %v2030, %v1148
      %v2064 = vsel %vm2060, %v2031, %v1150
      %v2065 = vsel %vm2060, %v2032, %v1152
      %v2066 = vsel %vm2060, %v2033, %v1154
      %v2067 = vsel %vm2060, %v2034, %v1156
      %v2068 = vsel %vm2060, %v2035, %v1158
      %v2069 = vsel %vm2060, %v2036, %v1160
      %v2070 = vsel %vm2060, %v2037, %v1162
      %v2071 = vsel %vm2060, %v2038, %v1164
      %v2072 = vsel %vm2060, %v2039, %v1166
      %v2073 = vsel %vm2060, %v2040, %v1168
      %v2074 = vsel %vm2060, %v2041, %v1170
      %v2075 = vsel %vm2060, %v2042, %v1172
      %v2076 = vsel %vm2060, %v2043, %v1174
      %v2077 = vsel %vm2060, %v2044, %v1176
      %v2078 = vsel %vm2060, %v2045, %v1178
      %v2079 = vsel %vm2060, %v2046, %v1180
      %v2080 = vsel %vm2060, %v2047, %v1182
      %v2081 = vsel %vm2060, %v2048, %v1184
      %v2082 = vsel %vm2060, %v2049, %v1186
      %v2083 = vsel %vm2060, %v2050, %v1188
      %v2084 = vsel %vm2060, %v2051, %v1190
      %v2085 = vsel %vm2060, %v2052, %v1192
      %v2086 = vsel %vm2060, %v2053, %v1194
      %v2087 = vsel %vm2060, %v2054, %v1196
      %v2088 = vsel %vm2060, %v2055, %v1198
      %v2089 = vsel %vm2060, %v2056, %v1200
      %v2090 = vsel %vm2060, %v2057, %v1202
      %v2091 = vsel %vm2060, %v2058, %v1204
      %v2092 = vsel %vm2060, %v2059, %v1206
      %vm2093 = vcmask 392192
      %v2094 = vsel %vm2093, %v2061, %v1246
      %v2095 = vsel %vm2093, %v2062, %v1248
      %v2096 = vsel %vm2093, %v2063, %v1250
      %v2097 = vsel %vm2093, %v2064, %v1252
      %v2098 = vsel %vm2093, %v2065, %v1254
      %v2099 = vsel %vm2093, %v2066, %v1256
      %v2100 = vsel %vm2093, %v2067, %v1258
      %v2101 = vsel %vm2093, %v2068, %v1260
      %v2102 = vsel %vm2093, %v2069, %v1262
      %v2103 = vsel %vm2093, %v2070, %v1264
      %v2104 = vsel %vm2093, %v2071, %v1266
      %v2105 = vsel %vm2093, %v2072, %v1268
      %v2106 = vsel %vm2093, %v2073, %v1270
      %v2107 = vsel %vm2093, %v2074, %v1272
      %v2108 = vsel %vm2093, %v2075, %v1274
      %v2109 = vsel %vm2093, %v2076, %v1276
      %v2110 = vsel %vm2093, %v2077, %v1278
      %v2111 = vsel %vm2093, %v2078, %v1280
      %v2112 = vsel %vm2093, %v2079, %v1282
      %v2113 = vsel %vm2093, %v2080, %v1284
      %v2114 = vsel %vm2093, %v2081, %v1286
      %v2115 = vsel %vm2093, %v2082, %v1288
      %v2116 = vsel %vm2093, %v2083, %v1290
      %v2117 = vsel %vm2093, %v2084, %v1292
      %v2118 = vsel %vm2093, %v2085, %v1294
      %v2119 = vsel %vm2093, %v2086, %v1296
      %v2120 = vsel %vm2093, %v2087, %v1298
      %v2121 = vsel %vm2093, %v2088, %v1300
      %v2122 = vsel %vm2093, %v2089, %v1302
      %v2123 = vsel %vm2093, %v2090, %v1304
      %v2124 = vsel %vm2093, %v2091, %v1306
      %v2125 = vsel %vm2093, %v2092, %v1308
      %vm2126 = vcmask 523264
      %v2127 = vsel %vm2126, %v2094, %v1408
      %v2128 = vsel %vm2126, %v2095, %v1410
      %v2129 = vsel %vm2126, %v2096, %v1412
      %v2130 = vsel %vm2126, %v2097, %v1414
      %v2131 = vsel %vm2126, %v2098, %v1416
      %v2132 = vsel %vm2126, %v2099, %v1418
      %v2133 = vsel %vm2126, %v2100, %v1420
      %v2134 = vsel %vm2126, %v2101, %v1422
      %v2135 = vsel %vm2126, %v2102, %v1424
      %v2136 = vsel %vm2126, %v2103, %v1426
      %v2137 = vsel %vm2126, %v2104, %v1428
      %v2138 = vsel %vm2126, %v2105, %v1430
      %v2139 = vsel %vm2126, %v2106, %v1432
      %v2140 = vsel %vm2126, %v2107, %v1434
      %v2141 = vsel %vm2126, %v2108, %v1436
      %v2142 = vsel %vm2126, %v2109, %v1438
      %v2143 = vsel %vm2126, %v2110, %v1440
      %v2144 = vsel %vm2126, %v2111, %v1442
      %v2145 = vsel %vm2126, %v2112, %v1444
      %v2146 = vsel %vm2126, %v2113, %v1446
      %v2147 = vsel %vm2126, %v2114, %v1448
      %v2148 = vsel %vm2126, %v2115, %v1450
      %v2149 = vsel %vm2126, %v2116, %v1452
      %v2150 = vsel %vm2126, %v2117, %v1454
      %v2151 = vsel %vm2126, %v2118, %v1456
      %v2152 = vsel %vm2126, %v2119, %v1458
      %v2153 = vsel %vm2126, %v2120, %v1460
      %v2154 = vsel %vm2126, %v2121, %v1462
      %v2155 = vsel %vm2126, %v2122, %v1464
      %v2156 = vsel %vm2126, %v2123, %v1466
      %v2157 = vsel %vm2126, %v2124, %v1468
      %v2158 = vsel %vm2126, %v2125, %v1470
      %vm2159 = vcmask 654336
      %v2160 = vsel %vm2159, %v2127, %v1570
      %v2161 = vsel %vm2159, %v2128, %v1572
      %v2162 = vsel %vm2159, %v2129, %v1574
      %v2163 = vsel %vm2159, %v2130, %v1576
      %v2164 = vsel %vm2159, %v2131, %v1578
      %v2165 = vsel %vm2159, %v2132, %v1580
      %v2166 = vsel %vm2159, %v2133, %v1582
      %v2167 = vsel %vm2159, %v2134, %v1584
      %v2168 = vsel %vm2159, %v2135, %v1586
      %v2169 = vsel %vm2159, %v2136, %v1588
      %v2170 = vsel %vm2159, %v2137, %v1590
      %v2171 = vsel %vm2159, %v2138, %v1592
      %v2172 = vsel %vm2159, %v2139, %v1594
      %v2173 = vsel %vm2159, %v2140, %v1596
      %v2174 = vsel %vm2159, %v2141, %v1598
      %v2175 = vsel %vm2159, %v2142, %v1600
      %v2176 = vsel %vm2159, %v2143, %v1602
      %v2177 = vsel %vm2159, %v2144, %v1604
      %v2178 = vsel %vm2159, %v2145, %v1606
      %v2179 = vsel %vm2159, %v2146, %v1608
      %v2180 = vsel %vm2159, %v2147, %v1610
      %v2181 = vsel %vm2159, %v2148, %v1612
      %v2182 = vsel %vm2159, %v2149, %v1614
      %v2183 = vsel %vm2159, %v2150, %v1616
      %v2184 = vsel %vm2159, %v2151, %v1618
      %v2185 = vsel %vm2159, %v2152, %v1620
      %v2186 = vsel %vm2159, %v2153, %v1622
      %v2187 = vsel %vm2159, %v2154, %v1624
      %v2188 = vsel %vm2159, %v2155, %v1626
      %v2189 = vsel %vm2159, %v2156, %v1628
      %v2190 = vsel %vm2159, %v2157, %v1630
      %v2191 = vsel %vm2159, %v2158, %v1632
      %vm2192 = vcmask 785408
      %v2193 = vsel %vm2192, %v2160, %v1672
      %v2194 = vsel %vm2192, %v2161, %v1674
      %v2195 = vsel %vm2192, %v2162, %v1676
      %v2196 = vsel %vm2192, %v2163, %v1678
      %v2197 = vsel %vm2192, %v2164, %v1680
      %v2198 = vsel %vm2192, %v2165, %v1682
      %v2199 = vsel %vm2192, %v2166, %v1684
      %v2200 = vsel %vm2192, %v2167, %v1686
      %v2201 = vsel %vm2192, %v2168, %v1688
      %v2202 = vsel %vm2192, %v2169, %v1690
      %v2203 = vsel %vm2192, %v2170, %v1692
      %v2204 = vsel %vm2192, %v2171, %v1694
      %v2205 = vsel %vm2192, %v2172, %v1696
      %v2206 = vsel %vm2192, %v2173, %v1698
      %v2207 = vsel %vm2192, %v2174, %v1700
      %v2208 = vsel %vm2192, %v2175, %v1702
      %v2209 = vsel %vm2192, %v2176, %v1704
      %v2210 = vsel %vm2192, %v2177, %v1706
      %v2211 = vsel %vm2192, %v2178, %v1708
      %v2212 = vsel %vm2192, %v2179, %v1710
      %v2213 = vsel %vm2192, %v2180, %v1712
      %v2214 = vsel %vm2192, %v2181, %v1714
      %v2215 = vsel %vm2192, %v2182, %v1716
      %v2216 = vsel %vm2192, %v2183, %v1718
      %v2217 = vsel %vm2192, %v2184, %v1720
      %v2218 = vsel %vm2192, %v2185, %v1722
      %v2219 = vsel %vm2192, %v2186, %v1724
      %v2220 = vsel %vm2192, %v2187, %v1726
      %v2221 = vsel %vm2192, %v2188, %v1728
      %v2222 = vsel %vm2192, %v2189, %v1730
      %v2223 = vsel %vm2192, %v2190, %v1732
      %v2224 = vsel %vm2192, %v2191, %v1734
      %vm2225 = vcmask 916480
      %v2226 = vsel %vm2225, %v2193, %v1834
      %v2227 = vsel %vm2225, %v2194, %v1836
      %v2228 = vsel %vm2225, %v2195, %v1838
      %v2229 = vsel %vm2225, %v2196, %v1840
      %v2230 = vsel %vm2225, %v2197, %v1842
      %v2231 = vsel %vm2225, %v2198, %v1844
      %v2232 = vsel %vm2225, %v2199, %v1846
      %v2233 = vsel %vm2225, %v2200, %v1848
      %v2234 = vsel %vm2225, %v2201, %v1850
      %v2235 = vsel %vm2225, %v2202, %v1852
      %v2236 = vsel %vm2225, %v2203, %v1854
      %v2237 = vsel %vm2225, %v2204, %v1856
      %v2238 = vsel %vm2225, %v2205, %v1858
      %v2239 = vsel %vm2225, %v2206, %v1860
      %v2240 = vsel %vm2225, %v2207, %v1862
      %v2241 = vsel %vm2225, %v2208, %v1864
      %v2242 = vsel %vm2225, %v2209, %v1866
      %v2243 = vsel %vm2225, %v2210, %v1868
      %v2244 = vsel %vm2225, %v2211, %v1870
      %v2245 = vsel %vm2225, %v2212, %v1872
      %v2246 = vsel %vm2225, %v2213, %v1874
      %v2247 = vsel %vm2225, %v2214, %v1876
      %v2248 = vsel %vm2225, %v2215, %v1878
      %v2249 = vsel %vm2225, %v2216, %v1880
      %v2250 = vsel %vm2225, %v2217, %v1882
      %v2251 = vsel %vm2225, %v2218, %v1884
      %v2252 = vsel %vm2225, %v2219, %v1886
      %v2253 = vsel %vm2225, %v2220, %v1888
      %v2254 = vsel %vm2225, %v2221, %v1890
      %v2255 = vsel %vm2225, %v2222, %v1892
      %v2256 = vsel %vm2225, %v2223, %v1894
      %v2257 = vsel %vm2225, %v2224, %v1896
      %v2258 = vpack.c.bf16 %v2227, %v2226
      %v2259 = vpack.c.bf16 %v1934, %v1932
      %v2260 = vpack.c.bf16 %v2229, %v2228
      %v2261 = vpack.c.bf16 %v1938, %v1936
      %v2262 = vpack.c.bf16 %v2231, %v2230
      %v2263 = vpack.c.bf16 %v1942, %v1940
      %v2264 = vpack.c.bf16 %v2233, %v2232
      %v2265 = vpack.c.bf16 %v1946, %v1944
      %v2266 = vpack.c.bf16 %v2235, %v2234
      %v2267 = vpack.c.bf16 %v1950, %v1948
      %v2268 = vpack.c.bf16 %v2237, %v2236
      %v2269 = vpack.c.bf16 %v1954, %v1952
      %v2270 = vpack.c.bf16 %v2239, %v2238
      %v2271 = vpack.c.bf16 %v1958, %v1956
      %v2272 = vpack.c.bf16 %v2241, %v2240
      %v2273 = vpack.c.bf16 %v1962, %v1960
      %v2274 = vpack.c.bf16 %v2243, %v2242
      %v2275 = vpack.c.bf16 %v1966, %v1964
      %v2276 = vpack.c.bf16 %v2245, %v2244
      %v2277 = vpack.c.bf16 %v1970, %v1968
      %v2278 = vpack.c.bf16 %v2247, %v2246
      %v2279 = vpack.c.bf16 %v1974, %v1972
      %v2280 = vpack.c.bf16 %v2249, %v2248
      %v2281 = vpack.c.bf16 %v1978, %v1976
      %v2282 = vpack.c.bf16 %v2251, %v2250
      %v2283 = vpack.c.bf16 %v1982, %v1980
      %v2284 = vpack.c.bf16 %v2253, %v2252
      %v2285 = vpack.c.bf16 %v1986, %v1984
      %v2286 = vpack.c.bf16 %v2255, %v2254
      %v2287 = vpack.c.bf16 %v1990, %v1988
      %v2288 = vpack.c.bf16 %v2257, %v2256
      %v2289 = vpack.c.bf16 %v1994, %v1992
      %v2290 = vld [vmem:[%s2] sm:$0xf]
      %v2291 = vld [vmem:[%s2 + $0x4] sm:$0xf]
      %v2292 = vld [vmem:[%s2 + $0x8] sm:$0xf]
      %v2293 = vld [vmem:[%s2 + $0xc] sm:$0xf]
      %v2294 = vld [vmem:[%s2 + $0x10] sm:$0xf]
      %v2295 = vld [vmem:[%s2 + $0x14] sm:$0xf]
      %v2296 = vld [vmem:[%s2 + $0x18] sm:$0xf]
      %v2297 = vld [vmem:[%s2 + $0x1c] sm:$0xf]
      %v2298 = vld [vmem:[%s2 + $0x20] sm:$0xf]
      %v2299 = vld [vmem:[%s2 + $0x24] sm:$0xf]
      %v2300 = vld [vmem:[%s2 + $0x28] sm:$0xf]
      %v2301 = vld [vmem:[%s2 + $0x2c] sm:$0xf]
      %v2302 = vld [vmem:[%s2 + $0x30] sm:$0xf]
      %v2303 = vld [vmem:[%s2 + $0x34] sm:$0xf]
      %v2304 = vld [vmem:[%s2 + $0x38] sm:$0xf]
      %v2305 = vld [vmem:[%s2 + $0x3c] sm:$0xf]
      %v2306 = vld [vmem:[%s2 + $0x40] sm:$0xf]
      %v2307 = vld [vmem:[%s2 + $0x44] sm:$0xf]
      %v2326 = vunpack.c.l.b16 %v2290
      %v2327 = vunpack.c.l.b16 %v2291
      %v2328 = vunpack.c.l.b16 %v2292
      %v2329 = vunpack.c.l.b16 %v2293
      %v2330 = vunpack.c.l.b16 %v2294
      %v2331 = vunpack.c.l.b16 %v2295
      %v2332 = vunpack.c.l.b16 %v2296
      %v2333 = vunpack.c.l.b16 %v2297
      %v2334 = vunpack.c.l.b16 %v2298
      %v2335 = vunpack.c.l.b16 %v2299
      %v2336 = vunpack.c.l.b16 %v2300
      %v2337 = vunpack.c.l.b16 %v2301
      %v2338 = vunpack.c.l.b16 %v2302
      %v2339 = vunpack.c.l.b16 %v2303
      %v2340 = vunpack.c.l.b16 %v2304
      %v2341 = vunpack.c.l.b16 %v2305
      %v2342 = vunpack.c.l.b16 %v2306
      %v2343 = vunpack.c.l.b16 %v2307
      %v2344 = vpack.c.b16 %v2327, %v2326
      %v2345 = vpack.c.b16 %v2329, %v2328
      %v2346 = vpack.c.b16 %v2331, %v2330
      %v2347 = vpack.c.b16 %v2333, %v2332
      %v2348 = vpack.c.b16 %v2335, %v2334
      %v2349 = vpack.c.b16 %v2337, %v2336
      %v2350 = vpack.c.b16 %v2339, %v2338
      %v2351 = vpack.c.b16 %v2341, %v2340
      %v2352 = vpack.c.b16 %v2343, %v2342
      %v2363 = vsel %vm2027, %v2259, 0
      %v2366 = vsel %vm2027, %v2261, 0
      %v2369 = vsel %vm2027, %v2263, 0
      %v2372 = vsel %vm2027, %v2265, 0
      %v2375 = vsel %vm2027, %v2267, 0
      %v2378 = vsel %vm2027, %v2269, 0
      %v2381 = vsel %vm2027, %v2271, 0
      %v2384 = vsel %vm2027, %v2273, 0
      %v2387 = vsel %vm2027, %v2275, 0
      %v2390 = vsel %vm2027, %v2277, 0
      %v2393 = vsel %vm2027, %v2279, 0
      %v2396 = vsel %vm2027, %v2281, 0
      %v2399 = vsel %vm2027, %v2283, 0
      %v2402 = vsel %vm2027, %v2285, 0
      %v2405 = vsel %vm2027, %v2287, 0
      %v2408 = vsel %vm2027, %v2289, 0
      %2410 = vmatprep.subr.bf16.mxu0 0
      %2411 = vmatpush1.bf16.msra.mxu0 %v2344
      %2412 = vmatprep.subr.bf16.mxu0 0
      %2413 = vmatpush1.bf16.msra.mxu0 %v2345
      %2414 = vmatprep.subr.bf16.mxu0 0
      %2415 = vmatpush1.bf16.msra.mxu0 %v2346
      %2416 = vmatprep.subr.bf16.mxu0 0
      %2417 = vmatpush1.bf16.msra.mxu0 %v2347
      %2418 = vmatprep.subr.bf16.mxu0 0
      %2419 = vmatpush1.bf16.msra.mxu0 %v2348
      %2420 = vmatprep.subr.bf16.mxu0 0
      %2421 = vmatpush1.bf16.msra.mxu0 %v2349
      %2422 = vmatprep.subr.bf16.mxu0 0
      %2423 = vmatpush1.bf16.msra.mxu0 %v2350
      %2424 = vmatprep.subr.bf16.mxu0 0
      %2425 = vmatpush1.bf16.msra.mxu0 %v2351
      %2426 = vmatprep.subr.bf16.mxu0 0
      %2427 = vmatpush1.bf16.msra.mxu0 %v2352
      %2428 = vmatprep.subr.bf16.mxu0 0
      %2429 = vmatpush1.bf16.msra.mxu0 0
      %2430 = vmatprep.subr.bf16.mxu0 0
      %2431 = vmatpush1.bf16.msra.mxu0 0
      %2432 = vmatprep.subr.bf16.mxu0 0
      %2433 = vmatpush1.bf16.msra.mxu0 0
      %2434 = vmatprep.subr.bf16.mxu0 0
      %2435 = vmatpush1.bf16.msra.mxu0 0
      %2436 = vmatprep.subr.bf16.mxu0 0
      %2437 = vmatpush1.bf16.msra.mxu0 0
      %2438 = vmatprep.subr.bf16.mxu0 0
      %2439 = vmatpush1.bf16.msra.mxu0 0
      %2440 = vmatprep.subr.bf16.mxu0 0
      %2441 = vmatpush1.bf16.msra.mxu0 0
      %2442 = vmatprep.mubr.bf16.mxu0 %v2363
      %2443 = vmatmul.mubr.bf16.gmra.mrb[0].mxu0 %v2258
      %v2444 = vpop.f32.mrb[0].mxu0
      %v2445 = vadd.f32 0.0, %v2444
      %v2446 = vpop.f32.mrb[0].mxu0
      %v2447 = vpop.f32.mrb[0].mxu0
      %v2448 = vadd.f32 0.0, %v2447
      %v2449 = vpop.f32.mrb[0].mxu0
      %2450 = vmatprep.mubr.bf16.mxu0 %v2366
      %2451 = vmatmul.mubr.bf16.gmra.mrb[0].mxu0 %v2260
      %v2452 = vpop.f32.mrb[0].mxu0
      %v2453 = vadd.f32 0.0, %v2452
      %v2454 = vpop.f32.mrb[0].mxu0
      %v2455 = vpop.f32.mrb[0].mxu0
      %v2456 = vadd.f32 0.0, %v2455
      %v2457 = vpop.f32.mrb[0].mxu0
      %2458 = vmatprep.mubr.bf16.mxu0 %v2369
      %2459 = vmatmul.mubr.bf16.gmra.mrb[0].mxu0 %v2262
      %v2460 = vpop.f32.mrb[0].mxu0
      %v2461 = vadd.f32 0.0, %v2460
      %v2462 = vpop.f32.mrb[0].mxu0
      %v2463 = vpop.f32.mrb[0].mxu0
      %v2464 = vadd.f32 0.0, %v2463
      %v2465 = vpop.f32.mrb[0].mxu0
      %2466 = vmatprep.mubr.bf16.mxu0 %v2372
      %2467 = vmatmul.mubr.bf16.gmra.mrb[0].mxu0 %v2264
      %v2468 = vpop.f32.mrb[0].mxu0
      %v2469 = vadd.f32 0.0, %v2468
      %v2470 = vpop.f32.mrb[0].mxu0
      %v2471 = vpop.f32.mrb[0].mxu0
      %v2472 = vadd.f32 0.0, %v2471
      %v2473 = vpop.f32.mrb[0].mxu0
      %2474 = vmatprep.mubr.bf16.mxu0 %v2375
      %2475 = vmatmul.mubr.bf16.gmra.mrb[0].mxu0 %v2266
      %v2476 = vpop.f32.mrb[0].mxu0
      %v2477 = vadd.f32 0.0, %v2476
      %v2478 = vpop.f32.mrb[0].mxu0
      %v2479 = vpop.f32.mrb[0].mxu0
      %v2480 = vadd.f32 0.0, %v2479
      %v2481 = vpop.f32.mrb[0].mxu0
      %2482 = vmatprep.mubr.bf16.mxu0 %v2378
      %2483 = vmatmul.mubr.bf16.gmra.mrb[0].mxu0 %v2268
      %v2484 = vpop.f32.mrb[0].mxu0
      %v2485 = vadd.f32 0.0, %v2484
      %v2486 = vpop.f32.mrb[0].mxu0
      %v2487 = vpop.f32.mrb[0].mxu0
      %v2488 = vadd.f32 0.0, %v2487
      %v2489 = vpop.f32.mrb[0].mxu0
      %2490 = vmatprep.mubr.bf16.mxu0 %v2381
      %2491 = vmatmul.mubr.bf16.gmra.mrb[0].mxu0 %v2270
      %v2492 = vpop.f32.mrb[0].mxu0
      %v2493 = vadd.f32 0.0, %v2492
      %v2494 = vpop.f32.mrb[0].mxu0
      %v2495 = vpop.f32.mrb[0].mxu0
      %v2496 = vadd.f32 0.0, %v2495
      %v2497 = vpop.f32.mrb[0].mxu0
      %2498 = vmatprep.mubr.bf16.mxu0 %v2384
      %2499 = vmatmul.mubr.bf16.gmra.mrb[0].mxu0 %v2272
      %v2500 = vpop.f32.mrb[0].mxu0
      %v2501 = vadd.f32 0.0, %v2500
      %v2502 = vpop.f32.mrb[0].mxu0
      %v2503 = vpop.f32.mrb[0].mxu0
      %v2504 = vadd.f32 0.0, %v2503
      %v2505 = vpop.f32.mrb[0].mxu0
      %2506 = vmatprep.mubr.bf16.mxu0 %v2387
      %2507 = vmatmul.mubr.bf16.gmra.mrb[0].mxu0 %v2274
      %v2508 = vpop.f32.mrb[0].mxu0
      %v2509 = vadd.f32 0.0, %v2508
      %v2510 = vpop.f32.mrb[0].mxu0
      %v2511 = vpop.f32.mrb[0].mxu0
      %v2512 = vadd.f32 0.0, %v2511
      %v2513 = vpop.f32.mrb[0].mxu0
      %2514 = vmatprep.mubr.bf16.mxu0 %v2390
      %2515 = vmatmul.mubr.bf16.gmra.mrb[0].mxu0 %v2276
      %v2516 = vpop.f32.mrb[0].mxu0
      %v2517 = vadd.f32 0.0, %v2516
      %v2518 = vpop.f32.mrb[0].mxu0
      %v2519 = vpop.f32.mrb[0].mxu0
      %v2520 = vadd.f32 0.0, %v2519
      %v2521 = vpop.f32.mrb[0].mxu0
      %2522 = vmatprep.mubr.bf16.mxu0 %v2393
      %2523 = vmatmul.mubr.bf16.gmra.mrb[0].mxu0 %v2278
      %v2524 = vpop.f32.mrb[0].mxu0
      %v2525 = vadd.f32 0.0, %v2524
      %v2526 = vpop.f32.mrb[0].mxu0
      %v2527 = vpop.f32.mrb[0].mxu0
      %v2528 = vadd.f32 0.0, %v2527
      %v2529 = vpop.f32.mrb[0].mxu0
      %2530 = vmatprep.mubr.bf16.mxu0 %v2396
      %2531 = vmatmul.mubr.bf16.gmra.mrb[0].mxu0 %v2280
      %v2532 = vpop.f32.mrb[0].mxu0
      %v2533 = vadd.f32 0.0, %v2532
      %v2534 = vpop.f32.mrb[0].mxu0
      %v2535 = vpop.f32.mrb[0].mxu0
      %v2536 = vadd.f32 0.0, %v2535
      %v2537 = vpop.f32.mrb[0].mxu0
      %2538 = vmatprep.mubr.bf16.mxu0 %v2399
      %2539 = vmatmul.mubr.bf16.gmra.mrb[0].mxu0 %v2282
      %v2540 = vpop.f32.mrb[0].mxu0
      %v2541 = vadd.f32 0.0, %v2540
      %v2542 = vpop.f32.mrb[0].mxu0
      %v2543 = vpop.f32.mrb[0].mxu0
      %v2544 = vadd.f32 0.0, %v2543
      %v2545 = vpop.f32.mrb[0].mxu0
      %2546 = vmatprep.mubr.bf16.mxu0 %v2402
      %2547 = vmatmul.mubr.bf16.gmra.mrb[0].mxu0 %v2284
      %v2548 = vpop.f32.mrb[0].mxu0
      %v2549 = vadd.f32 0.0, %v2548
      %v2550 = vpop.f32.mrb[0].mxu0
      %v2551 = vpop.f32.mrb[0].mxu0
      %v2552 = vadd.f32 0.0, %v2551
      %v2553 = vpop.f32.mrb[0].mxu0
      %2554 = vmatprep.mubr.bf16.mxu0 %v2405
      %2555 = vmatmul.mubr.bf16.gmra.mrb[0].mxu0 %v2286
      %v2556 = vpop.f32.mrb[0].mxu0
      %v2557 = vadd.f32 0.0, %v2556
      %v2558 = vpop.f32.mrb[0].mxu0
      %v2559 = vpop.f32.mrb[0].mxu0
      %v2560 = vadd.f32 0.0, %v2559
      %v2561 = vpop.f32.mrb[0].mxu0
      %2562 = vmatprep.mubr.bf16.mxu0 %v2408
      %2563 = vmatmul.mubr.bf16.gmra.mrb[0].mxu0 %v2288
      %v2564 = vpop.f32.mrb[0].mxu0
      %v2565 = vadd.f32 0.0, %v2564
      %v2566 = vpop.f32.mrb[0].mxu0
      %v2567 = vpop.f32.mrb[0].mxu0
      %v2568 = vadd.f32 0.0, %v2567
      %v2569 = vpop.f32.mrb[0].mxu0
      %2570 = vdwg.mxu0
      %v2571 = vrot.slane %v673, 3
      %v2572 = vrot.slane %v678, 3
      %v2573 = vsel %vm1341, %v2571, %v2572
      %v2574 = vrot.slane %v683, 3
      %v2575 = vsel %vm1341, %v2572, %v2574
      %v2576 = vrot.slane %v688, 3
      %v2577 = vsel %vm1341, %v2574, %v2576
      %v2578 = vrot.slane %v693, 3
      %v2579 = vsel %vm1341, %v2576, %v2578
      %v2580 = vrot.slane %v698, 3
      %v2581 = vsel %vm1341, %v2578, %v2580
      %v2582 = vrot.slane %v703, 3
      %v2583 = vsel %vm1341, %v2580, %v2582
      %v2584 = vrot.slane %v708, 3
      %v2585 = vsel %vm1341, %v2582, %v2584
      %v2586 = vrot.slane %v713, 3
      %v2587 = vsel %vm1341, %v2584, %v2586
      %v2588 = vrot.slane %v718, 3
      %v2589 = vsel %vm1341, %v2586, %v2588
      %v2590 = vrot.slane %v723, 3
      %v2591 = vsel %vm1341, %v2588, %v2590
      %v2592 = vrot.slane %v728, 3
      %v2593 = vsel %vm1341, %v2590, %v2592
      %v2594 = vrot.slane %v733, 3
      %v2595 = vsel %vm1341, %v2592, %v2594
      %v2596 = vrot.slane %v738, 3
      %v2597 = vsel %vm1341, %v2594, %v2596
      %v2598 = vrot.slane %v743, 3
      %v2599 = vsel %vm1341, %v2596, %v2598
      %v2600 = vrot.slane %v748, 3
      %v2601 = vsel %vm1341, %v2598, %v2600
      %v2602 = vrot.slane %v753, 3
      %v2603 = vsel %vm1341, %v2600, %v2602
      %v2604 = vrot.slane %v758, 3
      %v2605 = vsel %vm1341, %v2602, %v2604
      %v2606 = vrot.slane %v763, 3
      %v2607 = vsel %vm1341, %v2604, %v2606
      %v2608 = vrot.slane %v768, 3
      %v2609 = vsel %vm1341, %v2606, %v2608
      %v2610 = vrot.slane %v773, 3
      %v2611 = vsel %vm1341, %v2608, %v2610
      %v2612 = vrot.slane %v778, 3
      %v2613 = vsel %vm1341, %v2610, %v2612
      %v2614 = vrot.slane %v783, 3
      %v2615 = vsel %vm1341, %v2612, %v2614
      %v2616 = vrot.slane %v788, 3
      %v2617 = vsel %vm1341, %v2614, %v2616
      %v2618 = vrot.slane %v793, 3
      %v2619 = vsel %vm1341, %v2616, %v2618
      %v2620 = vrot.slane %v798, 3
      %v2621 = vsel %vm1341, %v2618, %v2620
      %v2622 = vrot.slane %v803, 3
      %v2623 = vsel %vm1341, %v2620, %v2622
      %v2624 = vrot.slane %v808, 3
      %v2625 = vsel %vm1341, %v2622, %v2624
      %v2626 = vrot.slane %v813, 3
      %v2627 = vsel %vm1341, %v2624, %v2626
      %v2628 = vrot.slane %v818, 3
      %v2629 = vsel %vm1341, %v2626, %v2628
      %v2630 = vrot.slane %v823, 3
      %v2631 = vsel %vm1341, %v2628, %v2630
      %v2632 = vrot.slane %v828, 3
      %v2633 = vsel %vm1341, %v2630, %v2632
      %v2634 = vrot.slane %v833, 3
      %v2635 = vsel %vm1341, %v2632, %v2634
      %v2668 = vmul.f32 %v2445, %v2573
      %v2669 = vmul.f32 %v2448, %v2575
      %v2670 = vmul.f32 %v2453, %v2577
      %v2671 = vmul.f32 %v2456, %v2579
      %v2672 = vmul.f32 %v2461, %v2581
      %v2673 = vmul.f32 %v2464, %v2583
      %v2674 = vmul.f32 %v2469, %v2585
      %v2675 = vmul.f32 %v2472, %v2587
      %v2676 = vmul.f32 %v2477, %v2589
      %v2677 = vmul.f32 %v2480, %v2591
      %v2678 = vmul.f32 %v2485, %v2593
      %v2679 = vmul.f32 %v2488, %v2595
      %v2680 = vmul.f32 %v2493, %v2597
      %v2681 = vmul.f32 %v2496, %v2599
      %v2682 = vmul.f32 %v2501, %v2601
      %v2683 = vmul.f32 %v2504, %v2603
      %v2684 = vmul.f32 %v2509, %v2605
      %v2685 = vmul.f32 %v2512, %v2607
      %v2686 = vmul.f32 %v2517, %v2609
      %v2687 = vmul.f32 %v2520, %v2611
      %v2688 = vmul.f32 %v2525, %v2613
      %v2689 = vmul.f32 %v2528, %v2615
      %v2690 = vmul.f32 %v2533, %v2617
      %v2691 = vmul.f32 %v2536, %v2619
      %v2692 = vmul.f32 %v2541, %v2621
      %v2693 = vmul.f32 %v2544, %v2623
      %v2694 = vmul.f32 %v2549, %v2625
      %v2695 = vmul.f32 %v2552, %v2627
      %v2696 = vmul.f32 %v2557, %v2629
      %v2697 = vmul.f32 %v2560, %v2631
      %v2698 = vmul.f32 %v2565, %v2633
      %v2699 = vmul.f32 %v2568, %v2635
      %vm2700 = vcmask 195584
      %2701 = vst.msk [vmem:[%s201] sm:$0xff] %vm2700, %v2668
      %2702 = vst.msk [vmem:[%s201 + $0x8] sm:$0xff] %vm2700, %v2669
      %2703 = vst.msk [vmem:[%s201 + $0x10] sm:$0xff] %vm2700, %v2670
      %2704 = vst.msk [vmem:[%s201 + $0x18] sm:$0xff] %vm2700, %v2671
      %2705 = vst.msk [vmem:[%s201 + $0x20] sm:$0xff] %vm2700, %v2672
      %2706 = vst.msk [vmem:[%s201 + $0x28] sm:$0xff] %vm2700, %v2673
      %2707 = vst.msk [vmem:[%s201 + $0x30] sm:$0xff] %vm2700, %v2674
      %2708 = vst.msk [vmem:[%s201 + $0x38] sm:$0xff] %vm2700, %v2675
      %2709 = vst.msk [vmem:[%s201 + $0x40] sm:$0xff] %vm2700, %v2676
      %2710 = vst.msk [vmem:[%s201 + $0x48] sm:$0xff] %vm2700, %v2677
      %2711 = vst.msk [vmem:[%s201 + $0x50] sm:$0xff] %vm2700, %v2678
      %2712 = vst.msk [vmem:[%s201 + $0x58] sm:$0xff] %vm2700, %v2679
      %2713 = vst.msk [vmem:[%s201 + $0x60] sm:$0xff] %vm2700, %v2680
      %2714 = vst.msk [vmem:[%s201 + $0x68] sm:$0xff] %vm2700, %v2681
      %2715 = vst.msk [vmem:[%s201 + $0x70] sm:$0xff] %vm2700, %v2682
      %2716 = vst.msk [vmem:[%s201 + $0x78] sm:$0xff] %vm2700, %v2683
      %2717 = vst.msk [vmem:[%s201 + $0x80] sm:$0xff] %vm2700, %v2684
      %2718 = vst.msk [vmem:[%s201 + $0x88] sm:$0xff] %vm2700, %v2685
      %2719 = vst.msk [vmem:[%s201 + $0x90] sm:$0xff] %vm2700, %v2686
      %2720 = vst.msk [vmem:[%s201 + $0x98] sm:$0xff] %vm2700, %v2687
      %2721 = vst.msk [vmem:[%s201 + $0xa0] sm:$0xff] %vm2700, %v2688
      %2722 = vst.msk [vmem:[%s201 + $0xa8] sm:$0xff] %vm2700, %v2689
      %2723 = vst.msk [vmem:[%s201 + $0xb0] sm:$0xff] %vm2700, %v2690
      %2724 = vst.msk [vmem:[%s201 + $0xb8] sm:$0xff] %vm2700, %v2691
      %2725 = vst.msk [vmem:[%s201 + $0xc0] sm:$0xff] %vm2700, %v2692
      %2726 = vst.msk [vmem:[%s201 + $0xc8] sm:$0xff] %vm2700, %v2693
      %2727 = vst.msk [vmem:[%s201 + $0xd0] sm:$0xff] %vm2700, %v2694
      %2728 = vst.msk [vmem:[%s201 + $0xd8] sm:$0xff] %vm2700, %v2695
      %2729 = vst.msk [vmem:[%s201 + $0xe0] sm:$0xff] %vm2700, %v2696
      %2730 = vst.msk [vmem:[%s201 + $0xe8] sm:$0xff] %vm2700, %v2697
      %2731 = vst.msk [vmem:[%s201 + $0xf0] sm:$0xff] %vm2700, %v2698
      %2732 = vst.msk [vmem:[%s201 + $0xf8] sm:$0xff] %vm2700, %v2699
      %p2733 = scmp.eq.s32.totalorder %s19, 0
      // Predicated region
      $region107: #{a_call__.7} parent=31 // pred_check
        %p2734 = pneg %p2733
      $region108: #{a_call__.7} parent=31 // pred_check_branch
        %2736 = sbr.rel (%p2734) target = $region110
      $region109: #{a_call__.7} parent=31 // pred_region
        %vm2737 = vcmask 188416
        %2738 = vst.msk [vmem:[%s6] sm:$0x1] %vm2737, 0.0
        %2739 = vst.msk [vmem:[%s7] sm:$0x1] %vm2737, 0.0
      $region110: #{a_call__.7} parent=31 // pred_fallthru
        _
      %v2740 = vld [vmem:[%s6] sm:$0x1]
      %v2741 = vsel %vm2700, %v2668, 0.0
      %v2742 = vsel %vm2700, %v2669, 0.0
      %v2743 = vadd.f32 %v2741, %v2742
      %v2744 = vsel %vm2700, %v2670, 0.0
      %v2745 = vadd.f32 %v2743, %v2744
      %v2746 = vsel %vm2700, %v2671, 0.0
      %v2747 = vadd.f32 %v2745, %v2746
      %v2748 = vsel %vm2700, %v2672, 0.0
      %v2749 = vadd.f32 %v2747, %v2748
      %v2750 = vsel %vm2700, %v2673, 0.0
      %v2751 = vadd.f32 %v2749, %v2750
      %v2752 = vsel %vm2700, %v2674, 0.0
      %v2753 = vadd.f32 %v2751, %v2752
      %v2754 = vsel %vm2700, %v2675, 0.0
      %v2755 = vadd.f32 %v2753, %v2754
      %v2756 = vsel %vm2700, %v2676, 0.0
      %v2757 = vadd.f32 %v2755, %v2756
      %v2758 = vsel %vm2700, %v2677, 0.0
      %v2759 = vadd.f32 %v2757, %v2758
      %v2760 = vsel %vm2700, %v2678, 0.0
      %v2761 = vadd.f32 %v2759, %v2760
      %v2762 = vsel %vm2700, %v2679, 0.0
      %v2763 = vadd.f32 %v2761, %v2762
      %v2764 = vsel %vm2700, %v2680, 0.0
      %v2765 = vadd.f32 %v2763, %v2764
      %v2766 = vsel %vm2700, %v2681, 0.0
      %v2767 = vadd.f32 %v2765, %v2766
      %v2768 = vsel %vm2700, %v2682, 0.0
      %v2769 = vadd.f32 %v2767, %v2768
      %v2770 = vsel %vm2700, %v2683, 0.0
      %v2771 = vadd.f32 %v2769, %v2770
      %v2772 = vsel %vm2700, %v2684, 0.0
      %v2773 = vadd.f32 %v2771, %v2772
      %v2774 = vsel %vm2700, %v2685, 0.0
      %v2775 = vadd.f32 %v2773, %v2774
      %v2776 = vsel %vm2700, %v2686, 0.0
      %v2777 = vadd.f32 %v2775, %v2776
      %v2778 = vsel %vm2700, %v2687, 0.0
      %v2779 = vadd.f32 %v2777, %v2778
      %v2780 = vsel %vm2700, %v2688, 0.0
      %v2781 = vadd.f32 %v2779, %v2780
      %v2782 = vsel %vm2700, %v2689, 0.0
      %v2783 = vadd.f32 %v2781, %v2782
      %v2784 = vsel %vm2700, %v2690, 0.0
      %v2785 = vadd.f32 %v2783, %v2784
      %v2786 = vsel %vm2700, %v2691, 0.0
      %v2787 = vadd.f32 %v2785, %v2786
      %v2788 = vsel %vm2700, %v2692, 0.0
      %v2789 = vadd.f32 %v2787, %v2788
      %v2790 = vsel %vm2700, %v2693, 0.0
      %v2791 = vadd.f32 %v2789, %v2790
      %v2792 = vsel %vm2700, %v2694, 0.0
      %v2793 = vadd.f32 %v2791, %v2792
      %v2794 = vsel %vm2700, %v2695, 0.0
      %v2795 = vadd.f32 %v2793, %v2794
      %v2796 = vsel %vm2700, %v2696, 0.0
      %v2797 = vadd.f32 %v2795, %v2796
      %v2798 = vsel %vm2700, %v2697, 0.0
      %v2799 = vadd.f32 %v2797, %v2798
      %v2800 = vsel %vm2700, %v2698, 0.0
      %v2801 = vadd.f32 %v2799, %v2800
      %v2802 = vsel %vm2700, %v2699, 0.0
      %v2803 = vadd.f32 %v2801, %v2802
      %v2804 = vrot.slane %v2803, 4
      %v2805 = vadd.f32 %v2803, %v2804
      %v2806 = vrot.slane %v2805, 2
      %v2807 = vadd.f32 %v2805, %v2806
      %v2808 = vrot.slane %v2807, 1
      %v2809 = vadd.f32 %v2807, %v2808
      %v2810 = vadd.f32 %v2740, %v2809
      %vm2811 = vcmask 188416
      %2812 = vst.msk [vmem:[%s6] sm:$0x1] %vm2811, %v2810
      %v2813 = vld [vmem:[%s7] sm:$0x1]
      %v2814 = vmul.f32 %v2668, %v2668
      %v2815 = vmul.f32 %v2669, %v2669
      %v2816 = vmul.f32 %v2670, %v2670
      %v2817 = vmul.f32 %v2671, %v2671
      %v2818 = vmul.f32 %v2672, %v2672
      %v2819 = vmul.f32 %v2673, %v2673
      %v2820 = vmul.f32 %v2674, %v2674
      %v2821 = vmul.f32 %v2675, %v2675
      %v2822 = vmul.f32 %v2676, %v2676
      %v2823 = vmul.f32 %v2677, %v2677
      %v2824 = vmul.f32 %v2678, %v2678
      %v2825 = vmul.f32 %v2679, %v2679
      %v2826 = vmul.f32 %v2680, %v2680
      %v2827 = vmul.f32 %v2681, %v2681
      %v2828 = vmul.f32 %v2682, %v2682
      %v2829 = vmul.f32 %v2683, %v2683
      %v2830 = vmul.f32 %v2684, %v2684
      %v2831 = vmul.f32 %v2685, %v2685
      %v2832 = vmul.f32 %v2686, %v2686
      %v2833 = vmul.f32 %v2687, %v2687
      %v2834 = vmul.f32 %v2688, %v2688
      %v2835 = vmul.f32 %v2689, %v2689
      %v2836 = vmul.f32 %v2690, %v2690
      %v2837 = vmul.f32 %v2691, %v2691
      %v2838 = vmul.f32 %v2692, %v2692
      %v2839 = vmul.f32 %v2693, %v2693
      %v2840 = vmul.f32 %v2694, %v2694
      %v2841 = vmul.f32 %v2695, %v2695
      %v2842 = vmul.f32 %v2696, %v2696
      %v2843 = vmul.f32 %v2697, %v2697
      %v2844 = vmul.f32 %v2698, %v2698
      %v2845 = vmul.f32 %v2699, %v2699
      %v2846 = vsel %vm2700, %v2814, 0.0
      %v2847 = vsel %vm2700, %v2815, 0.0
      %v2848 = vadd.f32 %v2846, %v2847
      %v2849 = vsel %vm2700, %v2816, 0.0
      %v2850 = vadd.f32 %v2848, %v2849
      %v2851 = vsel %vm2700, %v2817, 0.0
      %v2852 = vadd.f32 %v2850, %v2851
      %v2853 = vsel %vm2700, %v2818, 0.0
      %v2854 = vadd.f32 %v2852, %v2853
      %v2855 = vsel %vm2700, %v2819, 0.0
      %v2856 = vadd.f32 %v2854, %v2855
      %v2857 = vsel %vm2700, %v2820, 0.0
      %v2858 = vadd.f32 %v2856, %v2857
      %v2859 = vsel %vm2700, %v2821, 0.0
      %v2860 = vadd.f32 %v2858, %v2859
      %v2861 = vsel %vm2700, %v2822, 0.0
      %v2862 = vadd.f32 %v2860, %v2861
      %v2863 = vsel %vm2700, %v2823, 0.0
      %v2864 = vadd.f32 %v2862, %v2863
      %v2865 = vsel %vm2700, %v2824, 0.0
      %v2866 = vadd.f32 %v2864, %v2865
      %v2867 = vsel %vm2700, %v2825, 0.0
      %v2868 = vadd.f32 %v2866, %v2867
      %v2869 = vsel %vm2700, %v2826, 0.0
      %v2870 = vadd.f32 %v2868, %v2869
      %v2871 = vsel %vm2700, %v2827, 0.0
      %v2872 = vadd.f32 %v2870, %v2871
      %v2873 = vsel %vm2700, %v2828, 0.0
      %v2874 = vadd.f32 %v2872, %v2873
      %v2875 = vsel %vm2700, %v2829, 0.0
      %v2876 = vadd.f32 %v2874, %v2875
      %v2877 = vsel %vm2700, %v2830, 0.0
      %v2878 = vadd.f32 %v2876, %v2877
      %v2879 = vsel %vm2700, %v2831, 0.0
      %v2880 = vadd.f32 %v2878, %v2879
      %v2881 = vsel %vm2700, %v2832, 0.0
      %v2882 = vadd.f32 %v2880, %v2881
      %v2883 = vsel %vm2700, %v2833, 0.0
      %v2884 = vadd.f32 %v2882, %v2883
      %v2885 = vsel %vm2700, %v2834, 0.0
      %v2886 = vadd.f32 %v2884, %v2885
      %v2887 = vsel %vm2700, %v2835, 0.0
      %v2888 = vadd.f32 %v2886, %v2887
      %v2889 = vsel %vm2700, %v2836, 0.0
      %v2890 = vadd.f32 %v2888, %v2889
      %v2891 = vsel %vm2700, %v2837, 0.0
      %v2892 = vadd.f32 %v2890, %v2891
      %v2893 = vsel %vm2700, %v2838, 0.0
      %v2894 = vadd.f32 %v2892, %v2893
      %v2895 = vsel %vm2700, %v2839, 0.0
      %v2896 = vadd.f32 %v2894, %v2895
      %v2897 = vsel %vm2700, %v2840, 0.0
      %v2898 = vadd.f32 %v2896, %v2897
      %v2899 = vsel %vm2700, %v2841, 0.0
      %v2900 = vadd.f32 %v2898, %v2899
      %v2901 = vsel %vm2700, %v2842, 0.0
      %v2902 = vadd.f32 %v2900, %v2901
      %v2903 = vsel %vm2700, %v2843, 0.0
      %v2904 = vadd.f32 %v2902, %v2903
      %v2905 = vsel %vm2700, %v2844, 0.0
      %v2906 = vadd.f32 %v2904, %v2905
      %v2907 = vsel %vm2700, %v2845, 0.0
      %v2908 = vadd.f32 %v2906, %v2907
      %v2909 = vrot.slane %v2908, 4
      %v2910 = vadd.f32 %v2908, %v2909
      %v2911 = vrot.slane %v2910, 2
      %v2912 = vadd.f32 %v2910, %v2911
      %v2913 = vrot.slane %v2912, 1
      %v2914 = vadd.f32 %v2912, %v2913
      %v2915 = vadd.f32 %v2813, %v2914
      %2916 = vst.msk [vmem:[%s7] sm:$0x1] %vm2811, %v2915
      %s2917 = smul.u32 32, %s19
      %p2918 = scmp.lt.s32.totalorder %s2917, 95
      %s2919 = scalar_select %p2918, %s2917, 95
      %s2920 = smul.addr %s2919, 8
      %s2921 = scalar_lea.vmem %s5, %s2920
      // Predicated region
      $region111: #{a_call__.7} parent=31 // pred_check
        %p2922 = pneg %p100
      $region112: #{a_call__.7} parent=31 // pred_check_branch
        %2924 = sbr.rel (%p2922) target = $region114
      $region113: #{a_call__.7} parent=31 // pred_region
        %s2925 = smul.u32 32, %s19
      $region114: #{a_call__.7} parent=31 // pred_fallthru
        _
      // Predicated region
      $region115: #{a_call__.7} parent=31 // pred_check
        %p2926 = pneg %p121
      $region116: #{a_call__.7} parent=31 // pred_check_branch
        %2928 = sbr.rel (%p2926) target = $region118
      $region117: #{a_call__.7} parent=31 // pred_region
        _
      $region118: #{a_call__.7} parent=31 // pred_fallthru
        _
      // Predicated region
      $region119: #{a_call__.7} parent=31 // pred_check
        %p2929 = pneg %p142
      $region120: #{a_call__.7} parent=31 // pred_check_branch
        %2931 = sbr.rel (%p2929) target = $region122
      $region121: #{a_call__.7} parent=31 // pred_region
        _
      $region122: #{a_call__.7} parent=31 // pred_fallthru
        _
      // Predicated region
      $region123: #{a_call__.7} parent=31 // pred_check
        %p2932 = pneg %p121
      $region124: #{a_call__.7} parent=31 // pred_check_branch
        %2934 = sbr.rel (%p2932) target = $region126
      $region125: #{a_call__.7} parent=31 // pred_region
        _
      $region126: #{a_call__.7} parent=31 // pred_fallthru
        _
      // Predicated region
      $region127: #{a_call__.7} parent=31 // pred_check
        %p2935 = pneg %p142
      $region128: #{a_call__.7} parent=31 // pred_check_branch
        %2937 = sbr.rel (%p2935) target = $region130
      $region129: #{a_call__.7} parent=31 // pred_region
        _
      $region130: #{a_call__.7} parent=31 // pred_fallthru
        _
    $region32: #{a_call__.7} parent=5 // pred_fallthru
      _
    %p2938 = scmp.le.s32.totalorder 2, %s14
    // Predicated region
    $region131: #{a_call__.7} parent=5 // pred_check
      %p2939 = pneg %p2938
    $region132: #{a_call__.7} parent=5 // pred_check_branch
      %2941 = sbr.rel (%p2939) target = $region134
    $region133: #{a_call__.7} parent=5 // pred_region
      %s2942 = ssub.s32 %s14, 2
      // Predicated region
      $region135: #{a_call__.7} parent=133 // pred_check
        %p2943 = pneg %p106
      $region136: #{a_call__.7} parent=133 // pred_check_branch
        %2945 = sbr.rel (%p2943) target = $region138
      $region137: #{a_call__.7} parent=133 // pred_region
        %s2946 = smul.u32 32, %s20
        %p2947 = scmp.lt.s32.totalorder %s2946, 95
        %s2948 = scalar_select %p2947, %s2946, 95
        %s2949 = smul.addr %s2948, 8
        %s2950 = scalar_lea.vmem %s5, %s2949
      $region138: #{a_call__.7} parent=133 // pred_fallthru
        _
    $region134: #{a_call__.7} parent=5 // pred_fallthru
      _
  $region6: #{a_call__.7} parent=0 // loop_footer
    %s18 = sadd.s32 1, %s14
  $region7: #{a_call__.7} parent=0 // loop_footer_branch
    %13 = sbr.rel target = $region3
  $region8: #{a_call__.7} parent=0 // loop_exit
    _
  %2951 = vsyncmov [#allocation4]
  %s2952 = vpop.sfrf %2951
  %p2953 = scmp.eq.s32.totalorder %s2952, 0
  %p2954 = pneg %p2953
  %2956 = shalt.err (%p2954)
  %s2957 = scalar_lea.sflag [#allocation4], 1
  %2958 = vsyncmov %s2957
  %s2959 = vpop.sfrf %2958
  %p2960 = scmp.eq.s32.totalorder %s2959, 0
  %p2961 = pneg %p2960
  %2963 = shalt.err (%p2961)

// kernel: a_call__.9
$region0: #{a_call__.9}
  #allocation0 [shape = 'u32[]', space=smem, size = 0x4, offset = 0x4, fixed_abs, tag = 'smem constant byte address 0x4 - core index']
  #allocation1 [shape = 'u32[144,128]{1,0:T(1,128)}', space=vmem, size = 0x12000, scoped, tag = 'internal scratch']
  %s0 = inlined_call_operand.vmem [shape: f32[768,80], index: 0, kind: input, shape index: {}]
  %s1 = inlined_call_operand.vmem [shape: f32[768,24], index: 1, kind: input, shape index: {}]
  %s2 = inlined_call_operand.vmem [shape: f32[768,24], index: 2, kind: input, shape index: {}]
  %s3 = inlined_call_operand.vmem [shape: f32[1,16], index: 3, kind: input, shape index: {}]
  %s4 = inlined_call_operand.vmem [shape: f32[1,16], index: 4, kind: input, shape index: {}]
  %s5 = inlined_call_operand.vmem [shape: f32[1,24], index: 5, kind: input, shape index: {}]
  %s6 = inlined_call_operand.vmem [shape: f32[1,24], index: 6, kind: input, shape index: {}]
  %s7 = inlined_call_operand.vmem [shape: f32[1,24], index: 7, kind: input, shape index: {}]
  %s8 = inlined_call_operand.vmem [shape: f32[1,24], index: 8, kind: input, shape index: {}]
  %s9 = inlined_call_operand.vmem [shape: f32[1,32], index: 9, kind: input, shape index: {}]
  %s10 = inlined_call_operand.vmem [shape: f32[1,32], index: 10, kind: input, shape index: {}]
  %s11 = inlined_call_operand.vmem [shape: bf16[64,32], index: 11, kind: input, shape index: {}]
  %s12 = inlined_call_operand.vmem [shape: f32[1,32], index: 12, kind: input, shape index: {}]
  %s13 = inlined_call_operand.vmem [shape: f32[768,32], index: 13, kind: output, shape index: {}]
  %s14 = sld [smem:[#allocation0]]
  $region85: #{a_call__.9} parent=0
    _
  %s16 = ssub.s32 1, %s14
  %s17 = scalar_select 0, %s16, %s14
  loop: start=0, step=1, limit=5
  $region2: #{a_call__.9} parent=0 // loop_pre_header
    _
  $region3: #{a_call__.9} parent=0 // loop_header
    %s19 = sphi 0, %s23
    %p20 = scmp.ge.s32.totalorder %s19, 5
    %s29 = sphi 0, %s31
    %s32 = sphi 0, %s29
    %s33 = sphi 0, %s32
    %s49 = sphi 0, %s33
    %s55 = sphi 0, %s57
    %s58 = sphi 0, %s55
    %s59 = sphi 0, %s58
    %s75 = sphi 0, %s59
    %s81 = sphi 0, %s83
    %s84 = sphi 0, %s81
    %s85 = sphi 0, %s84
    %s101 = sphi 0, %s85
    %s105 = sphi 0, %s105
    %s107 = sphi 0, %s105
    %s108 = sphi 0, %s107
    %s122 = sphi 0, %s108
    %s126 = sphi 0, %s126
    %s128 = sphi 0, %s126
    %s129 = sphi 0, %s128
    %s143 = sphi 0, %s129
    %s147 = sphi 0, %s147
    %s149 = sphi 0, %s147
    %s150 = sphi 0, %s149
    %s164 = sphi 0, %s150
    %s168 = sphi 0, %s168
    %s170 = sphi 0, %s168
    %s171 = sphi 0, %s170
    %s185 = sphi 0, %s171
    %s189 = sphi 0, %s189
    %s191 = sphi 0, %s189
    %s192 = sphi 0, %s191
    %s206 = sphi 0, %s192
    %s210 = sphi 0, %s210
    %s212 = sphi 0, %s210
    %s213 = sphi 0, %s212
    %s227 = sphi 0, %s213
    %s231 = sphi 0, %s231
    %s233 = sphi 0, %s231
    %s234 = sphi 0, %s233
    %s248 = sphi 0, %s234
    %s252 = sphi 0, %s252
    %s254 = sphi 0, %s252
    %s255 = sphi 0, %s254
    %s269 = sphi 0, %s255
    %s273 = sphi 0, %s273
    %s275 = sphi 0, %s273
    %s276 = sphi 0, %s275
    %s290 = sphi 0, %s276
    %s294 = sphi 0, %s294
    %s296 = sphi 0, %s294
    %s297 = sphi 0, %s296
    %s311 = sphi 0, %s297
    %s317 = sphi 0, %s319
    %s320 = sphi 0, %s317
    %s321 = sphi 0, %s320
    %s337 = sphi 0, %s321
  $region4: #{a_call__.9} parent=0 // loop_header_branch
    %22 = sbr.rel (%p20) target = $region8
  $region5: #{a_call__.9} parent=0 // loop_body
    %s24 = ssub.s32 %s19, 1
    %s25 = ssub.s32 %s19, 2
    %s26 = sadd.s32 %s19, 1
    %s27 = ssub.s32 %s19, %s26
    %p28 = scmp.eq.s32.totalorder %s27, 0
    %s30 = sadd.s32 %s29, 1
    %s31 = scalar_select %p28, %s29, %s30
    %p34 = pneg %p28
    %p35 = scmp.eq.s32.totalorder %s19, 2
    %p36 = por %p34, %p35
    %p37 = scmp.ne.s32.totalorder %s29, %s32
    %p38 = scmp.eq.s32.totalorder %s19, 0
    %p39 = por %p37, %p38
    %p40 = scmp.ne.s32.totalorder %s29, %s32
    %p41 = scmp.eq.s32.totalorder %s24, 2
    %p42 = por %p40, %p41
    %p43 = scmp.ne.s32.totalorder %s32, %s33
    %p44 = scmp.eq.s32.totalorder %s24, 0
    %p45 = por %p43, %p44
    %p46 = scmp.ne.s32.totalorder %s32, %s33
    %p47 = scmp.eq.s32.totalorder %s25, 2
    %p48 = por %p46, %p47
    %p50 = scmp.ne.s32.totalorder %s33, %s49
    %p51 = scmp.eq.s32.totalorder %s25, 0
    %p52 = por %p50, %p51
    %s53 = ssub.s32 %s19, %s26
    %p54 = scmp.eq.s32.totalorder %s53, 0
    %s56 = sadd.s32 %s55, 1
    %s57 = scalar_select %p54, %s55, %s56
    %p60 = pneg %p54
    %p61 = scmp.eq.s32.totalorder %s19, 2
    %p62 = por %p60, %p61
    %p63 = scmp.ne.s32.totalorder %s55, %s58
    %p64 = scmp.eq.s32.totalorder %s19, 0
    %p65 = por %p63, %p64
    %p66 = scmp.ne.s32.totalorder %s55, %s58
    %p67 = scmp.eq.s32.totalorder %s24, 2
    %p68 = por %p66, %p67
    %p69 = scmp.ne.s32.totalorder %s58, %s59
    %p70 = scmp.eq.s32.totalorder %s24, 0
    %p71 = por %p69, %p70
    %p72 = scmp.ne.s32.totalorder %s58, %s59
    %p73 = scmp.eq.s32.totalorder %s25, 2
    %p74 = por %p72, %p73
    %p76 = scmp.ne.s32.totalorder %s59, %s75
    %p77 = scmp.eq.s32.totalorder %s25, 0
    %p78 = por %p76, %p77
    %s79 = ssub.s32 %s19, %s26
    %p80 = scmp.eq.s32.totalorder %s79, 0
    %s82 = sadd.s32 %s81, 1
    %s83 = scalar_select %p80, %s81, %s82
    %p86 = pneg %p80
    %p87 = scmp.eq.s32.totalorder %s19, 2
    %p88 = por %p86, %p87
    %p89 = scmp.ne.s32.totalorder %s81, %s84
    %p90 = scmp.eq.s32.totalorder %s19, 0
    %p91 = por %p89, %p90
    %p92 = scmp.ne.s32.totalorder %s81, %s84
    %p93 = scmp.eq.s32.totalorder %s24, 2
    %p94 = por %p92, %p93
    %p95 = scmp.ne.s32.totalorder %s84, %s85
    %p96 = scmp.eq.s32.totalorder %s24, 0
    %p97 = por %p95, %p96
    %p98 = scmp.ne.s32.totalorder %s84, %s85
    %p99 = scmp.eq.s32.totalorder %s25, 2
    %p100 = por %p98, %p99
    %p102 = scmp.ne.s32.totalorder %s85, %s101
    %p103 = scmp.eq.s32.totalorder %s25, 0
    %p104 = por %p102, %p103
    %s106 = sadd.s32 %s105, 1
    %p109 = scmp.eq.s32.totalorder %s19, 2
    %p110 = scmp.ne.s32.totalorder %s105, %s107
    %p111 = scmp.eq.s32.totalorder %s19, 0
    %p112 = por %p110, %p111
    %p113 = scmp.ne.s32.totalorder %s105, %s107
    %p114 = scmp.eq.s32.totalorder %s24, 2
    %p115 = por %p113, %p114
    %p116 = scmp.ne.s32.totalorder %s107, %s108
    %p117 = scmp.eq.s32.totalorder %s24, 0
    %p118 = por %p116, %p117
    %p119 = scmp.ne.s32.totalorder %s107, %s108
    %p120 = scmp.eq.s32.totalorder %s25, 2
    %p121 = por %p119, %p120
    %p123 = scmp.ne.s32.totalorder %s108, %s122
    %p124 = scmp.eq.s32.totalorder %s25, 0
    %p125 = por %p123, %p124
    %s127 = sadd.s32 %s126, 1
    %p130 = scmp.eq.s32.totalorder %s19, 2
    %p131 = scmp.ne.s32.totalorder %s126, %s128
    %p132 = scmp.eq.s32.totalorder %s19, 0
    %p133 = por %p131, %p132
    %p134 = scmp.ne.s32.totalorder %s126, %s128
    %p135 = scmp.eq.s32.totalorder %s24, 2
    %p136 = por %p134, %p135
    %p137 = scmp.ne.s32.totalorder %s128, %s129
    %p138 = scmp.eq.s32.totalorder %s24, 0
    %p139 = por %p137, %p138
    %p140 = scmp.ne.s32.totalorder %s128, %s129
    %p141 = scmp.eq.s32.totalorder %s25, 2
    %p142 = por %p140, %p141
    %p144 = scmp.ne.s32.totalorder %s129, %s143
    %p145 = scmp.eq.s32.totalorder %s25, 0
    %p146 = por %p144, %p145
    %s148 = sadd.s32 %s147, 1
    %p151 = scmp.eq.s32.totalorder %s19, 2
    %p152 = scmp.ne.s32.totalorder %s147, %s149
    %p153 = scmp.eq.s32.totalorder %s19, 0
    %p154 = por %p152, %p153
    %p155 = scmp.ne.s32.totalorder %s147, %s149
    %p156 = scmp.eq.s32.totalorder %s24, 2
    %p157 = por %p155, %p156
    %p158 = scmp.ne.s32.totalorder %s149, %s150
    %p159 = scmp.eq.s32.totalorder %s24, 0
    %p160 = por %p158, %p159
    %p161 = scmp.ne.s32.totalorder %s149, %s150
    %p162 = scmp.eq.s32.totalorder %s25, 2
    %p163 = por %p161, %p162
    %p165 = scmp.ne.s32.totalorder %s150, %s164
    %p166 = scmp.eq.s32.totalorder %s25, 0
    %p167 = por %p165, %p166
    %s169 = sadd.s32 %s168, 1
    %p172 = scmp.eq.s32.totalorder %s19, 2
    %p173 = scmp.ne.s32.totalorder %s168, %s170
    %p174 = scmp.eq.s32.totalorder %s19, 0
    %p175 = por %p173, %p174
    %p176 = scmp.ne.s32.totalorder %s168, %s170
    %p177 = scmp.eq.s32.totalorder %s24, 2
    %p178 = por %p176, %p177
    %p179 = scmp.ne.s32.totalorder %s170, %s171
    %p180 = scmp.eq.s32.totalorder %s24, 0
    %p181 = por %p179, %p180
    %p182 = scmp.ne.s32.totalorder %s170, %s171
    %p183 = scmp.eq.s32.totalorder %s25, 2
    %p184 = por %p182, %p183
    %p186 = scmp.ne.s32.totalorder %s171, %s185
    %p187 = scmp.eq.s32.totalorder %s25, 0
    %p188 = por %p186, %p187
    %s190 = sadd.s32 %s189, 1
    %p193 = scmp.eq.s32.totalorder %s19, 2
    %p194 = scmp.ne.s32.totalorder %s189, %s191
    %p195 = scmp.eq.s32.totalorder %s19, 0
    %p196 = por %p194, %p195
    %p197 = scmp.ne.s32.totalorder %s189, %s191
    %p198 = scmp.eq.s32.totalorder %s24, 2
    %p199 = por %p197, %p198
    %p200 = scmp.ne.s32.totalorder %s191, %s192
    %p201 = scmp.eq.s32.totalorder %s24, 0
    %p202 = por %p200, %p201
    %p203 = scmp.ne.s32.totalorder %s191, %s192
    %p204 = scmp.eq.s32.totalorder %s25, 2
    %p205 = por %p203, %p204
    %p207 = scmp.ne.s32.totalorder %s192, %s206
    %p208 = scmp.eq.s32.totalorder %s25, 0
    %p209 = por %p207, %p208
    %s211 = sadd.s32 %s210, 1
    %p214 = scmp.eq.s32.totalorder %s19, 2
    %p215 = scmp.ne.s32.totalorder %s210, %s212
    %p216 = scmp.eq.s32.totalorder %s19, 0
    %p217 = por %p215, %p216
    %p218 = scmp.ne.s32.totalorder %s210, %s212
    %p219 = scmp.eq.s32.totalorder %s24, 2
    %p220 = por %p218, %p219
    %p221 = scmp.ne.s32.totalorder %s212, %s213
    %p222 = scmp.eq.s32.totalorder %s24, 0
    %p223 = por %p221, %p222
    %p224 = scmp.ne.s32.totalorder %s212, %s213
    %p225 = scmp.eq.s32.totalorder %s25, 2
    %p226 = por %p224, %p225
    %p228 = scmp.ne.s32.totalorder %s213, %s227
    %p229 = scmp.eq.s32.totalorder %s25, 0
    %p230 = por %p228, %p229
    %s232 = sadd.s32 %s231, 1
    %p235 = scmp.eq.s32.totalorder %s19, 2
    %p236 = scmp.ne.s32.totalorder %s231, %s233
    %p237 = scmp.eq.s32.totalorder %s19, 0
    %p238 = por %p236, %p237
    %p239 = scmp.ne.s32.totalorder %s231, %s233
    %p240 = scmp.eq.s32.totalorder %s24, 2
    %p241 = por %p239, %p240
    %p242 = scmp.ne.s32.totalorder %s233, %s234
    %p243 = scmp.eq.s32.totalorder %s24, 0
    %p244 = por %p242, %p243
    %p245 = scmp.ne.s32.totalorder %s233, %s234
    %p246 = scmp.eq.s32.totalorder %s25, 2
    %p247 = por %p245, %p246
    %p249 = scmp.ne.s32.totalorder %s234, %s248
    %p250 = scmp.eq.s32.totalorder %s25, 0
    %p251 = por %p249, %p250
    %s253 = sadd.s32 %s252, 1
    %p256 = scmp.eq.s32.totalorder %s19, 2
    %p257 = scmp.ne.s32.totalorder %s252, %s254
    %p258 = scmp.eq.s32.totalorder %s19, 0
    %p259 = por %p257, %p258
    %p260 = scmp.ne.s32.totalorder %s252, %s254
    %p261 = scmp.eq.s32.totalorder %s24, 2
    %p262 = por %p260, %p261
    %p263 = scmp.ne.s32.totalorder %s254, %s255
    %p264 = scmp.eq.s32.totalorder %s24, 0
    %p265 = por %p263, %p264
    %p266 = scmp.ne.s32.totalorder %s254, %s255
    %p267 = scmp.eq.s32.totalorder %s25, 2
    %p268 = por %p266, %p267
    %p270 = scmp.ne.s32.totalorder %s255, %s269
    %p271 = scmp.eq.s32.totalorder %s25, 0
    %p272 = por %p270, %p271
    %s274 = sadd.s32 %s273, 1
    %p277 = scmp.eq.s32.totalorder %s19, 2
    %p278 = scmp.ne.s32.totalorder %s273, %s275
    %p279 = scmp.eq.s32.totalorder %s19, 0
    %p280 = por %p278, %p279
    %p281 = scmp.ne.s32.totalorder %s273, %s275
    %p282 = scmp.eq.s32.totalorder %s24, 2
    %p283 = por %p281, %p282
    %p284 = scmp.ne.s32.totalorder %s275, %s276
    %p285 = scmp.eq.s32.totalorder %s24, 0
    %p286 = por %p284, %p285
    %p287 = scmp.ne.s32.totalorder %s275, %s276
    %p288 = scmp.eq.s32.totalorder %s25, 2
    %p289 = por %p287, %p288
    %p291 = scmp.ne.s32.totalorder %s276, %s290
    %p292 = scmp.eq.s32.totalorder %s25, 0
    %p293 = por %p291, %p292
    %s295 = sadd.s32 %s294, 1
    %p298 = scmp.eq.s32.totalorder %s19, 2
    %p299 = scmp.ne.s32.totalorder %s294, %s296
    %p300 = scmp.eq.s32.totalorder %s19, 0
    %p301 = por %p299, %p300
    %p302 = scmp.ne.s32.totalorder %s294, %s296
    %p303 = scmp.eq.s32.totalorder %s24, 2
    %p304 = por %p302, %p303
    %p305 = scmp.ne.s32.totalorder %s296, %s297
    %p306 = scmp.eq.s32.totalorder %s24, 0
    %p307 = por %p305, %p306
    %p308 = scmp.ne.s32.totalorder %s296, %s297
    %p309 = scmp.eq.s32.totalorder %s25, 2
    %p310 = por %p308, %p309
    %p312 = scmp.ne.s32.totalorder %s297, %s311
    %p313 = scmp.eq.s32.totalorder %s25, 0
    %p314 = por %p312, %p313
    %s315 = ssub.s32 %s19, %s26
    %p316 = scmp.eq.s32.totalorder %s315, 0
    %s318 = sadd.s32 %s317, 1
    %s319 = scalar_select %p316, %s317, %s318
    %p322 = pneg %p316
    %p323 = scmp.eq.s32.totalorder %s19, 2
    %p324 = por %p322, %p323
    %p325 = scmp.ne.s32.totalorder %s317, %s320
    %p326 = scmp.eq.s32.totalorder %s19, 0
    %p327 = por %p325, %p326
    %p328 = scmp.ne.s32.totalorder %s317, %s320
    %p329 = scmp.eq.s32.totalorder %s24, 2
    %p330 = por %p328, %p329
    %p331 = scmp.ne.s32.totalorder %s320, %s321
    %p332 = scmp.eq.s32.totalorder %s24, 0
    %p333 = por %p331, %p332
    %p334 = scmp.ne.s32.totalorder %s320, %s321
    %p335 = scmp.eq.s32.totalorder %s25, 2
    %p336 = por %p334, %p335
    %p338 = scmp.ne.s32.totalorder %s321, %s337
    %p339 = scmp.eq.s32.totalorder %s25, 0
    %p340 = por %p338, %p339
    %p341 = scmp.le.s32.totalorder 1, %s19
    %p342 = scmp.lt.s32.totalorder %s19, 4
    %p343 = pnand %p341, %p342
    %p344 = pneg %p343
    // Predicated region
    $region9: #{a_call__.9} parent=5 // pred_check
      _
    $region10: #{a_call__.9} parent=5 // pred_check_branch
      %346 = sbr.rel (%p343) target = $region12
    $region11: #{a_call__.9} parent=5 // pred_region
      %s347 = ssub.s32 %s19, 1
      // Predicated region
      $region13: #{a_call__.9} parent=11 // pred_check
        %p348 = pneg %p118
      $region14: #{a_call__.9} parent=11 // pred_check_branch
        %350 = sbr.rel (%p348) target = $region16
      $region15: #{a_call__.9} parent=11 // pred_region
        _
      $region16: #{a_call__.9} parent=11 // pred_fallthru
        _
      // Predicated region
      $region17: #{a_call__.9} parent=11 // pred_check
        %p351 = pneg %p139
      $region18: #{a_call__.9} parent=11 // pred_check_branch
        %353 = sbr.rel (%p351) target = $region20
      $region19: #{a_call__.9} parent=11 // pred_region
        _
      $region20: #{a_call__.9} parent=11 // pred_fallthru
        _
      // Predicated region
      $region21: #{a_call__.9} parent=11 // pred_check
        %p354 = pneg %p160
      $region22: #{a_call__.9} parent=11 // pred_check_branch
        %356 = sbr.rel (%p354) target = $region24
      $region23: #{a_call__.9} parent=11 // pred_region
        _
      $region24: #{a_call__.9} parent=11 // pred_fallthru
        _
      // Predicated region
      $region25: #{a_call__.9} parent=11 // pred_check
        %p357 = pneg %p181
      $region26: #{a_call__.9} parent=11 // pred_check_branch
        %359 = sbr.rel (%p357) target = $region28
      $region27: #{a_call__.9} parent=11 // pred_region
        _
      $region28: #{a_call__.9} parent=11 // pred_fallthru
        _
      // Predicated region
      $region29: #{a_call__.9} parent=11 // pred_check
        %p360 = pneg %p202
      $region30: #{a_call__.9} parent=11 // pred_check_branch
        %362 = sbr.rel (%p360) target = $region32
      $region31: #{a_call__.9} parent=11 // pred_region
        _
      $region32: #{a_call__.9} parent=11 // pred_fallthru
        _
      // Predicated region
      $region33: #{a_call__.9} parent=11 // pred_check
        %p363 = pneg %p223
      $region34: #{a_call__.9} parent=11 // pred_check_branch
        %365 = sbr.rel (%p363) target = $region36
      $region35: #{a_call__.9} parent=11 // pred_region
        _
      $region36: #{a_call__.9} parent=11 // pred_fallthru
        _
      // Predicated region
      $region37: #{a_call__.9} parent=11 // pred_check
        %p366 = pneg %p244
      $region38: #{a_call__.9} parent=11 // pred_check_branch
        %368 = sbr.rel (%p366) target = $region40
      $region39: #{a_call__.9} parent=11 // pred_region
        _
      $region40: #{a_call__.9} parent=11 // pred_fallthru
        _
      // Predicated region
      $region41: #{a_call__.9} parent=11 // pred_check
        %p369 = pneg %p265
      $region42: #{a_call__.9} parent=11 // pred_check_branch
        %371 = sbr.rel (%p369) target = $region44
      $region43: #{a_call__.9} parent=11 // pred_region
        _
      $region44: #{a_call__.9} parent=11 // pred_fallthru
        _
      // Predicated region
      $region45: #{a_call__.9} parent=11 // pred_check
        %p372 = pneg %p286
      $region46: #{a_call__.9} parent=11 // pred_check_branch
        %374 = sbr.rel (%p372) target = $region48
      $region47: #{a_call__.9} parent=11 // pred_region
        _
      $region48: #{a_call__.9} parent=11 // pred_fallthru
        _
      // Predicated region
      $region49: #{a_call__.9} parent=11 // pred_check
        %p375 = pneg %p307
      $region50: #{a_call__.9} parent=11 // pred_check_branch
        %377 = sbr.rel (%p375) target = $region52
      $region51: #{a_call__.9} parent=11 // pred_region
        _
      $region52: #{a_call__.9} parent=11 // pred_fallthru
        _
    $region12: #{a_call__.9} parent=5 // pred_fallthru
      _
    %p378 = scmp.lt.s32.totalorder %s19, 3
    // Predicated region
    $region53: #{a_call__.9} parent=5 // pred_check
      %p379 = pneg %p378
    $region54: #{a_call__.9} parent=5 // pred_check_branch
      %381 = sbr.rel (%p379) target = $region56
    $region55: #{a_call__.9} parent=5 // pred_region
      // Predicated region
      $region57: #{a_call__.9} parent=55 // pred_check
        %p382 = pneg %p39
      $region58: #{a_call__.9} parent=55 // pred_check_branch
        %384 = sbr.rel (%p382) target = $region60
      $region59: #{a_call__.9} parent=55 // pred_region
        %s385 = smul.u32 32, %s19
        %p386 = scmp.lt.s32.totalorder %s385, 95
        %s387 = scalar_select %p386, %s385, 95
        %s388 = smul.addr %s387, 8
        %s389 = scalar_lea.vmem %s0, %s388
        %s390 = smul.u32 32, %s19
      $region60: #{a_call__.9} parent=55 // pred_fallthru
        _
      // Predicated region
      $region61: #{a_call__.9} parent=55 // pred_check
        %p391 = pneg %p65
      $region62: #{a_call__.9} parent=55 // pred_check_branch
        %393 = sbr.rel (%p391) target = $region64
      $region63: #{a_call__.9} parent=55 // pred_region
        %s394 = smul.u32 32, %s19
        %p395 = scmp.lt.s32.totalorder %s394, 95
        %s396 = scalar_select %p395, %s394, 95
        %s397 = smul.addr %s396, 8
        %s398 = scalar_lea.vmem %s1, %s397
        %s399 = smul.u32 32, %s19
      $region64: #{a_call__.9} parent=55 // pred_fallthru
        _
      // Predicated region
      $region65: #{a_call__.9} parent=55 // pred_check
        %p400 = pneg %p91
      $region66: #{a_call__.9} parent=55 // pred_check_branch
        %402 = sbr.rel (%p400) target = $region68
      $region67: #{a_call__.9} parent=55 // pred_region
        %s403 = smul.u32 32, %s19
        %p404 = scmp.lt.s32.totalorder %s403, 95
        %s405 = scalar_select %p404, %s403, 95
        %s406 = smul.addr %s405, 8
        %s407 = scalar_lea.vmem %s2, %s406
        %s408 = smul.u32 32, %s19
      $region68: #{a_call__.9} parent=55 // pred_fallthru
        _
    $region56: #{a_call__.9} parent=5 // pred_fallthru
      _
    %p409 = scmp.le.s32.totalorder 1, %s19
    %p410 = scmp.lt.s32.totalorder %s19, 4
    %p411 = pnand %p409, %p410
    %p412 = pneg %p411
    // Predicated region
    $region69: #{a_call__.9} parent=5 // pred_check
      _
    $region70: #{a_call__.9} parent=5 // pred_check_branch
      %414 = sbr.rel (%p411) target = $region72
    $region71: #{a_call__.9} parent=5 // pred_region
      %s415 = ssub.s32 %s19, 1
      %s416 = smul.u32 32, %s24
      %p417 = scmp.lt.s32.totalorder %s416, 95
      %s418 = scalar_select %p417, %s416, 95
      %s419 = smul.addr %s418, 8
      %s420 = scalar_lea.vmem %s0, %s419
      %p421 = pneg %p45
      %p422 = pneg %p42
      %s423 = smul.u32 32, %s24
      %p424 = scmp.lt.s32.totalorder %s423, 95
      %s425 = scalar_select %p424, %s423, 95
      %s426 = smul.addr %s425, 8
      %s427 = scalar_lea.vmem %s1, %s426
      %p428 = pneg %p71
      %p429 = pneg %p68
      %s430 = smul.u32 32, %s24
      %p431 = scmp.lt.s32.totalorder %s430, 95
      %s432 = scalar_select %p431, %s430, 95
      %s433 = smul.addr %s432, 8
      %s434 = scalar_lea.vmem %s2, %s433
      %p435 = pneg %p97
      %p436 = pneg %p94
      %p437 = pneg %p118
      %p438 = pneg %p115
      %p439 = pneg %p139
      %p440 = pneg %p136
      %p441 = pneg %p160
      %p442 = pneg %p157
      %p443 = pneg %p181
      %p444 = pneg %p178
      %p445 = pneg %p202
      %p446 = pneg %p199
      %p447 = pneg %p223
      %p448 = pneg %p220
      %p449 = pneg %p244
      %p450 = pneg %p241
      %p451 = pneg %p265
      %p452 = pneg %p262
      %p453 = pneg %p286
      %p454 = pneg %p283
      %p455 = pneg %p307
      %p456 = pneg %p304
      %p457 = pneg %p333
      %p458 = pneg %p330
      %s459 = smul.u32 32, %s24
      %p460 = scmp.lt.s32.totalorder %s459, 95
      %s461 = scalar_select %p460, %s459, 95
      %s462 = smul.addr %s461, 8
      %s463 = scalar_lea.vmem %s13, %s462
      %s464 = smul.u32 32, %s24
      %p465 = scmp.lt.s32.totalorder %s464, 95
      %s466 = scalar_select %p465, %s464, 95
      %s467 = smul.addr %s466, 8
      %s468 = scalar_lea.vmem %s0, %s467
      %s469 = smul.u32 32, %s24
      %s470 = smul.u32 32, %s24
      %p471 = scmp.lt.s32.totalorder %s470, 95
      %s472 = scalar_select %p471, %s470, 95
      %s473 = smul.addr %s472, 8
      %s474 = scalar_lea.vmem %s1, %s473
      %s475 = smul.u32 32, %s24
      %s476 = smul.u32 32, %s24
      %p477 = scmp.lt.s32.totalorder %s476, 95
      %s478 = scalar_select %p477, %s476, 95
      %s479 = smul.addr %s478, 8
      %s480 = scalar_lea.vmem %s2, %s479
      %s481 = smul.u32 32, %s24
      %s482 = smul.u32 32, %s24
      %p483 = scmp.lt.s32.totalorder %s482, 95
      %s484 = scalar_select %p483, %s482, 95
      %s485 = smul.addr %s484, 8
      %s486 = scalar_lea.vmem %s13, %s485
      %s487 = smul.u32 32, %s24
      %v489 = vld [vmem:[%s468] sm:$0xff]
      %v490 = vld [vmem:[%s468 + $0x8] sm:$0xff]
      %v491 = vld [vmem:[%s468 + $0x10] sm:$0xff]
      %v492 = vld [vmem:[%s468 + $0x18] sm:$0xff]
      %v493 = vld [vmem:[%s468 + $0x20] sm:$0xff]
      %v494 = vld [vmem:[%s468 + $0x28] sm:$0xff]
      %v495 = vld [vmem:[%s468 + $0x30] sm:$0xff]
      %v496 = vld [vmem:[%s468 + $0x38] sm:$0xff]
      %v497 = vld [vmem:[%s468 + $0x40] sm:$0xff]
      %v498 = vld [vmem:[%s468 + $0x48] sm:$0xff]
      %v499 = vld [vmem:[%s468 + $0x50] sm:$0xff]
      %v500 = vld [vmem:[%s468 + $0x58] sm:$0xff]
      %v501 = vld [vmem:[%s468 + $0x60] sm:$0xff]
      %v502 = vld [vmem:[%s468 + $0x68] sm:$0xff]
      %v503 = vld [vmem:[%s468 + $0x70] sm:$0xff]
      %v504 = vld [vmem:[%s468 + $0x78] sm:$0xff]
      %v505 = vld [vmem:[%s468 + $0x80] sm:$0xff]
      %v506 = vld [vmem:[%s468 + $0x88] sm:$0xff]
      %v507 = vld [vmem:[%s468 + $0x90] sm:$0xff]
      %v508 = vld [vmem:[%s468 + $0x98] sm:$0xff]
      %v509 = vld [vmem:[%s468 + $0xa0] sm:$0xff]
      %v510 = vld [vmem:[%s468 + $0xa8] sm:$0xff]
      %v511 = vld [vmem:[%s468 + $0xb0] sm:$0xff]
      %v512 = vld [vmem:[%s468 + $0xb8] sm:$0xff]
      %v513 = vld [vmem:[%s468 + $0xc0] sm:$0xff]
      %v514 = vld [vmem:[%s468 + $0xc8] sm:$0xff]
      %v515 = vld [vmem:[%s468 + $0xd0] sm:$0xff]
      %v516 = vld [vmem:[%s468 + $0xd8] sm:$0xff]
      %v517 = vld [vmem:[%s468 + $0xe0] sm:$0xff]
      %v518 = vld [vmem:[%s468 + $0xe8] sm:$0xff]
      %v519 = vld [vmem:[%s468 + $0xf0] sm:$0xff]
      %v520 = vld [vmem:[%s468 + $0xf8] sm:$0xff]
      %v521 = vld [vmem:[%s3] sm:$0x1]
      %v523 = vlaneseq
      %v524 = vshrl.u32 %v523, 7
      %v525 = vsub.s32 0, %v524
      %v526 = vrot.slane %v521, %v525
      %v528 = vmul.f32 %v489, %v526
      %v529 = vmul.f32 %v490, %v526
      %v530 = vmul.f32 %v491, %v526
      %v531 = vmul.f32 %v492, %v526
      %v532 = vmul.f32 %v493, %v526
      %v533 = vmul.f32 %v494, %v526
      %v534 = vmul.f32 %v495, %v526
      %v535 = vmul.f32 %v496, %v526
      %v536 = vmul.f32 %v497, %v526
      %v537 = vmul.f32 %v498, %v526
      %v538 = vmul.f32 %v499, %v526
      %v539 = vmul.f32 %v500, %v526
      %v540 = vmul.f32 %v501, %v526
      %v541 = vmul.f32 %v502, %v526
      %v542 = vmul.f32 %v503, %v526
      %v543 = vmul.f32 %v504, %v526
      %v544 = vmul.f32 %v505, %v526
      %v545 = vmul.f32 %v506, %v526
      %v546 = vmul.f32 %v507, %v526
      %v547 = vmul.f32 %v508, %v526
      %v548 = vmul.f32 %v509, %v526
      %v549 = vmul.f32 %v510, %v526
      %v550 = vmul.f32 %v511, %v526
      %v551 = vmul.f32 %v512, %v526
      %v552 = vmul.f32 %v513, %v526
      %v553 = vmul.f32 %v514, %v526
      %v554 = vmul.f32 %v515, %v526
      %v555 = vmul.f32 %v516, %v526
      %v556 = vmul.f32 %v517, %v526
      %v557 = vmul.f32 %v518, %v526
      %v558 = vmul.f32 %v519, %v526
      %v559 = vmul.f32 %v520, %v526
      %v560 = vld [vmem:[%s4] sm:$0x1]
      %v562 = vlaneseq
      %v563 = vshrl.u32 %v562, 7
      %v564 = vsub.s32 0, %v563
      %v565 = vrot.slane %v560, %v564
      %v567 = vadd.f32 %v528, %v565
      %v568 = vadd.f32 %v529, %v565
      %v569 = vadd.f32 %v530, %v565
      %v570 = vadd.f32 %v531, %v565
      %v571 = vadd.f32 %v532, %v565
      %v572 = vadd.f32 %v533, %v565
      %v573 = vadd.f32 %v534, %v565
      %v574 = vadd.f32 %v535, %v565
      %v575 = vadd.f32 %v536, %v565
      %v576 = vadd.f32 %v537, %v565
      %v577 = vadd.f32 %v538, %v565
      %v578 = vadd.f32 %v539, %v565
      %v579 = vadd.f32 %v540, %v565
      %v580 = vadd.f32 %v541, %v565
      %v581 = vadd.f32 %v542, %v565
      %v582 = vadd.f32 %v543, %v565
      %v583 = vadd.f32 %v544, %v565
      %v584 = vadd.f32 %v545, %v565
      %v585 = vadd.f32 %v546, %v565
      %v586 = vadd.f32 %v547, %v565
      %v587 = vadd.f32 %v548, %v565
      %v588 = vadd.f32 %v549, %v565
      %v589 = vadd.f32 %v550, %v565
      %v590 = vadd.f32 %v551, %v565
      %v591 = vadd.f32 %v552, %v565
      %v592 = vadd.f32 %v553, %v565
      %v593 = vadd.f32 %v554, %v565
      %v594 = vadd.f32 %v555, %v565
      %v595 = vadd.f32 %v556, %v565
      %v596 = vadd.f32 %v557, %v565
      %v597 = vadd.f32 %v558, %v565
      %v598 = vadd.f32 %v559, %v565
      %v599 = vmax.f32 %v567, 0.0
      %v600 = vmax.f32 %v568, 0.0
      %v601 = vmax.f32 %v569, 0.0
      %v602 = vmax.f32 %v570, 0.0
      %v603 = vmax.f32 %v571, 0.0
      %v604 = vmax.f32 %v572, 0.0
      %v605 = vmax.f32 %v573, 0.0
      %v606 = vmax.f32 %v574, 0.0
      %v607 = vmax.f32 %v575, 0.0
      %v608 = vmax.f32 %v576, 0.0
      %v609 = vmax.f32 %v577, 0.0
      %v610 = vmax.f32 %v578, 0.0
      %v611 = vmax.f32 %v579, 0.0
      %v612 = vmax.f32 %v580, 0.0
      %v613 = vmax.f32 %v581, 0.0
      %v614 = vmax.f32 %v582, 0.0
      %v615 = vmax.f32 %v583, 0.0
      %v616 = vmax.f32 %v584, 0.0
      %v617 = vmax.f32 %v585, 0.0
      %v618 = vmax.f32 %v586, 0.0
      %v619 = vmax.f32 %v587, 0.0
      %v620 = vmax.f32 %v588, 0.0
      %v621 = vmax.f32 %v589, 0.0
      %v622 = vmax.f32 %v590, 0.0
      %v623 = vmax.f32 %v591, 0.0
      %v624 = vmax.f32 %v592, 0.0
      %v625 = vmax.f32 %v593, 0.0
      %v626 = vmax.f32 %v594, 0.0
      %v627 = vmax.f32 %v595, 0.0
      %v628 = vmax.f32 %v596, 0.0
      %v629 = vmax.f32 %v597, 0.0
      %v630 = vmax.f32 %v598, 0.0
      %v631 = vld [vmem:[%s474] sm:$0xff]
      %v632 = vld [vmem:[%s474 + $0x8] sm:$0xff]
      %v633 = vld [vmem:[%s474 + $0x10] sm:$0xff]
      %v634 = vld [vmem:[%s474 + $0x18] sm:$0xff]
      %v635 = vld [vmem:[%s474 + $0x20] sm:$0xff]
      %v636 = vld [vmem:[%s474 + $0x28] sm:$0xff]
      %v637 = vld [vmem:[%s474 + $0x30] sm:$0xff]
      %v638 = vld [vmem:[%s474 + $0x38] sm:$0xff]
      %v639 = vld [vmem:[%s474 + $0x40] sm:$0xff]
      %v640 = vld [vmem:[%s474 + $0x48] sm:$0xff]
      %v641 = vld [vmem:[%s474 + $0x50] sm:$0xff]
      %v642 = vld [vmem:[%s474 + $0x58] sm:$0xff]
      %v643 = vld [vmem:[%s474 + $0x60] sm:$0xff]
      %v644 = vld [vmem:[%s474 + $0x68] sm:$0xff]
      %v645 = vld [vmem:[%s474 + $0x70] sm:$0xff]
      %v646 = vld [vmem:[%s474 + $0x78] sm:$0xff]
      %v647 = vld [vmem:[%s474 + $0x80] sm:$0xff]
      %v648 = vld [vmem:[%s474 + $0x88] sm:$0xff]
      %v649 = vld [vmem:[%s474 + $0x90] sm:$0xff]
      %v650 = vld [vmem:[%s474 + $0x98] sm:$0xff]
      %v651 = vld [vmem:[%s474 + $0xa0] sm:$0xff]
      %v652 = vld [vmem:[%s474 + $0xa8] sm:$0xff]
      %v653 = vld [vmem:[%s474 + $0xb0] sm:$0xff]
      %v654 = vld [vmem:[%s474 + $0xb8] sm:$0xff]
      %v655 = vld [vmem:[%s474 + $0xc0] sm:$0xff]
      %v656 = vld [vmem:[%s474 + $0xc8] sm:$0xff]
      %v657 = vld [vmem:[%s474 + $0xd0] sm:$0xff]
      %v658 = vld [vmem:[%s474 + $0xd8] sm:$0xff]
      %v659 = vld [vmem:[%s474 + $0xe0] sm:$0xff]
      %v660 = vld [vmem:[%s474 + $0xe8] sm:$0xff]
      %v661 = vld [vmem:[%s474 + $0xf0] sm:$0xff]
      %v662 = vld [vmem:[%s474 + $0xf8] sm:$0xff]
      %v663 = vld [vmem:[%s5] sm:$0x1]
      %v665 = vlaneseq
      %v666 = vshrl.u32 %v665, 7
      %v667 = vsub.s32 0, %v666
      %v668 = vrot.slane %v663, %v667
      %v670 = vmul.f32 %v631, %v668
      %v671 = vmul.f32 %v632, %v668
      %v672 = vmul.f32 %v633, %v668
      %v673 = vmul.f32 %v634, %v668
      %v674 = vmul.f32 %v635, %v668
      %v675 = vmul.f32 %v636, %v668
      %v676 = vmul.f32 %v637, %v668
      %v677 = vmul.f32 %v638, %v668
      %v678 = vmul.f32 %v639, %v668
      %v679 = vmul.f32 %v640, %v668
      %v680 = vmul.f32 %v641, %v668
      %v681 = vmul.f32 %v642, %v668
      %v682 = vmul.f32 %v643, %v668
      %v683 = vmul.f32 %v644, %v668
      %v684 = vmul.f32 %v645, %v668
      %v685 = vmul.f32 %v646, %v668
      %v686 = vmul.f32 %v647, %v668
      %v687 = vmul.f32 %v648, %v668
      %v688 = vmul.f32 %v649, %v668
      %v689 = vmul.f32 %v650, %v668
      %v690 = vmul.f32 %v651, %v668
      %v691 = vmul.f32 %v652, %v668
      %v692 = vmul.f32 %v653, %v668
      %v693 = vmul.f32 %v654, %v668
      %v694 = vmul.f32 %v655, %v668
      %v695 = vmul.f32 %v656, %v668
      %v696 = vmul.f32 %v657, %v668
      %v697 = vmul.f32 %v658, %v668
      %v698 = vmul.f32 %v659, %v668
      %v699 = vmul.f32 %v660, %v668
      %v700 = vmul.f32 %v661, %v668
      %v701 = vmul.f32 %v662, %v668
      %v702 = vld [vmem:[%s6] sm:$0x1]
      %v704 = vlaneseq
      %v705 = vshrl.u32 %v704, 7
      %v706 = vsub.s32 0, %v705
      %v707 = vrot.slane %v702, %v706
      %v709 = vadd.f32 %v670, %v707
      %v710 = vadd.f32 %v671, %v707
      %v711 = vadd.f32 %v672, %v707
      %v712 = vadd.f32 %v673, %v707
      %v713 = vadd.f32 %v674, %v707
      %v714 = vadd.f32 %v675, %v707
      %v715 = vadd.f32 %v676, %v707
      %v716 = vadd.f32 %v677, %v707
      %v717 = vadd.f32 %v678, %v707
      %v718 = vadd.f32 %v679, %v707
      %v719 = vadd.f32 %v680, %v707
      %v720 = vadd.f32 %v681, %v707
      %v721 = vadd.f32 %v682, %v707
      %v722 = vadd.f32 %v683, %v707
      %v723 = vadd.f32 %v684, %v707
      %v724 = vadd.f32 %v685, %v707
      %v725 = vadd.f32 %v686, %v707
      %v726 = vadd.f32 %v687, %v707
      %v727 = vadd.f32 %v688, %v707
      %v728 = vadd.f32 %v689, %v707
      %v729 = vadd.f32 %v690, %v707
      %v730 = vadd.f32 %v691, %v707
      %v731 = vadd.f32 %v692, %v707
      %v732 = vadd.f32 %v693, %v707
      %v733 = vadd.f32 %v694, %v707
      %v734 = vadd.f32 %v695, %v707
      %v735 = vadd.f32 %v696, %v707
      %v736 = vadd.f32 %v697, %v707
      %v737 = vadd.f32 %v698, %v707
      %v738 = vadd.f32 %v699, %v707
      %v739 = vadd.f32 %v700, %v707
      %v740 = vadd.f32 %v701, %v707
      %v741 = vmax.f32 %v709, 0.0
      %v742 = vmax.f32 %v710, 0.0
      %v743 = vmax.f32 %v711, 0.0
      %v744 = vmax.f32 %v712, 0.0
      %v745 = vmax.f32 %v713, 0.0
      %v746 = vmax.f32 %v714, 0.0
      %v747 = vmax.f32 %v715, 0.0
      %v748 = vmax.f32 %v716, 0.0
      %v749 = vmax.f32 %v717, 0.0
      %v750 = vmax.f32 %v718, 0.0
      %v751 = vmax.f32 %v719, 0.0
      %v752 = vmax.f32 %v720, 0.0
      %v753 = vmax.f32 %v721, 0.0
      %v754 = vmax.f32 %v722, 0.0
      %v755 = vmax.f32 %v723, 0.0
      %v756 = vmax.f32 %v724, 0.0
      %v757 = vmax.f32 %v725, 0.0
      %v758 = vmax.f32 %v726, 0.0
      %v759 = vmax.f32 %v727, 0.0
      %v760 = vmax.f32 %v728, 0.0
      %v761 = vmax.f32 %v729, 0.0
      %v762 = vmax.f32 %v730, 0.0
      %v763 = vmax.f32 %v731, 0.0
      %v764 = vmax.f32 %v732, 0.0
      %v765 = vmax.f32 %v733, 0.0
      %v766 = vmax.f32 %v734, 0.0
      %v767 = vmax.f32 %v735, 0.0
      %v768 = vmax.f32 %v736, 0.0
      %v769 = vmax.f32 %v737, 0.0
      %v770 = vmax.f32 %v738, 0.0
      %v771 = vmax.f32 %v739, 0.0
      %v772 = vmax.f32 %v740, 0.0
      %v773 = vld [vmem:[%s480] sm:$0xff]
      %v774 = vld [vmem:[%s480 + $0x8] sm:$0xff]
      %v775 = vld [vmem:[%s480 + $0x10] sm:$0xff]
      %v776 = vld [vmem:[%s480 + $0x18] sm:$0xff]
      %v777 = vld [vmem:[%s480 + $0x20] sm:$0xff]
      %v778 = vld [vmem:[%s480 + $0x28] sm:$0xff]
      %v779 = vld [vmem:[%s480 + $0x30] sm:$0xff]
      %v780 = vld [vmem:[%s480 + $0x38] sm:$0xff]
      %v781 = vld [vmem:[%s480 + $0x40] sm:$0xff]
      %v782 = vld [vmem:[%s480 + $0x48] sm:$0xff]
      %v783 = vld [vmem:[%s480 + $0x50] sm:$0xff]
      %v784 = vld [vmem:[%s480 + $0x58] sm:$0xff]
      %v785 = vld [vmem:[%s480 + $0x60] sm:$0xff]
      %v786 = vld [vmem:[%s480 + $0x68] sm:$0xff]
      %v787 = vld [vmem:[%s480 + $0x70] sm:$0xff]
      %v788 = vld [vmem:[%s480 + $0x78] sm:$0xff]
      %v789 = vld [vmem:[%s480 + $0x80] sm:$0xff]
      %v790 = vld [vmem:[%s480 + $0x88] sm:$0xff]
      %v791 = vld [vmem:[%s480 + $0x90] sm:$0xff]
      %v792 = vld [vmem:[%s480 + $0x98] sm:$0xff]
      %v793 = vld [vmem:[%s480 + $0xa0] sm:$0xff]
      %v794 = vld [vmem:[%s480 + $0xa8] sm:$0xff]
      %v795 = vld [vmem:[%s480 + $0xb0] sm:$0xff]
      %v796 = vld [vmem:[%s480 + $0xb8] sm:$0xff]
      %v797 = vld [vmem:[%s480 + $0xc0] sm:$0xff]
      %v798 = vld [vmem:[%s480 + $0xc8] sm:$0xff]
      %v799 = vld [vmem:[%s480 + $0xd0] sm:$0xff]
      %v800 = vld [vmem:[%s480 + $0xd8] sm:$0xff]
      %v801 = vld [vmem:[%s480 + $0xe0] sm:$0xff]
      %v802 = vld [vmem:[%s480 + $0xe8] sm:$0xff]
      %v803 = vld [vmem:[%s480 + $0xf0] sm:$0xff]
      %v804 = vld [vmem:[%s480 + $0xf8] sm:$0xff]
      %v805 = vld [vmem:[%s7] sm:$0x1]
      %v807 = vlaneseq
      %v808 = vshrl.u32 %v807, 7
      %v809 = vsub.s32 0, %v808
      %v810 = vrot.slane %v805, %v809
      %v812 = vmul.f32 %v773, %v810
      %v813 = vmul.f32 %v774, %v810
      %v814 = vmul.f32 %v775, %v810
      %v815 = vmul.f32 %v776, %v810
      %v816 = vmul.f32 %v777, %v810
      %v817 = vmul.f32 %v778, %v810
      %v818 = vmul.f32 %v779, %v810
      %v819 = vmul.f32 %v780, %v810
      %v820 = vmul.f32 %v781, %v810
      %v821 = vmul.f32 %v782, %v810
      %v822 = vmul.f32 %v783, %v810
      %v823 = vmul.f32 %v784, %v810
      %v824 = vmul.f32 %v785, %v810
      %v825 = vmul.f32 %v786, %v810
      %v826 = vmul.f32 %v787, %v810
      %v827 = vmul.f32 %v788, %v810
      %v828 = vmul.f32 %v789, %v810
      %v829 = vmul.f32 %v790, %v810
      %v830 = vmul.f32 %v791, %v810
      %v831 = vmul.f32 %v792, %v810
      %v832 = vmul.f32 %v793, %v810
      %v833 = vmul.f32 %v794, %v810
      %v834 = vmul.f32 %v795, %v810
      %v835 = vmul.f32 %v796, %v810
      %v836 = vmul.f32 %v797, %v810
      %v837 = vmul.f32 %v798, %v810
      %v838 = vmul.f32 %v799, %v810
      %v839 = vmul.f32 %v800, %v810
      %v840 = vmul.f32 %v801, %v810
      %v841 = vmul.f32 %v802, %v810
      %v842 = vmul.f32 %v803, %v810
      %v843 = vmul.f32 %v804, %v810
      %v844 = vld [vmem:[%s8] sm:$0x1]
      %v846 = vlaneseq
      %v847 = vshrl.u32 %v846, 7
      %v848 = vsub.s32 0, %v847
      %v849 = vrot.slane %v844, %v848
      %v851 = vadd.f32 %v812, %v849
      %v852 = vadd.f32 %v813, %v849
      %v853 = vadd.f32 %v814, %v849
      %v854 = vadd.f32 %v815, %v849
      %v855 = vadd.f32 %v816, %v849
      %v856 = vadd.f32 %v817, %v849
      %v857 = vadd.f32 %v818, %v849
      %v858 = vadd.f32 %v819, %v849
      %v859 = vadd.f32 %v820, %v849
      %v860 = vadd.f32 %v821, %v849
      %v861 = vadd.f32 %v822, %v849
      %v862 = vadd.f32 %v823, %v849
      %v863 = vadd.f32 %v824, %v849
      %v864 = vadd.f32 %v825, %v849
      %v865 = vadd.f32 %v826, %v849
      %v866 = vadd.f32 %v827, %v849
      %v867 = vadd.f32 %v828, %v849
      %v868 = vadd.f32 %v829, %v849
      %v869 = vadd.f32 %v830, %v849
      %v870 = vadd.f32 %v831, %v849
      %v871 = vadd.f32 %v832, %v849
      %v872 = vadd.f32 %v833, %v849
      %v873 = vadd.f32 %v834, %v849
      %v874 = vadd.f32 %v835, %v849
      %v875 = vadd.f32 %v836, %v849
      %v876 = vadd.f32 %v837, %v849
      %v877 = vadd.f32 %v838, %v849
      %v878 = vadd.f32 %v839, %v849
      %v879 = vadd.f32 %v840, %v849
      %v880 = vadd.f32 %v841, %v849
      %v881 = vadd.f32 %v842, %v849
      %v882 = vadd.f32 %v843, %v849
      %v883 = vmax.f32 %v851, 0.0
      %v884 = vmax.f32 %v852, 0.0
      %v885 = vmax.f32 %v853, 0.0
      %v886 = vmax.f32 %v854, 0.0
      %v887 = vmax.f32 %v855, 0.0
      %v888 = vmax.f32 %v856, 0.0
      %v889 = vmax.f32 %v857, 0.0
      %v890 = vmax.f32 %v858, 0.0
      %v891 = vmax.f32 %v859, 0.0
      %v892 = vmax.f32 %v860, 0.0
      %v893 = vmax.f32 %v861, 0.0
      %v894 = vmax.f32 %v862, 0.0
      %v895 = vmax.f32 %v863, 0.0
      %v896 = vmax.f32 %v864, 0.0
      %v897 = vmax.f32 %v865, 0.0
      %v898 = vmax.f32 %v866, 0.0
      %v899 = vmax.f32 %v867, 0.0
      %v900 = vmax.f32 %v868, 0.0
      %v901 = vmax.f32 %v869, 0.0
      %v902 = vmax.f32 %v870, 0.0
      %v903 = vmax.f32 %v871, 0.0
      %v904 = vmax.f32 %v872, 0.0
      %v905 = vmax.f32 %v873, 0.0
      %v906 = vmax.f32 %v874, 0.0
      %v907 = vmax.f32 %v875, 0.0
      %v908 = vmax.f32 %v876, 0.0
      %v909 = vmax.f32 %v877, 0.0
      %v910 = vmax.f32 %v878, 0.0
      %v911 = vmax.f32 %v879, 0.0
      %v912 = vmax.f32 %v880, 0.0
      %v913 = vmax.f32 %v881, 0.0
      %v914 = vmax.f32 %v882, 0.0
      %947 = vrot.lane.b32.xlu0 %v741, 16
      %v948 = vpop.permute.xlu0 %947
      %949 = vrot.lane.b32.xlu0 %v742, 16
      %v950 = vpop.permute.xlu0 %949
      %951 = vrot.lane.b32.xlu0 %v743, 16
      %v952 = vpop.permute.xlu0 %951
      %953 = vrot.lane.b32.xlu0 %v744, 16
      %v954 = vpop.permute.xlu0 %953
      %955 = vrot.lane.b32.xlu0 %v745, 16
      %v956 = vpop.permute.xlu0 %955
      %957 = vrot.lane.b32.xlu0 %v746, 16
      %v958 = vpop.permute.xlu0 %957
      %959 = vrot.lane.b32.xlu0 %v747, 16
      %v960 = vpop.permute.xlu0 %959
      %961 = vrot.lane.b32.xlu0 %v748, 16
      %v962 = vpop.permute.xlu0 %961
      %963 = vrot.lane.b32.xlu0 %v749, 16
      %v964 = vpop.permute.xlu0 %963
      %965 = vrot.lane.b32.xlu0 %v750, 16
      %v966 = vpop.permute.xlu0 %965
      %967 = vrot.lane.b32.xlu0 %v751, 16
      %v968 = vpop.permute.xlu0 %967
      %969 = vrot.lane.b32.xlu0 %v752, 16
      %v970 = vpop.permute.xlu0 %969
      %971 = vrot.lane.b32.xlu0 %v753, 16
      %v972 = vpop.permute.xlu0 %971
      %973 = vrot.lane.b32.xlu0 %v754, 16
      %v974 = vpop.permute.xlu0 %973
      %975 = vrot.lane.b32.xlu0 %v755, 16
      %v976 = vpop.permute.xlu0 %975
      %977 = vrot.lane.b32.xlu0 %v756, 16
      %v978 = vpop.permute.xlu0 %977
      %979 = vrot.lane.b32.xlu0 %v757, 16
      %v980 = vpop.permute.xlu0 %979
      %981 = vrot.lane.b32.xlu0 %v758, 16
      %v982 = vpop.permute.xlu0 %981
      %983 = vrot.lane.b32.xlu0 %v759, 16
      %v984 = vpop.permute.xlu0 %983
      %985 = vrot.lane.b32.xlu0 %v760, 16
      %v986 = vpop.permute.xlu0 %985
      %987 = vrot.lane.b32.xlu0 %v761, 16
      %v988 = vpop.permute.xlu0 %987
      %989 = vrot.lane.b32.xlu0 %v762, 16
      %v990 = vpop.permute.xlu0 %989
      %991 = vrot.lane.b32.xlu0 %v763, 16
      %v992 = vpop.permute.xlu0 %991
      %993 = vrot.lane.b32.xlu0 %v764, 16
      %v994 = vpop.permute.xlu0 %993
      %995 = vrot.lane.b32.xlu0 %v765, 16
      %v996 = vpop.permute.xlu0 %995
      %997 = vrot.lane.b32.xlu0 %v766, 16
      %v998 = vpop.permute.xlu0 %997
      %999 = vrot.lane.b32.xlu0 %v767, 16
      %v1000 = vpop.permute.xlu0 %999
      %1001 = vrot.lane.b32.xlu0 %v768, 16
      %v1002 = vpop.permute.xlu0 %1001
      %1003 = vrot.lane.b32.xlu0 %v769, 16
      %v1004 = vpop.permute.xlu0 %1003
      %1005 = vrot.lane.b32.xlu0 %v770, 16
      %v1006 = vpop.permute.xlu0 %1005
      %1007 = vrot.lane.b32.xlu0 %v771, 16
      %v1008 = vpop.permute.xlu0 %1007
      %1009 = vrot.lane.b32.xlu0 %v772, 16
      %v1010 = vpop.permute.xlu0 %1009
      %1075 = vrot.lane.b32.xlu0 %v883, 40
      %v1076 = vpop.permute.xlu0 %1075
      %1077 = vrot.lane.b32.xlu0 %v884, 40
      %v1078 = vpop.permute.xlu0 %1077
      %1079 = vrot.lane.b32.xlu0 %v885, 40
      %v1080 = vpop.permute.xlu0 %1079
      %1081 = vrot.lane.b32.xlu0 %v886, 40
      %v1082 = vpop.permute.xlu0 %1081
      %1083 = vrot.lane.b32.xlu0 %v887, 40
      %v1084 = vpop.permute.xlu0 %1083
      %1085 = vrot.lane.b32.xlu0 %v888, 40
      %v1086 = vpop.permute.xlu0 %1085
      %1087 = vrot.lane.b32.xlu0 %v889, 40
      %v1088 = vpop.permute.xlu0 %1087
      %1089 = vrot.lane.b32.xlu0 %v890, 40
      %v1090 = vpop.permute.xlu0 %1089
      %1091 = vrot.lane.b32.xlu0 %v891, 40
      %v1092 = vpop.permute.xlu0 %1091
      %1093 = vrot.lane.b32.xlu0 %v892, 40
      %v1094 = vpop.permute.xlu0 %1093
      %1095 = vrot.lane.b32.xlu0 %v893, 40
      %v1096 = vpop.permute.xlu0 %1095
      %1097 = vrot.lane.b32.xlu0 %v894, 40
      %v1098 = vpop.permute.xlu0 %1097
      %1099 = vrot.lane.b32.xlu0 %v895, 40
      %v1100 = vpop.permute.xlu0 %1099
      %1101 = vrot.lane.b32.xlu0 %v896, 40
      %v1102 = vpop.permute.xlu0 %1101
      %1103 = vrot.lane.b32.xlu0 %v897, 40
      %v1104 = vpop.permute.xlu0 %1103
      %1105 = vrot.lane.b32.xlu0 %v898, 40
      %v1106 = vpop.permute.xlu0 %1105
      %1107 = vrot.lane.b32.xlu0 %v899, 40
      %v1108 = vpop.permute.xlu0 %1107
      %1109 = vrot.lane.b32.xlu0 %v900, 40
      %v1110 = vpop.permute.xlu0 %1109
      %1111 = vrot.lane.b32.xlu0 %v901, 40
      %v1112 = vpop.permute.xlu0 %1111
      %1113 = vrot.lane.b32.xlu0 %v902, 40
      %v1114 = vpop.permute.xlu0 %1113
      %1115 = vrot.lane.b32.xlu0 %v903, 40
      %v1116 = vpop.permute.xlu0 %1115
      %1117 = vrot.lane.b32.xlu0 %v904, 40
      %v1118 = vpop.permute.xlu0 %1117
      %1119 = vrot.lane.b32.xlu0 %v905, 40
      %v1120 = vpop.permute.xlu0 %1119
      %1121 = vrot.lane.b32.xlu0 %v906, 40
      %v1122 = vpop.permute.xlu0 %1121
      %1123 = vrot.lane.b32.xlu0 %v907, 40
      %v1124 = vpop.permute.xlu0 %1123
      %1125 = vrot.lane.b32.xlu0 %v908, 40
      %v1126 = vpop.permute.xlu0 %1125
      %1127 = vrot.lane.b32.xlu0 %v909, 40
      %v1128 = vpop.permute.xlu0 %1127
      %1129 = vrot.lane.b32.xlu0 %v910, 40
      %v1130 = vpop.permute.xlu0 %1129
      %1131 = vrot.lane.b32.xlu0 %v911, 40
      %v1132 = vpop.permute.xlu0 %1131
      %1133 = vrot.lane.b32.xlu0 %v912, 40
      %v1134 = vpop.permute.xlu0 %1133
      %1135 = vrot.lane.b32.xlu0 %v913, 40
      %v1136 = vpop.permute.xlu0 %1135
      %1137 = vrot.lane.b32.xlu0 %v914, 40
      %v1138 = vpop.permute.xlu0 %1137
      %vm1171 = vcmask 130048
      %v1172 = vsel %vm1171, %v599, %v948
      %v1173 = vsel %vm1171, %v600, %v950
      %v1174 = vsel %vm1171, %v601, %v952
      %v1175 = vsel %vm1171, %v602, %v954
      %v1176 = vsel %vm1171, %v603, %v956
      %v1177 = vsel %vm1171, %v604, %v958
      %v1178 = vsel %vm1171, %v605, %v960
      %v1179 = vsel %vm1171, %v606, %v962
      %v1180 = vsel %vm1171, %v607, %v964
      %v1181 = vsel %vm1171, %v608, %v966
      %v1182 = vsel %vm1171, %v609, %v968
      %v1183 = vsel %vm1171, %v610, %v970
      %v1184 = vsel %vm1171, %v611, %v972
      %v1185 = vsel %vm1171, %v612, %v974
      %v1186 = vsel %vm1171, %v613, %v976
      %v1187 = vsel %vm1171, %v614, %v978
      %v1188 = vsel %vm1171, %v615, %v980
      %v1189 = vsel %vm1171, %v616, %v982
      %v1190 = vsel %vm1171, %v617, %v984
      %v1191 = vsel %vm1171, %v618, %v986
      %v1192 = vsel %vm1171, %v619, %v988
      %v1193 = vsel %vm1171, %v620, %v990
      %v1194 = vsel %vm1171, %v621, %v992
      %v1195 = vsel %vm1171, %v622, %v994
      %v1196 = vsel %vm1171, %v623, %v996
      %v1197 = vsel %vm1171, %v624, %v998
      %v1198 = vsel %vm1171, %v625, %v1000
      %v1199 = vsel %vm1171, %v626, %v1002
      %v1200 = vsel %vm1171, %v627, %v1004
      %v1201 = vsel %vm1171, %v628, %v1006
      %v1202 = vsel %vm1171, %v629, %v1008
      %v1203 = vsel %vm1171, %v630, %v1010
      %vm1204 = vcmask 326656
      %v1205 = vsel %vm1204, %v1172, %v1076
      %v1206 = vsel %vm1204, %v1173, %v1078
      %v1207 = vsel %vm1204, %v1174, %v1080
      %v1208 = vsel %vm1204, %v1175, %v1082
      %v1209 = vsel %vm1204, %v1176, %v1084
      %v1210 = vsel %vm1204, %v1177, %v1086
      %v1211 = vsel %vm1204, %v1178, %v1088
      %v1212 = vsel %vm1204, %v1179, %v1090
      %v1213 = vsel %vm1204, %v1180, %v1092
      %v1214 = vsel %vm1204, %v1181, %v1094
      %v1215 = vsel %vm1204, %v1182, %v1096
      %v1216 = vsel %vm1204, %v1183, %v1098
      %v1217 = vsel %vm1204, %v1184, %v1100
      %v1218 = vsel %vm1204, %v1185, %v1102
      %v1219 = vsel %vm1204, %v1186, %v1104
      %v1220 = vsel %vm1204, %v1187, %v1106
      %v1221 = vsel %vm1204, %v1188, %v1108
      %v1222 = vsel %vm1204, %v1189, %v1110
      %v1223 = vsel %vm1204, %v1190, %v1112
      %v1224 = vsel %vm1204, %v1191, %v1114
      %v1225 = vsel %vm1204, %v1192, %v1116
      %v1226 = vsel %vm1204, %v1193, %v1118
      %v1227 = vsel %vm1204, %v1194, %v1120
      %v1228 = vsel %vm1204, %v1195, %v1122
      %v1229 = vsel %vm1204, %v1196, %v1124
      %v1230 = vsel %vm1204, %v1197, %v1126
      %v1231 = vsel %vm1204, %v1198, %v1128
      %v1232 = vsel %vm1204, %v1199, %v1130
      %v1233 = vsel %vm1204, %v1200, %v1132
      %v1234 = vsel %vm1204, %v1201, %v1134
      %v1235 = vsel %vm1204, %v1202, %v1136
      %v1236 = vsel %vm1204, %v1203, %v1138
      %v1237 = vpack.c.bf16 %v1206, %v1205
      %v1238 = vpack.c.bf16 %v1208, %v1207
      %v1239 = vpack.c.bf16 %v1210, %v1209
      %v1240 = vpack.c.bf16 %v1212, %v1211
      %v1241 = vpack.c.bf16 %v1214, %v1213
      %v1242 = vpack.c.bf16 %v1216, %v1215
      %v1243 = vpack.c.bf16 %v1218, %v1217
      %v1244 = vpack.c.bf16 %v1220, %v1219
      %v1245 = vpack.c.bf16 %v1222, %v1221
      %v1246 = vpack.c.bf16 %v1224, %v1223
      %v1247 = vpack.c.bf16 %v1226, %v1225
      %v1248 = vpack.c.bf16 %v1228, %v1227
      %v1249 = vpack.c.bf16 %v1230, %v1229
      %v1250 = vpack.c.bf16 %v1232, %v1231
      %v1251 = vpack.c.bf16 %v1234, %v1233
      %v1252 = vpack.c.bf16 %v1236, %v1235
      %v1253 = vld [vmem:[%s11] sm:$0xf]
      %v1254 = vld [vmem:[%s11 + $0x4] sm:$0xf]
      %v1255 = vld [vmem:[%s11 + $0x8] sm:$0xf]
      %v1256 = vld [vmem:[%s11 + $0xc] sm:$0xf]
      %v1257 = vld [vmem:[%s11 + $0x10] sm:$0xf]
      %v1258 = vld [vmem:[%s11 + $0x14] sm:$0xf]
      %v1259 = vld [vmem:[%s11 + $0x18] sm:$0xf]
      %v1260 = vld [vmem:[%s11 + $0x1c] sm:$0xf]
      %v1261 = vld [vmem:[%s12] sm:$0x1]
      %v1263 = vlaneseq
      %v1264 = vshrl.u32 %v1263, 7
      %v1265 = vsub.s32 0, %v1264
      %v1266 = vrot.slane %v1261, %v1265
      %v1276 = vunpack.c.l.b16 %v1253
      %v1277 = vunpack.c.l.b16 %v1254
      %v1278 = vunpack.c.l.b16 %v1255
      %v1279 = vunpack.c.l.b16 %v1256
      %v1280 = vunpack.c.l.b16 %v1257
      %v1281 = vunpack.c.l.b16 %v1258
      %v1282 = vunpack.c.l.b16 %v1259
      %v1283 = vunpack.c.l.b16 %v1260
      %v1284 = vpack.c.b16 %v1277, %v1276
      %v1285 = vpack.c.b16 %v1279, %v1278
      %v1286 = vpack.c.b16 %v1281, %v1280
      %v1287 = vpack.c.b16 %v1283, %v1282
      %vm1292 = vcmask 523264
      %v1294 = vsel %vm1292, %v1237, 0
      %v1297 = vsel %vm1292, %v1238, 0
      %v1300 = vsel %vm1292, %v1239, 0
      %v1303 = vsel %vm1292, %v1240, 0
      %v1306 = vsel %vm1292, %v1241, 0
      %v1309 = vsel %vm1292, %v1242, 0
      %v1312 = vsel %vm1292, %v1243, 0
      %v1315 = vsel %vm1292, %v1244, 0
      %v1318 = vsel %vm1292, %v1245, 0
      %v1321 = vsel %vm1292, %v1246, 0
      %v1324 = vsel %vm1292, %v1247, 0
      %v1327 = vsel %vm1292, %v1248, 0
      %v1330 = vsel %vm1292, %v1249, 0
      %v1333 = vsel %vm1292, %v1250, 0
      %v1336 = vsel %vm1292, %v1251, 0
      %v1339 = vsel %vm1292, %v1252, 0
      %1341 = vmatprep.subr.bf16.mxu0 0
      %1342 = vmatpush1.bf16.msra.mxu0 %v1284
      %1343 = vmatprep.subr.bf16.mxu0 0
      %1344 = vmatpush1.bf16.msra.mxu0 %v1285
      %1345 = vmatprep.subr.bf16.mxu0 0
      %1346 = vmatpush1.bf16.msra.mxu0 %v1286
      %1347 = vmatprep.subr.bf16.mxu0 0
      %1348 = vmatpush1.bf16.msra.mxu0 %v1287
      %1349 = vmatprep.subr.bf16.mxu0 0
      %1350 = vmatpush1.bf16.msra.mxu0 0
      %1351 = vmatprep.subr.bf16.mxu0 0
      %1352 = vmatpush1.bf16.msra.mxu0 0
      %1353 = vmatprep.subr.bf16.mxu0 0
      %1354 = vmatpush1.bf16.msra.mxu0 0
      %1355 = vmatprep.subr.bf16.mxu0 0
      %1356 = vmatpush1.bf16.msra.mxu0 0
      %1357 = vmatprep.subr.bf16.mxu0 0
      %1358 = vmatpush1.bf16.msra.mxu0 0
      %1359 = vmatprep.subr.bf16.mxu0 0
      %1360 = vmatpush1.bf16.msra.mxu0 0
      %1361 = vmatprep.subr.bf16.mxu0 0
      %1362 = vmatpush1.bf16.msra.mxu0 0
      %1363 = vmatprep.subr.bf16.mxu0 0
      %1364 = vmatpush1.bf16.msra.mxu0 0
      %1365 = vmatprep.subr.bf16.mxu0 0
      %1366 = vmatpush1.bf16.msra.mxu0 0
      %1367 = vmatprep.subr.bf16.mxu0 0
      %1368 = vmatpush1.bf16.msra.mxu0 0
      %1369 = vmatprep.subr.bf16.mxu0 0
      %1370 = vmatpush1.bf16.msra.mxu0 0
      %1371 = vmatprep.subr.bf16.mxu0 0
      %1372 = vmatpush1.bf16.msra.mxu0 0
      %1373 = vmatprep.mubr.bf16.mxu0 0
      %1374 = vmatmul.mubr.bf16.gmra.mrb[0].mxu0 %v1294
      %v1375 = vpop.f32.mrb[0].mxu0
      %v1376 = vadd.f32 %v1266, %v1375
      %v1377 = vpop.f32.mrb[0].mxu0
      %v1378 = vpop.f32.mrb[0].mxu0
      %v1379 = vadd.f32 %v1266, %v1378
      %v1380 = vpop.f32.mrb[0].mxu0
      %1381 = vmatprep.mubr.bf16.mxu0 0
      %1382 = vmatmul.mubr.bf16.gmra.mrb[0].mxu0 %v1297
      %v1383 = vpop.f32.mrb[0].mxu0
      %v1384 = vadd.f32 %v1266, %v1383
      %v1385 = vpop.f32.mrb[0].mxu0
      %v1386 = vpop.f32.mrb[0].mxu0
      %v1387 = vadd.f32 %v1266, %v1386
      %v1388 = vpop.f32.mrb[0].mxu0
      %1389 = vmatprep.mubr.bf16.mxu0 0
      %1390 = vmatmul.mubr.bf16.gmra.mrb[0].mxu0 %v1300
      %v1391 = vpop.f32.mrb[0].mxu0
      %v1392 = vadd.f32 %v1266, %v1391
      %v1393 = vpop.f32.mrb[0].mxu0
      %v1394 = vpop.f32.mrb[0].mxu0
      %v1395 = vadd.f32 %v1266, %v1394
      %v1396 = vpop.f32.mrb[0].mxu0
      %1397 = vmatprep.mubr.bf16.mxu0 0
      %1398 = vmatmul.mubr.bf16.gmra.mrb[0].mxu0 %v1303
      %v1399 = vpop.f32.mrb[0].mxu0
      %v1400 = vadd.f32 %v1266, %v1399
      %v1401 = vpop.f32.mrb[0].mxu0
      %v1402 = vpop.f32.mrb[0].mxu0
      %v1403 = vadd.f32 %v1266, %v1402
      %v1404 = vpop.f32.mrb[0].mxu0
      %1405 = vmatprep.mubr.bf16.mxu0 0
      %1406 = vmatmul.mubr.bf16.gmra.mrb[0].mxu0 %v1306
      %v1407 = vpop.f32.mrb[0].mxu0
      %v1408 = vadd.f32 %v1266, %v1407
      %v1409 = vpop.f32.mrb[0].mxu0
      %v1410 = vpop.f32.mrb[0].mxu0
      %v1411 = vadd.f32 %v1266, %v1410
      %v1412 = vpop.f32.mrb[0].mxu0
      %1413 = vmatprep.mubr.bf16.mxu0 0
      %1414 = vmatmul.mubr.bf16.gmra.mrb[0].mxu0 %v1309
      %v1415 = vpop.f32.mrb[0].mxu0
      %v1416 = vadd.f32 %v1266, %v1415
      %v1417 = vpop.f32.mrb[0].mxu0
      %v1418 = vpop.f32.mrb[0].mxu0
      %v1419 = vadd.f32 %v1266, %v1418
      %v1420 = vpop.f32.mrb[0].mxu0
      %1421 = vmatprep.mubr.bf16.mxu0 0
      %1422 = vmatmul.mubr.bf16.gmra.mrb[0].mxu0 %v1312
      %v1423 = vpop.f32.mrb[0].mxu0
      %v1424 = vadd.f32 %v1266, %v1423
      %v1425 = vpop.f32.mrb[0].mxu0
      %v1426 = vpop.f32.mrb[0].mxu0
      %v1427 = vadd.f32 %v1266, %v1426
      %v1428 = vpop.f32.mrb[0].mxu0
      %1429 = vmatprep.mubr.bf16.mxu0 0
      %1430 = vmatmul.mubr.bf16.gmra.mrb[0].mxu0 %v1315
      %v1431 = vpop.f32.mrb[0].mxu0
      %v1432 = vadd.f32 %v1266, %v1431
      %v1433 = vpop.f32.mrb[0].mxu0
      %v1434 = vpop.f32.mrb[0].mxu0
      %v1435 = vadd.f32 %v1266, %v1434
      %v1436 = vpop.f32.mrb[0].mxu0
      %1437 = vmatprep.mubr.bf16.mxu0 0
      %1438 = vmatmul.mubr.bf16.gmra.mrb[0].mxu0 %v1318
      %v1439 = vpop.f32.mrb[0].mxu0
      %v1440 = vadd.f32 %v1266, %v1439
      %v1441 = vpop.f32.mrb[0].mxu0
      %v1442 = vpop.f32.mrb[0].mxu0
      %v1443 = vadd.f32 %v1266, %v1442
      %v1444 = vpop.f32.mrb[0].mxu0
      %1445 = vmatprep.mubr.bf16.mxu0 0
      %1446 = vmatmul.mubr.bf16.gmra.mrb[0].mxu0 %v1321
      %v1447 = vpop.f32.mrb[0].mxu0
      %v1448 = vadd.f32 %v1266, %v1447
      %v1449 = vpop.f32.mrb[0].mxu0
      %v1450 = vpop.f32.mrb[0].mxu0
      %v1451 = vadd.f32 %v1266, %v1450
      %v1452 = vpop.f32.mrb[0].mxu0
      %1453 = vmatprep.mubr.bf16.mxu0 0
      %1454 = vmatmul.mubr.bf16.gmra.mrb[0].mxu0 %v1324
      %v1455 = vpop.f32.mrb[0].mxu0
      %v1456 = vadd.f32 %v1266, %v1455
      %v1457 = vpop.f32.mrb[0].mxu0
      %v1458 = vpop.f32.mrb[0].mxu0
      %v1459 = vadd.f32 %v1266, %v1458
      %v1460 = vpop.f32.mrb[0].mxu0
      %1461 = vmatprep.mubr.bf16.mxu0 0
      %1462 = vmatmul.mubr.bf16.gmra.mrb[0].mxu0 %v1327
      %v1463 = vpop.f32.mrb[0].mxu0
      %v1464 = vadd.f32 %v1266, %v1463
      %v1465 = vpop.f32.mrb[0].mxu0
      %v1466 = vpop.f32.mrb[0].mxu0
      %v1467 = vadd.f32 %v1266, %v1466
      %v1468 = vpop.f32.mrb[0].mxu0
      %1469 = vmatprep.mubr.bf16.mxu0 0
      %1470 = vmatmul.mubr.bf16.gmra.mrb[0].mxu0 %v1330
      %v1471 = vpop.f32.mrb[0].mxu0
      %v1472 = vadd.f32 %v1266, %v1471
      %v1473 = vpop.f32.mrb[0].mxu0
      %v1474 = vpop.f32.mrb[0].mxu0
      %v1475 = vadd.f32 %v1266, %v1474
      %v1476 = vpop.f32.mrb[0].mxu0
      %1477 = vmatprep.mubr.bf16.mxu0 0
      %1478 = vmatmul.mubr.bf16.gmra.mrb[0].mxu0 %v1333
      %v1479 = vpop.f32.mrb[0].mxu0
      %v1480 = vadd.f32 %v1266, %v1479
      %v1481 = vpop.f32.mrb[0].mxu0
      %v1482 = vpop.f32.mrb[0].mxu0
      %v1483 = vadd.f32 %v1266, %v1482
      %v1484 = vpop.f32.mrb[0].mxu0
      %1485 = vmatprep.mubr.bf16.mxu0 0
      %1486 = vmatmul.mubr.bf16.gmra.mrb[0].mxu0 %v1336
      %v1487 = vpop.f32.mrb[0].mxu0
      %v1488 = vadd.f32 %v1266, %v1487
      %v1489 = vpop.f32.mrb[0].mxu0
      %v1490 = vpop.f32.mrb[0].mxu0
      %v1491 = vadd.f32 %v1266, %v1490
      %v1492 = vpop.f32.mrb[0].mxu0
      %1493 = vmatprep.mubr.bf16.mxu0 0
      %1494 = vmatmul.mubr.bf16.gmra.mrb[0].mxu0 %v1339
      %v1495 = vpop.f32.mrb[0].mxu0
      %v1496 = vadd.f32 %v1266, %v1495
      %v1497 = vpop.f32.mrb[0].mxu0
      %v1498 = vpop.f32.mrb[0].mxu0
      %v1499 = vadd.f32 %v1266, %v1498
      %v1500 = vpop.f32.mrb[0].mxu0
      %1501 = vdwg.mxu0
      %v1502 = vld [vmem:[%s9] sm:$0x1]
      %v1504 = vlaneseq
      %v1505 = vshrl.u32 %v1504, 7
      %v1506 = vsub.s32 0, %v1505
      %v1507 = vrot.slane %v1502, %v1506
      %1508 = vrot.lane.b32.xlu0 %v1507, 48
      %v1509 = vpop.permute.xlu0 %1508
      %v1511 = vmul.f32 %v489, %v1509
      %v1512 = vmul.f32 %v490, %v1509
      %v1513 = vmul.f32 %v491, %v1509
      %v1514 = vmul.f32 %v492, %v1509
      %v1515 = vmul.f32 %v493, %v1509
      %v1516 = vmul.f32 %v494, %v1509
      %v1517 = vmul.f32 %v495, %v1509
      %v1518 = vmul.f32 %v496, %v1509
      %v1519 = vmul.f32 %v497, %v1509
      %v1520 = vmul.f32 %v498, %v1509
      %v1521 = vmul.f32 %v499, %v1509
      %v1522 = vmul.f32 %v500, %v1509
      %v1523 = vmul.f32 %v501, %v1509
      %v1524 = vmul.f32 %v502, %v1509
      %v1525 = vmul.f32 %v503, %v1509
      %v1526 = vmul.f32 %v504, %v1509
      %v1527 = vmul.f32 %v505, %v1509
      %v1528 = vmul.f32 %v506, %v1509
      %v1529 = vmul.f32 %v507, %v1509
      %v1530 = vmul.f32 %v508, %v1509
      %v1531 = vmul.f32 %v509, %v1509
      %v1532 = vmul.f32 %v510, %v1509
      %v1533 = vmul.f32 %v511, %v1509
      %v1534 = vmul.f32 %v512, %v1509
      %v1535 = vmul.f32 %v513, %v1509
      %v1536 = vmul.f32 %v514, %v1509
      %v1537 = vmul.f32 %v515, %v1509
      %v1538 = vmul.f32 %v516, %v1509
      %v1539 = vmul.f32 %v517, %v1509
      %v1540 = vmul.f32 %v518, %v1509
      %v1541 = vmul.f32 %v519, %v1509
      %v1542 = vmul.f32 %v520, %v1509
      %v1543 = vld [vmem:[%s10] sm:$0x1]
      %v1545 = vlaneseq
      %v1546 = vshrl.u32 %v1545, 7
      %v1547 = vsub.s32 0, %v1546
      %v1548 = vrot.slane %v1543, %v1547
      %1549 = vrot.lane.b32.xlu0 %v1548, 48
      %v1550 = vpop.permute.xlu0 %1549
      %v1552 = vadd.f32 %v1511, %v1550
      %v1553 = vadd.f32 %v1512, %v1550
      %v1554 = vadd.f32 %v1513, %v1550
      %v1555 = vadd.f32 %v1514, %v1550
      %v1556 = vadd.f32 %v1515, %v1550
      %v1557 = vadd.f32 %v1516, %v1550
      %v1558 = vadd.f32 %v1517, %v1550
      %v1559 = vadd.f32 %v1518, %v1550
      %v1560 = vadd.f32 %v1519, %v1550
      %v1561 = vadd.f32 %v1520, %v1550
      %v1562 = vadd.f32 %v1521, %v1550
      %v1563 = vadd.f32 %v1522, %v1550
      %v1564 = vadd.f32 %v1523, %v1550
      %v1565 = vadd.f32 %v1524, %v1550
      %v1566 = vadd.f32 %v1525, %v1550
      %v1567 = vadd.f32 %v1526, %v1550
      %v1568 = vadd.f32 %v1527, %v1550
      %v1569 = vadd.f32 %v1528, %v1550
      %v1570 = vadd.f32 %v1529, %v1550
      %v1571 = vadd.f32 %v1530, %v1550
      %v1572 = vadd.f32 %v1531, %v1550
      %v1573 = vadd.f32 %v1532, %v1550
      %v1574 = vadd.f32 %v1533, %v1550
      %v1575 = vadd.f32 %v1534, %v1550
      %v1576 = vadd.f32 %v1535, %v1550
      %v1577 = vadd.f32 %v1536, %v1550
      %v1578 = vadd.f32 %v1537, %v1550
      %v1579 = vadd.f32 %v1538, %v1550
      %v1580 = vadd.f32 %v1539, %v1550
      %v1581 = vadd.f32 %v1540, %v1550
      %v1582 = vadd.f32 %v1541, %v1550
      %v1583 = vadd.f32 %v1542, %v1550
      %1616 = vrot.lane.b32.xlu0 %v1552, 80
      %v1617 = vpop.permute.xlu0 %1616
      %1618 = vrot.lane.b32.xlu0 %v1553, 80
      %v1619 = vpop.permute.xlu0 %1618
      %1620 = vrot.lane.b32.xlu0 %v1554, 80
      %v1621 = vpop.permute.xlu0 %1620
      %1622 = vrot.lane.b32.xlu0 %v1555, 80
      %v1623 = vpop.permute.xlu0 %1622
      %1624 = vrot.lane.b32.xlu0 %v1556, 80
      %v1625 = vpop.permute.xlu0 %1624
      %1626 = vrot.lane.b32.xlu0 %v1557, 80
      %v1627 = vpop.permute.xlu0 %1626
      %1628 = vrot.lane.b32.xlu0 %v1558, 80
      %v1629 = vpop.permute.xlu0 %1628
      %1630 = vrot.lane.b32.xlu0 %v1559, 80
      %v1631 = vpop.permute.xlu0 %1630
      %1632 = vrot.lane.b32.xlu0 %v1560, 80
      %v1633 = vpop.permute.xlu0 %1632
      %1634 = vrot.lane.b32.xlu0 %v1561, 80
      %v1635 = vpop.permute.xlu0 %1634
      %1636 = vrot.lane.b32.xlu0 %v1562, 80
      %v1637 = vpop.permute.xlu0 %1636
      %1638 = vrot.lane.b32.xlu0 %v1563, 80
      %v1639 = vpop.permute.xlu0 %1638
      %1640 = vrot.lane.b32.xlu0 %v1564, 80
      %v1641 = vpop.permute.xlu0 %1640
      %1642 = vrot.lane.b32.xlu0 %v1565, 80
      %v1643 = vpop.permute.xlu0 %1642
      %1644 = vrot.lane.b32.xlu0 %v1566, 80
      %v1645 = vpop.permute.xlu0 %1644
      %1646 = vrot.lane.b32.xlu0 %v1567, 80
      %v1647 = vpop.permute.xlu0 %1646
      %1648 = vrot.lane.b32.xlu0 %v1568, 80
      %v1649 = vpop.permute.xlu0 %1648
      %1650 = vrot.lane.b32.xlu0 %v1569, 80
      %v1651 = vpop.permute.xlu0 %1650
      %1652 = vrot.lane.b32.xlu0 %v1570, 80
      %v1653 = vpop.permute.xlu0 %1652
      %1654 = vrot.lane.b32.xlu0 %v1571, 80
      %v1655 = vpop.permute.xlu0 %1654
      %1656 = vrot.lane.b32.xlu0 %v1572, 80
      %v1657 = vpop.permute.xlu0 %1656
      %1658 = vrot.lane.b32.xlu0 %v1573, 80
      %v1659 = vpop.permute.xlu0 %1658
      %1660 = vrot.lane.b32.xlu0 %v1574, 80
      %v1661 = vpop.permute.xlu0 %1660
      %1662 = vrot.lane.b32.xlu0 %v1575, 80
      %v1663 = vpop.permute.xlu0 %1662
      %1664 = vrot.lane.b32.xlu0 %v1576, 80
      %v1665 = vpop.permute.xlu0 %1664
      %1666 = vrot.lane.b32.xlu0 %v1577, 80
      %v1667 = vpop.permute.xlu0 %1666
      %1668 = vrot.lane.b32.xlu0 %v1578, 80
      %v1669 = vpop.permute.xlu0 %1668
      %1670 = vrot.lane.b32.xlu0 %v1579, 80
      %v1671 = vpop.permute.xlu0 %1670
      %1672 = vrot.lane.b32.xlu0 %v1580, 80
      %v1673 = vpop.permute.xlu0 %1672
      %1674 = vrot.lane.b32.xlu0 %v1581, 80
      %v1675 = vpop.permute.xlu0 %1674
      %1676 = vrot.lane.b32.xlu0 %v1582, 80
      %v1677 = vpop.permute.xlu0 %1676
      %1678 = vrot.lane.b32.xlu0 %v1583, 80
      %v1679 = vpop.permute.xlu0 %1678
      %v1712 = vadd.f32 %v1376, %v1617
      %v1713 = vadd.f32 %v1379, %v1619
      %v1714 = vadd.f32 %v1384, %v1621
      %v1715 = vadd.f32 %v1387, %v1623
      %v1716 = vadd.f32 %v1392, %v1625
      %v1717 = vadd.f32 %v1395, %v1627
      %v1718 = vadd.f32 %v1400, %v1629
      %v1719 = vadd.f32 %v1403, %v1631
      %v1720 = vadd.f32 %v1408, %v1633
      %v1721 = vadd.f32 %v1411, %v1635
      %v1722 = vadd.f32 %v1416, %v1637
      %v1723 = vadd.f32 %v1419, %v1639
      %v1724 = vadd.f32 %v1424, %v1641
      %v1725 = vadd.f32 %v1427, %v1643
      %v1726 = vadd.f32 %v1432, %v1645
      %v1727 = vadd.f32 %v1435, %v1647
      %v1728 = vadd.f32 %v1440, %v1649
      %v1729 = vadd.f32 %v1443, %v1651
      %v1730 = vadd.f32 %v1448, %v1653
      %v1731 = vadd.f32 %v1451, %v1655
      %v1732 = vadd.f32 %v1456, %v1657
      %v1733 = vadd.f32 %v1459, %v1659
      %v1734 = vadd.f32 %v1464, %v1661
      %v1735 = vadd.f32 %v1467, %v1663
      %v1736 = vadd.f32 %v1472, %v1665
      %v1737 = vadd.f32 %v1475, %v1667
      %v1738 = vadd.f32 %v1480, %v1669
      %v1739 = vadd.f32 %v1483, %v1671
      %v1740 = vadd.f32 %v1488, %v1673
      %v1741 = vadd.f32 %v1491, %v1675
      %v1742 = vadd.f32 %v1496, %v1677
      %v1743 = vadd.f32 %v1499, %v1679
      %v1744 = vmax.f32 %v1712, 0.0
      %v1745 = vmax.f32 %v1713, 0.0
      %v1746 = vmax.f32 %v1714, 0.0
      %v1747 = vmax.f32 %v1715, 0.0
      %v1748 = vmax.f32 %v1716, 0.0
      %v1749 = vmax.f32 %v1717, 0.0
      %v1750 = vmax.f32 %v1718, 0.0
      %v1751 = vmax.f32 %v1719, 0.0
      %v1752 = vmax.f32 %v1720, 0.0
      %v1753 = vmax.f32 %v1721, 0.0
      %v1754 = vmax.f32 %v1722, 0.0
      %v1755 = vmax.f32 %v1723, 0.0
      %v1756 = vmax.f32 %v1724, 0.0
      %v1757 = vmax.f32 %v1725, 0.0
      %v1758 = vmax.f32 %v1726, 0.0
      %v1759 = vmax.f32 %v1727, 0.0
      %v1760 = vmax.f32 %v1728, 0.0
      %v1761 = vmax.f32 %v1729, 0.0
      %v1762 = vmax.f32 %v1730, 0.0
      %v1763 = vmax.f32 %v1731, 0.0
      %v1764 = vmax.f32 %v1732, 0.0
      %v1765 = vmax.f32 %v1733, 0.0
      %v1766 = vmax.f32 %v1734, 0.0
      %v1767 = vmax.f32 %v1735, 0.0
      %v1768 = vmax.f32 %v1736, 0.0
      %v1769 = vmax.f32 %v1737, 0.0
      %v1770 = vmax.f32 %v1738, 0.0
      %v1771 = vmax.f32 %v1739, 0.0
      %v1772 = vmax.f32 %v1740, 0.0
      %v1773 = vmax.f32 %v1741, 0.0
      %v1774 = vmax.f32 %v1742, 0.0
      %v1775 = vmax.f32 %v1743, 0.0
      %vm1776 = vcmask 261120
      %1777 = vst.msk [vmem:[%s486] sm:$0xff] %vm1776, %v1744
      %1778 = vst.msk [vmem:[%s486 + $0x8] sm:$0xff] %vm1776, %v1745
      %1779 = vst.msk [vmem:[%s486 + $0x10] sm:$0xff] %vm1776, %v1746
      %1780 = vst.msk [vmem:[%s486 + $0x18] sm:$0xff] %vm1776, %v1747
      %1781 = vst.msk [vmem:[%s486 + $0x20] sm:$0xff] %vm1776, %v1748
      %1782 = vst.msk [vmem:[%s486 + $0x28] sm:$0xff] %vm1776, %v1749
      %1783 = vst.msk [vmem:[%s486 + $0x30] sm:$0xff] %vm1776, %v1750
      %1784 = vst.msk [vmem:[%s486 + $0x38] sm:$0xff] %vm1776, %v1751
      %1785 = vst.msk [vmem:[%s486 + $0x40] sm:$0xff] %vm1776, %v1752
      %1786 = vst.msk [vmem:[%s486 + $0x48] sm:$0xff] %vm1776, %v1753
      %1787 = vst.msk [vmem:[%s486 + $0x50] sm:$0xff] %vm1776, %v1754
      %1788 = vst.msk [vmem:[%s486 + $0x58] sm:$0xff] %vm1776, %v1755
      %1789 = vst.msk [vmem:[%s486 + $0x60] sm:$0xff] %vm1776, %v1756
      %1790 = vst.msk [vmem:[%s486 + $0x68] sm:$0xff] %vm1776, %v1757
      %1791 = vst.msk [vmem:[%s486 + $0x70] sm:$0xff] %vm1776, %v1758
      %1792 = vst.msk [vmem:[%s486 + $0x78] sm:$0xff] %vm1776, %v1759
      %1793 = vst.msk [vmem:[%s486 + $0x80] sm:$0xff] %vm1776, %v1760
      %1794 = vst.msk [vmem:[%s486 + $0x88] sm:$0xff] %vm1776, %v1761
      %1795 = vst.msk [vmem:[%s486 + $0x90] sm:$0xff] %vm1776, %v1762
      %1796 = vst.msk [vmem:[%s486 + $0x98] sm:$0xff] %vm1776, %v1763
      %1797 = vst.msk [vmem:[%s486 + $0xa0] sm:$0xff] %vm1776, %v1764
      %1798 = vst.msk [vmem:[%s486 + $0xa8] sm:$0xff] %vm1776, %v1765
      %1799 = vst.msk [vmem:[%s486 + $0xb0] sm:$0xff] %vm1776, %v1766
      %1800 = vst.msk [vmem:[%s486 + $0xb8] sm:$0xff] %vm1776, %v1767
      %1801 = vst.msk [vmem:[%s486 + $0xc0] sm:$0xff] %vm1776, %v1768
      %1802 = vst.msk [vmem:[%s486 + $0xc8] sm:$0xff] %vm1776, %v1769
      %1803 = vst.msk [vmem:[%s486 + $0xd0] sm:$0xff] %vm1776, %v1770
      %1804 = vst.msk [vmem:[%s486 + $0xd8] sm:$0xff] %vm1776, %v1771
      %1805 = vst.msk [vmem:[%s486 + $0xe0] sm:$0xff] %vm1776, %v1772
      %1806 = vst.msk [vmem:[%s486 + $0xe8] sm:$0xff] %vm1776, %v1773
      %1807 = vst.msk [vmem:[%s486 + $0xf0] sm:$0xff] %vm1776, %v1774
      %1808 = vst.msk [vmem:[%s486 + $0xf8] sm:$0xff] %vm1776, %v1775
      %s1809 = smul.u32 32, %s24
      %p1810 = scmp.lt.s32.totalorder %s1809, 95
      %s1811 = scalar_select %p1810, %s1809, 95
      %s1812 = smul.addr %s1811, 8
      %s1813 = scalar_lea.vmem %s13, %s1812
      // Predicated region
      $region73: #{a_call__.9} parent=71 // pred_check
        %p1814 = pneg %p330
      $region74: #{a_call__.9} parent=71 // pred_check_branch
        %1816 = sbr.rel (%p1814) target = $region76
      $region75: #{a_call__.9} parent=71 // pred_region
        %s1817 = smul.u32 32, %s24
      $region76: #{a_call__.9} parent=71 // pred_fallthru
        _
    $region72: #{a_call__.9} parent=5 // pred_fallthru
      _
    %p1818 = scmp.le.s32.totalorder 2, %s19
    // Predicated region
    $region77: #{a_call__.9} parent=5 // pred_check
      %p1819 = pneg %p1818
    $region78: #{a_call__.9} parent=5 // pred_check_branch
      %1821 = sbr.rel (%p1819) target = $region80
    $region79: #{a_call__.9} parent=5 // pred_region
      %s1822 = ssub.s32 %s19, 2
      // Predicated region
      $region81: #{a_call__.9} parent=79 // pred_check
        %p1823 = pneg %p336
      $region82: #{a_call__.9} parent=79 // pred_check_branch
        %1825 = sbr.rel (%p1823) target = $region84
      $region83: #{a_call__.9} parent=79 // pred_region
        %s1826 = smul.u32 32, %s25
        %p1827 = scmp.lt.s32.totalorder %s1826, 95
        %s1828 = scalar_select %p1827, %s1826, 95
        %s1829 = smul.addr %s1828, 8
        %s1830 = scalar_lea.vmem %s13, %s1829
      $region84: #{a_call__.9} parent=79 // pred_fallthru
        _
    $region80: #{a_call__.9} parent=5 // pred_fallthru
      _
  $region6: #{a_call__.9} parent=0 // loop_footer
    %s23 = sadd.s32 1, %s19
  $region7: #{a_call__.9} parent=0 // loop_footer_branch
    %18 = sbr.rel target = $region3
  $region8: #{a_call__.9} parent=0 // loop_exit
    _

// kernel: a_call__.8
$region0: #{a_call__.8}
  #allocation0 [shape = 'u32[]', space=smem, size = 0x4, offset = 0x4, fixed_abs, tag = 'smem constant byte address 0x4 - core index']
  #allocation1 [shape = 'u32[144,128]{1,0:T(1,128)}', space=vmem, size = 0x12000, scoped, tag = 'internal scratch']
  #allocation2 [shape = 'f32[294,24]{1,0:T(8,128)}', space=vmem, size = 0x25000, scoped, tag = 'scratch operand']
  #allocation3 [shape = 'f32[294,1]{1,0:T(8,128)}', space=vmem, size = 0x25000, scoped, tag = 'scratch operand']
  #allocation4 [shape = 's32[2]{0}', space=sflag, size = 0x8, scoped, tag = 'scratch operand']
  #allocation5 [shape = 's32[]', space=sflag, size = 0x4, offset = 0, fixed_abs, tag = 'sflag constant byte address 0x0 - dummy sync flag']
  #allocation6 [shape = 's32[]', space=sflag, size = 0x4, offset = 0, fixed_abs, tag = 'sflag constant byte address 0x0 - dummy sync flag']
  %s0 = inlined_call_operand.vmem [shape: f32[1,24], index: 0, kind: input, shape index: {}]
  %s1 = inlined_call_operand.vmem [shape: f32[1,24], index: 1, kind: input, shape index: {}]
  %s2 = inlined_call_operand.vmem [shape: bf16[216,24], index: 2, kind: input, shape index: {}]
  %s3 = inlined_call_operand.vmem [shape: f32[806,24], index: 3, kind: input, shape index: {}]
  %s4 = inlined_call_operand.vmem [shape: f32[806,1], index: 4, kind: input, shape index: {}]
  %s5 = inlined_call_operand.vmem [shape: f32[768,24], index: 5, kind: output, shape index: {0}]
  %s6 = inlined_call_operand.vmem [shape: f32[1,24], index: 6, kind: output, shape index: {1}]
  %s7 = inlined_call_operand.vmem [shape: f32[1,24], index: 7, kind: output, shape index: {2}]
  %8 = xla_tuple %s5, %s6, %s7
  %s9 = sld [smem:[#allocation0]]
  $region139: #{a_call__.8} parent=0
    _
  %s11 = ssub.s32 1, %s9
  %s12 = scalar_select 0, %s11, %s9
  loop: start=0, step=1, limit=5
  $region2: #{a_call__.8} parent=0 // loop_pre_header
    _
  $region3: #{a_call__.8} parent=0 // loop_header
    %s14 = sphi 0, %s18
    %p15 = scmp.ge.s32.totalorder %s14, 5
    %s22 = sphi 0, %s22
    %s24 = sphi 0, %s22
    %s25 = sphi 0, %s24
    %s39 = sphi 0, %s25
    %s43 = sphi 0, %s43
    %s45 = sphi 0, %s43
    %s46 = sphi 0, %s45
    %s60 = sphi 0, %s46
    %s64 = sphi 0, %s64
    %s66 = sphi 0, %s64
    %s67 = sphi 0, %s66
    %s81 = sphi 0, %s67
    %s87 = sphi 0, %s89
    %s90 = sphi 0, %s87
    %s91 = sphi 0, %s90
    %s107 = sphi 0, %s91
    %s111 = sphi 0, %s111
    %s113 = sphi 0, %s111
    %s114 = sphi 0, %s113
    %s128 = sphi 0, %s114
    %s132 = sphi 0, %s132
    %s134 = sphi 0, %s132
    %s135 = sphi 0, %s134
    %s149 = sphi 0, %s135
  $region4: #{a_call__.8} parent=0 // loop_header_branch
    %17 = sbr.rel (%p15) target = $region8
  $region5: #{a_call__.8} parent=0 // loop_body
    %s19 = ssub.s32 %s14, 1
    %s20 = ssub.s32 %s14, 2
    %s21 = sadd.s32 %s14, 1
    %s23 = sadd.s32 %s22, 1
    %p26 = scmp.eq.s32.totalorder %s14, 2
    %p27 = scmp.ne.s32.totalorder %s22, %s24
    %p28 = scmp.eq.s32.totalorder %s14, 0
    %p29 = por %p27, %p28
    %p30 = scmp.ne.s32.totalorder %s22, %s24
    %p31 = scmp.eq.s32.totalorder %s19, 2
    %p32 = por %p30, %p31
    %p33 = scmp.ne.s32.totalorder %s24, %s25
    %p34 = scmp.eq.s32.totalorder %s19, 0
    %p35 = por %p33, %p34
    %p36 = scmp.ne.s32.totalorder %s24, %s25
    %p37 = scmp.eq.s32.totalorder %s20, 2
    %p38 = por %p36, %p37
    %p40 = scmp.ne.s32.totalorder %s25, %s39
    %p41 = scmp.eq.s32.totalorder %s20, 0
    %p42 = por %p40, %p41
    %s44 = sadd.s32 %s43, 1
    %p47 = scmp.eq.s32.totalorder %s14, 2
    %p48 = scmp.ne.s32.totalorder %s43, %s45
    %p49 = scmp.eq.s32.totalorder %s14, 0
    %p50 = por %p48, %p49
    %p51 = scmp.ne.s32.totalorder %s43, %s45
    %p52 = scmp.eq.s32.totalorder %s19, 2
    %p53 = por %p51, %p52
    %p54 = scmp.ne.s32.totalorder %s45, %s46
    %p55 = scmp.eq.s32.totalorder %s19, 0
    %p56 = por %p54, %p55
    %p57 = scmp.ne.s32.totalorder %s45, %s46
    %p58 = scmp.eq.s32.totalorder %s20, 2
    %p59 = por %p57, %p58
    %p61 = scmp.ne.s32.totalorder %s46, %s60
    %p62 = scmp.eq.s32.totalorder %s20, 0
    %p63 = por %p61, %p62
    %s65 = sadd.s32 %s64, 1
    %p68 = scmp.eq.s32.totalorder %s14, 2
    %p69 = scmp.ne.s32.totalorder %s64, %s66
    %p70 = scmp.eq.s32.totalorder %s14, 0
    %p71 = por %p69, %p70
    %p72 = scmp.ne.s32.totalorder %s64, %s66
    %p73 = scmp.eq.s32.totalorder %s19, 2
    %p74 = por %p72, %p73
    %p75 = scmp.ne.s32.totalorder %s66, %s67
    %p76 = scmp.eq.s32.totalorder %s19, 0
    %p77 = por %p75, %p76
    %p78 = scmp.ne.s32.totalorder %s66, %s67
    %p79 = scmp.eq.s32.totalorder %s20, 2
    %p80 = por %p78, %p79
    %p82 = scmp.ne.s32.totalorder %s67, %s81
    %p83 = scmp.eq.s32.totalorder %s20, 0
    %p84 = por %p82, %p83
    %s85 = ssub.s32 %s14, %s21
    %p86 = scmp.eq.s32.totalorder %s85, 0
    %s88 = sadd.s32 %s87, 1
    %s89 = scalar_select %p86, %s87, %s88
    %p92 = pneg %p86
    %p93 = scmp.eq.s32.totalorder %s14, 2
    %p94 = por %p92, %p93
    %p95 = scmp.ne.s32.totalorder %s87, %s90
    %p96 = scmp.eq.s32.totalorder %s14, 0
    %p97 = por %p95, %p96
    %p98 = scmp.ne.s32.totalorder %s87, %s90
    %p99 = scmp.eq.s32.totalorder %s19, 2
    %p100 = por %p98, %p99
    %p101 = scmp.ne.s32.totalorder %s90, %s91
    %p102 = scmp.eq.s32.totalorder %s19, 0
    %p103 = por %p101, %p102
    %p104 = scmp.ne.s32.totalorder %s90, %s91
    %p105 = scmp.eq.s32.totalorder %s20, 2
    %p106 = por %p104, %p105
    %p108 = scmp.ne.s32.totalorder %s91, %s107
    %p109 = scmp.eq.s32.totalorder %s20, 0
    %p110 = por %p108, %p109
    %s112 = sadd.s32 %s111, 1
    %p115 = scmp.eq.s32.totalorder %s14, 2
    %p116 = scmp.ne.s32.totalorder %s111, %s113
    %p117 = scmp.eq.s32.totalorder %s14, 0
    %p118 = por %p116, %p117
    %p119 = scmp.ne.s32.totalorder %s111, %s113
    %p120 = scmp.eq.s32.totalorder %s19, 2
    %p121 = por %p119, %p120
    %p122 = scmp.ne.s32.totalorder %s113, %s114
    %p123 = scmp.eq.s32.totalorder %s19, 0
    %p124 = por %p122, %p123
    %p125 = scmp.ne.s32.totalorder %s113, %s114
    %p126 = scmp.eq.s32.totalorder %s20, 2
    %p127 = por %p125, %p126
    %p129 = scmp.ne.s32.totalorder %s114, %s128
    %p130 = scmp.eq.s32.totalorder %s20, 0
    %p131 = por %p129, %p130
    %s133 = sadd.s32 %s132, 1
    %p136 = scmp.eq.s32.totalorder %s14, 2
    %p137 = scmp.ne.s32.totalorder %s132, %s134
    %p138 = scmp.eq.s32.totalorder %s14, 0
    %p139 = por %p137, %p138
    %p140 = scmp.ne.s32.totalorder %s132, %s134
    %p141 = scmp.eq.s32.totalorder %s19, 2
    %p142 = por %p140, %p141
    %p143 = scmp.ne.s32.totalorder %s134, %s135
    %p144 = scmp.eq.s32.totalorder %s19, 0
    %p145 = por %p143, %p144
    %p146 = scmp.ne.s32.totalorder %s134, %s135
    %p147 = scmp.eq.s32.totalorder %s20, 2
    %p148 = por %p146, %p147
    %p150 = scmp.ne.s32.totalorder %s135, %s149
    %p151 = scmp.eq.s32.totalorder %s20, 0
    %p152 = por %p150, %p151
    %p153 = scmp.le.s32.totalorder 1, %s14
    %p154 = scmp.lt.s32.totalorder %s14, 4
    %p155 = pnand %p153, %p154
    %p156 = pneg %p155
    // Predicated region
    $region9: #{a_call__.8} parent=5 // pred_check
      _
    $region10: #{a_call__.8} parent=5 // pred_check_branch
      %158 = sbr.rel (%p155) target = $region12
    $region11: #{a_call__.8} parent=5 // pred_region
      %s159 = ssub.s32 %s14, 1
      // Predicated region
      $region13: #{a_call__.8} parent=11 // pred_check
        %p160 = pneg %p35
      $region14: #{a_call__.8} parent=11 // pred_check_branch
        %162 = sbr.rel (%p160) target = $region16
      $region15: #{a_call__.8} parent=11 // pred_region
        _
      $region16: #{a_call__.8} parent=11 // pred_fallthru
        _
      // Predicated region
      $region17: #{a_call__.8} parent=11 // pred_check
        %p163 = pneg %p56
      $region18: #{a_call__.8} parent=11 // pred_check_branch
        %165 = sbr.rel (%p163) target = $region20
      $region19: #{a_call__.8} parent=11 // pred_region
        _
      $region20: #{a_call__.8} parent=11 // pred_fallthru
        _
      // Predicated region
      $region21: #{a_call__.8} parent=11 // pred_check
        %p166 = pneg %p77
      $region22: #{a_call__.8} parent=11 // pred_check_branch
        %168 = sbr.rel (%p166) target = $region24
      $region23: #{a_call__.8} parent=11 // pred_region
        _
      $region24: #{a_call__.8} parent=11 // pred_fallthru
        _
    $region12: #{a_call__.8} parent=5 // pred_fallthru
      _
    %p169 = scmp.lt.s32.totalorder %s14, 3
    // Predicated region
    $region25: #{a_call__.8} parent=5 // pred_check
      %p170 = pneg %p169
    $region26: #{a_call__.8} parent=5 // pred_check_branch
      %172 = sbr.rel (%p170) target = $region28
    $region27: #{a_call__.8} parent=5 // pred_region
      _
    $region28: #{a_call__.8} parent=5 // pred_fallthru
      _
    %p173 = scmp.le.s32.totalorder 1, %s14
    %p174 = scmp.lt.s32.totalorder %s14, 4
    %p175 = pnand %p173, %p174
    %p176 = pneg %p175
    // Predicated region
    $region29: #{a_call__.8} parent=5 // pred_check
      _
    $region30: #{a_call__.8} parent=5 // pred_check_branch
      %178 = sbr.rel (%p175) target = $region32
    $region31: #{a_call__.8} parent=5 // pred_region
      %s179 = ssub.s32 %s14, 1
      %p180 = pneg %p35
      %p181 = pneg %p32
      %p182 = pneg %p56
      %p183 = pneg %p53
      %p184 = pneg %p77
      %p185 = pneg %p74
      %p186 = pneg %p103
      %p187 = pneg %p100
      %s188 = smul.u32 32, %s19
      %p189 = scmp.lt.s32.totalorder %s188, 95
      %s190 = scalar_select %p189, %s188, 95
      %s191 = smul.addr %s190, 8
      %s192 = scalar_lea.vmem %s5, %s191
      %p193 = pneg %p124
      %p194 = pneg %p121
      %p195 = pneg %p145
      %p196 = pneg %p142
      %s197 = smul.u32 32, %s19
      %p198 = scmp.lt.s32.totalorder %s197, 95
      %s199 = scalar_select %p198, %s197, 95
      %s200 = smul.addr %s199, 8
      %s201 = scalar_lea.vmem %s5, %s200
      %s202 = smul.u32 32, %s19
      %s204 = smul.u32 %s19, 256
      %s205 = scalar_lea.vmem %s3, %s204
      %p207 = scmp.lt.u32.totalorder 294, 8
      %p208 = pneg %p207
      // Predicated region
      $region33: #{a_call__.8} parent=31 // pred_check
        _
      $region34: #{a_call__.8} parent=31 // pred_check_branch
        %210 = sbr.rel (%p207) target = $region36
      $region35: #{a_call__.8} parent=31 // pred_region
        %s225 = sand.u32 294, 7
        %p226 = scmp.eq.s32.totalorder %s225, 0
        %p227 = pneg %p226
        // Predicated region
        $region48: #{a_call__.8} parent=35 // pred_check
          _
        $region49: #{a_call__.8} parent=35 // pred_check_branch
          %229 = sbr.rel (%p226) target = $region51
        $region50: #{a_call__.8} parent=35 // pred_region
          %s230 = sand.u32 294, 7
          %s231 = ssub.s32 294, %s230
          %s232 = scalar_lea.vmem %s205, %s231
          %s233 = ssub.s32 294, %s230
          %s234 = scalar_lea.vmem [#allocation2], %s233
          loop: start=0, step=1, limit=1
          $region52: #{a_call__.8} parent=50 // loop_pre_header
            _
          $region53: #{a_call__.8} parent=50 // loop_header
            %s236 = sphi 0, %s240
            %p237 = scmp.ge.s32.totalorder %s236, 1
            %s241 = sphi %s205, %s205
            %s242 = sphi [#allocation2], [#allocation2]
          $region54: #{a_call__.8} parent=50 // loop_header_branch
            %239 = sbr.rel (%p237) target = $region58
          $region55: #{a_call__.8} parent=50 // loop_body
            %v243 = vld [vmem:[%s241] sm:$0xff]
            %244 = vst [vmem:[%s242] sm:$0xff] %v243
            %v245 = vld [vmem:[%s241 + $0x8] sm:$0xff]
            %246 = vst [vmem:[%s242 + $0x8] sm:$0xff] %v245
            %v247 = vld [vmem:[%s241 + $0x10] sm:$0xff]
            %248 = vst [vmem:[%s242 + $0x10] sm:$0xff] %v247
            %v249 = vld [vmem:[%s241 + $0x18] sm:$0xff]
            %250 = vst [vmem:[%s242 + $0x18] sm:$0xff] %v249
            %v251 = vld [vmem:[%s241 + $0x20] sm:$0xff]
            %252 = vst [vmem:[%s242 + $0x20] sm:$0xff] %v251
            %v253 = vld [vmem:[%s241 + $0x28] sm:$0xff]
            %254 = vst [vmem:[%s242 + $0x28] sm:$0xff] %v253
            %v255 = vld [vmem:[%s241 + $0x30] sm:$0xff]
            %256 = vst [vmem:[%s242 + $0x30] sm:$0xff] %v255
            %v257 = vld [vmem:[%s241 + $0x38] sm:$0xff]
            %258 = vst [vmem:[%s242 + $0x38] sm:$0xff] %v257
            %v259 = vld [vmem:[%s241 + $0x40] sm:$0xff]
            %260 = vst [vmem:[%s242 + $0x40] sm:$0xff] %v259
            %v261 = vld [vmem:[%s241 + $0x48] sm:$0xff]
            %262 = vst [vmem:[%s242 + $0x48] sm:$0xff] %v261
            %v263 = vld [vmem:[%s241 + $0x50] sm:$0xff]
            %264 = vst [vmem:[%s242 + $0x50] sm:$0xff] %v263
            %v265 = vld [vmem:[%s241 + $0x58] sm:$0xff]
            %266 = vst [vmem:[%s242 + $0x58] sm:$0xff] %v265
            %v267 = vld [vmem:[%s241 + $0x60] sm:$0xff]
            %268 = vst [vmem:[%s242 + $0x60] sm:$0xff] %v267
            %v269 = vld [vmem:[%s241 + $0x68] sm:$0xff]
            %270 = vst [vmem:[%s242 + $0x68] sm:$0xff] %v269
            %v271 = vld [vmem:[%s241 + $0x70] sm:$0xff]
            %272 = vst [vmem:[%s242 + $0x70] sm:$0xff] %v271
            %v273 = vld [vmem:[%s241 + $0x78] sm:$0xff]
            %274 = vst [vmem:[%s242 + $0x78] sm:$0xff] %v273
            %v275 = vld [vmem:[%s241 + $0x80] sm:$0xff]
            %276 = vst [vmem:[%s242 + $0x80] sm:$0xff] %v275
            %v277 = vld [vmem:[%s241 + $0x88] sm:$0xff]
            %278 = vst [vmem:[%s242 + $0x88] sm:$0xff] %v277
            %v279 = vld [vmem:[%s241 + $0x90] sm:$0xff]
            %280 = vst [vmem:[%s242 + $0x90] sm:$0xff] %v279
            %v281 = vld [vmem:[%s241 + $0x98] sm:$0xff]
            %282 = vst [vmem:[%s242 + $0x98] sm:$0xff] %v281
            %v283 = vld [vmem:[%s241 + $0xa0] sm:$0xff]
            %284 = vst [vmem:[%s242 + $0xa0] sm:$0xff] %v283
            %v285 = vld [vmem:[%s241 + $0xa8] sm:$0xff]
            %286 = vst [vmem:[%s242 + $0xa8] sm:$0xff] %v285
            %v287 = vld [vmem:[%s241 + $0xb0] sm:$0xff]
            %288 = vst [vmem:[%s242 + $0xb0] sm:$0xff] %v287
            %v289 = vld [vmem:[%s241 + $0xb8] sm:$0xff]
            %290 = vst [vmem:[%s242 + $0xb8] sm:$0xff] %v289
            %v291 = vld [vmem:[%s241 + $0xc0] sm:$0xff]
            %292 = vst [vmem:[%s242 + $0xc0] sm:$0xff] %v291
            %v293 = vld [vmem:[%s241 + $0xc8] sm:$0xff]
            %294 = vst [vmem:[%s242 + $0xc8] sm:$0xff] %v293
            %v295 = vld [vmem:[%s241 + $0xd0] sm:$0xff]
            %296 = vst [vmem:[%s242 + $0xd0] sm:$0xff] %v295
            %v297 = vld [vmem:[%s241 + $0xd8] sm:$0xff]
            %298 = vst [vmem:[%s242 + $0xd8] sm:$0xff] %v297
            %v299 = vld [vmem:[%s241 + $0xe0] sm:$0xff]
            %300 = vst [vmem:[%s242 + $0xe0] sm:$0xff] %v299
            %v301 = vld [vmem:[%s241 + $0xe8] sm:$0xff]
            %302 = vst [vmem:[%s242 + $0xe8] sm:$0xff] %v301
            %v303 = vld [vmem:[%s241 + $0xf0] sm:$0xff]
            %304 = vst [vmem:[%s242 + $0xf0] sm:$0xff] %v303
            %v305 = vld [vmem:[%s241 + $0xf8] sm:$0xff]
            %306 = vst [vmem:[%s242 + $0xf8] sm:$0xff] %v305
            %v307 = vld [vmem:[%s241 + $0x100] sm:$0xff]
            %308 = vst [vmem:[%s242 + $0x100] sm:$0xff] %v307
            %v309 = vld [vmem:[%s241 + $0x108] sm:$0xff]
            %310 = vst [vmem:[%s242 + $0x108] sm:$0xff] %v309
            %v311 = vld [vmem:[%s241 + $0x110] sm:$0xff]
            %312 = vst [vmem:[%s242 + $0x110] sm:$0xff] %v311
            %v313 = vld [vmem:[%s241 + $0x118] sm:$0xff]
            %314 = vst [vmem:[%s242 + $0x118] sm:$0xff] %v313
          $region56: #{a_call__.8} parent=50 // loop_footer
            %s240 = sadd.s32 1, %s236
          $region57: #{a_call__.8} parent=50 // loop_footer_branch
            %235 = sbr.rel target = $region53
          $region58: #{a_call__.8} parent=50 // loop_exit
            _
          %s315 = sshllo.u32 0, %s230
          loop: start=0, step=1, limit=1
          $region59: #{a_call__.8} parent=50 // loop_pre_header
            _
          $region60: #{a_call__.8} parent=50 // loop_header
            %s317 = sphi 0, %s321
            %p318 = scmp.ge.s32.totalorder %s317, 1
            %s322 = sphi %s232, %s232
            %s323 = sphi %s234, %s234
          $region61: #{a_call__.8} parent=50 // loop_header_branch
            %320 = sbr.rel (%p318) target = $region65
          $region62: #{a_call__.8} parent=50 // loop_body
            %v324 = vld [vmem:[%s322] sm:%s315]
            %325 = vst [vmem:[%s323] sm:%s315] %v324
          $region63: #{a_call__.8} parent=50 // loop_footer
            %s321 = sadd.s32 1, %s317
          $region64: #{a_call__.8} parent=50 // loop_footer_branch
            %316 = sbr.rel target = $region60
          $region65: #{a_call__.8} parent=50 // loop_exit
            _
        $region51: #{a_call__.8} parent=35 // pred_fallthru
          _
      $region36: #{a_call__.8} parent=31 // pred_fallthru
        _
      // Predicated region
      $region37: #{a_call__.8} parent=31 // pred_check
        %p211 = pneg %p207
      $region38: #{a_call__.8} parent=31 // pred_check_branch
        %213 = sbr.rel (%p211) target = $region40
      $region39: #{a_call__.8} parent=31 // pred_region
        %s214 = sshllo.u32 0, 294
        loop: start=0, step=1, limit=1
        $region41: #{a_call__.8} parent=39 // loop_pre_header
          _
        $region42: #{a_call__.8} parent=39 // loop_header
          %s216 = sphi 0, %s220
          %p217 = scmp.ge.s32.totalorder %s216, 1
          %s221 = sphi %s205, %s205
          %s222 = sphi [#allocation2], [#allocation2]
        $region43: #{a_call__.8} parent=39 // loop_header_branch
          %219 = sbr.rel (%p217) target = $region47
        $region44: #{a_call__.8} parent=39 // loop_body
          %v223 = vld [vmem:[%s221] sm:%s214]
          %224 = vst [vmem:[%s222] sm:%s214] %v223
        $region45: #{a_call__.8} parent=39 // loop_footer
          %s220 = sadd.s32 1, %s216
        $region46: #{a_call__.8} parent=39 // loop_footer_branch
          %215 = sbr.rel target = $region42
        $region47: #{a_call__.8} parent=39 // loop_exit
          _
      $region40: #{a_call__.8} parent=31 // pred_fallthru
        _
      // Predicated region
      $region66: #{a_call__.8} parent=31 // pred_check
        _
      $region67: #{a_call__.8} parent=31 // pred_check_branch
        %328 = sbr.rel (0) target = $region69
      $region68: #{a_call__.8} parent=31 // pred_region
        %329 = vsyncadd [#allocation4], 4704
      $region69: #{a_call__.8} parent=31 // pred_fallthru
        _
      %s330 = scalar_lea.vmem %s4, %s204
      %s331 = scalar_lea.sflag [#allocation4], 1
      %p333 = scmp.lt.u32.totalorder 294, 8
      %p334 = pneg %p333
      // Predicated region
      $region70: #{a_call__.8} parent=31 // pred_check
        _
      $region71: #{a_call__.8} parent=31 // pred_check_branch
        %336 = sbr.rel (%p333) target = $region73
      $region72: #{a_call__.8} parent=31 // pred_region
        %s351 = sand.u32 294, 7
        %p352 = scmp.eq.s32.totalorder %s351, 0
        %p353 = pneg %p352
        // Predicated region
        $region85: #{a_call__.8} parent=72 // pred_check
          _
        $region86: #{a_call__.8} parent=72 // pred_check_branch
          %355 = sbr.rel (%p352) target = $region88
        $region87: #{a_call__.8} parent=72 // pred_region
          %s356 = sand.u32 294, 7
          %s357 = ssub.s32 294, %s356
          %s358 = scalar_lea.vmem %s330, %s357
          %s359 = ssub.s32 294, %s356
          %s360 = scalar_lea.vmem [#allocation3], %s359
          loop: start=0, step=1, limit=1
          $region89: #{a_call__.8} parent=87 // loop_pre_header
            _
          $region90: #{a_call__.8} parent=87 // loop_header
            %s362 = sphi 0, %s366
            %p363 = scmp.ge.s32.totalorder %s362, 1
            %s367 = sphi %s330, %s330
            %s368 = sphi [#allocation3], [#allocation3]
          $region91: #{a_call__.8} parent=87 // loop_header_branch
            %365 = sbr.rel (%p363) target = $region95
          $region92: #{a_call__.8} parent=87 // loop_body
            %v369 = vld [vmem:[%s367] sm:$0xff]
            %370 = vst [vmem:[%s368] sm:$0xff] %v369
            %v371 = vld [vmem:[%s367 + $0x8] sm:$0xff]
            %372 = vst [vmem:[%s368 + $0x8] sm:$0xff] %v371
            %v373 = vld [vmem:[%s367 + $0x10] sm:$0xff]
            %374 = vst [vmem:[%s368 + $0x10] sm:$0xff] %v373
            %v375 = vld [vmem:[%s367 + $0x18] sm:$0xff]
            %376 = vst [vmem:[%s368 + $0x18] sm:$0xff] %v375
            %v377 = vld [vmem:[%s367 + $0x20] sm:$0xff]
            %378 = vst [vmem:[%s368 + $0x20] sm:$0xff] %v377
            %v379 = vld [vmem:[%s367 + $0x28] sm:$0xff]
            %380 = vst [vmem:[%s368 + $0x28] sm:$0xff] %v379
            %v381 = vld [vmem:[%s367 + $0x30] sm:$0xff]
            %382 = vst [vmem:[%s368 + $0x30] sm:$0xff] %v381
            %v383 = vld [vmem:[%s367 + $0x38] sm:$0xff]
            %384 = vst [vmem:[%s368 + $0x38] sm:$0xff] %v383
            %v385 = vld [vmem:[%s367 + $0x40] sm:$0xff]
            %386 = vst [vmem:[%s368 + $0x40] sm:$0xff] %v385
            %v387 = vld [vmem:[%s367 + $0x48] sm:$0xff]
            %388 = vst [vmem:[%s368 + $0x48] sm:$0xff] %v387
            %v389 = vld [vmem:[%s367 + $0x50] sm:$0xff]
            %390 = vst [vmem:[%s368 + $0x50] sm:$0xff] %v389
            %v391 = vld [vmem:[%s367 + $0x58] sm:$0xff]
            %392 = vst [vmem:[%s368 + $0x58] sm:$0xff] %v391
            %v393 = vld [vmem:[%s367 + $0x60] sm:$0xff]
            %394 = vst [vmem:[%s368 + $0x60] sm:$0xff] %v393
            %v395 = vld [vmem:[%s367 + $0x68] sm:$0xff]
            %396 = vst [vmem:[%s368 + $0x68] sm:$0xff] %v395
            %v397 = vld [vmem:[%s367 + $0x70] sm:$0xff]
            %398 = vst [vmem:[%s368 + $0x70] sm:$0xff] %v397
            %v399 = vld [vmem:[%s367 + $0x78] sm:$0xff]
            %400 = vst [vmem:[%s368 + $0x78] sm:$0xff] %v399
            %v401 = vld [vmem:[%s367 + $0x80] sm:$0xff]
            %402 = vst [vmem:[%s368 + $0x80] sm:$0xff] %v401
            %v403 = vld [vmem:[%s367 + $0x88] sm:$0xff]
            %404 = vst [vmem:[%s368 + $0x88] sm:$0xff] %v403
            %v405 = vld [vmem:[%s367 + $0x90] sm:$0xff]
            %406 = vst [vmem:[%s368 + $0x90] sm:$0xff] %v405
            %v407 = vld [vmem:[%s367 + $0x98] sm:$0xff]
            %408 = vst [vmem:[%s368 + $0x98] sm:$0xff] %v407
            %v409 = vld [vmem:[%s367 + $0xa0] sm:$0xff]
            %410 = vst [vmem:[%s368 + $0xa0] sm:$0xff] %v409
            %v411 = vld [vmem:[%s367 + $0xa8] sm:$0xff]
            %412 = vst [vmem:[%s368 + $0xa8] sm:$0xff] %v411
            %v413 = vld [vmem:[%s367 + $0xb0] sm:$0xff]
            %414 = vst [vmem:[%s368 + $0xb0] sm:$0xff] %v413
            %v415 = vld [vmem:[%s367 + $0xb8] sm:$0xff]
            %416 = vst [vmem:[%s368 + $0xb8] sm:$0xff] %v415
            %v417 = vld [vmem:[%s367 + $0xc0] sm:$0xff]
            %418 = vst [vmem:[%s368 + $0xc0] sm:$0xff] %v417
            %v419 = vld [vmem:[%s367 + $0xc8] sm:$0xff]
            %420 = vst [vmem:[%s368 + $0xc8] sm:$0xff] %v419
            %v421 = vld [vmem:[%s367 + $0xd0] sm:$0xff]
            %422 = vst [vmem:[%s368 + $0xd0] sm:$0xff] %v421
            %v423 = vld [vmem:[%s367 + $0xd8] sm:$0xff]
            %424 = vst [vmem:[%s368 + $0xd8] sm:$0xff] %v423
            %v425 = vld [vmem:[%s367 + $0xe0] sm:$0xff]
            %426 = vst [vmem:[%s368 + $0xe0] sm:$0xff] %v425
            %v427 = vld [vmem:[%s367 + $0xe8] sm:$0xff]
            %428 = vst [vmem:[%s368 + $0xe8] sm:$0xff] %v427
            %v429 = vld [vmem:[%s367 + $0xf0] sm:$0xff]
            %430 = vst [vmem:[%s368 + $0xf0] sm:$0xff] %v429
            %v431 = vld [vmem:[%s367 + $0xf8] sm:$0xff]
            %432 = vst [vmem:[%s368 + $0xf8] sm:$0xff] %v431
            %v433 = vld [vmem:[%s367 + $0x100] sm:$0xff]
            %434 = vst [vmem:[%s368 + $0x100] sm:$0xff] %v433
            %v435 = vld [vmem:[%s367 + $0x108] sm:$0xff]
            %436 = vst [vmem:[%s368 + $0x108] sm:$0xff] %v435
            %v437 = vld [vmem:[%s367 + $0x110] sm:$0xff]
            %438 = vst [vmem:[%s368 + $0x110] sm:$0xff] %v437
            %v439 = vld [vmem:[%s367 + $0x118] sm:$0xff]
            %440 = vst [vmem:[%s368 + $0x118] sm:$0xff] %v439
          $region93: #{a_call__.8} parent=87 // loop_footer
            %s366 = sadd.s32 1, %s362
          $region94: #{a_call__.8} parent=87 // loop_footer_branch
            %361 = sbr.rel target = $region90
          $region95: #{a_call__.8} parent=87 // loop_exit
            _
          %s441 = sshllo.u32 0, %s356
          loop: start=0, step=1, limit=1
          $region96: #{a_call__.8} parent=87 // loop_pre_header
            _
          $region97: #{a_call__.8} parent=87 // loop_header
            %s443 = sphi 0, %s447
            %p444 = scmp.ge.s32.totalorder %s443, 1
            %s448 = sphi %s358, %s358
            %s449 = sphi %s360, %s360
          $region98: #{a_call__.8} parent=87 // loop_header_branch
            %446 = sbr.rel (%p444) target = $region102
          $region99: #{a_call__.8} parent=87 // loop_body
            %v450 = vld [vmem:[%s448] sm:%s441]
            %451 = vst [vmem:[%s449] sm:%s441] %v450
          $region100: #{a_call__.8} parent=87 // loop_footer
            %s447 = sadd.s32 1, %s443
          $region101: #{a_call__.8} parent=87 // loop_footer_branch
            %442 = sbr.rel target = $region97
          $region102: #{a_call__.8} parent=87 // loop_exit
            _
        $region88: #{a_call__.8} parent=72 // pred_fallthru
          _
      $region73: #{a_call__.8} parent=31 // pred_fallthru
        _
      // Predicated region
      $region74: #{a_call__.8} parent=31 // pred_check
        %p337 = pneg %p333
      $region75: #{a_call__.8} parent=31 // pred_check_branch
        %339 = sbr.rel (%p337) target = $region77
      $region76: #{a_call__.8} parent=31 // pred_region
        %s340 = sshllo.u32 0, 294
        loop: start=0, step=1, limit=1
        $region78: #{a_call__.8} parent=76 // loop_pre_header
          _
        $region79: #{a_call__.8} parent=76 // loop_header
          %s342 = sphi 0, %s346
          %p343 = scmp.ge.s32.totalorder %s342, 1
          %s347 = sphi %s330, %s330
          %s348 = sphi [#allocation3], [#allocation3]
        $region80: #{a_call__.8} parent=76 // loop_header_branch
          %345 = sbr.rel (%p343) target = $region84
        $region81: #{a_call__.8} parent=76 // loop_body
          %v349 = vld [vmem:[%s347] sm:%s340]
          %350 = vst [vmem:[%s348] sm:%s340] %v349
        $region82: #{a_call__.8} parent=76 // loop_footer
          %s346 = sadd.s32 1, %s342
        $region83: #{a_call__.8} parent=76 // loop_footer_branch
          %341 = sbr.rel target = $region79
        $region84: #{a_call__.8} parent=76 // loop_exit
          _
      $region77: #{a_call__.8} parent=31 // pred_fallthru
        _
      // Predicated region
      $region103: #{a_call__.8} parent=31 // pred_check
        _
      $region104: #{a_call__.8} parent=31 // pred_check_branch
        %454 = sbr.rel (0) target = $region106
      $region105: #{a_call__.8} parent=31 // pred_region
        %455 = vsyncadd %s331, 4704
      $region106: #{a_call__.8} parent=31 // pred_fallthru
        _
      %s456 = smul.u32 294, 1
      %s457 = sshll.u32 %s456, 4
      %458 = dma.done [#allocation4], %s457
      %s459 = sshll.u32 %s456, 4
      %460 = dma.done %s331, %s459
      %v461 = vld [vmem:[#allocation3] sm:$0xff]
      %v462 = vld [vmem:[#allocation3 + $0x8] sm:$0xff]
      %v463 = vld [vmem:[#allocation3 + $0x10] sm:$0xff]
      %v464 = vld [vmem:[#allocation3 + $0x18] sm:$0xff]
      %v465 = vld [vmem:[#allocation3 + $0x20] sm:$0xff]
      %v466 = vld [vmem:[#allocation3 + $0x28] sm:$0xff]
      %v467 = vld [vmem:[#allocation3 + $0x30] sm:$0xff]
      %v468 = vld [vmem:[#allocation3 + $0x38] sm:$0xff]
      %v469 = vld [vmem:[#allocation3 + $0x40] sm:$0xff]
      %v470 = vld [vmem:[#allocation3 + $0x48] sm:$0xff]
      %v471 = vld [vmem:[#allocation3 + $0x50] sm:$0xff]
      %v472 = vld [vmem:[#allocation3 + $0x58] sm:$0xff]
      %v473 = vld [vmem:[#allocation3 + $0x60] sm:$0xff]
      %v474 = vld [vmem:[#allocation3 + $0x68] sm:$0xff]
      %v475 = vld [vmem:[#allocation3 + $0x70] sm:$0xff]
      %v476 = vld [vmem:[#allocation3 + $0x78] sm:$0xff]
      %v477 = vld [vmem:[#allocation3 + $0x80] sm:$0xff]
      %v478 = vld [vmem:[#allocation3 + $0x88] sm:$0xff]
      %v479 = vld [vmem:[#allocation3 + $0x90] sm:$0xff]
      %v480 = vld [vmem:[#allocation3 + $0x98] sm:$0xff]
      %v481 = vld [vmem:[#allocation3 + $0xa0] sm:$0xff]
      %v482 = vld [vmem:[#allocation3 + $0xa8] sm:$0xff]
      %v483 = vld [vmem:[#allocation3 + $0xb0] sm:$0xff]
      %v484 = vld [vmem:[#allocation3 + $0xb8] sm:$0xff]
      %v485 = vld [vmem:[#allocation3 + $0xc0] sm:$0xff]
      %v486 = vld [vmem:[#allocation3 + $0xc8] sm:$0xff]
      %v487 = vld [vmem:[#allocation3 + $0xd0] sm:$0xff]
      %v488 = vld [vmem:[#allocation3 + $0xd8] sm:$0xff]
      %v489 = vld [vmem:[#allocation3 + $0xe0] sm:$0xff]
      %v490 = vld [vmem:[#allocation3 + $0xe8] sm:$0xff]
      %v491 = vld [vmem:[#allocation3 + $0xf0] sm:$0xff]
      %v492 = vld [vmem:[#allocation3 + $0xf8] sm:$0xff]
      %v493 = vld [vmem:[#allocation3 + $0x100] sm:$0xff]
      %v494 = vld [vmem:[#allocation3 + $0x108] sm:$0xff]
      %v495 = vld [vmem:[#allocation3 + $0x110] sm:$0xff]
      %v496 = vld [vmem:[#allocation3 + $0x118] sm:$0xff]
      %v497 = vld [vmem:[#allocation3 + $0x120] sm:$0x3f]
      %v498 = vld [vmem:[#allocation2] sm:$0xff]
      %v499 = vld [vmem:[#allocation2 + $0x8] sm:$0xff]
      %v500 = vld [vmem:[#allocation2 + $0x10] sm:$0xff]
      %v501 = vld [vmem:[#allocation2 + $0x18] sm:$0xff]
      %v502 = vld [vmem:[#allocation2 + $0x20] sm:$0xff]
      %v503 = vld [vmem:[#allocation2 + $0x28] sm:$0xff]
      %v504 = vld [vmem:[#allocation2 + $0x30] sm:$0xff]
      %v505 = vld [vmem:[#allocation2 + $0x38] sm:$0xff]
      %v506 = vld [vmem:[#allocation2 + $0x40] sm:$0xff]
      %v507 = vld [vmem:[#allocation2 + $0x48] sm:$0xff]
      %v508 = vld [vmem:[#allocation2 + $0x50] sm:$0xff]
      %v509 = vld [vmem:[#allocation2 + $0x58] sm:$0xff]
      %v510 = vld [vmem:[#allocation2 + $0x60] sm:$0xff]
      %v511 = vld [vmem:[#allocation2 + $0x68] sm:$0xff]
      %v512 = vld [vmem:[#allocation2 + $0x70] sm:$0xff]
      %v513 = vld [vmem:[#allocation2 + $0x78] sm:$0xff]
      %v514 = vld [vmem:[#allocation2 + $0x80] sm:$0xff]
      %v515 = vld [vmem:[#allocation2 + $0x88] sm:$0xff]
      %v516 = vld [vmem:[#allocation2 + $0x90] sm:$0xff]
      %v517 = vld [vmem:[#allocation2 + $0x98] sm:$0xff]
      %v518 = vld [vmem:[#allocation2 + $0xa0] sm:$0xff]
      %v519 = vld [vmem:[#allocation2 + $0xa8] sm:$0xff]
      %v520 = vld [vmem:[#allocation2 + $0xb0] sm:$0xff]
      %v521 = vld [vmem:[#allocation2 + $0xb8] sm:$0xff]
      %v522 = vld [vmem:[#allocation2 + $0xc0] sm:$0xff]
      %v523 = vld [vmem:[#allocation2 + $0xc8] sm:$0xff]
      %v524 = vld [vmem:[#allocation2 + $0xd0] sm:$0xff]
      %v525 = vld [vmem:[#allocation2 + $0xd8] sm:$0xff]
      %v526 = vld [vmem:[#allocation2 + $0xe0] sm:$0xff]
      %v527 = vld [vmem:[#allocation2 + $0xe8] sm:$0xff]
      %v528 = vld [vmem:[#allocation2 + $0xf0] sm:$0xff]
      %v529 = vld [vmem:[#allocation2 + $0xf8] sm:$0xff]
      %v530 = vld [vmem:[#allocation2 + $0x100] sm:$0xff]
      %v531 = vld [vmem:[#allocation2 + $0x108] sm:$0xff]
      %v532 = vld [vmem:[#allocation2 + $0x110] sm:$0xff]
      %v533 = vld [vmem:[#allocation2 + $0x118] sm:$0xff]
      %v534 = vld [vmem:[#allocation2 + $0x120] sm:$0x3f]
      %v535 = vld [vmem:[%s0] sm:$0x1]
      %v537 = vlaneseq
      %v538 = vshrl.u32 %v537, 7
      %v539 = vsub.s32 0, %v538
      %v540 = vrot.slane %v535, %v539
      %v542 = vmul.f32 %v498, %v540
      %v543 = vmul.f32 %v499, %v540
      %v544 = vmul.f32 %v500, %v540
      %v545 = vmul.f32 %v501, %v540
      %v546 = vmul.f32 %v502, %v540
      %v547 = vmul.f32 %v503, %v540
      %v548 = vmul.f32 %v504, %v540
      %v549 = vmul.f32 %v505, %v540
      %v550 = vmul.f32 %v506, %v540
      %v551 = vmul.f32 %v507, %v540
      %v552 = vmul.f32 %v508, %v540
      %v553 = vmul.f32 %v509, %v540
      %v554 = vmul.f32 %v510, %v540
      %v555 = vmul.f32 %v511, %v540
      %v556 = vmul.f32 %v512, %v540
      %v557 = vmul.f32 %v513, %v540
      %v558 = vmul.f32 %v514, %v540
      %v559 = vmul.f32 %v515, %v540
      %v560 = vmul.f32 %v516, %v540
      %v561 = vmul.f32 %v517, %v540
      %v562 = vmul.f32 %v518, %v540
      %v563 = vmul.f32 %v519, %v540
      %v564 = vmul.f32 %v520, %v540
      %v565 = vmul.f32 %v521, %v540
      %v566 = vmul.f32 %v522, %v540
      %v567 = vmul.f32 %v523, %v540
      %v568 = vmul.f32 %v524, %v540
      %v569 = vmul.f32 %v525, %v540
      %v570 = vmul.f32 %v526, %v540
      %v571 = vmul.f32 %v527, %v540
      %v572 = vmul.f32 %v528, %v540
      %v573 = vmul.f32 %v529, %v540
      %v574 = vmul.f32 %v530, %v540
      %v575 = vmul.f32 %v531, %v540
      %v576 = vmul.f32 %v532, %v540
      %v577 = vmul.f32 %v533, %v540
      %v578 = vmul.f32 %v534, %v540
      %v579 = vld [vmem:[%s1] sm:$0x1]
      %v581 = vlaneseq
      %v582 = vshrl.u32 %v581, 7
      %v583 = vsub.s32 0, %v582
      %v584 = vrot.slane %v579, %v583
      %v586 = vadd.f32 %v542, %v584
      %v587 = vadd.f32 %v543, %v584
      %v588 = vadd.f32 %v544, %v584
      %v589 = vadd.f32 %v545, %v584
      %v590 = vadd.f32 %v546, %v584
      %v591 = vadd.f32 %v547, %v584
      %v592 = vadd.f32 %v548, %v584
      %v593 = vadd.f32 %v549, %v584
      %v594 = vadd.f32 %v550, %v584
      %v595 = vadd.f32 %v551, %v584
      %v596 = vadd.f32 %v552, %v584
      %v597 = vadd.f32 %v553, %v584
      %v598 = vadd.f32 %v554, %v584
      %v599 = vadd.f32 %v555, %v584
      %v600 = vadd.f32 %v556, %v584
      %v601 = vadd.f32 %v557, %v584
      %v602 = vadd.f32 %v558, %v584
      %v603 = vadd.f32 %v559, %v584
      %v604 = vadd.f32 %v560, %v584
      %v605 = vadd.f32 %v561, %v584
      %v606 = vadd.f32 %v562, %v584
      %v607 = vadd.f32 %v563, %v584
      %v608 = vadd.f32 %v564, %v584
      %v609 = vadd.f32 %v565, %v584
      %v610 = vadd.f32 %v566, %v584
      %v611 = vadd.f32 %v567, %v584
      %v612 = vadd.f32 %v568, %v584
      %v613 = vadd.f32 %v569, %v584
      %v614 = vadd.f32 %v570, %v584
      %v615 = vadd.f32 %v571, %v584
      %v616 = vadd.f32 %v572, %v584
      %v617 = vadd.f32 %v573, %v584
      %v618 = vadd.f32 %v574, %v584
      %v619 = vadd.f32 %v575, %v584
      %v620 = vadd.f32 %v576, %v584
      %v621 = vadd.f32 %v577, %v584
      %v622 = vadd.f32 %v578, %v584
      %v623 = vmax.f32 %v586, 0.0
      %v624 = vmax.f32 %v587, 0.0
      %v625 = vmax.f32 %v588, 0.0
      %v626 = vmax.f32 %v589, 0.0
      %v627 = vmax.f32 %v590, 0.0
      %v628 = vmax.f32 %v591, 0.0
      %v629 = vmax.f32 %v592, 0.0
      %v630 = vmax.f32 %v593, 0.0
      %v631 = vmax.f32 %v594, 0.0
      %v632 = vmax.f32 %v595, 0.0
      %v633 = vmax.f32 %v596, 0.0
      %v634 = vmax.f32 %v597, 0.0
      %v635 = vmax.f32 %v598, 0.0
      %v636 = vmax.f32 %v599, 0.0
      %v637 = vmax.f32 %v600, 0.0
      %v638 = vmax.f32 %v601, 0.0
      %v639 = vmax.f32 %v602, 0.0
      %v640 = vmax.f32 %v603, 0.0
      %v641 = vmax.f32 %v604, 0.0
      %v642 = vmax.f32 %v605, 0.0
      %v643 = vmax.f32 %v606, 0.0
      %v644 = vmax.f32 %v607, 0.0
      %v645 = vmax.f32 %v608, 0.0
      %v646 = vmax.f32 %v609, 0.0
      %v647 = vmax.f32 %v610, 0.0
      %v648 = vmax.f32 %v611, 0.0
      %v649 = vmax.f32 %v612, 0.0
      %v650 = vmax.f32 %v613, 0.0
      %v651 = vmax.f32 %v614, 0.0
      %v652 = vmax.f32 %v615, 0.0
      %v653 = vmax.f32 %v616, 0.0
      %v654 = vmax.f32 %v617, 0.0
      %v655 = vmax.f32 %v618, 0.0
      %v656 = vmax.f32 %v619, 0.0
      %v657 = vmax.f32 %v620, 0.0
      %v658 = vmax.f32 %v621, 0.0
      %v659 = vmax.f32 %v622, 0.0
      %661 = vset.pattern.permute.xlu0 0
      %662 = vperm.xlu0 %661, %v461
      %v663 = vpop.permute.xlu0 %662
      %666 = vset.pattern.permute.xlu0 0
      %667 = vperm.xlu0 %666, %v462
      %v668 = vpop.permute.xlu0 %667
      %671 = vset.pattern.permute.xlu0 0
      %672 = vperm.xlu0 %671, %v463
      %v673 = vpop.permute.xlu0 %672
      %676 = vset.pattern.permute.xlu0 0
      %677 = vperm.xlu0 %676, %v464
      %v678 = vpop.permute.xlu0 %677
      %681 = vset.pattern.permute.xlu0 0
      %682 = vperm.xlu0 %681, %v465
      %v683 = vpop.permute.xlu0 %682
      %686 = vset.pattern.permute.xlu0 0
      %687 = vperm.xlu0 %686, %v466
      %v688 = vpop.permute.xlu0 %687
      %691 = vset.pattern.permute.xlu0 0
      %692 = vperm.xlu0 %691, %v467
      %v693 = vpop.permute.xlu0 %692
      %696 = vset.pattern.permute.xlu0 0
      %697 = vperm.xlu0 %696, %v468
      %v698 = vpop.permute.xlu0 %697
      %701 = vset.pattern.permute.xlu0 0
      %702 = vperm.xlu0 %701, %v469
      %v703 = vpop.permute.xlu0 %702
      %706 = vset.pattern.permute.xlu0 0
      %707 = vperm.xlu0 %706, %v470
      %v708 = vpop.permute.xlu0 %707
      %711 = vset.pattern.permute.xlu0 0
      %712 = vperm.xlu0 %711, %v471
      %v713 = vpop.permute.xlu0 %712
      %716 = vset.pattern.permute.xlu0 0
      %717 = vperm.xlu0 %716, %v472
      %v718 = vpop.permute.xlu0 %717
      %721 = vset.pattern.permute.xlu0 0
      %722 = vperm.xlu0 %721, %v473
      %v723 = vpop.permute.xlu0 %722
      %726 = vset.pattern.permute.xlu0 0
      %727 = vperm.xlu0 %726, %v474
      %v728 = vpop.permute.xlu0 %727
      %731 = vset.pattern.permute.xlu0 0
      %732 = vperm.xlu0 %731, %v475
      %v733 = vpop.permute.xlu0 %732
      %736 = vset.pattern.permute.xlu0 0
      %737 = vperm.xlu0 %736, %v476
      %v738 = vpop.permute.xlu0 %737
      %741 = vset.pattern.permute.xlu0 0
      %742 = vperm.xlu0 %741, %v477
      %v743 = vpop.permute.xlu0 %742
      %746 = vset.pattern.permute.xlu0 0
      %747 = vperm.xlu0 %746, %v478
      %v748 = vpop.permute.xlu0 %747
      %751 = vset.pattern.permute.xlu0 0
      %752 = vperm.xlu0 %751, %v479
      %v753 = vpop.permute.xlu0 %752
      %756 = vset.pattern.permute.xlu0 0
      %757 = vperm.xlu0 %756, %v480
      %v758 = vpop.permute.xlu0 %757
      %761 = vset.pattern.permute.xlu0 0
      %762 = vperm.xlu0 %761, %v481
      %v763 = vpop.permute.xlu0 %762
      %766 = vset.pattern.permute.xlu0 0
      %767 = vperm.xlu0 %766, %v482
      %v768 = vpop.permute.xlu0 %767
      %771 = vset.pattern.permute.xlu0 0
      %772 = vperm.xlu0 %771, %v483
      %v773 = vpop.permute.xlu0 %772
      %776 = vset.pattern.permute.xlu0 0
      %777 = vperm.xlu0 %776, %v484
      %v778 = vpop.permute.xlu0 %777
      %781 = vset.pattern.permute.xlu0 0
      %782 = vperm.xlu0 %781, %v485
      %v783 = vpop.permute.xlu0 %782
      %786 = vset.pattern.permute.xlu0 0
      %787 = vperm.xlu0 %786, %v486
      %v788 = vpop.permute.xlu0 %787
      %791 = vset.pattern.permute.xlu0 0
      %792 = vperm.xlu0 %791, %v487
      %v793 = vpop.permute.xlu0 %792
      %796 = vset.pattern.permute.xlu0 0
      %797 = vperm.xlu0 %796, %v488
      %v798 = vpop.permute.xlu0 %797
      %801 = vset.pattern.permute.xlu0 0
      %802 = vperm.xlu0 %801, %v489
      %v803 = vpop.permute.xlu0 %802
      %806 = vset.pattern.permute.xlu0 0
      %807 = vperm.xlu0 %806, %v490
      %v808 = vpop.permute.xlu0 %807
      %811 = vset.pattern.permute.xlu0 0
      %812 = vperm.xlu0 %811, %v491
      %v813 = vpop.permute.xlu0 %812
      %816 = vset.pattern.permute.xlu0 0
      %817 = vperm.xlu0 %816, %v492
      %v818 = vpop.permute.xlu0 %817
      %821 = vset.pattern.permute.xlu0 0
      %822 = vperm.xlu0 %821, %v493
      %v823 = vpop.permute.xlu0 %822
      %826 = vset.pattern.permute.xlu0 0
      %827 = vperm.xlu0 %826, %v494
      %v828 = vpop.permute.xlu0 %827
      %831 = vset.pattern.permute.xlu0 0
      %832 = vperm.xlu0 %831, %v495
      %v833 = vpop.permute.xlu0 %832
      %836 = vset.pattern.permute.xlu0 0
      %837 = vperm.xlu0 %836, %v496
      %v838 = vpop.permute.xlu0 %837
      %841 = vset.pattern.permute.xlu0 0
      %842 = vperm.xlu0 %841, %v497
      %v843 = vpop.permute.xlu0 %842
      %v845 = vmul.f32 %v623, %v663
      %v846 = vmul.f32 %v624, %v668
      %v847 = vmul.f32 %v625, %v673
      %v848 = vmul.f32 %v626, %v678
      %v849 = vmul.f32 %v627, %v683
      %v850 = vmul.f32 %v628, %v688
      %v851 = vmul.f32 %v629, %v693
      %v852 = vmul.f32 %v630, %v698
      %v853 = vmul.f32 %v631, %v703
      %v854 = vmul.f32 %v632, %v708
      %v855 = vmul.f32 %v633, %v713
      %v856 = vmul.f32 %v634, %v718
      %v857 = vmul.f32 %v635, %v723
      %v858 = vmul.f32 %v636, %v728
      %v859 = vmul.f32 %v637, %v733
      %v860 = vmul.f32 %v638, %v738
      %v861 = vmul.f32 %v639, %v743
      %v862 = vmul.f32 %v640, %v748
      %v863 = vmul.f32 %v641, %v753
      %v864 = vmul.f32 %v642, %v758
      %v865 = vmul.f32 %v643, %v763
      %v866 = vmul.f32 %v644, %v768
      %v867 = vmul.f32 %v645, %v773
      %v868 = vmul.f32 %v646, %v778
      %v869 = vmul.f32 %v647, %v783
      %v870 = vmul.f32 %v648, %v788
      %v871 = vmul.f32 %v649, %v793
      %v872 = vmul.f32 %v650, %v798
      %v873 = vmul.f32 %v651, %v803
      %v874 = vmul.f32 %v652, %v808
      %v875 = vmul.f32 %v653, %v813
      %v876 = vmul.f32 %v654, %v818
      %v877 = vmul.f32 %v655, %v823
      %v878 = vmul.f32 %v656, %v828
      %v879 = vmul.f32 %v657, %v833
      %v880 = vmul.f32 %v658, %v838
      %v881 = vmul.f32 %v659, %v843
      %vm915 = vcmask 1046528
      %v916 = vrot.slane %v845, 1
      %v917 = vrot.slane %v846, 1
      %v918 = vsel %vm915, %v916, %v917
      %v919 = vrot.slane %v847, 1
      %v920 = vsel %vm915, %v917, %v919
      %v921 = vrot.slane %v848, 1
      %v922 = vsel %vm915, %v919, %v921
      %v923 = vrot.slane %v849, 1
      %v924 = vsel %vm915, %v921, %v923
      %v925 = vrot.slane %v850, 1
      %v926 = vsel %vm915, %v923, %v925
      %v927 = vrot.slane %v851, 1
      %v928 = vsel %vm915, %v925, %v927
      %v929 = vrot.slane %v852, 1
      %v930 = vsel %vm915, %v927, %v929
      %v931 = vrot.slane %v853, 1
      %v932 = vsel %vm915, %v929, %v931
      %v933 = vrot.slane %v854, 1
      %v934 = vsel %vm915, %v931, %v933
      %v935 = vrot.slane %v855, 1
      %v936 = vsel %vm915, %v933, %v935
      %v937 = vrot.slane %v856, 1
      %v938 = vsel %vm915, %v935, %v937
      %v939 = vrot.slane %v857, 1
      %v940 = vsel %vm915, %v937, %v939
      %v941 = vrot.slane %v858, 1
      %v942 = vsel %vm915, %v939, %v941
      %v943 = vrot.slane %v859, 1
      %v944 = vsel %vm915, %v941, %v943
      %v945 = vrot.slane %v860, 1
      %v946 = vsel %vm915, %v943, %v945
      %v947 = vrot.slane %v861, 1
      %v948 = vsel %vm915, %v945, %v947
      %v949 = vrot.slane %v862, 1
      %v950 = vsel %vm915, %v947, %v949
      %v951 = vrot.slane %v863, 1
      %v952 = vsel %vm915, %v949, %v951
      %v953 = vrot.slane %v864, 1
      %v954 = vsel %vm915, %v951, %v953
      %v955 = vrot.slane %v865, 1
      %v956 = vsel %vm915, %v953, %v955
      %v957 = vrot.slane %v866, 1
      %v958 = vsel %vm915, %v955, %v957
      %v959 = vrot.slane %v867, 1
      %v960 = vsel %vm915, %v957, %v959
      %v961 = vrot.slane %v868, 1
      %v962 = vsel %vm915, %v959, %v961
      %v963 = vrot.slane %v869, 1
      %v964 = vsel %vm915, %v961, %v963
      %v965 = vrot.slane %v870, 1
      %v966 = vsel %vm915, %v963, %v965
      %v967 = vrot.slane %v871, 1
      %v968 = vsel %vm915, %v965, %v967
      %v969 = vrot.slane %v872, 1
      %v970 = vsel %vm915, %v967, %v969
      %v971 = vrot.slane %v873, 1
      %v972 = vsel %vm915, %v969, %v971
      %v973 = vrot.slane %v874, 1
      %v974 = vsel %vm915, %v971, %v973
      %v975 = vrot.slane %v875, 1
      %v976 = vsel %vm915, %v973, %v975
      %v977 = vrot.slane %v876, 1
      %v978 = vsel %vm915, %v975, %v977
      %v979 = vrot.slane %v877, 1
      %v980 = vsel %vm915, %v977, %v979
      %981 = vrot.lane.b32.xlu0 %v918, 24
      %v982 = vpop.permute.xlu0 %981
      %983 = vrot.lane.b32.xlu0 %v920, 24
      %v984 = vpop.permute.xlu0 %983
      %985 = vrot.lane.b32.xlu0 %v922, 24
      %v986 = vpop.permute.xlu0 %985
      %987 = vrot.lane.b32.xlu0 %v924, 24
      %v988 = vpop.permute.xlu0 %987
      %989 = vrot.lane.b32.xlu0 %v926, 24
      %v990 = vpop.permute.xlu0 %989
      %991 = vrot.lane.b32.xlu0 %v928, 24
      %v992 = vpop.permute.xlu0 %991
      %993 = vrot.lane.b32.xlu0 %v930, 24
      %v994 = vpop.permute.xlu0 %993
      %995 = vrot.lane.b32.xlu0 %v932, 24
      %v996 = vpop.permute.xlu0 %995
      %997 = vrot.lane.b32.xlu0 %v934, 24
      %v998 = vpop.permute.xlu0 %997
      %999 = vrot.lane.b32.xlu0 %v936, 24
      %v1000 = vpop.permute.xlu0 %999
      %1001 = vrot.lane.b32.xlu0 %v938, 24
      %v1002 = vpop.permute.xlu0 %1001
      %1003 = vrot.lane.b32.xlu0 %v940, 24
      %v1004 = vpop.permute.xlu0 %1003
      %1005 = vrot.lane.b32.xlu0 %v942, 24
      %v1006 = vpop.permute.xlu0 %1005
      %1007 = vrot.lane.b32.xlu0 %v944, 24
      %v1008 = vpop.permute.xlu0 %1007
      %1009 = vrot.lane.b32.xlu0 %v946, 24
      %v1010 = vpop.permute.xlu0 %1009
      %1011 = vrot.lane.b32.xlu0 %v948, 24
      %v1012 = vpop.permute.xlu0 %1011
      %1013 = vrot.lane.b32.xlu0 %v950, 24
      %v1014 = vpop.permute.xlu0 %1013
      %1015 = vrot.lane.b32.xlu0 %v952, 24
      %v1016 = vpop.permute.xlu0 %1015
      %1017 = vrot.lane.b32.xlu0 %v954, 24
      %v1018 = vpop.permute.xlu0 %1017
      %1019 = vrot.lane.b32.xlu0 %v956, 24
      %v1020 = vpop.permute.xlu0 %1019
      %1021 = vrot.lane.b32.xlu0 %v958, 24
      %v1022 = vpop.permute.xlu0 %1021
      %1023 = vrot.lane.b32.xlu0 %v960, 24
      %v1024 = vpop.permute.xlu0 %1023
      %1025 = vrot.lane.b32.xlu0 %v962, 24
      %v1026 = vpop.permute.xlu0 %1025
      %1027 = vrot.lane.b32.xlu0 %v964, 24
      %v1028 = vpop.permute.xlu0 %1027
      %1029 = vrot.lane.b32.xlu0 %v966, 24
      %v1030 = vpop.permute.xlu0 %1029
      %1031 = vrot.lane.b32.xlu0 %v968, 24
      %v1032 = vpop.permute.xlu0 %1031
      %1033 = vrot.lane.b32.xlu0 %v970, 24
      %v1034 = vpop.permute.xlu0 %1033
      %1035 = vrot.lane.b32.xlu0 %v972, 24
      %v1036 = vpop.permute.xlu0 %1035
      %1037 = vrot.lane.b32.xlu0 %v974, 24
      %v1038 = vpop.permute.xlu0 %1037
      %1039 = vrot.lane.b32.xlu0 %v976, 24
      %v1040 = vpop.permute.xlu0 %1039
      %1041 = vrot.lane.b32.xlu0 %v978, 24
      %v1042 = vpop.permute.xlu0 %1041
      %1043 = vrot.lane.b32.xlu0 %v980, 24
      %v1044 = vpop.permute.xlu0 %1043
      %vm1077 = vcmask 1045504
      %v1078 = vrot.slane %v845, 2
      %v1079 = vrot.slane %v846, 2
      %v1080 = vsel %vm1077, %v1078, %v1079
      %v1081 = vrot.slane %v847, 2
      %v1082 = vsel %vm1077, %v1079, %v1081
      %v1083 = vrot.slane %v848, 2
      %v1084 = vsel %vm1077, %v1081, %v1083
      %v1085 = vrot.slane %v849, 2
      %v1086 = vsel %vm1077, %v1083, %v1085
      %v1087 = vrot.slane %v850, 2
      %v1088 = vsel %vm1077, %v1085, %v1087
      %v1089 = vrot.slane %v851, 2
      %v1090 = vsel %vm1077, %v1087, %v1089
      %v1091 = vrot.slane %v852, 2
      %v1092 = vsel %vm1077, %v1089, %v1091
      %v1093 = vrot.slane %v853, 2
      %v1094 = vsel %vm1077, %v1091, %v1093
      %v1095 = vrot.slane %v854, 2
      %v1096 = vsel %vm1077, %v1093, %v1095
      %v1097 = vrot.slane %v855, 2
      %v1098 = vsel %vm1077, %v1095, %v1097
      %v1099 = vrot.slane %v856, 2
      %v1100 = vsel %vm1077, %v1097, %v1099
      %v1101 = vrot.slane %v857, 2
      %v1102 = vsel %vm1077, %v1099, %v1101
      %v1103 = vrot.slane %v858, 2
      %v1104 = vsel %vm1077, %v1101, %v1103
      %v1105 = vrot.slane %v859, 2
      %v1106 = vsel %vm1077, %v1103, %v1105
      %v1107 = vrot.slane %v860, 2
      %v1108 = vsel %vm1077, %v1105, %v1107
      %v1109 = vrot.slane %v861, 2
      %v1110 = vsel %vm1077, %v1107, %v1109
      %v1111 = vrot.slane %v862, 2
      %v1112 = vsel %vm1077, %v1109, %v1111
      %v1113 = vrot.slane %v863, 2
      %v1114 = vsel %vm1077, %v1111, %v1113
      %v1115 = vrot.slane %v864, 2
      %v1116 = vsel %vm1077, %v1113, %v1115
      %v1117 = vrot.slane %v865, 2
      %v1118 = vsel %vm1077, %v1115, %v1117
      %v1119 = vrot.slane %v866, 2
      %v1120 = vsel %vm1077, %v1117, %v1119
      %v1121 = vrot.slane %v867, 2
      %v1122 = vsel %vm1077, %v1119, %v1121
      %v1123 = vrot.slane %v868, 2
      %v1124 = vsel %vm1077, %v1121, %v1123
      %v1125 = vrot.slane %v869, 2
      %v1126 = vsel %vm1077, %v1123, %v1125
      %v1127 = vrot.slane %v870, 2
      %v1128 = vsel %vm1077, %v1125, %v1127
      %v1129 = vrot.slane %v871, 2
      %v1130 = vsel %vm1077, %v1127, %v1129
      %v1131 = vrot.slane %v872, 2
      %v1132 = vsel %vm1077, %v1129, %v1131
      %v1133 = vrot.slane %v873, 2
      %v1134 = vsel %vm1077, %v1131, %v1133
      %v1135 = vrot.slane %v874, 2
      %v1136 = vsel %vm1077, %v1133, %v1135
      %v1137 = vrot.slane %v875, 2
      %v1138 = vsel %vm1077, %v1135, %v1137
      %v1139 = vrot.slane %v876, 2
      %v1140 = vsel %vm1077, %v1137, %v1139
      %v1141 = vrot.slane %v877, 2
      %v1142 = vsel %vm1077, %v1139, %v1141
      %1143 = vrot.lane.b32.xlu0 %v1080, 48
      %v1144 = vpop.permute.xlu0 %1143
      %1145 = vrot.lane.b32.xlu0 %v1082, 48
      %v1146 = vpop.permute.xlu0 %1145
      %1147 = vrot.lane.b32.xlu0 %v1084, 48
      %v1148 = vpop.permute.xlu0 %1147
      %1149 = vrot.lane.b32.xlu0 %v1086, 48
      %v1150 = vpop.permute.xlu0 %1149
      %1151 = vrot.lane.b32.xlu0 %v1088, 48
      %v1152 = vpop.permute.xlu0 %1151
      %1153 = vrot.lane.b32.xlu0 %v1090, 48
      %v1154 = vpop.permute.xlu0 %1153
      %1155 = vrot.lane.b32.xlu0 %v1092, 48
      %v1156 = vpop.permute.xlu0 %1155
      %1157 = vrot.lane.b32.xlu0 %v1094, 48
      %v1158 = vpop.permute.xlu0 %1157
      %1159 = vrot.lane.b32.xlu0 %v1096, 48
      %v1160 = vpop.permute.xlu0 %1159
      %1161 = vrot.lane.b32.xlu0 %v1098, 48
      %v1162 = vpop.permute.xlu0 %1161
      %1163 = vrot.lane.b32.xlu0 %v1100, 48
      %v1164 = vpop.permute.xlu0 %1163
      %1165 = vrot.lane.b32.xlu0 %v1102, 48
      %v1166 = vpop.permute.xlu0 %1165
      %1167 = vrot.lane.b32.xlu0 %v1104, 48
      %v1168 = vpop.permute.xlu0 %1167
      %1169 = vrot.lane.b32.xlu0 %v1106, 48
      %v1170 = vpop.permute.xlu0 %1169
      %1171 = vrot.lane.b32.xlu0 %v1108, 48
      %v1172 = vpop.permute.xlu0 %1171
      %1173 = vrot.lane.b32.xlu0 %v1110, 48
      %v1174 = vpop.permute.xlu0 %1173
      %1175 = vrot.lane.b32.xlu0 %v1112, 48
      %v1176 = vpop.permute.xlu0 %1175
      %1177 = vrot.lane.b32.xlu0 %v1114, 48
      %v1178 = vpop.permute.xlu0 %1177
      %1179 = vrot.lane.b32.xlu0 %v1116, 48
      %v1180 = vpop.permute.xlu0 %1179
      %1181 = vrot.lane.b32.xlu0 %v1118, 48
      %v1182 = vpop.permute.xlu0 %1181
      %1183 = vrot.lane.b32.xlu0 %v1120, 48
      %v1184 = vpop.permute.xlu0 %1183
      %1185 = vrot.lane.b32.xlu0 %v1122, 48
      %v1186 = vpop.permute.xlu0 %1185
      %1187 = vrot.lane.b32.xlu0 %v1124, 48
      %v1188 = vpop.permute.xlu0 %1187
      %1189 = vrot.lane.b32.xlu0 %v1126, 48
      %v1190 = vpop.permute.xlu0 %1189
      %1191 = vrot.lane.b32.xlu0 %v1128, 48
      %v1192 = vpop.permute.xlu0 %1191
      %1193 = vrot.lane.b32.xlu0 %v1130, 48
      %v1194 = vpop.permute.xlu0 %1193
      %1195 = vrot.lane.b32.xlu0 %v1132, 48
      %v1196 = vpop.permute.xlu0 %1195
      %1197 = vrot.lane.b32.xlu0 %v1134, 48
      %v1198 = vpop.permute.xlu0 %1197
      %1199 = vrot.lane.b32.xlu0 %v1136, 48
      %v1200 = vpop.permute.xlu0 %1199
      %1201 = vrot.lane.b32.xlu0 %v1138, 48
      %v1202 = vpop.permute.xlu0 %1201
      %1203 = vrot.lane.b32.xlu0 %v1140, 48
      %v1204 = vpop.permute.xlu0 %1203
      %1205 = vrot.lane.b32.xlu0 %v1142, 48
      %v1206 = vpop.permute.xlu0 %1205
      %v1241 = vrot.slane %v878, 2
      %v1242 = vsel %vm1077, %v1141, %v1241
      %v1243 = vrot.slane %v879, 2
      %v1244 = vsel %vm1077, %v1241, %v1243
      %1245 = vrot.lane.b32.xlu0 %v1084, 72
      %v1246 = vpop.permute.xlu0 %1245
      %1247 = vrot.lane.b32.xlu0 %v1086, 72
      %v1248 = vpop.permute.xlu0 %1247
      %1249 = vrot.lane.b32.xlu0 %v1088, 72
      %v1250 = vpop.permute.xlu0 %1249
      %1251 = vrot.lane.b32.xlu0 %v1090, 72
      %v1252 = vpop.permute.xlu0 %1251
      %1253 = vrot.lane.b32.xlu0 %v1092, 72
      %v1254 = vpop.permute.xlu0 %1253
      %1255 = vrot.lane.b32.xlu0 %v1094, 72
      %v1256 = vpop.permute.xlu0 %1255
      %1257 = vrot.lane.b32.xlu0 %v1096, 72
      %v1258 = vpop.permute.xlu0 %1257
      %1259 = vrot.lane.b32.xlu0 %v1098, 72
      %v1260 = vpop.permute.xlu0 %1259
      %1261 = vrot.lane.b32.xlu0 %v1100, 72
      %v1262 = vpop.permute.xlu0 %1261
      %1263 = vrot.lane.b32.xlu0 %v1102, 72
      %v1264 = vpop.permute.xlu0 %1263
      %1265 = vrot.lane.b32.xlu0 %v1104, 72
      %v1266 = vpop.permute.xlu0 %1265
      %1267 = vrot.lane.b32.xlu0 %v1106, 72
      %v1268 = vpop.permute.xlu0 %1267
      %1269 = vrot.lane.b32.xlu0 %v1108, 72
      %v1270 = vpop.permute.xlu0 %1269
      %1271 = vrot.lane.b32.xlu0 %v1110, 72
      %v1272 = vpop.permute.xlu0 %1271
      %1273 = vrot.lane.b32.xlu0 %v1112, 72
      %v1274 = vpop.permute.xlu0 %1273
      %1275 = vrot.lane.b32.xlu0 %v1114, 72
      %v1276 = vpop.permute.xlu0 %1275
      %1277 = vrot.lane.b32.xlu0 %v1116, 72
      %v1278 = vpop.permute.xlu0 %1277
      %1279 = vrot.lane.b32.xlu0 %v1118, 72
      %v1280 = vpop.permute.xlu0 %1279
      %1281 = vrot.lane.b32.xlu0 %v1120, 72
      %v1282 = vpop.permute.xlu0 %1281
      %1283 = vrot.lane.b32.xlu0 %v1122, 72
      %v1284 = vpop.permute.xlu0 %1283
      %1285 = vrot.lane.b32.xlu0 %v1124, 72
      %v1286 = vpop.permute.xlu0 %1285
      %1287 = vrot.lane.b32.xlu0 %v1126, 72
      %v1288 = vpop.permute.xlu0 %1287
      %1289 = vrot.lane.b32.xlu0 %v1128, 72
      %v1290 = vpop.permute.xlu0 %1289
      %1291 = vrot.lane.b32.xlu0 %v1130, 72
      %v1292 = vpop.permute.xlu0 %1291
      %1293 = vrot.lane.b32.xlu0 %v1132, 72
      %v1294 = vpop.permute.xlu0 %1293
      %1295 = vrot.lane.b32.xlu0 %v1134, 72
      %v1296 = vpop.permute.xlu0 %1295
      %1297 = vrot.lane.b32.xlu0 %v1136, 72
      %v1298 = vpop.permute.xlu0 %1297
      %1299 = vrot.lane.b32.xlu0 %v1138, 72
      %v1300 = vpop.permute.xlu0 %1299
      %1301 = vrot.lane.b32.xlu0 %v1140, 72
      %v1302 = vpop.permute.xlu0 %1301
      %1303 = vrot.lane.b32.xlu0 %v1142, 72
      %v1304 = vpop.permute.xlu0 %1303
      %1305 = vrot.lane.b32.xlu0 %v1242, 72
      %v1306 = vpop.permute.xlu0 %1305
      %1307 = vrot.lane.b32.xlu0 %v1244, 72
      %v1308 = vpop.permute.xlu0 %1307
      %vm1341 = vcmask 1044480
      %v1342 = vrot.slane %v847, 3
      %v1343 = vrot.slane %v848, 3
      %v1344 = vsel %vm1341, %v1342, %v1343
      %v1345 = vrot.slane %v849, 3
      %v1346 = vsel %vm1341, %v1343, %v1345
      %v1347 = vrot.slane %v850, 3
      %v1348 = vsel %vm1341, %v1345, %v1347
      %v1349 = vrot.slane %v851, 3
      %v1350 = vsel %vm1341, %v1347, %v1349
      %v1351 = vrot.slane %v852, 3
      %v1352 = vsel %vm1341, %v1349, %v1351
      %v1353 = vrot.slane %v853, 3
      %v1354 = vsel %vm1341, %v1351, %v1353
      %v1355 = vrot.slane %v854, 3
      %v1356 = vsel %vm1341, %v1353, %v1355
      %v1357 = vrot.slane %v855, 3
      %v1358 = vsel %vm1341, %v1355, %v1357
      %v1359 = vrot.slane %v856, 3
      %v1360 = vsel %vm1341, %v1357, %v1359
      %v1361 = vrot.slane %v857, 3
      %v1362 = vsel %vm1341, %v1359, %v1361
      %v1363 = vrot.slane %v858, 3
      %v1364 = vsel %vm1341, %v1361, %v1363
      %v1365 = vrot.slane %v859, 3
      %v1366 = vsel %vm1341, %v1363, %v1365
      %v1367 = vrot.slane %v860, 3
      %v1368 = vsel %vm1341, %v1365, %v1367
      %v1369 = vrot.slane %v861, 3
      %v1370 = vsel %vm1341, %v1367, %v1369
      %v1371 = vrot.slane %v862, 3
      %v1372 = vsel %vm1341, %v1369, %v1371
      %v1373 = vrot.slane %v863, 3
      %v1374 = vsel %vm1341, %v1371, %v1373
      %v1375 = vrot.slane %v864, 3
      %v1376 = vsel %vm1341, %v1373, %v1375
      %v1377 = vrot.slane %v865, 3
      %v1378 = vsel %vm1341, %v1375, %v1377
      %v1379 = vrot.slane %v866, 3
      %v1380 = vsel %vm1341, %v1377, %v1379
      %v1381 = vrot.slane %v867, 3
      %v1382 = vsel %vm1341, %v1379, %v1381
      %v1383 = vrot.slane %v868, 3
      %v1384 = vsel %vm1341, %v1381, %v1383
      %v1385 = vrot.slane %v869, 3
      %v1386 = vsel %vm1341, %v1383, %v1385
      %v1387 = vrot.slane %v870, 3
      %v1388 = vsel %vm1341, %v1385, %v1387
      %v1389 = vrot.slane %v871, 3
      %v1390 = vsel %vm1341, %v1387, %v1389
      %v1391 = vrot.slane %v872, 3
      %v1392 = vsel %vm1341, %v1389, %v1391
      %v1393 = vrot.slane %v873, 3
      %v1394 = vsel %vm1341, %v1391, %v1393
      %v1395 = vrot.slane %v874, 3
      %v1396 = vsel %vm1341, %v1393, %v1395
      %v1397 = vrot.slane %v875, 3
      %v1398 = vsel %vm1341, %v1395, %v1397
      %v1399 = vrot.slane %v876, 3
      %v1400 = vsel %vm1341, %v1397, %v1399
      %v1401 = vrot.slane %v877, 3
      %v1402 = vsel %vm1341, %v1399, %v1401
      %v1403 = vrot.slane %v878, 3
      %v1404 = vsel %vm1341, %v1401, %v1403
      %v1405 = vrot.slane %v879, 3
      %v1406 = vsel %vm1341, %v1403, %v1405
      %1407 = vrot.lane.b32.xlu0 %v1344, 96
      %v1408 = vpop.permute.xlu0 %1407
      %1409 = vrot.lane.b32.xlu0 %v1346, 96
      %v1410 = vpop.permute.xlu0 %1409
      %1411 = vrot.lane.b32.xlu0 %v1348, 96
      %v1412 = vpop.permute.xlu0 %1411
      %1413 = vrot.lane.b32.xlu0 %v1350, 96
      %v1414 = vpop.permute.xlu0 %1413
      %1415 = vrot.lane.b32.xlu0 %v1352, 96
      %v1416 = vpop.permute.xlu0 %1415
      %1417 = vrot.lane.b32.xlu0 %v1354, 96
      %v1418 = vpop.permute.xlu0 %1417
      %1419 = vrot.lane.b32.xlu0 %v1356, 96
      %v1420 = vpop.permute.xlu0 %1419
      %1421 = vrot.lane.b32.xlu0 %v1358, 96
      %v1422 = vpop.permute.xlu0 %1421
      %1423 = vrot.lane.b32.xlu0 %v1360, 96
      %v1424 = vpop.permute.xlu0 %1423
      %1425 = vrot.lane.b32.xlu0 %v1362, 96
      %v1426 = vpop.permute.xlu0 %1425
      %1427 = vrot.lane.b32.xlu0 %v1364, 96
      %v1428 = vpop.permute.xlu0 %1427
      %1429 = vrot.lane.b32.xlu0 %v1366, 96
      %v1430 = vpop.permute.xlu0 %1429
      %1431 = vrot.lane.b32.xlu0 %v1368, 96
      %v1432 = vpop.permute.xlu0 %1431
      %1433 = vrot.lane.b32.xlu0 %v1370, 96
      %v1434 = vpop.permute.xlu0 %1433
      %1435 = vrot.lane.b32.xlu0 %v1372, 96
      %v1436 = vpop.permute.xlu0 %1435
      %1437 = vrot.lane.b32.xlu0 %v1374, 96
      %v1438 = vpop.permute.xlu0 %1437
      %1439 = vrot.lane.b32.xlu0 %v1376, 96
      %v1440 = vpop.permute.xlu0 %1439
      %1441 = vrot.lane.b32.xlu0 %v1378, 96
      %v1442 = vpop.permute.xlu0 %1441
      %1443 = vrot.lane.b32.xlu0 %v1380, 96
      %v1444 = vpop.permute.xlu0 %1443
      %1445 = vrot.lane.b32.xlu0 %v1382, 96
      %v1446 = vpop.permute.xlu0 %1445
      %1447 = vrot.lane.b32.xlu0 %v1384, 96
      %v1448 = vpop.permute.xlu0 %1447
      %1449 = vrot.lane.b32.xlu0 %v1386, 96
      %v1450 = vpop.permute.xlu0 %1449
      %1451 = vrot.lane.b32.xlu0 %v1388, 96
      %v1452 = vpop.permute.xlu0 %1451
      %1453 = vrot.lane.b32.xlu0 %v1390, 96
      %v1454 = vpop.permute.xlu0 %1453
      %1455 = vrot.lane.b32.xlu0 %v1392, 96
      %v1456 = vpop.permute.xlu0 %1455
      %1457 = vrot.lane.b32.xlu0 %v1394, 96
      %v1458 = vpop.permute.xlu0 %1457
      %1459 = vrot.lane.b32.xlu0 %v1396, 96
      %v1460 = vpop.permute.xlu0 %1459
      %1461 = vrot.lane.b32.xlu0 %v1398, 96
      %v1462 = vpop.permute.xlu0 %1461
      %1463 = vrot.lane.b32.xlu0 %v1400, 96
      %v1464 = vpop.permute.xlu0 %1463
      %1465 = vrot.lane.b32.xlu0 %v1402, 96
      %v1466 = vpop.permute.xlu0 %1465
      %1467 = vrot.lane.b32.xlu0 %v1404, 96
      %v1468 = vpop.permute.xlu0 %1467
      %1469 = vrot.lane.b32.xlu0 %v1406, 96
      %v1470 = vpop.permute.xlu0 %1469
      %vm1503 = vcmask 1043456
      %v1504 = vrot.slane %v847, 4
      %v1505 = vrot.slane %v848, 4
      %v1506 = vsel %vm1503, %v1504, %v1505
      %v1507 = vrot.slane %v849, 4
      %v1508 = vsel %vm1503, %v1505, %v1507
      %v1509 = vrot.slane %v850, 4
      %v1510 = vsel %vm1503, %v1507, %v1509
      %v1511 = vrot.slane %v851, 4
      %v1512 = vsel %vm1503, %v1509, %v1511
      %v1513 = vrot.slane %v852, 4
      %v1514 = vsel %vm1503, %v1511, %v1513
      %v1515 = vrot.slane %v853, 4
      %v1516 = vsel %vm1503, %v1513, %v1515
      %v1517 = vrot.slane %v854, 4
      %v1518 = vsel %vm1503, %v1515, %v1517
      %v1519 = vrot.slane %v855, 4
      %v1520 = vsel %vm1503, %v1517, %v1519
      %v1521 = vrot.slane %v856, 4
      %v1522 = vsel %vm1503, %v1519, %v1521
      %v1523 = vrot.slane %v857, 4
      %v1524 = vsel %vm1503, %v1521, %v1523
      %v1525 = vrot.slane %v858, 4
      %v1526 = vsel %vm1503, %v1523, %v1525
      %v1527 = vrot.slane %v859, 4
      %v1528 = vsel %vm1503, %v1525, %v1527
      %v1529 = vrot.slane %v860, 4
      %v1530 = vsel %vm1503, %v1527, %v1529
      %v1531 = vrot.slane %v861, 4
      %v1532 = vsel %vm1503, %v1529, %v1531
      %v1533 = vrot.slane %v862, 4
      %v1534 = vsel %vm1503, %v1531, %v1533
      %v1535 = vrot.slane %v863, 4
      %v1536 = vsel %vm1503, %v1533, %v1535
      %v1537 = vrot.slane %v864, 4
      %v1538 = vsel %vm1503, %v1535, %v1537
      %v1539 = vrot.slane %v865, 4
      %v1540 = vsel %vm1503, %v1537, %v1539
      %v1541 = vrot.slane %v866, 4
      %v1542 = vsel %vm1503, %v1539, %v1541
      %v1543 = vrot.slane %v867, 4
      %v1544 = vsel %vm1503, %v1541, %v1543
      %v1545 = vrot.slane %v868, 4
      %v1546 = vsel %vm1503, %v1543, %v1545
      %v1547 = vrot.slane %v869, 4
      %v1548 = vsel %vm1503, %v1545, %v1547
      %v1549 = vrot.slane %v870, 4
      %v1550 = vsel %vm1503, %v1547, %v1549
      %v1551 = vrot.slane %v871, 4
      %v1552 = vsel %vm1503, %v1549, %v1551
      %v1553 = vrot.slane %v872, 4
      %v1554 = vsel %vm1503, %v1551, %v1553
      %v1555 = vrot.slane %v873, 4
      %v1556 = vsel %vm1503, %v1553, %v1555
      %v1557 = vrot.slane %v874, 4
      %v1558 = vsel %vm1503, %v1555, %v1557
      %v1559 = vrot.slane %v875, 4
      %v1560 = vsel %vm1503, %v1557, %v1559
      %v1561 = vrot.slane %v876, 4
      %v1562 = vsel %vm1503, %v1559, %v1561
      %v1563 = vrot.slane %v877, 4
      %v1564 = vsel %vm1503, %v1561, %v1563
      %v1565 = vrot.slane %v878, 4
      %v1566 = vsel %vm1503, %v1563, %v1565
      %v1567 = vrot.slane %v879, 4
      %v1568 = vsel %vm1503, %v1565, %v1567
      %1569 = vrot.lane.b32.xlu0 %v1506, 120
      %v1570 = vpop.permute.xlu0 %1569
      %1571 = vrot.lane.b32.xlu0 %v1508, 120
      %v1572 = vpop.permute.xlu0 %1571
      %1573 = vrot.lane.b32.xlu0 %v1510, 120
      %v1574 = vpop.permute.xlu0 %1573
      %1575 = vrot.lane.b32.xlu0 %v1512, 120
      %v1576 = vpop.permute.xlu0 %1575
      %1577 = vrot.lane.b32.xlu0 %v1514, 120
      %v1578 = vpop.permute.xlu0 %1577
      %1579 = vrot.lane.b32.xlu0 %v1516, 120
      %v1580 = vpop.permute.xlu0 %1579
      %1581 = vrot.lane.b32.xlu0 %v1518, 120
      %v1582 = vpop.permute.xlu0 %1581
      %1583 = vrot.lane.b32.xlu0 %v1520, 120
      %v1584 = vpop.permute.xlu0 %1583
      %1585 = vrot.lane.b32.xlu0 %v1522, 120
      %v1586 = vpop.permute.xlu0 %1585
      %1587 = vrot.lane.b32.xlu0 %v1524, 120
      %v1588 = vpop.permute.xlu0 %1587
      %1589 = vrot.lane.b32.xlu0 %v1526, 120
      %v1590 = vpop.permute.xlu0 %1589
      %1591 = vrot.lane.b32.xlu0 %v1528, 120
      %v1592 = vpop.permute.xlu0 %1591
      %1593 = vrot.lane.b32.xlu0 %v1530, 120
      %v1594 = vpop.permute.xlu0 %1593
      %1595 = vrot.lane.b32.xlu0 %v1532, 120
      %v1596 = vpop.permute.xlu0 %1595
      %1597 = vrot.lane.b32.xlu0 %v1534, 120
      %v1598 = vpop.permute.xlu0 %1597
      %1599 = vrot.lane.b32.xlu0 %v1536, 120
      %v1600 = vpop.permute.xlu0 %1599
      %1601 = vrot.lane.b32.xlu0 %v1538, 120
      %v1602 = vpop.permute.xlu0 %1601
      %1603 = vrot.lane.b32.xlu0 %v1540, 120
      %v1604 = vpop.permute.xlu0 %1603
      %1605 = vrot.lane.b32.xlu0 %v1542, 120
      %v1606 = vpop.permute.xlu0 %1605
      %1607 = vrot.lane.b32.xlu0 %v1544, 120
      %v1608 = vpop.permute.xlu0 %1607
      %1609 = vrot.lane.b32.xlu0 %v1546, 120
      %v1610 = vpop.permute.xlu0 %1609
      %1611 = vrot.lane.b32.xlu0 %v1548, 120
      %v1612 = vpop.permute.xlu0 %1611
      %1613 = vrot.lane.b32.xlu0 %v1550, 120
      %v1614 = vpop.permute.xlu0 %1613
      %1615 = vrot.lane.b32.xlu0 %v1552, 120
      %v1616 = vpop.permute.xlu0 %1615
      %1617 = vrot.lane.b32.xlu0 %v1554, 120
      %v1618 = vpop.permute.xlu0 %1617
      %1619 = vrot.lane.b32.xlu0 %v1556, 120
      %v1620 = vpop.permute.xlu0 %1619
      %1621 = vrot.lane.b32.xlu0 %v1558, 120
      %v1622 = vpop.permute.xlu0 %1621
      %1623 = vrot.lane.b32.xlu0 %v1560, 120
      %v1624 = vpop.permute.xlu0 %1623
      %1625 = vrot.lane.b32.xlu0 %v1562, 120
      %v1626 = vpop.permute.xlu0 %1625
      %1627 = vrot.lane.b32.xlu0 %v1564, 120
      %v1628 = vpop.permute.xlu0 %1627
      %1629 = vrot.lane.b32.xlu0 %v1566, 120
      %v1630 = vpop.permute.xlu0 %1629
      %1631 = vrot.lane.b32.xlu0 %v1568, 120
      %v1632 = vpop.permute.xlu0 %1631
      %v1667 = vrot.slane %v880, 4
      %v1668 = vsel %vm1503, %v1567, %v1667
      %v1669 = vrot.slane %v881, 4
      %v1670 = vsel %vm1503, %v1667, %v1669
      %1671 = vrot.lane.b32.xlu0 %v1510, 16
      %v1672 = vpop.permute.xlu0 %1671
      %1673 = vrot.lane.b32.xlu0 %v1512, 16
      %v1674 = vpop.permute.xlu0 %1673
      %1675 = vrot.lane.b32.xlu0 %v1514, 16
      %v1676 = vpop.permute.xlu0 %1675
      %1677 = vrot.lane.b32.xlu0 %v1516, 16
      %v1678 = vpop.permute.xlu0 %1677
      %1679 = vrot.lane.b32.xlu0 %v1518, 16
      %v1680 = vpop.permute.xlu0 %1679
      %1681 = vrot.lane.b32.xlu0 %v1520, 16
      %v1682 = vpop.permute.xlu0 %1681
      %1683 = vrot.lane.b32.xlu0 %v1522, 16
      %v1684 = vpop.permute.xlu0 %1683
      %1685 = vrot.lane.b32.xlu0 %v1524, 16
      %v1686 = vpop.permute.xlu0 %1685
      %1687 = vrot.lane.b32.xlu0 %v1526, 16
      %v1688 = vpop.permute.xlu0 %1687
      %1689 = vrot.lane.b32.xlu0 %v1528, 16
      %v1690 = vpop.permute.xlu0 %1689
      %1691 = vrot.lane.b32.xlu0 %v1530, 16
      %v1692 = vpop.permute.xlu0 %1691
      %1693 = vrot.lane.b32.xlu0 %v1532, 16
      %v1694 = vpop.permute.xlu0 %1693
      %1695 = vrot.lane.b32.xlu0 %v1534, 16
      %v1696 = vpop.permute.xlu0 %1695
      %1697 = vrot.lane.b32.xlu0 %v1536, 16
      %v1698 = vpop.permute.xlu0 %1697
      %1699 = vrot.lane.b32.xlu0 %v1538, 16
      %v1700 = vpop.permute.xlu0 %1699
      %1701 = vrot.lane.b32.xlu0 %v1540, 16
      %v1702 = vpop.permute.xlu0 %1701
      %1703 = vrot.lane.b32.xlu0 %v1542, 16
      %v1704 = vpop.permute.xlu0 %1703
      %1705 = vrot.lane.b32.xlu0 %v1544, 16
      %v1706 = vpop.permute.xlu0 %1705
      %1707 = vrot.lane.b32.xlu0 %v1546, 16
      %v1708 = vpop.permute.xlu0 %1707
      %1709 = vrot.lane.b32.xlu0 %v1548, 16
      %v1710 = vpop.permute.xlu0 %1709
      %1711 = vrot.lane.b32.xlu0 %v1550, 16
      %v1712 = vpop.permute.xlu0 %1711
      %1713 = vrot.lane.b32.xlu0 %v1552, 16
      %v1714 = vpop.permute.xlu0 %1713
      %1715 = vrot.lane.b32.xlu0 %v1554, 16
      %v1716 = vpop.permute.xlu0 %1715
      %1717 = vrot.lane.b32.xlu0 %v1556, 16
      %v1718 = vpop.permute.xlu0 %1717
      %1719 = vrot.lane.b32.xlu0 %v1558, 16
      %v1720 = vpop.permute.xlu0 %1719
      %1721 = vrot.lane.b32.xlu0 %v1560, 16
      %v1722 = vpop.permute.xlu0 %1721
      %1723 = vrot.lane.b32.xlu0 %v1562, 16
      %v1724 = vpop.permute.xlu0 %1723
      %1725 = vrot.lane.b32.xlu0 %v1564, 16
      %v1726 = vpop.permute.xlu0 %1725
      %1727 = vrot.lane.b32.xlu0 %v1566, 16
      %v1728 = vpop.permute.xlu0 %1727
      %1729 = vrot.lane.b32.xlu0 %v1568, 16
      %v1730 = vpop.permute.xlu0 %1729
      %1731 = vrot.lane.b32.xlu0 %v1668, 16
      %v1732 = vpop.permute.xlu0 %1731
      %1733 = vrot.lane.b32.xlu0 %v1670, 16
      %v1734 = vpop.permute.xlu0 %1733
      %vm1767 = vcmask 1042432
      %v1768 = vrot.slane %v849, 5
      %v1769 = vrot.slane %v850, 5
      %v1770 = vsel %vm1767, %v1768, %v1769
      %v1771 = vrot.slane %v851, 5
      %v1772 = vsel %vm1767, %v1769, %v1771
      %v1773 = vrot.slane %v852, 5
      %v1774 = vsel %vm1767, %v1771, %v1773
      %v1775 = vrot.slane %v853, 5
      %v1776 = vsel %vm1767, %v1773, %v1775
      %v1777 = vrot.slane %v854, 5
      %v1778 = vsel %vm1767, %v1775, %v1777
      %v1779 = vrot.slane %v855, 5
      %v1780 = vsel %vm1767, %v1777, %v1779
      %v1781 = vrot.slane %v856, 5
      %v1782 = vsel %vm1767, %v1779, %v1781
      %v1783 = vrot.slane %v857, 5
      %v1784 = vsel %vm1767, %v1781, %v1783
      %v1785 = vrot.slane %v858, 5
      %v1786 = vsel %vm1767, %v1783, %v1785
      %v1787 = vrot.slane %v859, 5
      %v1788 = vsel %vm1767, %v1785, %v1787
      %v1789 = vrot.slane %v860, 5
      %v1790 = vsel %vm1767, %v1787, %v1789
      %v1791 = vrot.slane %v861, 5
      %v1792 = vsel %vm1767, %v1789, %v1791
      %v1793 = vrot.slane %v862, 5
      %v1794 = vsel %vm1767, %v1791, %v1793
      %v1795 = vrot.slane %v863, 5
      %v1796 = vsel %vm1767, %v1793, %v1795
      %v1797 = vrot.slane %v864, 5
      %v1798 = vsel %vm1767, %v1795, %v1797
      %v1799 = vrot.slane %v865, 5
      %v1800 = vsel %vm1767, %v1797, %v1799
      %v1801 = vrot.slane %v866, 5
      %v1802 = vsel %vm1767, %v1799, %v1801
      %v1803 = vrot.slane %v867, 5
      %v1804 = vsel %vm1767, %v1801, %v1803
      %v1805 = vrot.slane %v868, 5
      %v1806 = vsel %vm1767, %v1803, %v1805
      %v1807 = vrot.slane %v869, 5
      %v1808 = vsel %vm1767, %v1805, %v1807
      %v1809 = vrot.slane %v870, 5
      %v1810 = vsel %vm1767, %v1807, %v1809
      %v1811 = vrot.slane %v871, 5
      %v1812 = vsel %vm1767, %v1809, %v1811
      %v1813 = vrot.slane %v872, 5
      %v1814 = vsel %vm1767, %v1811, %v1813
      %v1815 = vrot.slane %v873, 5
      %v1816 = vsel %vm1767, %v1813, %v1815
      %v1817 = vrot.slane %v874, 5
      %v1818 = vsel %vm1767, %v1815, %v1817
      %v1819 = vrot.slane %v875, 5
      %v1820 = vsel %vm1767, %v1817, %v1819
      %v1821 = vrot.slane %v876, 5
      %v1822 = vsel %vm1767, %v1819, %v1821
      %v1823 = vrot.slane %v877, 5
      %v1824 = vsel %vm1767, %v1821, %v1823
      %v1825 = vrot.slane %v878, 5
      %v1826 = vsel %vm1767, %v1823, %v1825
      %v1827 = vrot.slane %v879, 5
      %v1828 = vsel %vm1767, %v1825, %v1827
      %v1829 = vrot.slane %v880, 5
      %v1830 = vsel %vm1767, %v1827, %v1829
      %v1831 = vrot.slane %v881, 5
      %v1832 = vsel %vm1767, %v1829, %v1831
      %1833 = vrot.lane.b32.xlu0 %v1770, 40
      %v1834 = vpop.permute.xlu0 %1833
      %1835 = vrot.lane.b32.xlu0 %v1772, 40
      %v1836 = vpop.permute.xlu0 %1835
      %1837 = vrot.lane.b32.xlu0 %v1774, 40
      %v1838 = vpop.permute.xlu0 %1837
      %1839 = vrot.lane.b32.xlu0 %v1776, 40
      %v1840 = vpop.permute.xlu0 %1839
      %1841 = vrot.lane.b32.xlu0 %v1778, 40
      %v1842 = vpop.permute.xlu0 %1841
      %1843 = vrot.lane.b32.xlu0 %v1780, 40
      %v1844 = vpop.permute.xlu0 %1843
      %1845 = vrot.lane.b32.xlu0 %v1782, 40
      %v1846 = vpop.permute.xlu0 %1845
      %1847 = vrot.lane.b32.xlu0 %v1784, 40
      %v1848 = vpop.permute.xlu0 %1847
      %1849 = vrot.lane.b32.xlu0 %v1786, 40
      %v1850 = vpop.permute.xlu0 %1849
      %1851 = vrot.lane.b32.xlu0 %v1788, 40
      %v1852 = vpop.permute.xlu0 %1851
      %1853 = vrot.lane.b32.xlu0 %v1790, 40
      %v1854 = vpop.permute.xlu0 %1853
      %1855 = vrot.lane.b32.xlu0 %v1792, 40
      %v1856 = vpop.permute.xlu0 %1855
      %1857 = vrot.lane.b32.xlu0 %v1794, 40
      %v1858 = vpop.permute.xlu0 %1857
      %1859 = vrot.lane.b32.xlu0 %v1796, 40
      %v1860 = vpop.permute.xlu0 %1859
      %1861 = vrot.lane.b32.xlu0 %v1798, 40
      %v1862 = vpop.permute.xlu0 %1861
      %1863 = vrot.lane.b32.xlu0 %v1800, 40
      %v1864 = vpop.permute.xlu0 %1863
      %1865 = vrot.lane.b32.xlu0 %v1802, 40
      %v1866 = vpop.permute.xlu0 %1865
      %1867 = vrot.lane.b32.xlu0 %v1804, 40
      %v1868 = vpop.permute.xlu0 %1867
      %1869 = vrot.lane.b32.xlu0 %v1806, 40
      %v1870 = vpop.permute.xlu0 %1869
      %1871 = vrot.lane.b32.xlu0 %v1808, 40
      %v1872 = vpop.permute.xlu0 %1871
      %1873 = vrot.lane.b32.xlu0 %v1810, 40
      %v1874 = vpop.permute.xlu0 %1873
      %1875 = vrot.lane.b32.xlu0 %v1812, 40
      %v1876 = vpop.permute.xlu0 %1875
      %1877 = vrot.lane.b32.xlu0 %v1814, 40
      %v1878 = vpop.permute.xlu0 %1877
      %1879 = vrot.lane.b32.xlu0 %v1816, 40
      %v1880 = vpop.permute.xlu0 %1879
      %1881 = vrot.lane.b32.xlu0 %v1818, 40
      %v1882 = vpop.permute.xlu0 %1881
      %1883 = vrot.lane.b32.xlu0 %v1820, 40
      %v1884 = vpop.permute.xlu0 %1883
      %1885 = vrot.lane.b32.xlu0 %v1822, 40
      %v1886 = vpop.permute.xlu0 %1885
      %1887 = vrot.lane.b32.xlu0 %v1824, 40
      %v1888 = vpop.permute.xlu0 %1887
      %1889 = vrot.lane.b32.xlu0 %v1826, 40
      %v1890 = vpop.permute.xlu0 %1889
      %1891 = vrot.lane.b32.xlu0 %v1828, 40
      %v1892 = vpop.permute.xlu0 %1891
      %1893 = vrot.lane.b32.xlu0 %v1830, 40
      %v1894 = vpop.permute.xlu0 %1893
      %1895 = vrot.lane.b32.xlu0 %v1832, 40
      %v1896 = vpop.permute.xlu0 %1895
      %vm1929 = vcmask 1041408
      %v1930 = vrot.slane %v849, 6
      %v1931 = vrot.slane %v850, 6
      %v1932 = vsel %vm1929, %v1930, %v1931
      %v1933 = vrot.slane %v851, 6
      %v1934 = vsel %vm1929, %v1931, %v1933
      %v1935 = vrot.slane %v852, 6
      %v1936 = vsel %vm1929, %v1933, %v1935
      %v1937 = vrot.slane %v853, 6
      %v1938 = vsel %vm1929, %v1935, %v1937
      %v1939 = vrot.slane %v854, 6
      %v1940 = vsel %vm1929, %v1937, %v1939
      %v1941 = vrot.slane %v855, 6
      %v1942 = vsel %vm1929, %v1939, %v1941
      %v1943 = vrot.slane %v856, 6
      %v1944 = vsel %vm1929, %v1941, %v1943
      %v1945 = vrot.slane %v857, 6
      %v1946 = vsel %vm1929, %v1943, %v1945
      %v1947 = vrot.slane %v858, 6
      %v1948 = vsel %vm1929, %v1945, %v1947
      %v1949 = vrot.slane %v859, 6
      %v1950 = vsel %vm1929, %v1947, %v1949
      %v1951 = vrot.slane %v860, 6
      %v1952 = vsel %vm1929, %v1949, %v1951
      %v1953 = vrot.slane %v861, 6
      %v1954 = vsel %vm1929, %v1951, %v1953
      %v1955 = vrot.slane %v862, 6
      %v1956 = vsel %vm1929, %v1953, %v1955
      %v1957 = vrot.slane %v863, 6
      %v1958 = vsel %vm1929, %v1955, %v1957
      %v1959 = vrot.slane %v864, 6
      %v1960 = vsel %vm1929, %v1957, %v1959
      %v1961 = vrot.slane %v865, 6
      %v1962 = vsel %vm1929, %v1959, %v1961
      %v1963 = vrot.slane %v866, 6
      %v1964 = vsel %vm1929, %v1961, %v1963
      %v1965 = vrot.slane %v867, 6
      %v1966 = vsel %vm1929, %v1963, %v1965
      %v1967 = vrot.slane %v868, 6
      %v1968 = vsel %vm1929, %v1965, %v1967
      %v1969 = vrot.slane %v869, 6
      %v1970 = vsel %vm1929, %v1967, %v1969
      %v1971 = vrot.slane %v870, 6
      %v1972 = vsel %vm1929, %v1969, %v1971
      %v1973 = vrot.slane %v871, 6
      %v1974 = vsel %vm1929, %v1971, %v1973
      %v1975 = vrot.slane %v872, 6
      %v1976 = vsel %vm1929, %v1973, %v1975
      %v1977 = vrot.slane %v873, 6
      %v1978 = vsel %vm1929, %v1975, %v1977
      %v1979 = vrot.slane %v874, 6
      %v1980 = vsel %vm1929, %v1977, %v1979
      %v1981 = vrot.slane %v875, 6
      %v1982 = vsel %vm1929, %v1979, %v1981
      %v1983 = vrot.slane %v876, 6
      %v1984 = vsel %vm1929, %v1981, %v1983
      %v1985 = vrot.slane %v877, 6
      %v1986 = vsel %vm1929, %v1983, %v1985
      %v1987 = vrot.slane %v878, 6
      %v1988 = vsel %vm1929, %v1985, %v1987
      %v1989 = vrot.slane %v879, 6
      %v1990 = vsel %vm1929, %v1987, %v1989
      %v1991 = vrot.slane %v880, 6
      %v1992 = vsel %vm1929, %v1989, %v1991
      %v1993 = vrot.slane %v881, 6
      %v1994 = vsel %vm1929, %v1991, %v1993
      %1995 = vrot.lane.b32.xlu0 %v1932, 64
      %v1996 = vpop.permute.xlu0 %1995
      %1997 = vrot.lane.b32.xlu0 %v1934, 64
      %v1998 = vpop.permute.xlu0 %1997
      %1999 = vrot.lane.b32.xlu0 %v1936, 64
      %v2000 = vpop.permute.xlu0 %1999
      %2001 = vrot.lane.b32.xlu0 %v1938, 64
      %v2002 = vpop.permute.xlu0 %2001
      %2003 = vrot.lane.b32.xlu0 %v1940, 64
      %v2004 = vpop.permute.xlu0 %2003
      %2005 = vrot.lane.b32.xlu0 %v1942, 64
      %v2006 = vpop.permute.xlu0 %2005
      %2007 = vrot.lane.b32.xlu0 %v1944, 64
      %v2008 = vpop.permute.xlu0 %2007
      %2009 = vrot.lane.b32.xlu0 %v1946, 64
      %v2010 = vpop.permute.xlu0 %2009
      %2011 = vrot.lane.b32.xlu0 %v1948, 64
      %v2012 = vpop.permute.xlu0 %2011
      %2013 = vrot.lane.b32.xlu0 %v1950, 64
      %v2014 = vpop.permute.xlu0 %2013
      %2015 = vrot.lane.b32.xlu0 %v1952, 64
      %v2016 = vpop.permute.xlu0 %2015
      %2017 = vrot.lane.b32.xlu0 %v1954, 64
      %v2018 = vpop.permute.xlu0 %2017
      %2019 = vrot.lane.b32.xlu0 %v1956, 64
      %v2020 = vpop.permute.xlu0 %2019
      %2021 = vrot.lane.b32.xlu0 %v1958, 64
      %v2022 = vpop.permute.xlu0 %2021
      %2023 = vrot.lane.b32.xlu0 %v1960, 64
      %v2024 = vpop.permute.xlu0 %2023
      %2025 = vrot.lane.b32.xlu0 %v1962, 64
      %v2026 = vpop.permute.xlu0 %2025
      %2027 = vrot.lane.b32.xlu0 %v1964, 64
      %v2028 = vpop.permute.xlu0 %2027
      %2029 = vrot.lane.b32.xlu0 %v1966, 64
      %v2030 = vpop.permute.xlu0 %2029
      %2031 = vrot.lane.b32.xlu0 %v1968, 64
      %v2032 = vpop.permute.xlu0 %2031
      %2033 = vrot.lane.b32.xlu0 %v1970, 64
      %v2034 = vpop.permute.xlu0 %2033
      %2035 = vrot.lane.b32.xlu0 %v1972, 64
      %v2036 = vpop.permute.xlu0 %2035
      %2037 = vrot.lane.b32.xlu0 %v1974, 64
      %v2038 = vpop.permute.xlu0 %2037
      %2039 = vrot.lane.b32.xlu0 %v1976, 64
      %v2040 = vpop.permute.xlu0 %2039
      %2041 = vrot.lane.b32.xlu0 %v1978, 64
      %v2042 = vpop.permute.xlu0 %2041
      %2043 = vrot.lane.b32.xlu0 %v1980, 64
      %v2044 = vpop.permute.xlu0 %2043
      %2045 = vrot.lane.b32.xlu0 %v1982, 64
      %v2046 = vpop.permute.xlu0 %2045
      %2047 = vrot.lane.b32.xlu0 %v1984, 64
      %v2048 = vpop.permute.xlu0 %2047
      %2049 = vrot.lane.b32.xlu0 %v1986, 64
      %v2050 = vpop.permute.xlu0 %2049
      %2051 = vrot.lane.b32.xlu0 %v1988, 64
      %v2052 = vpop.permute.xlu0 %2051
      %2053 = vrot.lane.b32.xlu0 %v1990, 64
      %v2054 = vpop.permute.xlu0 %2053
      %2055 = vrot.lane.b32.xlu0 %v1992, 64
      %v2056 = vpop.permute.xlu0 %2055
      %2057 = vrot.lane.b32.xlu0 %v1994, 64
      %v2058 = vpop.permute.xlu0 %2057
      %vm2091 = vcmask 195584
      %v2092 = vsel %vm2091, %v845, %v982
      %v2093 = vsel %vm2091, %v846, %v984
      %v2094 = vsel %vm2091, %v847, %v986
      %v2095 = vsel %vm2091, %v848, %v988
      %v2096 = vsel %vm2091, %v849, %v990
      %v2097 = vsel %vm2091, %v850, %v992
      %v2098 = vsel %vm2091, %v851, %v994
      %v2099 = vsel %vm2091, %v852, %v996
      %v2100 = vsel %vm2091, %v853, %v998
      %v2101 = vsel %vm2091, %v854, %v1000
      %v2102 = vsel %vm2091, %v855, %v1002
      %v2103 = vsel %vm2091, %v856, %v1004
      %v2104 = vsel %vm2091, %v857, %v1006
      %v2105 = vsel %vm2091, %v858, %v1008
      %v2106 = vsel %vm2091, %v859, %v1010
      %v2107 = vsel %vm2091, %v860, %v1012
      %v2108 = vsel %vm2091, %v861, %v1014
      %v2109 = vsel %vm2091, %v862, %v1016
      %v2110 = vsel %vm2091, %v863, %v1018
      %v2111 = vsel %vm2091, %v864, %v1020
      %v2112 = vsel %vm2091, %v865, %v1022
      %v2113 = vsel %vm2091, %v866, %v1024
      %v2114 = vsel %vm2091, %v867, %v1026
      %v2115 = vsel %vm2091, %v868, %v1028
      %v2116 = vsel %vm2091, %v869, %v1030
      %v2117 = vsel %vm2091, %v870, %v1032
      %v2118 = vsel %vm2091, %v871, %v1034
      %v2119 = vsel %vm2091, %v872, %v1036
      %v2120 = vsel %vm2091, %v873, %v1038
      %v2121 = vsel %vm2091, %v874, %v1040
      %v2122 = vsel %vm2091, %v875, %v1042
      %v2123 = vsel %vm2091, %v876, %v1044
      %vm2124 = vcmask 392192
      %v2125 = vsel %vm2124, %v2092, %v1144
      %v2126 = vsel %vm2124, %v2093, %v1146
      %v2127 = vsel %vm2124, %v2094, %v1148
      %v2128 = vsel %vm2124, %v2095, %v1150
      %v2129 = vsel %vm2124, %v2096, %v1152
      %v2130 = vsel %vm2124, %v2097, %v1154
      %v2131 = vsel %vm2124, %v2098, %v1156
      %v2132 = vsel %vm2124, %v2099, %v1158
      %v2133 = vsel %vm2124, %v2100, %v1160
      %v2134 = vsel %vm2124, %v2101, %v1162
      %v2135 = vsel %vm2124, %v2102, %v1164
      %v2136 = vsel %vm2124, %v2103, %v1166
      %v2137 = vsel %vm2124, %v2104, %v1168
      %v2138 = vsel %vm2124, %v2105, %v1170
      %v2139 = vsel %vm2124, %v2106, %v1172
      %v2140 = vsel %vm2124, %v2107, %v1174
      %v2141 = vsel %vm2124, %v2108, %v1176
      %v2142 = vsel %vm2124, %v2109, %v1178
      %v2143 = vsel %vm2124, %v2110, %v1180
      %v2144 = vsel %vm2124, %v2111, %v1182
      %v2145 = vsel %vm2124, %v2112, %v1184
      %v2146 = vsel %vm2124, %v2113, %v1186
      %v2147 = vsel %vm2124, %v2114, %v1188
      %v2148 = vsel %vm2124, %v2115, %v1190
      %v2149 = vsel %vm2124, %v2116, %v1192
      %v2150 = vsel %vm2124, %v2117, %v1194
      %v2151 = vsel %vm2124, %v2118, %v1196
      %v2152 = vsel %vm2124, %v2119, %v1198
      %v2153 = vsel %vm2124, %v2120, %v1200
      %v2154 = vsel %vm2124, %v2121, %v1202
      %v2155 = vsel %vm2124, %v2122, %v1204
      %v2156 = vsel %vm2124, %v2123, %v1206
      %vm2157 = vcmask 588800
      %v2158 = vsel %vm2157, %v2125, %v1246
      %v2159 = vsel %vm2157, %v2126, %v1248
      %v2160 = vsel %vm2157, %v2127, %v1250
      %v2161 = vsel %vm2157, %v2128, %v1252
      %v2162 = vsel %vm2157, %v2129, %v1254
      %v2163 = vsel %vm2157, %v2130, %v1256
      %v2164 = vsel %vm2157, %v2131, %v1258
      %v2165 = vsel %vm2157, %v2132, %v1260
      %v2166 = vsel %vm2157, %v2133, %v1262
      %v2167 = vsel %vm2157, %v2134, %v1264
      %v2168 = vsel %vm2157, %v2135, %v1266
      %v2169 = vsel %vm2157, %v2136, %v1268
      %v2170 = vsel %vm2157, %v2137, %v1270
      %v2171 = vsel %vm2157, %v2138, %v1272
      %v2172 = vsel %vm2157, %v2139, %v1274
      %v2173 = vsel %vm2157, %v2140, %v1276
      %v2174 = vsel %vm2157, %v2141, %v1278
      %v2175 = vsel %vm2157, %v2142, %v1280
      %v2176 = vsel %vm2157, %v2143, %v1282
      %v2177 = vsel %vm2157, %v2144, %v1284
      %v2178 = vsel %vm2157, %v2145, %v1286
      %v2179 = vsel %vm2157, %v2146, %v1288
      %v2180 = vsel %vm2157, %v2147, %v1290
      %v2181 = vsel %vm2157, %v2148, %v1292
      %v2182 = vsel %vm2157, %v2149, %v1294
      %v2183 = vsel %vm2157, %v2150, %v1296
      %v2184 = vsel %vm2157, %v2151, %v1298
      %v2185 = vsel %vm2157, %v2152, %v1300
      %v2186 = vsel %vm2157, %v2153, %v1302
      %v2187 = vsel %vm2157, %v2154, %v1304
      %v2188 = vsel %vm2157, %v2155, %v1306
      %v2189 = vsel %vm2157, %v2156, %v1308
      %vm2190 = vcmask 785408
      %v2191 = vsel %vm2190, %v2158, %v1408
      %v2192 = vsel %vm2190, %v2159, %v1410
      %v2193 = vsel %vm2190, %v2160, %v1412
      %v2194 = vsel %vm2190, %v2161, %v1414
      %v2195 = vsel %vm2190, %v2162, %v1416
      %v2196 = vsel %vm2190, %v2163, %v1418
      %v2197 = vsel %vm2190, %v2164, %v1420
      %v2198 = vsel %vm2190, %v2165, %v1422
      %v2199 = vsel %vm2190, %v2166, %v1424
      %v2200 = vsel %vm2190, %v2167, %v1426
      %v2201 = vsel %vm2190, %v2168, %v1428
      %v2202 = vsel %vm2190, %v2169, %v1430
      %v2203 = vsel %vm2190, %v2170, %v1432
      %v2204 = vsel %vm2190, %v2171, %v1434
      %v2205 = vsel %vm2190, %v2172, %v1436
      %v2206 = vsel %vm2190, %v2173, %v1438
      %v2207 = vsel %vm2190, %v2174, %v1440
      %v2208 = vsel %vm2190, %v2175, %v1442
      %v2209 = vsel %vm2190, %v2176, %v1444
      %v2210 = vsel %vm2190, %v2177, %v1446
      %v2211 = vsel %vm2190, %v2178, %v1448
      %v2212 = vsel %vm2190, %v2179, %v1450
      %v2213 = vsel %vm2190, %v2180, %v1452
      %v2214 = vsel %vm2190, %v2181, %v1454
      %v2215 = vsel %vm2190, %v2182, %v1456
      %v2216 = vsel %vm2190, %v2183, %v1458
      %v2217 = vsel %vm2190, %v2184, %v1460
      %v2218 = vsel %vm2190, %v2185, %v1462
      %v2219 = vsel %vm2190, %v2186, %v1464
      %v2220 = vsel %vm2190, %v2187, %v1466
      %v2221 = vsel %vm2190, %v2188, %v1468
      %v2222 = vsel %vm2190, %v2189, %v1470
      %vm2223 = vcmask 982016
      %v2224 = vsel %vm2223, %v2191, %v1570
      %v2225 = vsel %vm2223, %v2192, %v1572
      %v2226 = vsel %vm2223, %v2193, %v1574
      %v2227 = vsel %vm2223, %v2194, %v1576
      %v2228 = vsel %vm2223, %v2195, %v1578
      %v2229 = vsel %vm2223, %v2196, %v1580
      %v2230 = vsel %vm2223, %v2197, %v1582
      %v2231 = vsel %vm2223, %v2198, %v1584
      %v2232 = vsel %vm2223, %v2199, %v1586
      %v2233 = vsel %vm2223, %v2200, %v1588
      %v2234 = vsel %vm2223, %v2201, %v1590
      %v2235 = vsel %vm2223, %v2202, %v1592
      %v2236 = vsel %vm2223, %v2203, %v1594
      %v2237 = vsel %vm2223, %v2204, %v1596
      %v2238 = vsel %vm2223, %v2205, %v1598
      %v2239 = vsel %vm2223, %v2206, %v1600
      %v2240 = vsel %vm2223, %v2207, %v1602
      %v2241 = vsel %vm2223, %v2208, %v1604
      %v2242 = vsel %vm2223, %v2209, %v1606
      %v2243 = vsel %vm2223, %v2210, %v1608
      %v2244 = vsel %vm2223, %v2211, %v1610
      %v2245 = vsel %vm2223, %v2212, %v1612
      %v2246 = vsel %vm2223, %v2213, %v1614
      %v2247 = vsel %vm2223, %v2214, %v1616
      %v2248 = vsel %vm2223, %v2215, %v1618
      %v2249 = vsel %vm2223, %v2216, %v1620
      %v2250 = vsel %vm2223, %v2217, %v1622
      %v2251 = vsel %vm2223, %v2218, %v1624
      %v2252 = vsel %vm2223, %v2219, %v1626
      %v2253 = vsel %vm2223, %v2220, %v1628
      %v2254 = vsel %vm2223, %v2221, %v1630
      %v2255 = vsel %vm2223, %v2222, %v1632
      %vm2256 = vcmask 130048
      %v2257 = vsel %vm2256, %v1570, %v1672
      %v2258 = vsel %vm2256, %v1572, %v1674
      %v2259 = vsel %vm2256, %v1574, %v1676
      %v2260 = vsel %vm2256, %v1576, %v1678
      %v2261 = vsel %vm2256, %v1578, %v1680
      %v2262 = vsel %vm2256, %v1580, %v1682
      %v2263 = vsel %vm2256, %v1582, %v1684
      %v2264 = vsel %vm2256, %v1584, %v1686
      %v2265 = vsel %vm2256, %v1586, %v1688
      %v2266 = vsel %vm2256, %v1588, %v1690
      %v2267 = vsel %vm2256, %v1590, %v1692
      %v2268 = vsel %vm2256, %v1592, %v1694
      %v2269 = vsel %vm2256, %v1594, %v1696
      %v2270 = vsel %vm2256, %v1596, %v1698
      %v2271 = vsel %vm2256, %v1598, %v1700
      %v2272 = vsel %vm2256, %v1600, %v1702
      %v2273 = vsel %vm2256, %v1602, %v1704
      %v2274 = vsel %vm2256, %v1604, %v1706
      %v2275 = vsel %vm2256, %v1606, %v1708
      %v2276 = vsel %vm2256, %v1608, %v1710
      %v2277 = vsel %vm2256, %v1610, %v1712
      %v2278 = vsel %vm2256, %v1612, %v1714
      %v2279 = vsel %vm2256, %v1614, %v1716
      %v2280 = vsel %vm2256, %v1616, %v1718
      %v2281 = vsel %vm2256, %v1618, %v1720
      %v2282 = vsel %vm2256, %v1620, %v1722
      %v2283 = vsel %vm2256, %v1622, %v1724
      %v2284 = vsel %vm2256, %v1624, %v1726
      %v2285 = vsel %vm2256, %v1626, %v1728
      %v2286 = vsel %vm2256, %v1628, %v1730
      %v2287 = vsel %vm2256, %v1630, %v1732
      %v2288 = vsel %vm2256, %v1632, %v1734
      %vm2289 = vcmask 326656
      %v2290 = vsel %vm2289, %v2257, %v1834
      %v2291 = vsel %vm2289, %v2258, %v1836
      %v2292 = vsel %vm2289, %v2259, %v1838
      %v2293 = vsel %vm2289, %v2260, %v1840
      %v2294 = vsel %vm2289, %v2261, %v1842
      %v2295 = vsel %vm2289, %v2262, %v1844
      %v2296 = vsel %vm2289, %v2263, %v1846
      %v2297 = vsel %vm2289, %v2264, %v1848
      %v2298 = vsel %vm2289, %v2265, %v1850
      %v2299 = vsel %vm2289, %v2266, %v1852
      %v2300 = vsel %vm2289, %v2267, %v1854
      %v2301 = vsel %vm2289, %v2268, %v1856
      %v2302 = vsel %vm2289, %v2269, %v1858
      %v2303 = vsel %vm2289, %v2270, %v1860
      %v2304 = vsel %vm2289, %v2271, %v1862
      %v2305 = vsel %vm2289, %v2272, %v1864
      %v2306 = vsel %vm2289, %v2273, %v1866
      %v2307 = vsel %vm2289, %v2274, %v1868
      %v2308 = vsel %vm2289, %v2275, %v1870
      %v2309 = vsel %vm2289, %v2276, %v1872
      %v2310 = vsel %vm2289, %v2277, %v1874
      %v2311 = vsel %vm2289, %v2278, %v1876
      %v2312 = vsel %vm2289, %v2279, %v1878
      %v2313 = vsel %vm2289, %v2280, %v1880
      %v2314 = vsel %vm2289, %v2281, %v1882
      %v2315 = vsel %vm2289, %v2282, %v1884
      %v2316 = vsel %vm2289, %v2283, %v1886
      %v2317 = vsel %vm2289, %v2284, %v1888
      %v2318 = vsel %vm2289, %v2285, %v1890
      %v2319 = vsel %vm2289, %v2286, %v1892
      %v2320 = vsel %vm2289, %v2287, %v1894
      %v2321 = vsel %vm2289, %v2288, %v1896
      %vm2322 = vcmask 523264
      %v2323 = vsel %vm2322, %v2290, %v1996
      %v2324 = vsel %vm2322, %v2291, %v1998
      %v2325 = vsel %vm2322, %v2292, %v2000
      %v2326 = vsel %vm2322, %v2293, %v2002
      %v2327 = vsel %vm2322, %v2294, %v2004
      %v2328 = vsel %vm2322, %v2295, %v2006
      %v2329 = vsel %vm2322, %v2296, %v2008
      %v2330 = vsel %vm2322, %v2297, %v2010
      %v2331 = vsel %vm2322, %v2298, %v2012
      %v2332 = vsel %vm2322, %v2299, %v2014
      %v2333 = vsel %vm2322, %v2300, %v2016
      %v2334 = vsel %vm2322, %v2301, %v2018
      %v2335 = vsel %vm2322, %v2302, %v2020
      %v2336 = vsel %vm2322, %v2303, %v2022
      %v2337 = vsel %vm2322, %v2304, %v2024
      %v2338 = vsel %vm2322, %v2305, %v2026
      %v2339 = vsel %vm2322, %v2306, %v2028
      %v2340 = vsel %vm2322, %v2307, %v2030
      %v2341 = vsel %vm2322, %v2308, %v2032
      %v2342 = vsel %vm2322, %v2309, %v2034
      %v2343 = vsel %vm2322, %v2310, %v2036
      %v2344 = vsel %vm2322, %v2311, %v2038
      %v2345 = vsel %vm2322, %v2312, %v2040
      %v2346 = vsel %vm2322, %v2313, %v2042
      %v2347 = vsel %vm2322, %v2314, %v2044
      %v2348 = vsel %vm2322, %v2315, %v2046
      %v2349 = vsel %vm2322, %v2316, %v2048
      %v2350 = vsel %vm2322, %v2317, %v2050
      %v2351 = vsel %vm2322, %v2318, %v2052
      %v2352 = vsel %vm2322, %v2319, %v2054
      %v2353 = vsel %vm2322, %v2320, %v2056
      %v2354 = vsel %vm2322, %v2321, %v2058
      %v2355 = vpack.c.bf16 %v2225, %v2224
      %v2356 = vpack.c.bf16 %v2324, %v2323
      %v2357 = vpack.c.bf16 %v2227, %v2226
      %v2358 = vpack.c.bf16 %v2326, %v2325
      %v2359 = vpack.c.bf16 %v2229, %v2228
      %v2360 = vpack.c.bf16 %v2328, %v2327
      %v2361 = vpack.c.bf16 %v2231, %v2230
      %v2362 = vpack.c.bf16 %v2330, %v2329
      %v2363 = vpack.c.bf16 %v2233, %v2232
      %v2364 = vpack.c.bf16 %v2332, %v2331
      %v2365 = vpack.c.bf16 %v2235, %v2234
      %v2366 = vpack.c.bf16 %v2334, %v2333
      %v2367 = vpack.c.bf16 %v2237, %v2236
      %v2368 = vpack.c.bf16 %v2336, %v2335
      %v2369 = vpack.c.bf16 %v2239, %v2238
      %v2370 = vpack.c.bf16 %v2338, %v2337
      %v2371 = vpack.c.bf16 %v2241, %v2240
      %v2372 = vpack.c.bf16 %v2340, %v2339
      %v2373 = vpack.c.bf16 %v2243, %v2242
      %v2374 = vpack.c.bf16 %v2342, %v2341
      %v2375 = vpack.c.bf16 %v2245, %v2244
      %v2376 = vpack.c.bf16 %v2344, %v2343
      %v2377 = vpack.c.bf16 %v2247, %v2246
      %v2378 = vpack.c.bf16 %v2346, %v2345
      %v2379 = vpack.c.bf16 %v2249, %v2248
      %v2380 = vpack.c.bf16 %v2348, %v2347
      %v2381 = vpack.c.bf16 %v2251, %v2250
      %v2382 = vpack.c.bf16 %v2350, %v2349
      %v2383 = vpack.c.bf16 %v2253, %v2252
      %v2384 = vpack.c.bf16 %v2352, %v2351
      %v2385 = vpack.c.bf16 %v2255, %v2254
      %v2386 = vpack.c.bf16 %v2354, %v2353
      %v2387 = vld [vmem:[%s2] sm:$0xf]
      %v2388 = vld [vmem:[%s2 + $0x4] sm:$0xf]
      %v2389 = vld [vmem:[%s2 + $0x8] sm:$0xf]
      %v2390 = vld [vmem:[%s2 + $0xc] sm:$0xf]
      %v2391 = vld [vmem:[%s2 + $0x10] sm:$0xf]
      %v2392 = vld [vmem:[%s2 + $0x14] sm:$0xf]
      %v2393 = vld [vmem:[%s2 + $0x18] sm:$0xf]
      %v2394 = vld [vmem:[%s2 + $0x1c] sm:$0xf]
      %v2395 = vld [vmem:[%s2 + $0x20] sm:$0xf]
      %v2396 = vld [vmem:[%s2 + $0x24] sm:$0xf]
      %v2397 = vld [vmem:[%s2 + $0x28] sm:$0xf]
      %v2398 = vld [vmem:[%s2 + $0x2c] sm:$0xf]
      %v2399 = vld [vmem:[%s2 + $0x30] sm:$0xf]
      %v2400 = vld [vmem:[%s2 + $0x34] sm:$0xf]
      %v2401 = vld [vmem:[%s2 + $0x38] sm:$0xf]
      %v2402 = vld [vmem:[%s2 + $0x3c] sm:$0xf]
      %v2403 = vld [vmem:[%s2 + $0x40] sm:$0xf]
      %v2404 = vld [vmem:[%s2 + $0x44] sm:$0xf]
      %v2405 = vld [vmem:[%s2 + $0x48] sm:$0xf]
      %v2406 = vld [vmem:[%s2 + $0x4c] sm:$0xf]
      %v2407 = vld [vmem:[%s2 + $0x50] sm:$0xf]
      %v2408 = vld [vmem:[%s2 + $0x54] sm:$0xf]
      %v2409 = vld [vmem:[%s2 + $0x58] sm:$0xf]
      %v2410 = vld [vmem:[%s2 + $0x5c] sm:$0xf]
      %v2411 = vld [vmem:[%s2 + $0x60] sm:$0xf]
      %v2412 = vld [vmem:[%s2 + $0x64] sm:$0xf]
      %v2413 = vld [vmem:[%s2 + $0x68] sm:$0xf]
      %v2441 = vunpack.c.l.b16 %v2387
      %v2442 = vunpack.c.l.b16 %v2388
      %v2443 = vunpack.c.l.b16 %v2389
      %v2444 = vunpack.c.l.b16 %v2390
      %v2445 = vunpack.c.l.b16 %v2391
      %v2446 = vunpack.c.l.b16 %v2392
      %v2447 = vunpack.c.l.b16 %v2393
      %v2448 = vunpack.c.l.b16 %v2394
      %v2449 = vunpack.c.l.b16 %v2395
      %v2450 = vunpack.c.l.b16 %v2396
      %v2451 = vunpack.c.l.b16 %v2397
      %v2452 = vunpack.c.l.b16 %v2398
      %v2453 = vunpack.c.l.b16 %v2399
      %v2454 = vunpack.c.l.b16 %v2400
      %v2455 = vunpack.c.l.b16 %v2401
      %v2456 = vunpack.c.l.b16 %v2402
      %v2457 = vunpack.c.l.b16 %v2403
      %v2458 = vunpack.c.l.b16 %v2404
      %v2459 = vunpack.c.l.b16 %v2405
      %v2460 = vunpack.c.l.b16 %v2406
      %v2461 = vunpack.c.l.b16 %v2407
      %v2462 = vunpack.c.l.b16 %v2408
      %v2463 = vunpack.c.l.b16 %v2409
      %v2464 = vunpack.c.l.b16 %v2410
      %v2465 = vunpack.c.l.b16 %v2411
      %v2466 = vunpack.c.l.b16 %v2412
      %v2467 = vunpack.c.l.b16 %v2413
      %v2468 = vpack.c.b16 %v2442, %v2441
      %v2469 = vpack.c.b16 %v2444, %v2443
      %v2470 = vpack.c.b16 %v2446, %v2445
      %v2471 = vpack.c.b16 %v2448, %v2447
      %v2472 = vpack.c.b16 %v2450, %v2449
      %v2473 = vpack.c.b16 %v2452, %v2451
      %v2474 = vpack.c.b16 %v2454, %v2453
      %v2475 = vpack.c.b16 %v2456, %v2455
      %v2476 = vpack.c.b16 %v2458, %v2457
      %v2477 = vpack.c.b16 %v2460, %v2459
      %v2478 = vpack.c.b16 %v2462, %v2461
      %v2479 = vpack.c.b16 %v2464, %v2463
      %v2480 = vpack.c.b16 %v2466, %v2465
      %v2481 = vpack.c.b16 %v2467, %v2467
      %vm2495 = vcmask 719872
      %v2497 = vsel %vm2495, %v2356, 0
      %v2500 = vsel %vm2495, %v2358, 0
      %v2503 = vsel %vm2495, %v2360, 0
      %v2506 = vsel %vm2495, %v2362, 0
      %v2509 = vsel %vm2495, %v2364, 0
      %v2512 = vsel %vm2495, %v2366, 0
      %v2515 = vsel %vm2495, %v2368, 0
      %v2518 = vsel %vm2495, %v2370, 0
      %v2521 = vsel %vm2495, %v2372, 0
      %v2524 = vsel %vm2495, %v2374, 0
      %v2527 = vsel %vm2495, %v2376, 0
      %v2530 = vsel %vm2495, %v2378, 0
      %v2533 = vsel %vm2495, %v2380, 0
      %v2536 = vsel %vm2495, %v2382, 0
      %v2539 = vsel %vm2495, %v2384, 0
      %v2542 = vsel %vm2495, %v2386, 0
      %v2545 = vsel %vm1503, %v2481, 0
      %2547 = vmatprep.subr.bf16.mxu0 0
      %2548 = vmatpush1.bf16.msra.mxu0 %v2468
      %2549 = vmatprep.subr.bf16.mxu0 0
      %2550 = vmatpush1.bf16.msra.mxu0 %v2469
      %2551 = vmatprep.subr.bf16.mxu0 0
      %2552 = vmatpush1.bf16.msra.mxu0 %v2470
      %2553 = vmatprep.subr.bf16.mxu0 0
      %2554 = vmatpush1.bf16.msra.mxu0 %v2471
      %2555 = vmatprep.subr.bf16.mxu0 0
      %2556 = vmatpush1.bf16.msra.mxu0 %v2472
      %2557 = vmatprep.subr.bf16.mxu0 0
      %2558 = vmatpush1.bf16.msra.mxu0 %v2473
      %2559 = vmatprep.subr.bf16.mxu0 0
      %2560 = vmatpush1.bf16.msra.mxu0 %v2474
      %2561 = vmatprep.subr.bf16.mxu0 0
      %2562 = vmatpush1.bf16.msra.mxu0 %v2475
      %2563 = vmatprep.subr.bf16.mxu0 0
      %2564 = vmatpush1.bf16.msra.mxu0 %v2476
      %2565 = vmatprep.subr.bf16.mxu0 0
      %2566 = vmatpush1.bf16.msra.mxu0 %v2477
      %2567 = vmatprep.subr.bf16.mxu0 0
      %2568 = vmatpush1.bf16.msra.mxu0 %v2478
      %2569 = vmatprep.subr.bf16.mxu0 0
      %2570 = vmatpush1.bf16.msra.mxu0 %v2479
      %2571 = vmatprep.subr.bf16.mxu0 0
      %2572 = vmatpush1.bf16.msra.mxu0 %v2480
      %2573 = vmatprep.subr.bf16.mxu0 0
      %2574 = vmatpush1.bf16.msra.mxu0 %v2545
      %2575 = vmatprep.subr.bf16.mxu0 0
      %2576 = vmatpush1.bf16.msra.mxu0 0
      %2577 = vmatprep.subr.bf16.mxu0 0
      %2578 = vmatpush1.bf16.msra.mxu0 0
      %2579 = vmatprep.mubr.bf16.mxu0 %v2497
      %2580 = vmatmul.mubr.bf16.gmra.mrb[0].mxu0 %v2355
      %v2581 = vpop.f32.mrb[0].mxu0
      %v2582 = vadd.f32 0.0, %v2581
      %v2583 = vpop.f32.mrb[0].mxu0
      %v2584 = vpop.f32.mrb[0].mxu0
      %v2585 = vadd.f32 0.0, %v2584
      %v2586 = vpop.f32.mrb[0].mxu0
      %2587 = vmatprep.mubr.bf16.mxu0 %v2500
      %2588 = vmatmul.mubr.bf16.gmra.mrb[0].mxu0 %v2357
      %v2589 = vpop.f32.mrb[0].mxu0
      %v2590 = vadd.f32 0.0, %v2589
      %v2591 = vpop.f32.mrb[0].mxu0
      %v2592 = vpop.f32.mrb[0].mxu0
      %v2593 = vadd.f32 0.0, %v2592
      %v2594 = vpop.f32.mrb[0].mxu0
      %2595 = vmatprep.mubr.bf16.mxu0 %v2503
      %2596 = vmatmul.mubr.bf16.gmra.mrb[0].mxu0 %v2359
      %v2597 = vpop.f32.mrb[0].mxu0
      %v2598 = vadd.f32 0.0, %v2597
      %v2599 = vpop.f32.mrb[0].mxu0
      %v2600 = vpop.f32.mrb[0].mxu0
      %v2601 = vadd.f32 0.0, %v2600
      %v2602 = vpop.f32.mrb[0].mxu0
      %2603 = vmatprep.mubr.bf16.mxu0 %v2506
      %2604 = vmatmul.mubr.bf16.gmra.mrb[0].mxu0 %v2361
      %v2605 = vpop.f32.mrb[0].mxu0
      %v2606 = vadd.f32 0.0, %v2605
      %v2607 = vpop.f32.mrb[0].mxu0
      %v2608 = vpop.f32.mrb[0].mxu0
      %v2609 = vadd.f32 0.0, %v2608
      %v2610 = vpop.f32.mrb[0].mxu0
      %2611 = vmatprep.mubr.bf16.mxu0 %v2509
      %2612 = vmatmul.mubr.bf16.gmra.mrb[0].mxu0 %v2363
      %v2613 = vpop.f32.mrb[0].mxu0
      %v2614 = vadd.f32 0.0, %v2613
      %v2615 = vpop.f32.mrb[0].mxu0
      %v2616 = vpop.f32.mrb[0].mxu0
      %v2617 = vadd.f32 0.0, %v2616
      %v2618 = vpop.f32.mrb[0].mxu0
      %2619 = vmatprep.mubr.bf16.mxu0 %v2512
      %2620 = vmatmul.mubr.bf16.gmra.mrb[0].mxu0 %v2365
      %v2621 = vpop.f32.mrb[0].mxu0
      %v2622 = vadd.f32 0.0, %v2621
      %v2623 = vpop.f32.mrb[0].mxu0
      %v2624 = vpop.f32.mrb[0].mxu0
      %v2625 = vadd.f32 0.0, %v2624
      %v2626 = vpop.f32.mrb[0].mxu0
      %2627 = vmatprep.mubr.bf16.mxu0 %v2515
      %2628 = vmatmul.mubr.bf16.gmra.mrb[0].mxu0 %v2367
      %v2629 = vpop.f32.mrb[0].mxu0
      %v2630 = vadd.f32 0.0, %v2629
      %v2631 = vpop.f32.mrb[0].mxu0
      %v2632 = vpop.f32.mrb[0].mxu0
      %v2633 = vadd.f32 0.0, %v2632
      %v2634 = vpop.f32.mrb[0].mxu0
      %2635 = vmatprep.mubr.bf16.mxu0 %v2518
      %2636 = vmatmul.mubr.bf16.gmra.mrb[0].mxu0 %v2369
      %v2637 = vpop.f32.mrb[0].mxu0
      %v2638 = vadd.f32 0.0, %v2637
      %v2639 = vpop.f32.mrb[0].mxu0
      %v2640 = vpop.f32.mrb[0].mxu0
      %v2641 = vadd.f32 0.0, %v2640
      %v2642 = vpop.f32.mrb[0].mxu0
      %2643 = vmatprep.mubr.bf16.mxu0 %v2521
      %2644 = vmatmul.mubr.bf16.gmra.mrb[0].mxu0 %v2371
      %v2645 = vpop.f32.mrb[0].mxu0
      %v2646 = vadd.f32 0.0, %v2645
      %v2647 = vpop.f32.mrb[0].mxu0
      %v2648 = vpop.f32.mrb[0].mxu0
      %v2649 = vadd.f32 0.0, %v2648
      %v2650 = vpop.f32.mrb[0].mxu0
      %2651 = vmatprep.mubr.bf16.mxu0 %v2524
      %2652 = vmatmul.mubr.bf16.gmra.mrb[0].mxu0 %v2373
      %v2653 = vpop.f32.mrb[0].mxu0
      %v2654 = vadd.f32 0.0, %v2653
      %v2655 = vpop.f32.mrb[0].mxu0
      %v2656 = vpop.f32.mrb[0].mxu0
      %v2657 = vadd.f32 0.0, %v2656
      %v2658 = vpop.f32.mrb[0].mxu0
      %2659 = vmatprep.mubr.bf16.mxu0 %v2527
      %2660 = vmatmul.mubr.bf16.gmra.mrb[0].mxu0 %v2375
      %v2661 = vpop.f32.mrb[0].mxu0
      %v2662 = vadd.f32 0.0, %v2661
      %v2663 = vpop.f32.mrb[0].mxu0
      %v2664 = vpop.f32.mrb[0].mxu0
      %v2665 = vadd.f32 0.0, %v2664
      %v2666 = vpop.f32.mrb[0].mxu0
      %2667 = vmatprep.mubr.bf16.mxu0 %v2530
      %2668 = vmatmul.mubr.bf16.gmra.mrb[0].mxu0 %v2377
      %v2669 = vpop.f32.mrb[0].mxu0
      %v2670 = vadd.f32 0.0, %v2669
      %v2671 = vpop.f32.mrb[0].mxu0
      %v2672 = vpop.f32.mrb[0].mxu0
      %v2673 = vadd.f32 0.0, %v2672
      %v2674 = vpop.f32.mrb[0].mxu0
      %2675 = vmatprep.mubr.bf16.mxu0 %v2533
      %2676 = vmatmul.mubr.bf16.gmra.mrb[0].mxu0 %v2379
      %v2677 = vpop.f32.mrb[0].mxu0
      %v2678 = vadd.f32 0.0, %v2677
      %v2679 = vpop.f32.mrb[0].mxu0
      %v2680 = vpop.f32.mrb[0].mxu0
      %v2681 = vadd.f32 0.0, %v2680
      %v2682 = vpop.f32.mrb[0].mxu0
      %2683 = vmatprep.mubr.bf16.mxu0 %v2536
      %2684 = vmatmul.mubr.bf16.gmra.mrb[0].mxu0 %v2381
      %v2685 = vpop.f32.mrb[0].mxu0
      %v2686 = vadd.f32 0.0, %v2685
      %v2687 = vpop.f32.mrb[0].mxu0
      %v2688 = vpop.f32.mrb[0].mxu0
      %v2689 = vadd.f32 0.0, %v2688
      %v2690 = vpop.f32.mrb[0].mxu0
      %2691 = vmatprep.mubr.bf16.mxu0 %v2539
      %2692 = vmatmul.mubr.bf16.gmra.mrb[0].mxu0 %v2383
      %v2693 = vpop.f32.mrb[0].mxu0
      %v2694 = vadd.f32 0.0, %v2693
      %v2695 = vpop.f32.mrb[0].mxu0
      %v2696 = vpop.f32.mrb[0].mxu0
      %v2697 = vadd.f32 0.0, %v2696
      %v2698 = vpop.f32.mrb[0].mxu0
      %2699 = vmatprep.mubr.bf16.mxu0 %v2542
      %2700 = vmatmul.mubr.bf16.gmra.mrb[0].mxu0 %v2385
      %v2701 = vpop.f32.mrb[0].mxu0
      %v2702 = vadd.f32 0.0, %v2701
      %v2703 = vpop.f32.mrb[0].mxu0
      %v2704 = vpop.f32.mrb[0].mxu0
      %v2705 = vadd.f32 0.0, %v2704
      %v2706 = vpop.f32.mrb[0].mxu0
      %2707 = vdwg.mxu0
      %v2708 = vrot.slane %v673, 3
      %v2709 = vrot.slane %v678, 3
      %v2710 = vsel %vm1341, %v2708, %v2709
      %v2711 = vrot.slane %v683, 3
      %v2712 = vsel %vm1341, %v2709, %v2711
      %v2713 = vrot.slane %v688, 3
      %v2714 = vsel %vm1341, %v2711, %v2713
      %v2715 = vrot.slane %v693, 3
      %v2716 = vsel %vm1341, %v2713, %v2715
      %v2717 = vrot.slane %v698, 3
      %v2718 = vsel %vm1341, %v2715, %v2717
      %v2719 = vrot.slane %v703, 3
      %v2720 = vsel %vm1341, %v2717, %v2719
      %v2721 = vrot.slane %v708, 3
      %v2722 = vsel %vm1341, %v2719, %v2721
      %v2723 = vrot.slane %v713, 3
      %v2724 = vsel %vm1341, %v2721, %v2723
      %v2725 = vrot.slane %v718, 3
      %v2726 = vsel %vm1341, %v2723, %v2725
      %v2727 = vrot.slane %v723, 3
      %v2728 = vsel %vm1341, %v2725, %v2727
      %v2729 = vrot.slane %v728, 3
      %v2730 = vsel %vm1341, %v2727, %v2729
      %v2731 = vrot.slane %v733, 3
      %v2732 = vsel %vm1341, %v2729, %v2731
      %v2733 = vrot.slane %v738, 3
      %v2734 = vsel %vm1341, %v2731, %v2733
      %v2735 = vrot.slane %v743, 3
      %v2736 = vsel %vm1341, %v2733, %v2735
      %v2737 = vrot.slane %v748, 3
      %v2738 = vsel %vm1341, %v2735, %v2737
      %v2739 = vrot.slane %v753, 3
      %v2740 = vsel %vm1341, %v2737, %v2739
      %v2741 = vrot.slane %v758, 3
      %v2742 = vsel %vm1341, %v2739, %v2741
      %v2743 = vrot.slane %v763, 3
      %v2744 = vsel %vm1341, %v2741, %v2743
      %v2745 = vrot.slane %v768, 3
      %v2746 = vsel %vm1341, %v2743, %v2745
      %v2747 = vrot.slane %v773, 3
      %v2748 = vsel %vm1341, %v2745, %v2747
      %v2749 = vrot.slane %v778, 3
      %v2750 = vsel %vm1341, %v2747, %v2749
      %v2751 = vrot.slane %v783, 3
      %v2752 = vsel %vm1341, %v2749, %v2751
      %v2753 = vrot.slane %v788, 3
      %v2754 = vsel %vm1341, %v2751, %v2753
      %v2755 = vrot.slane %v793, 3
      %v2756 = vsel %vm1341, %v2753, %v2755
      %v2757 = vrot.slane %v798, 3
      %v2758 = vsel %vm1341, %v2755, %v2757
      %v2759 = vrot.slane %v803, 3
      %v2760 = vsel %vm1341, %v2757, %v2759
      %v2761 = vrot.slane %v808, 3
      %v2762 = vsel %vm1341, %v2759, %v2761
      %v2763 = vrot.slane %v813, 3
      %v2764 = vsel %vm1341, %v2761, %v2763
      %v2765 = vrot.slane %v818, 3
      %v2766 = vsel %vm1341, %v2763, %v2765
      %v2767 = vrot.slane %v823, 3
      %v2768 = vsel %vm1341, %v2765, %v2767
      %v2769 = vrot.slane %v828, 3
      %v2770 = vsel %vm1341, %v2767, %v2769
      %v2771 = vrot.slane %v833, 3
      %v2772 = vsel %vm1341, %v2769, %v2771
      %v2805 = vmul.f32 %v2582, %v2710
      %v2806 = vmul.f32 %v2585, %v2712
      %v2807 = vmul.f32 %v2590, %v2714
      %v2808 = vmul.f32 %v2593, %v2716
      %v2809 = vmul.f32 %v2598, %v2718
      %v2810 = vmul.f32 %v2601, %v2720
      %v2811 = vmul.f32 %v2606, %v2722
      %v2812 = vmul.f32 %v2609, %v2724
      %v2813 = vmul.f32 %v2614, %v2726
      %v2814 = vmul.f32 %v2617, %v2728
      %v2815 = vmul.f32 %v2622, %v2730
      %v2816 = vmul.f32 %v2625, %v2732
      %v2817 = vmul.f32 %v2630, %v2734
      %v2818 = vmul.f32 %v2633, %v2736
      %v2819 = vmul.f32 %v2638, %v2738
      %v2820 = vmul.f32 %v2641, %v2740
      %v2821 = vmul.f32 %v2646, %v2742
      %v2822 = vmul.f32 %v2649, %v2744
      %v2823 = vmul.f32 %v2654, %v2746
      %v2824 = vmul.f32 %v2657, %v2748
      %v2825 = vmul.f32 %v2662, %v2750
      %v2826 = vmul.f32 %v2665, %v2752
      %v2827 = vmul.f32 %v2670, %v2754
      %v2828 = vmul.f32 %v2673, %v2756
      %v2829 = vmul.f32 %v2678, %v2758
      %v2830 = vmul.f32 %v2681, %v2760
      %v2831 = vmul.f32 %v2686, %v2762
      %v2832 = vmul.f32 %v2689, %v2764
      %v2833 = vmul.f32 %v2694, %v2766
      %v2834 = vmul.f32 %v2697, %v2768
      %v2835 = vmul.f32 %v2702, %v2770
      %v2836 = vmul.f32 %v2705, %v2772
      %2837 = vst.msk [vmem:[%s201] sm:$0xff] %vm2091, %v2805
      %2838 = vst.msk [vmem:[%s201 + $0x8] sm:$0xff] %vm2091, %v2806
      %2839 = vst.msk [vmem:[%s201 + $0x10] sm:$0xff] %vm2091, %v2807
      %2840 = vst.msk [vmem:[%s201 + $0x18] sm:$0xff] %vm2091, %v2808
      %2841 = vst.msk [vmem:[%s201 + $0x20] sm:$0xff] %vm2091, %v2809
      %2842 = vst.msk [vmem:[%s201 + $0x28] sm:$0xff] %vm2091, %v2810
      %2843 = vst.msk [vmem:[%s201 + $0x30] sm:$0xff] %vm2091, %v2811
      %2844 = vst.msk [vmem:[%s201 + $0x38] sm:$0xff] %vm2091, %v2812
      %2845 = vst.msk [vmem:[%s201 + $0x40] sm:$0xff] %vm2091, %v2813
      %2846 = vst.msk [vmem:[%s201 + $0x48] sm:$0xff] %vm2091, %v2814
      %2847 = vst.msk [vmem:[%s201 + $0x50] sm:$0xff] %vm2091, %v2815
      %2848 = vst.msk [vmem:[%s201 + $0x58] sm:$0xff] %vm2091, %v2816
      %2849 = vst.msk [vmem:[%s201 + $0x60] sm:$0xff] %vm2091, %v2817
      %2850 = vst.msk [vmem:[%s201 + $0x68] sm:$0xff] %vm2091, %v2818
      %2851 = vst.msk [vmem:[%s201 + $0x70] sm:$0xff] %vm2091, %v2819
      %2852 = vst.msk [vmem:[%s201 + $0x78] sm:$0xff] %vm2091, %v2820
      %2853 = vst.msk [vmem:[%s201 + $0x80] sm:$0xff] %vm2091, %v2821
      %2854 = vst.msk [vmem:[%s201 + $0x88] sm:$0xff] %vm2091, %v2822
      %2855 = vst.msk [vmem:[%s201 + $0x90] sm:$0xff] %vm2091, %v2823
      %2856 = vst.msk [vmem:[%s201 + $0x98] sm:$0xff] %vm2091, %v2824
      %2857 = vst.msk [vmem:[%s201 + $0xa0] sm:$0xff] %vm2091, %v2825
      %2858 = vst.msk [vmem:[%s201 + $0xa8] sm:$0xff] %vm2091, %v2826
      %2859 = vst.msk [vmem:[%s201 + $0xb0] sm:$0xff] %vm2091, %v2827
      %2860 = vst.msk [vmem:[%s201 + $0xb8] sm:$0xff] %vm2091, %v2828
      %2861 = vst.msk [vmem:[%s201 + $0xc0] sm:$0xff] %vm2091, %v2829
      %2862 = vst.msk [vmem:[%s201 + $0xc8] sm:$0xff] %vm2091, %v2830
      %2863 = vst.msk [vmem:[%s201 + $0xd0] sm:$0xff] %vm2091, %v2831
      %2864 = vst.msk [vmem:[%s201 + $0xd8] sm:$0xff] %vm2091, %v2832
      %2865 = vst.msk [vmem:[%s201 + $0xe0] sm:$0xff] %vm2091, %v2833
      %2866 = vst.msk [vmem:[%s201 + $0xe8] sm:$0xff] %vm2091, %v2834
      %2867 = vst.msk [vmem:[%s201 + $0xf0] sm:$0xff] %vm2091, %v2835
      %2868 = vst.msk [vmem:[%s201 + $0xf8] sm:$0xff] %vm2091, %v2836
      %p2869 = scmp.eq.s32.totalorder %s19, 0
      // Predicated region
      $region107: #{a_call__.8} parent=31 // pred_check
        %p2870 = pneg %p2869
      $region108: #{a_call__.8} parent=31 // pred_check_branch
        %2872 = sbr.rel (%p2870) target = $region110
      $region109: #{a_call__.8} parent=31 // pred_region
        %vm2873 = vcmask 188416
        %2874 = vst.msk [vmem:[%s6] sm:$0x1] %vm2873, 0.0
        %2875 = vst.msk [vmem:[%s7] sm:$0x1] %vm2873, 0.0
      $region110: #{a_call__.8} parent=31 // pred_fallthru
        _
      %v2876 = vld [vmem:[%s6] sm:$0x1]
      %v2877 = vsel %vm2091, %v2805, 0.0
      %v2878 = vsel %vm2091, %v2806, 0.0
      %v2879 = vadd.f32 %v2877, %v2878
      %v2880 = vsel %vm2091, %v2807, 0.0
      %v2881 = vadd.f32 %v2879, %v2880
      %v2882 = vsel %vm2091, %v2808, 0.0
      %v2883 = vadd.f32 %v2881, %v2882
      %v2884 = vsel %vm2091, %v2809, 0.0
      %v2885 = vadd.f32 %v2883, %v2884
      %v2886 = vsel %vm2091, %v2810, 0.0
      %v2887 = vadd.f32 %v2885, %v2886
      %v2888 = vsel %vm2091, %v2811, 0.0
      %v2889 = vadd.f32 %v2887, %v2888
      %v2890 = vsel %vm2091, %v2812, 0.0
      %v2891 = vadd.f32 %v2889, %v2890
      %v2892 = vsel %vm2091, %v2813, 0.0
      %v2893 = vadd.f32 %v2891, %v2892
      %v2894 = vsel %vm2091, %v2814, 0.0
      %v2895 = vadd.f32 %v2893, %v2894
      %v2896 = vsel %vm2091, %v2815, 0.0
      %v2897 = vadd.f32 %v2895, %v2896
      %v2898 = vsel %vm2091, %v2816, 0.0
      %v2899 = vadd.f32 %v2897, %v2898
      %v2900 = vsel %vm2091, %v2817, 0.0
      %v2901 = vadd.f32 %v2899, %v2900
      %v2902 = vsel %vm2091, %v2818, 0.0
      %v2903 = vadd.f32 %v2901, %v2902
      %v2904 = vsel %vm2091, %v2819, 0.0
      %v2905 = vadd.f32 %v2903, %v2904
      %v2906 = vsel %vm2091, %v2820, 0.0
      %v2907 = vadd.f32 %v2905, %v2906
      %v2908 = vsel %vm2091, %v2821, 0.0
      %v2909 = vadd.f32 %v2907, %v2908
      %v2910 = vsel %vm2091, %v2822, 0.0
      %v2911 = vadd.f32 %v2909, %v2910
      %v2912 = vsel %vm2091, %v2823, 0.0
      %v2913 = vadd.f32 %v2911, %v2912
      %v2914 = vsel %vm2091, %v2824, 0.0
      %v2915 = vadd.f32 %v2913, %v2914
      %v2916 = vsel %vm2091, %v2825, 0.0
      %v2917 = vadd.f32 %v2915, %v2916
      %v2918 = vsel %vm2091, %v2826, 0.0
      %v2919 = vadd.f32 %v2917, %v2918
      %v2920 = vsel %vm2091, %v2827, 0.0
      %v2921 = vadd.f32 %v2919, %v2920
      %v2922 = vsel %vm2091, %v2828, 0.0
      %v2923 = vadd.f32 %v2921, %v2922
      %v2924 = vsel %vm2091, %v2829, 0.0
      %v2925 = vadd.f32 %v2923, %v2924
      %v2926 = vsel %vm2091, %v2830, 0.0
      %v2927 = vadd.f32 %v2925, %v2926
      %v2928 = vsel %vm2091, %v2831, 0.0
      %v2929 = vadd.f32 %v2927, %v2928
      %v2930 = vsel %vm2091, %v2832, 0.0
      %v2931 = vadd.f32 %v2929, %v2930
      %v2932 = vsel %vm2091, %v2833, 0.0
      %v2933 = vadd.f32 %v2931, %v2932
      %v2934 = vsel %vm2091, %v2834, 0.0
      %v2935 = vadd.f32 %v2933, %v2934
      %v2936 = vsel %vm2091, %v2835, 0.0
      %v2937 = vadd.f32 %v2935, %v2936
      %v2938 = vsel %vm2091, %v2836, 0.0
      %v2939 = vadd.f32 %v2937, %v2938
      %v2940 = vrot.slane %v2939, 4
      %v2941 = vadd.f32 %v2939, %v2940
      %v2942 = vrot.slane %v2941, 2
      %v2943 = vadd.f32 %v2941, %v2942
      %v2944 = vrot.slane %v2943, 1
      %v2945 = vadd.f32 %v2943, %v2944
      %v2946 = vadd.f32 %v2876, %v2945
      %vm2947 = vcmask 188416
      %2948 = vst.msk [vmem:[%s6] sm:$0x1] %vm2947, %v2946
      %v2949 = vld [vmem:[%s7] sm:$0x1]
      %v2950 = vmul.f32 %v2805, %v2805
      %v2951 = vmul.f32 %v2806, %v2806
      %v2952 = vmul.f32 %v2807, %v2807
      %v2953 = vmul.f32 %v2808, %v2808
      %v2954 = vmul.f32 %v2809, %v2809
      %v2955 = vmul.f32 %v2810, %v2810
      %v2956 = vmul.f32 %v2811, %v2811
      %v2957 = vmul.f32 %v2812, %v2812
      %v2958 = vmul.f32 %v2813, %v2813
      %v2959 = vmul.f32 %v2814, %v2814
      %v2960 = vmul.f32 %v2815, %v2815
      %v2961 = vmul.f32 %v2816, %v2816
      %v2962 = vmul.f32 %v2817, %v2817
      %v2963 = vmul.f32 %v2818, %v2818
      %v2964 = vmul.f32 %v2819, %v2819
      %v2965 = vmul.f32 %v2820, %v2820
      %v2966 = vmul.f32 %v2821, %v2821
      %v2967 = vmul.f32 %v2822, %v2822
      %v2968 = vmul.f32 %v2823, %v2823
      %v2969 = vmul.f32 %v2824, %v2824
      %v2970 = vmul.f32 %v2825, %v2825
      %v2971 = vmul.f32 %v2826, %v2826
      %v2972 = vmul.f32 %v2827, %v2827
      %v2973 = vmul.f32 %v2828, %v2828
      %v2974 = vmul.f32 %v2829, %v2829
      %v2975 = vmul.f32 %v2830, %v2830
      %v2976 = vmul.f32 %v2831, %v2831
      %v2977 = vmul.f32 %v2832, %v2832
      %v2978 = vmul.f32 %v2833, %v2833
      %v2979 = vmul.f32 %v2834, %v2834
      %v2980 = vmul.f32 %v2835, %v2835
      %v2981 = vmul.f32 %v2836, %v2836
      %v2982 = vsel %vm2091, %v2950, 0.0
      %v2983 = vsel %vm2091, %v2951, 0.0
      %v2984 = vadd.f32 %v2982, %v2983
      %v2985 = vsel %vm2091, %v2952, 0.0
      %v2986 = vadd.f32 %v2984, %v2985
      %v2987 = vsel %vm2091, %v2953, 0.0
      %v2988 = vadd.f32 %v2986, %v2987
      %v2989 = vsel %vm2091, %v2954, 0.0
      %v2990 = vadd.f32 %v2988, %v2989
      %v2991 = vsel %vm2091, %v2955, 0.0
      %v2992 = vadd.f32 %v2990, %v2991
      %v2993 = vsel %vm2091, %v2956, 0.0
      %v2994 = vadd.f32 %v2992, %v2993
      %v2995 = vsel %vm2091, %v2957, 0.0
      %v2996 = vadd.f32 %v2994, %v2995
      %v2997 = vsel %vm2091, %v2958, 0.0
      %v2998 = vadd.f32 %v2996, %v2997
      %v2999 = vsel %vm2091, %v2959, 0.0
      %v3000 = vadd.f32 %v2998, %v2999
      %v3001 = vsel %vm2091, %v2960, 0.0
      %v3002 = vadd.f32 %v3000, %v3001
      %v3003 = vsel %vm2091, %v2961, 0.0
      %v3004 = vadd.f32 %v3002, %v3003
      %v3005 = vsel %vm2091, %v2962, 0.0
      %v3006 = vadd.f32 %v3004, %v3005
      %v3007 = vsel %vm2091, %v2963, 0.0
      %v3008 = vadd.f32 %v3006, %v3007
      %v3009 = vsel %vm2091, %v2964, 0.0
      %v3010 = vadd.f32 %v3008, %v3009
      %v3011 = vsel %vm2091, %v2965, 0.0
      %v3012 = vadd.f32 %v3010, %v3011
      %v3013 = vsel %vm2091, %v2966, 0.0
      %v3014 = vadd.f32 %v3012, %v3013
      %v3015 = vsel %vm2091, %v2967, 0.0
      %v3016 = vadd.f32 %v3014, %v3015
      %v3017 = vsel %vm2091, %v2968, 0.0
      %v3018 = vadd.f32 %v3016, %v3017
      %v3019 = vsel %vm2091, %v2969, 0.0
      %v3020 = vadd.f32 %v3018, %v3019
      %v3021 = vsel %vm2091, %v2970, 0.0
      %v3022 = vadd.f32 %v3020, %v3021
      %v3023 = vsel %vm2091, %v2971, 0.0
      %v3024 = vadd.f32 %v3022, %v3023
      %v3025 = vsel %vm2091, %v2972, 0.0
      %v3026 = vadd.f32 %v3024, %v3025
      %v3027 = vsel %vm2091, %v2973, 0.0
      %v3028 = vadd.f32 %v3026, %v3027
      %v3029 = vsel %vm2091, %v2974, 0.0
      %v3030 = vadd.f32 %v3028, %v3029
      %v3031 = vsel %vm2091, %v2975, 0.0
      %v3032 = vadd.f32 %v3030, %v3031
      %v3033 = vsel %vm2091, %v2976, 0.0
      %v3034 = vadd.f32 %v3032, %v3033
      %v3035 = vsel %vm2091, %v2977, 0.0
      %v3036 = vadd.f32 %v3034, %v3035
      %v3037 = vsel %vm2091, %v2978, 0.0
      %v3038 = vadd.f32 %v3036, %v3037
      %v3039 = vsel %vm2091, %v2979, 0.0
      %v3040 = vadd.f32 %v3038, %v3039
      %v3041 = vsel %vm2091, %v2980, 0.0
      %v3042 = vadd.f32 %v3040, %v3041
      %v3043 = vsel %vm2091, %v2981, 0.0
      %v3044 = vadd.f32 %v3042, %v3043
      %v3045 = vrot.slane %v3044, 4
      %v3046 = vadd.f32 %v3044, %v3045
      %v3047 = vrot.slane %v3046, 2
      %v3048 = vadd.f32 %v3046, %v3047
      %v3049 = vrot.slane %v3048, 1
      %v3050 = vadd.f32 %v3048, %v3049
      %v3051 = vadd.f32 %v2949, %v3050
      %3052 = vst.msk [vmem:[%s7] sm:$0x1] %vm2947, %v3051
      %s3053 = smul.u32 32, %s19
      %p3054 = scmp.lt.s32.totalorder %s3053, 95
      %s3055 = scalar_select %p3054, %s3053, 95
      %s3056 = smul.addr %s3055, 8
      %s3057 = scalar_lea.vmem %s5, %s3056
      // Predicated region
      $region111: #{a_call__.8} parent=31 // pred_check
        %p3058 = pneg %p100
      $region112: #{a_call__.8} parent=31 // pred_check_branch
        %3060 = sbr.rel (%p3058) target = $region114
      $region113: #{a_call__.8} parent=31 // pred_region
        %s3061 = smul.u32 32, %s19
      $region114: #{a_call__.8} parent=31 // pred_fallthru
        _
      // Predicated region
      $region115: #{a_call__.8} parent=31 // pred_check
        %p3062 = pneg %p121
      $region116: #{a_call__.8} parent=31 // pred_check_branch
        %3064 = sbr.rel (%p3062) target = $region118
      $region117: #{a_call__.8} parent=31 // pred_region
        _
      $region118: #{a_call__.8} parent=31 // pred_fallthru
        _
      // Predicated region
      $region119: #{a_call__.8} parent=31 // pred_check
        %p3065 = pneg %p142
      $region120: #{a_call__.8} parent=31 // pred_check_branch
        %3067 = sbr.rel (%p3065) target = $region122
      $region121: #{a_call__.8} parent=31 // pred_region
        _
      $region122: #{a_call__.8} parent=31 // pred_fallthru
        _
      // Predicated region
      $region123: #{a_call__.8} parent=31 // pred_check
        %p3068 = pneg %p121
      $region124: #{a_call__.8} parent=31 // pred_check_branch
        %3070 = sbr.rel (%p3068) target = $region126
      $region125: #{a_call__.8} parent=31 // pred_region
        _
      $region126: #{a_call__.8} parent=31 // pred_fallthru
        _
      // Predicated region
      $region127: #{a_call__.8} parent=31 // pred_check
        %p3071 = pneg %p142
      $region128: #{a_call__.8} parent=31 // pred_check_branch
        %3073 = sbr.rel (%p3071) target = $region130
      $region129: #{a_call__.8} parent=31 // pred_region
        _
      $region130: #{a_call__.8} parent=31 // pred_fallthru
        _
    $region32: #{a_call__.8} parent=5 // pred_fallthru
      _
    %p3074 = scmp.le.s32.totalorder 2, %s14
    // Predicated region
    $region131: #{a_call__.8} parent=5 // pred_check
      %p3075 = pneg %p3074
    $region132: #{a_call__.8} parent=5 // pred_check_branch
      %3077 = sbr.rel (%p3075) target = $region134
    $region133: #{a_call__.8} parent=5 // pred_region
      %s3078 = ssub.s32 %s14, 2
      // Predicated region
      $region135: #{a_call__.8} parent=133 // pred_check
        %p3079 = pneg %p106
      $region136: #{a_call__.8} parent=133 // pred_check_branch
        %3081 = sbr.rel (%p3079) target = $region138
      $region137: #{a_call__.8} parent=133 // pred_region
        %s3082 = smul.u32 32, %s20
        %p3083 = scmp.lt.s32.totalorder %s3082, 95
        %s3084 = scalar_select %p3083, %s3082, 95
        %s3085 = smul.addr %s3084, 8
        %s3086 = scalar_lea.vmem %s5, %s3085
      $region138: #{a_call__.8} parent=133 // pred_fallthru
        _
    $region134: #{a_call__.8} parent=5 // pred_fallthru
      _
  $region6: #{a_call__.8} parent=0 // loop_footer
    %s18 = sadd.s32 1, %s14
  $region7: #{a_call__.8} parent=0 // loop_footer_branch
    %13 = sbr.rel target = $region3
  $region8: #{a_call__.8} parent=0 // loop_exit
    _
  %3087 = vsyncmov [#allocation4]
  %s3088 = vpop.sfrf %3087
  %p3089 = scmp.eq.s32.totalorder %s3088, 0
  %p3090 = pneg %p3089
  %3092 = shalt.err (%p3090)
  %s3093 = scalar_lea.sflag [#allocation4], 1
  %3094 = vsyncmov %s3093
  %s3095 = vpop.sfrf %3094
  %p3096 = scmp.eq.s32.totalorder %s3095, 0
  %p3097 = pneg %p3096
  %3099 = shalt.err (%p3097)

</llo_original>
